<compile_context>
chip_gen: v5e
topology: v5e:2x2
jax: 0.10.0
libtpu: 0.0.40
codegen_flags: <defaults>
</compile_context>

<pallas_src>
import math

import jax
import jax.numpy as jnp
import numpy as np
from jax.experimental import pallas as pl
from jax.experimental.pallas import tpu as pltpu

LN_EPS = 1e-5
KV_ROW_ALIGN = 16  # bf16 sublane tile -> every kv_scratch store is full-tile


def _round_up(x, m):
    return ((x + m - 1) // m) * m


# ------------------------------- Pallas kernel --------------------------------


def make_attention_kernel(num_kvs, kv_offsets, kv_lens_pad, L_pad, block_b,
                          q_len, num_heads, head_dim, hidden_dim):
    """Fused MultiKVCrossAttention kernel (block_b batch elements per grid step).

    Ref order:
      q (Bb,Q,q_dim), vl_0..vl_{n-1} (Bb,Lp_i,kv_dim_i), mask (Bb,Q,L_pad),
      w_q (q_dim,H) bf16, b_q (1,H) f32,
      w_kv_0..w_kv_{n-1} (kv_dim_i,2H) bf16, b_kv_0..b_kv_{n-1} (1,2H) f32,
      w_o (H,q_dim_pad) bf16,
      out_ref (Bb,Q,q_dim_pad) f32,
      kv_scratch VMEM (Bb,L_pad,2H) bf16
    """
    H = hidden_dim
    nh, hd = num_heads, head_dim
    Bb, Q = block_b, q_len

    def rawnorm(x):
        # LayerNorm without affine (gamma/beta folded into the weights).
        mu = jnp.mean(x, axis=-1, keepdims=True)
        xc = x - mu
        var = jnp.mean(xc * xc, axis=-1, keepdims=True)
        return xc * jax.lax.rsqrt(var + LN_EPS)

    def kernel(*refs):
        idx = 0
        q_ref = refs[idx]; idx += 1
        vl_refs = refs[idx: idx + num_kvs]; idx += num_kvs
        mask_ref = refs[idx]; idx += 1
        w_q = refs[idx]; idx += 1
        b_q = refs[idx]; idx += 1
        w_kv = refs[idx: idx + num_kvs]; idx += num_kvs
        b_kv = refs[idx: idx + num_kvs]; idx += num_kvs
        w_o = refs[idx]; idx += 1
        out_ref = refs[idx]; idx += 1
        kv_scratch = refs[idx]

        # ---- q projection on flattened (Bb*Q) rows: LN (affine folded) + Linear ----
        q2 = q_ref[...].reshape(Bb * Q, -1)                            # (Bb*Q, q_dim)
        q_hat = rawnorm(q2)
        q_states = (
            jnp.dot(q_hat.astype(jnp.bfloat16), w_q[...],
                    preferred_element_type=jnp.float32)
            + b_q[...]
        )                                                              # (Bb*Q, H) f32

        # ---- fused k|v projections, staged tile-aligned into bf16 scratch ----
        for i in range(num_kvs):
            Lp = kv_lens_pad[i]
            off = kv_offsets[i]
            vl = vl_refs[i][...].reshape(Bb * Lp, -1)                  # (Bb*Lp, kvd_i)
            vl_hat = rawnorm(vl)
            kv_i = (
                jnp.dot(vl_hat.astype(jnp.bfloat16), w_kv[i][...],
                        preferred_element_type=jnp.float32)
                + b_kv[i][...]
            )                                                          # (Bb*Lp, 2H) f32
            kv_scratch[:, off:off + Lp, :] = (
                kv_i.astype(jnp.bfloat16).reshape(Bb, Lp, 2 * H))

        kv_all = kv_scratch[...]                                       # (Bb, L_pad, 2H) bf16
        k_all = kv_all[:, :, :H]
        v_all = kv_all[:, :, H:]

        # ---- multi-head SDPA, batched over (Bb*nh); cast bf16 BEFORE relayout ----
        q_r = (q_states.astype(jnp.bfloat16)
               .reshape(Bb, Q, nh, hd).transpose(0, 2, 1, 3)
               .reshape(Bb * nh, Q, hd))
        k_r = (k_all.reshape(Bb, L_pad, nh, hd).transpose(0, 2, 1, 3)
               .reshape(Bb * nh, L_pad, hd))
        v_r = (v_all.reshape(Bb, L_pad, nh, hd).transpose(0, 2, 1, 3)
               .reshape(Bb * nh, L_pad, hd))

        scale = 1.0 / math.sqrt(hd)
        s = jnp.einsum("bqd,bkd->bqk", q_r, k_r,
                       preferred_element_type=jnp.float32) * scale     # (Bb*nh, Q, L)
        s = s.reshape(Bb, nh, Q, L_pad) + mask_ref[...][:, None, :, :]
        s = s.reshape(Bb * nh, Q, L_pad)
        s = s - jnp.max(s, axis=-1, keepdims=True)
        p = jnp.exp(s)
        p = p * pl.reciprocal(jnp.sum(p, axis=-1, keepdims=True), approx=True)

        attn = jnp.einsum("bqk,bkd->bqd", p.astype(jnp.bfloat16), v_r,
                          preferred_element_type=jnp.float32)          # (Bb*nh, Q, hd)
        attn = (attn.reshape(Bb, nh, Q, hd).transpose(0, 2, 1, 3)
                .reshape(Bb * Q, H))

        # ---- o_proj (output columns zero-padded to a 128-lane-dense slab) ----
        out = jnp.dot(attn.astype(jnp.bfloat16), w_o[...],
                      preferred_element_type=jnp.float32)              # (Bb*Q, q_dim_pad)
        out_ref[...] = out.reshape(Bb, Q, -1).astype(out_ref.dtype)

    return kernel


# --------------------------------- wrapper -------------------------------------


def prepare_params(params, q_dim_pad):
    """Fold LN affines into projection weights, fuse k|v weights, pad o_proj."""
    H = params["w_q"].shape[1]
    w_q_f = (params["q_ln_g"][:, None] * params["w_q"]).astype(jnp.bfloat16)
    b_q = (params["q_ln_b"] @ params["w_q"]).reshape(1, H).astype(jnp.float32)

    w_kv_list, b_kv_list = [], []
    for kv in params["kv"]:
        wk = kv["k_ln_g"][:, None] * kv["w_k"]
        wv = kv["v_ln_g"][:, None] * kv["w_v"]
        bk = kv["k_ln_b"] @ kv["w_k"]
        bv = kv["v_ln_b"] @ kv["w_v"]
        w_kv_list.append(jnp.concatenate([wk, wv], axis=1).astype(jnp.bfloat16))
        b_kv_list.append(jnp.concatenate([bk, bv]).reshape(1, 2 * H).astype(jnp.float32))

    q_dim = params["w_o"].shape[1]
    w_o_p = jnp.zeros((H, q_dim_pad), jnp.float32).at[:, :q_dim].set(params["w_o"])
    return w_q_f, b_q, w_kv_list, b_kv_list, w_o_p.astype(jnp.bfloat16)


def _choose_block_b(B, per_batch_bytes, vmem_budget_bytes):
    """Largest divisor of B keeping >=2 grid steps (v7x: 2 TCs) within VMEM budget."""
    best = 1
    for d in range(1, B + 1):
        if B % d:
            continue
        if B >= 2 and (B // d) < 2:
            continue
        if 2 * d * per_batch_bytes > vmem_budget_bytes:   # 2x: double-buffered inputs
            continue
        best = max(best, d)
    return best


def multi_kv_cross_attention(params, queries, vision_latents_list,
                             attention_mask_list, num_heads):
    B, Q, q_dim = queries.shape
    H = params["w_q"].shape[1]
    head_dim = H // num_heads
    num_kvs = len(vision_latents_list)

    L_list = [int(v.shape[1]) for v in vision_latents_list]
    kv_dims = [int(v.shape[2]) for v in vision_latents_list]
    L_total = sum(L_list)
    L_pad_list = [_round_up(L, KV_ROW_ALIGN) for L in L_list]
    L_pad = sum(L_pad_list)
    q_dim_pad = _round_up(q_dim, 128)

    kv_offsets = [0]
    for Lp in L_pad_list:
        kv_offsets.append(kv_offsets[-1] + Lp)

    # Mask shape check (torch does the same on the concatenated mask).
    mask_cat = jnp.concatenate(attention_mask_list, axis=-1)
    if mask_cat.shape != (B, 1, Q, L_total):
        raise ValueError(
            f"Attention mask should be of size {(B, 1, Q, L_total)}, got {mask_cat.shape}")

    # Pad every KV source to the 16-row sublane tile: zero latent rows, -1e30 mask.
    vl_padded, mask_segs = [], []
    for i, vl in enumerate(vision_latents_list):
        L, Lp = L_list[i], L_pad_list[i]
        vlp = vl.astype(jnp.float32)
        if Lp > L:
            vlp = jnp.pad(vlp, ((0, 0), (0, Lp - L), (0, 0)))
        vl_padded.append(vlp)
        m = attention_mask_list[i].astype(jnp.float32)
        if Lp > L:
            m = jnp.pad(m, ((0, 0), (0, 0), (0, 0), (0, Lp - L)),
                        constant_values=-1e30)
        mask_segs.append(m)
    mask_p = jnp.concatenate(mask_segs, axis=-1).reshape(B, Q, L_pad)

    w_q_f, b_q, w_kv_list, b_kv_list, w_o_p = prepare_params(params, q_dim_pad)

    # --- batch-tile sizing against a conservative VMEM budget -------------------
    per_batch_in_bytes = 4 * (Q * q_dim
                              + sum(Lp * kd for Lp, kd in zip(L_pad_list, kv_dims))
                              + Q * L_pad
                              + Q * q_dim_pad) + 2 * L_pad * 2 * H  # + bf16 scratch rows
    weight_bytes = (2 * q_dim * H + 4 * H
                    + sum(2 * kd * 2 * H + 4 * 2 * H for kd in kv_dims)
                    + 2 * H * q_dim_pad)
    block_b = _choose_block_b(B, per_batch_in_bytes, 20 * 1024 * 1024)
    grid_b = B // block_b
    vmem_est = 2 * block_b * per_batch_in_bytes + 2 * weight_bytes + (4 << 20)
    vmem_limit = int(min(64 << 20, max(vmem_est, 32 << 20)))

    args, in_specs = [], []

    def add_batched(x):
        args.append(x)
        nd = x.ndim
        in_specs.append(pl.BlockSpec((block_b,) + tuple(x.shape[1:]),
                                     lambda b, _nd=nd: (b,) + (0,) * (_nd - 1)))

    def add_full(x):
        args.append(x)
        nd = x.ndim
        in_specs.append(pl.BlockSpec(tuple(x.shape), lambda b, _nd=nd: (0,) * _nd))

    add_batched(queries.astype(jnp.float32))
    for vl in vl_padded:
        add_batched(vl)
    add_batched(mask_p)
    add_full(w_q_f)
    add_full(b_q)
    for w in w_kv_list:
        add_full(w)
    for b in b_kv_list:
        add_full(b)
    add_full(w_o_p)

    kernel = make_attention_kernel(num_kvs, tuple(kv_offsets), tuple(L_pad_list),
                                   L_pad, block_b, Q, num_heads, head_dim, H)

    out_padded = pl.pallas_call(
        kernel,
        out_shape=jax.ShapeDtypeStruct((B, Q, q_dim_pad), jnp.float32),
        grid_spec=pltpu.PrefetchScalarGridSpec(
            num_scalar_prefetch=0,
            grid=(grid_b,),
            in_specs=in_specs,
            out_specs=pl.BlockSpec((block_b, Q, q_dim_pad), lambda b: (b, 0, 0)),
            scratch_shapes=[pltpu.VMEM((block_b, L_pad, 2 * H), jnp.bfloat16)],
        ),
        compiler_params=pltpu.CompilerParams(
            dimension_semantics=("parallel",),
            vmem_limit_bytes=vmem_limit),
    )(*args)

    return out_padded[:, :, :q_dim]


# ----------------------------- parameter init ----------------------------------


def init_params(key, q_dim, kv_dim_list, hidden_dim):
    keys = iter(jax.random.split(key, 64))

    def lin(din, dout):
        return jax.random.normal(next(keys), (din, dout), jnp.float32) * 0.02

    def ln_pair(dim):  # non-trivial gamma/beta so the LN-folding path is exercised
        g = 1.0 + 0.1 * jax.random.normal(next(keys), (dim,), jnp.float32)
        b = 0.1 * jax.random.normal(next(keys), (dim,), jnp.float32)
        return g, b

    q_g, q_b = ln_pair(q_dim)
    p = {
        "q_ln_g": q_g, "q_ln_b": q_b,
        "w_q": lin(q_dim, hidden_dim),
        "kv": [],
        "w_o": lin(hidden_dim, q_dim),
    }
    for kv_dim in kv_dim_list:
        kg, kb = ln_pair(kv_dim)
        vg, vb = ln_pair(kv_dim)
        p["kv"].append(dict(k_ln_g=kg, k_ln_b=kb, w_k=lin(kv_dim, hidden_dim),
                            v_ln_g=vg, v_ln_b=vb, w_v=lin(kv_dim, hidden_dim)))
    return p


# ----------------------------- pure-JAX reference -------------------------------


def _ref_forward(p, queries, vls, masks, num_heads):
    def ln(x, g, b):
        mu = x.mean(-1, keepdims=True)
        var = ((x - mu) ** 2).mean(-1, keepdims=True)
        return (x - mu) / jnp.sqrt(var + LN_EPS) * g + b

    H = p["w_q"].shape[1]
    head_dim = H // num_heads
    q = ln(queries, p["q_ln_g"], p["q_ln_b"]) @ p["w_q"]                 # (B,Q,H)
    ks, vs = [], []
    for i, vl in enumerate(vls):
        kv = p["kv"][i]
        ks.append(ln(vl, kv["k_ln_g"], kv["k_ln_b"]) @ kv["w_k"])
        vs.append(ln(vl, kv["v_ln_g"], kv["v_ln_b"]) @ kv["w_v"])
    K = jnp.concatenate(ks, 1)
    V = jnp.concatenate(vs, 1)
    M = jnp.concatenate(masks, -1)                                       # (B,1,Q,L)
    B, Q, _ = q.shape
    L = K.shape[1]
    qh = q.reshape(B, Q, num_heads, head_dim).transpose(0, 2, 1, 3)
    kh = K.reshape(B, L, num_heads, head_dim).transpose(0, 2, 1, 3)
    vh = V.reshape(B, L, num_heads, head_dim).transpose(0, 2, 1, 3)
    s = jnp.einsum("bhqd,bhkd->bhqk", qh, kh) / math.sqrt(head_dim) + M
    a = jax.nn.softmax(s, -1)
    o = jnp.einsum("bhqk,bhkd->bhqd", a, vh).transpose(0, 2, 1, 3).reshape(B, Q, H)
    return o @ p["w_o"]


# ----------------------------------- main ---------------------------------------


if __name__ == "__main__":
    B, Q = 4, 8                    # B=4 -> block_b=2, grid=(2,) ("parallel")
    q_dim = 64
    kv_dim_list = [128, 64]
    kv_len_list = [16, 1]          # e.g. kv_size 4 -> 16 latents, plus a 1-token source
    hidden_dim = 128
    num_heads = 16

    key = jax.random.PRNGKey(0)
    k_q, k_vl, k_par = jax.random.split(key, 3)
    vk = jax.random.split(k_vl, len(kv_dim_list))

    queries = jax.random.normal(k_q, (B, Q, q_dim), jnp.float32)
    vision_latents_list, attention_mask_list = [], []
    for i, (kd, L) in enumerate(zip(kv_dim_list, kv_len_list)):
        vision_latents_list.append(jax.random.normal(vk[i], (B, L, kd), jnp.float32))
        m = jnp.zeros((B, 1, Q, L), jnp.float32)      # additive float mask (SDPA style)
        if L > 1:
            m = m.at[1, :, :, ::5].set(-1e9)          # mask a few positions in batch 1
        attention_mask_list.append(m)

    params = init_params(k_par, q_dim, kv_dim_list, hidden_dim)

    out = multi_kv_cross_attention(params, queries, vision_latents_list,
                                   attention_mask_list, num_heads)
    out = jax.block_until_ready(out)
    assert out.shape == (B, Q, q_dim) and out.dtype == jnp.float32

    # cross-check against a pure-JAX f32 reference of the same math
    ref = _ref_forward(params, queries, vision_latents_list,
                       attention_mask_list, num_heads)
    np.testing.assert_allclose(np.asarray(out), np.asarray(ref), atol=1e-2, rtol=1e-2)

    # TODO(synk): torch.cuda.empty_cache()/.contiguous() calls in the reference are
    # CUDA memory-management no-ops with no TPU equivalent.
    print("KERNEL_OK")
</pallas_src>

<mosaic_0001>
module attributes {stable_mosaic.version = 11 : i64} {
  func.func @kernel(%arg0: i32, %arg1: memref<2x8x64xf32, #tpu.memory_space<vmem>>, %arg2: memref<2x16x128xf32, #tpu.memory_space<vmem>>, %arg3: memref<2x16x64xf32, #tpu.memory_space<vmem>>, %arg4: memref<2x8x32xf32, #tpu.memory_space<vmem>>, %arg5: memref<64x128xbf16, #tpu.memory_space<vmem>>, %arg6: memref<1x128xf32, #tpu.memory_space<vmem>>, %arg7: memref<128x256xbf16, #tpu.memory_space<vmem>>, %arg8: memref<64x256xbf16, #tpu.memory_space<vmem>>, %arg9: memref<1x256xf32, #tpu.memory_space<vmem>>, %arg10: memref<1x256xf32, #tpu.memory_space<vmem>>, %arg11: memref<128x128xbf16, #tpu.memory_space<vmem>>, %arg12: memref<2x8x128xf32, #tpu.memory_space<vmem>>, %arg13: memref<2x32x256xbf16, #tpu.memory_space<vmem>>) attributes {dimension_semantics = [#tpu.dimension_semantics<parallel>], iteration_bounds = array<i64: 2>, scalar_prefetch = 0 : i64, scratch_operands = 1 : i64, tpu.core_type = #tpu.core_type<tc>, window_params = [{transform_indices = @transform_0, window_bounds = array<i64: 2, 8, 64>}, {transform_indices = @transform_1, window_bounds = array<i64: 2, 16, 128>}, {transform_indices = @transform_2, window_bounds = array<i64: 2, 16, 64>}, {transform_indices = @transform_3, window_bounds = array<i64: 2, 8, 32>}, {pipeline_mode = #tpu.pipeline_mode<synchronous>, transform_indices = @transform_4, window_bounds = array<i64: 64, 128>}, {pipeline_mode = #tpu.pipeline_mode<synchronous>, transform_indices = @transform_5, window_bounds = array<i64: 1, 128>}, {pipeline_mode = #tpu.pipeline_mode<synchronous>, transform_indices = @transform_6, window_bounds = array<i64: 128, 256>}, {pipeline_mode = #tpu.pipeline_mode<synchronous>, transform_indices = @transform_7, window_bounds = array<i64: 64, 256>}, {pipeline_mode = #tpu.pipeline_mode<synchronous>, transform_indices = @transform_8, window_bounds = array<i64: 1, 256>}, {pipeline_mode = #tpu.pipeline_mode<synchronous>, transform_indices = @transform_9, window_bounds = array<i64: 1, 256>}, {pipeline_mode = #tpu.pipeline_mode<synchronous>, transform_indices = @transform_10, window_bounds = array<i64: 128, 128>}, {transform_indices = @transform_11, window_bounds = array<i64: 2, 8, 128>}]} {
    %c0 = arith.constant 0 : index
    %c0_0 = arith.constant 0 : index
    %c0_1 = arith.constant 0 : index
    %0 = vector.load %arg1[%c0, %c0_0, %c0_1] : memref<2x8x64xf32, #tpu.memory_space<vmem>>, vector<2x8x64xf32>
    %1 = vector.shape_cast %0 : vector<2x8x64xf32> to vector<16x64xf32>
    %cst = arith.constant dense<0.000000e+00> : vector<16xf32>
    %2 = vector.multi_reduction <add>, %1, %cst [1] : vector<16x64xf32> to vector<16xf32>
    %3 = vector.shape_cast %2 : vector<16xf32> to vector<16x1xf32>
    %cst_2 = arith.constant 6.400000e+01 : f32
    %4 = vector.broadcast %cst_2 : f32 to vector<16x1xf32>
    %5 = arith.divf %3, %4 : vector<16x1xf32>
    %6 = vector.broadcast %5 : vector<16x1xf32> to vector<16x64xf32>
    %7 = arith.subf %1, %6 : vector<16x64xf32>
    %8 = arith.mulf %7, %7 : vector<16x64xf32>
    %cst_3 = arith.constant dense<0.000000e+00> : vector<16xf32>
    %9 = vector.multi_reduction <add>, %8, %cst_3 [1] : vector<16x64xf32> to vector<16xf32>
    %10 = vector.shape_cast %9 : vector<16xf32> to vector<16x1xf32>
    %cst_4 = arith.constant 6.400000e+01 : f32
    %11 = vector.broadcast %cst_4 : f32 to vector<16x1xf32>
    %12 = arith.divf %10, %11 : vector<16x1xf32>
    %cst_5 = arith.constant 9.99999974E-6 : f32
    %13 = vector.broadcast %cst_5 : f32 to vector<16x1xf32>
    %14 = arith.addf %12, %13 : vector<16x1xf32>
    %15 = math.rsqrt %14 : vector<16x1xf32>
    %16 = vector.broadcast %15 : vector<16x1xf32> to vector<16x64xf32>
    %17 = arith.mulf %7, %16 : vector<16x64xf32>
    %18 = arith.truncf %17 : vector<16x64xf32> to vector<16x64xbf16>
    %c0_6 = arith.constant 0 : index
    %c0_7 = arith.constant 0 : index
    %19 = vector.load %arg5[%c0_6, %c0_7] : memref<64x128xbf16, #tpu.memory_space<vmem>>, vector<64x128xbf16>
    %cst_8 = arith.constant dense<0.000000e+00> : vector<16x128xf32>
    %20 = tpu.matmul %18, %19, %cst_8 {dimension_numbers = #tpu.dot_dimension_numbers<[1], [0], [0], [1], [0, 0, 1, 1], [], []>} : vector<16x64xbf16>, vector<64x128xbf16>, vector<16x128xf32> -> vector<16x128xf32>
    %c0_9 = arith.constant 0 : index
    %c0_10 = arith.constant 0 : index
    %21 = vector.load %arg6[%c0_9, %c0_10] : memref<1x128xf32, #tpu.memory_space<vmem>>, vector<1x128xf32>
    %22 = vector.broadcast %21 : vector<1x128xf32> to vector<16x128xf32>
    %23 = arith.addf %20, %22 : vector<16x128xf32>
    %c0_11 = arith.constant 0 : index
    %c0_12 = arith.constant 0 : index
    %c0_13 = arith.constant 0 : index
    %24 = vector.load %arg2[%c0_11, %c0_12, %c0_13] : memref<2x16x128xf32, #tpu.memory_space<vmem>>, vector<2x16x128xf32>
    %25 = vector.shape_cast %24 : vector<2x16x128xf32> to vector<32x128xf32>
    %cst_14 = arith.constant dense<0.000000e+00> : vector<32xf32>
    %26 = vector.multi_reduction <add>, %25, %cst_14 [1] : vector<32x128xf32> to vector<32xf32>
    %27 = vector.shape_cast %26 : vector<32xf32> to vector<32x1xf32>
    %cst_15 = arith.constant 1.280000e+02 : f32
    %28 = vector.broadcast %cst_15 : f32 to vector<32x1xf32>
    %29 = arith.divf %27, %28 : vector<32x1xf32>
    %30 = vector.broadcast %29 : vector<32x1xf32> to vector<32x128xf32>
    %31 = arith.subf %25, %30 : vector<32x128xf32>
    %32 = arith.mulf %31, %31 : vector<32x128xf32>
    %cst_16 = arith.constant dense<0.000000e+00> : vector<32xf32>
    %33 = vector.multi_reduction <add>, %32, %cst_16 [1] : vector<32x128xf32> to vector<32xf32>
    %34 = vector.shape_cast %33 : vector<32xf32> to vector<32x1xf32>
    %cst_17 = arith.constant 1.280000e+02 : f32
    %35 = vector.broadcast %cst_17 : f32 to vector<32x1xf32>
    %36 = arith.divf %34, %35 : vector<32x1xf32>
    %cst_18 = arith.constant 9.99999974E-6 : f32
    %37 = vector.broadcast %cst_18 : f32 to vector<32x1xf32>
    %38 = arith.addf %36, %37 : vector<32x1xf32>
    %39 = math.rsqrt %38 : vector<32x1xf32>
    %40 = vector.broadcast %39 : vector<32x1xf32> to vector<32x128xf32>
    %41 = arith.mulf %31, %40 : vector<32x128xf32>
    %42 = arith.truncf %41 : vector<32x128xf32> to vector<32x128xbf16>
    %c0_19 = arith.constant 0 : index
    %c0_20 = arith.constant 0 : index
    %43 = vector.load %arg7[%c0_19, %c0_20] : memref<128x256xbf16, #tpu.memory_space<vmem>>, vector<128x256xbf16>
    %cst_21 = arith.constant dense<0.000000e+00> : vector<32x256xf32>
    %44 = tpu.matmul %42, %43, %cst_21 {dimension_numbers = #tpu.dot_dimension_numbers<[1], [0], [0], [1], [0, 0, 1, 1], [], []>} : vector<32x128xbf16>, vector<128x256xbf16>, vector<32x256xf32> -> vector<32x256xf32>
    %c0_22 = arith.constant 0 : index
    %c0_23 = arith.constant 0 : index
    %45 = vector.load %arg9[%c0_22, %c0_23] : memref<1x256xf32, #tpu.memory_space<vmem>>, vector<1x256xf32>
    %46 = vector.broadcast %45 : vector<1x256xf32> to vector<32x256xf32>
    %47 = arith.addf %44, %46 : vector<32x256xf32>
    %48 = arith.truncf %47 : vector<32x256xf32> to vector<32x256xbf16>
    %49 = vector.shape_cast %48 : vector<32x256xbf16> to vector<2x16x256xbf16>
    %c0_24 = arith.constant 0 : index
    %c0_25 = arith.constant 0 : index
    %c0_26 = arith.constant 0 : index
    %50 = vector.load %arg13[%c0_24, %c0_25, %c0_26] : memref<2x32x256xbf16, #tpu.memory_space<vmem>>, vector<2x16x256xbf16>
    tpu.vector_store %arg13[%c0_24, %c0_25, %c0_26], %49 {strides = array<i32>} : memref<2x32x256xbf16, #tpu.memory_space<vmem>>, vector<2x16x256xbf16>,
    %c0_27 = arith.constant 0 : index
    %c0_28 = arith.constant 0 : index
    %c0_29 = arith.constant 0 : index
    %51 = vector.load %arg3[%c0_27, %c0_28, %c0_29] : memref<2x16x64xf32, #tpu.memory_space<vmem>>, vector<2x16x64xf32>
    %52 = vector.shape_cast %51 : vector<2x16x64xf32> to vector<32x64xf32>
    %cst_30 = arith.constant dense<0.000000e+00> : vector<32xf32>
    %53 = vector.multi_reduction <add>, %52, %cst_30 [1] : vector<32x64xf32> to vector<32xf32>
    %54 = vector.shape_cast %53 : vector<32xf32> to vector<32x1xf32>
    %cst_31 = arith.constant 6.400000e+01 : f32
    %55 = vector.broadcast %cst_31 : f32 to vector<32x1xf32>
    %56 = arith.divf %54, %55 : vector<32x1xf32>
    %57 = vector.broadcast %56 : vector<32x1xf32> to vector<32x64xf32>
    %58 = arith.subf %52, %57 : vector<32x64xf32>
    %59 = arith.mulf %58, %58 : vector<32x64xf32>
    %cst_32 = arith.constant dense<0.000000e+00> : vector<32xf32>
    %60 = vector.multi_reduction <add>, %59, %cst_32 [1] : vector<32x64xf32> to vector<32xf32>
    %61 = vector.shape_cast %60 : vector<32xf32> to vector<32x1xf32>
    %cst_33 = arith.constant 6.400000e+01 : f32
    %62 = vector.broadcast %cst_33 : f32 to vector<32x1xf32>
    %63 = arith.divf %61, %62 : vector<32x1xf32>
    %cst_34 = arith.constant 9.99999974E-6 : f32
    %64 = vector.broadcast %cst_34 : f32 to vector<32x1xf32>
    %65 = arith.addf %63, %64 : vector<32x1xf32>
    %66 = math.rsqrt %65 : vector<32x1xf32>
    %67 = vector.broadcast %66 : vector<32x1xf32> to vector<32x64xf32>
    %68 = arith.mulf %58, %67 : vector<32x64xf32>
    %69 = arith.truncf %68 : vector<32x64xf32> to vector<32x64xbf16>
    %c0_35 = arith.constant 0 : index
    %c0_36 = arith.constant 0 : index
    %70 = vector.load %arg8[%c0_35, %c0_36] : memref<64x256xbf16, #tpu.memory_space<vmem>>, vector<64x256xbf16>
    %cst_37 = arith.constant dense<0.000000e+00> : vector<32x256xf32>
    %71 = tpu.matmul %69, %70, %cst_37 {dimension_numbers = #tpu.dot_dimension_numbers<[1], [0], [0], [1], [0, 0, 1, 1], [], []>} : vector<32x64xbf16>, vector<64x256xbf16>, vector<32x256xf32> -> vector<32x256xf32>
    %c0_38 = arith.constant 0 : index
    %c0_39 = arith.constant 0 : index
    %72 = vector.load %arg10[%c0_38, %c0_39] : memref<1x256xf32, #tpu.memory_space<vmem>>, vector<1x256xf32>
    %73 = vector.broadcast %72 : vector<1x256xf32> to vector<32x256xf32>
    %74 = arith.addf %71, %73 : vector<32x256xf32>
    %75 = arith.truncf %74 : vector<32x256xf32> to vector<32x256xbf16>
    %76 = vector.shape_cast %75 : vector<32x256xbf16> to vector<2x16x256xbf16>
    %c0_40 = arith.constant 0 : index
    %c16 = arith.constant 16 : index
    %c0_41 = arith.constant 0 : index
    %77 = vector.load %arg13[%c0_40, %c16, %c0_41] : memref<2x32x256xbf16, #tpu.memory_space<vmem>>, vector<2x16x256xbf16>
    tpu.vector_store %arg13[%c0_40, %c16, %c0_41], %76 {strides = array<i32>} : memref<2x32x256xbf16, #tpu.memory_space<vmem>>, vector<2x16x256xbf16>,
    %c0_42 = arith.constant 0 : index
    %c0_43 = arith.constant 0 : index
    %c0_44 = arith.constant 0 : index
    %78 = vector.load %arg13[%c0_42, %c0_43, %c0_44] : memref<2x32x256xbf16, #tpu.memory_space<vmem>>, vector<2x32x256xbf16>
    %79 = vector.extract_strided_slice %78 {offsets = [0, 0, 0], sizes = [2, 32, 128], strides = [1, 1, 1]} : vector<2x32x256xbf16> to vector<2x32x128xbf16>
    %80 = vector.extract_strided_slice %78 {offsets = [0, 0, 128], sizes = [2, 32, 128], strides = [1, 1, 1]} : vector<2x32x256xbf16> to vector<2x32x128xbf16>
    %81 = arith.truncf %23 : vector<16x128xf32> to vector<16x128xbf16>
    %82 = vector.shape_cast %81 : vector<16x128xbf16> to vector<2x8x16x8xbf16>
    %83 = tpu.transpose %82, [0, 2, 1, 3] : vector<2x8x16x8xbf16> -> vector<2x16x8x8xbf16>
    %84 = vector.shape_cast %83 : vector<2x16x8x8xbf16> to vector<32x8x8xbf16>
    %85 = vector.shape_cast %79 : vector<2x32x128xbf16> to vector<2x32x16x8xbf16>
    %86 = tpu.transpose %85, [0, 2, 1, 3] : vector<2x32x16x8xbf16> -> vector<2x16x32x8xbf16>
    %87 = vector.shape_cast %86 : vector<2x16x32x8xbf16> to vector<32x32x8xbf16>
    %88 = vector.shape_cast %80 : vector<2x32x128xbf16> to vector<2x32x16x8xbf16>
    %89 = tpu.transpose %88, [0, 2, 1, 3] : vector<2x32x16x8xbf16> -> vector<2x16x32x8xbf16>
    %90 = vector.shape_cast %89 : vector<2x16x32x8xbf16> to vector<32x32x8xbf16>
    "tpu.trace_start"() <{level = 10 : i32, message = "bqd,bkd->bqk"}> : () -> ()
    %cst_45 = arith.constant dense<0.000000e+00> : vector<32x8x32xf32>
    %91 = tpu.matmul %84, %87, %cst_45 {dimension_numbers = #tpu.dot_dimension_numbers<[2], [2], [1], [1], [0, 0, 0, 1, 1, 1], [0], [0]>} : vector<32x8x8xbf16>, vector<32x32x8xbf16>, vector<32x8x32xf32> -> vector<32x8x32xf32>
    "tpu.trace_stop"() : () -> ()
    %cst_46 = arith.constant 0.353553385 : f32
    %92 = vector.broadcast %cst_46 : f32 to vector<32x8x32xf32>
    %93 = arith.mulf %91, %92 : vector<32x8x32xf32>
    %94 = vector.shape_cast %93 : vector<32x8x32xf32> to vector<2x16x8x32xf32>
    %c0_47 = arith.constant 0 : index
    %c0_48 = arith.constant 0 : index
    %c0_49 = arith.constant 0 : index
    %95 = vector.load %arg4[%c0_47, %c0_48, %c0_49] : memref<2x8x32xf32, #tpu.memory_space<vmem>>, vector<2x8x32xf32>
    %96 = vector.shape_cast %95 : vector<2x8x32xf32> to vector<2x1x8x32xf32>
    %97 = vector.broadcast %96 : vector<2x1x8x32xf32> to vector<2x16x8x32xf32>
    %98 = arith.addf %94, %97 : vector<2x16x8x32xf32>
    %99 = vector.shape_cast %98 : vector<2x16x8x32xf32> to vector<32x8x32xf32>
    %cst_50 = arith.constant dense<0xFF800000> : vector<32x8xf32>
    %100 = vector.multi_reduction <maximumf>, %99, %cst_50 [2] : vector<32x8x32xf32> to vector<32x8xf32>
    %101 = vector.shape_cast %100 : vector<32x8xf32> to vector<32x8x1xf32>
    %102 = vector.broadcast %101 : vector<32x8x1xf32> to vector<32x8x32xf32>
    %103 = arith.subf %99, %102 : vector<32x8x32xf32>
    %104 = math.exp %103 : vector<32x8x32xf32>
    %cst_51 = arith.constant dense<0.000000e+00> : vector<32x8xf32>
    %105 = vector.multi_reduction <add>, %104, %cst_51 [2] : vector<32x8x32xf32> to vector<32x8xf32>
    %106 = vector.shape_cast %105 : vector<32x8xf32> to vector<32x8x1xf32>
    %107 = tpu.reciprocal %106 {approx = true} : vector<32x8x1xf32> -> vector<32x8x1xf32>
    %108 = vector.broadcast %107 : vector<32x8x1xf32> to vector<32x8x32xf32>
    %109 = arith.mulf %104, %108 : vector<32x8x32xf32>
    %110 = arith.truncf %109 : vector<32x8x32xf32> to vector<32x8x32xbf16>
    "tpu.trace_start"() <{level = 10 : i32, message = "bqk,bkd->bqd"}> : () -> ()
    %cst_52 = arith.constant dense<0.000000e+00> : vector<32x8x8xf32>
    %111 = tpu.matmul %110, %90, %cst_52 {dimension_numbers = #tpu.dot_dimension_numbers<[2], [1], [1], [2], [0, 0, 0, 1, 1, 2], [0], [0]>} : vector<32x8x32xbf16>, vector<32x32x8xbf16>, vector<32x8x8xf32> -> vector<32x8x8xf32>
    "tpu.trace_stop"() : () -> ()
    %112 = vector.shape_cast %111 : vector<32x8x8xf32> to vector<2x16x8x8xf32>
    %113 = tpu.transpose %112, [0, 2, 1, 3] : vector<2x16x8x8xf32> -> vector<2x8x16x8xf32>
    %114 = vector.shape_cast %113 : vector<2x8x16x8xf32> to vector<16x128xf32>
    %115 = arith.truncf %114 : vector<16x128xf32> to vector<16x128xbf16>
    %c0_53 = arith.constant 0 : index
    %c0_54 = arith.constant 0 : index
    %116 = vector.load %arg11[%c0_53, %c0_54] : memref<128x128xbf16, #tpu.memory_space<vmem>>, vector<128x128xbf16>
    %cst_55 = arith.constant dense<0.000000e+00> : vector<16x128xf32>
    %117 = tpu.matmul %115, %116, %cst_55 {dimension_numbers = #tpu.dot_dimension_numbers<[1], [0], [0], [1], [0, 0, 1, 1], [], []>} : vector<16x128xbf16>, vector<128x128xbf16>, vector<16x128xf32> -> vector<16x128xf32>
    %118 = vector.shape_cast %117 : vector<16x128xf32> to vector<2x8x128xf32>
    %c0_56 = arith.constant 0 : index
    %c0_57 = arith.constant 0 : index
    %c0_58 = arith.constant 0 : index
    %119 = vector.load %arg12[%c0_56, %c0_57, %c0_58] : memref<2x8x128xf32, #tpu.memory_space<vmem>>, vector<2x8x128xf32>
    tpu.vector_store %arg12[%c0_56, %c0_57, %c0_58], %118 {strides = array<i32>} : memref<2x8x128xf32, #tpu.memory_space<vmem>>, vector<2x8x128xf32>,
    return
  }
  func.func @transform_0(%arg0: i32) -> (i32, i32, i32) {
    %c0_i32 = arith.constant 0 : i32
    %c0_i32_0 = arith.constant 0 : i32
    %c0_i32_1 = arith.constant 0 : i32
    return %arg0, %c0_i32, %c0_i32_0 : i32, i32, i32
  }
  func.func @transform_1(%arg0: i32) -> (i32, i32, i32) {
    %c0_i32 = arith.constant 0 : i32
    %c0_i32_0 = arith.constant 0 : i32
    %c0_i32_1 = arith.constant 0 : i32
    return %arg0, %c0_i32, %c0_i32_0 : i32, i32, i32
  }
  func.func @transform_2(%arg0: i32) -> (i32, i32, i32) {
    %c0_i32 = arith.constant 0 : i32
    %c0_i32_0 = arith.constant 0 : i32
    %c0_i32_1 = arith.constant 0 : i32
    return %arg0, %c0_i32, %c0_i32_0 : i32, i32, i32
  }
  func.func @transform_3(%arg0: i32) -> (i32, i32, i32) {
    %c0_i32 = arith.constant 0 : i32
    %c0_i32_0 = arith.constant 0 : i32
    %c0_i32_1 = arith.constant 0 : i32
    return %arg0, %c0_i32, %c0_i32_0 : i32, i32, i32
  }
  func.func @transform_4(%arg0: i32) -> (i32, i32) {
    %c0_i32 = arith.constant 0 : i32
    %c0_i32_0 = arith.constant 0 : i32
    %c0_i32_1 = arith.constant 0 : i32
    return %c0_i32, %c0_i32_0 : i32, i32
  }
  func.func @transform_5(%arg0: i32) -> (i32, i32) {
    %c0_i32 = arith.constant 0 : i32
    %c0_i32_0 = arith.constant 0 : i32
    %c0_i32_1 = arith.constant 0 : i32
    return %c0_i32, %c0_i32_0 : i32, i32
  }
  func.func @transform_6(%arg0: i32) -> (i32, i32) {
    %c0_i32 = arith.constant 0 : i32
    %c0_i32_0 = arith.constant 0 : i32
    %c0_i32_1 = arith.constant 0 : i32
    return %c0_i32, %c0_i32_0 : i32, i32
  }
  func.func @transform_7(%arg0: i32) -> (i32, i32) {
    %c0_i32 = arith.constant 0 : i32
    %c0_i32_0 = arith.constant 0 : i32
    %c0_i32_1 = arith.constant 0 : i32
    return %c0_i32, %c0_i32_0 : i32, i32
  }
  func.func @transform_8(%arg0: i32) -> (i32, i32) {
    %c0_i32 = arith.constant 0 : i32
    %c0_i32_0 = arith.constant 0 : i32
    %c0_i32_1 = arith.constant 0 : i32
    return %c0_i32, %c0_i32_0 : i32, i32
  }
  func.func @transform_9(%arg0: i32) -> (i32, i32) {
    %c0_i32 = arith.constant 0 : i32
    %c0_i32_0 = arith.constant 0 : i32
    %c0_i32_1 = arith.constant 0 : i32
    return %c0_i32, %c0_i32_0 : i32, i32
  }
  func.func @transform_10(%arg0: i32) -> (i32, i32) {
    %c0_i32 = arith.constant 0 : i32
    %c0_i32_0 = arith.constant 0 : i32
    %c0_i32_1 = arith.constant 0 : i32
    return %c0_i32, %c0_i32_0 : i32, i32
  }
  func.func @transform_11(%arg0: i32) -> (i32, i32, i32) {
    %c0_i32 = arith.constant 0 : i32
    %c0_i32_0 = arith.constant 0 : i32
    %c0_i32_1 = arith.constant 0 : i32
    return %arg0, %c0_i32, %c0_i32_0 : i32, i32, i32
  }
}

</mosaic_0001>

<llo_original>
// kernel: tpu_custom_call.1
$region0: #{tpu_custom_call.1}
  #allocation0 [shape = 'u32[]', space=smem, size = 0x4, offset = 0x4, fixed_abs, tag = 'smem constant byte address 0x4 - core index']
  #allocation1 [shape = 'u32[72,128]{1,0:T(1,128)}', space=vmem, size = 0x9000, scoped, tag = 'internal scratch']
  #allocation2 [shape = 'bf16[2,32,256]{2,1,0:T(8,128)(2,1)}', space=vmem, size = 0x8000, scoped, tag = 'scratch operand']
  %s0 = inlined_call_operand.hbm [shape: f32[4,8,64], index: 0, kind: input, shape index: {}]
  %s1 = inlined_call_operand.hbm [shape: f32[4,16,128], index: 1, kind: input, shape index: {}]
  %s2 = inlined_call_operand.hbm [shape: f32[4,16,64], index: 2, kind: input, shape index: {}]
  %s3 = inlined_call_operand.hbm [shape: f32[4,8,32], index: 3, kind: input, shape index: {}]
  %s4 = inlined_call_operand.hbm [shape: bf16[64,128], index: 4, kind: input, shape index: {}]
  %s5 = inlined_call_operand.hbm [shape: f32[1,128], index: 5, kind: input, shape index: {}]
  %s6 = inlined_call_operand.hbm [shape: bf16[128,256], index: 6, kind: input, shape index: {}]
  %s7 = inlined_call_operand.hbm [shape: bf16[64,256], index: 7, kind: input, shape index: {}]
  %s8 = inlined_call_operand.vmem [shape: f32[1,256], index: 8, kind: input, shape index: {}]
  %s9 = inlined_call_operand.vmem [shape: f32[1,256], index: 9, kind: input, shape index: {}]
  %s10 = inlined_call_operand.hbm [shape: bf16[128,128], index: 10, kind: input, shape index: {}]
  %s11 = inlined_call_operand.hbm [shape: f32[4,8,128], index: 11, kind: output, shape index: {}]
  %s12 = sld [smem:[#allocation0]]
  $region113: #{tpu_custom_call.1} parent=0
    _
  %s14 = ssub.s32 1, %s12
  %s15 = scalar_select 0, %s14, %s12
  $region1: #{tpu_custom_call.1} parent=0
    #allocation3 [shape = 'u8[16384]{0}', space=vmem, size = 0x4000, scoped, tag = 'input window, operand 0']
    #allocation4 [shape = 's32[2]{0}', space=sflag, size = 0x8, scoped, tag = 'scoped memory for tpu_custom_call.1']
    #allocation5 [shape = 's32[2]{0}', space=sflag, size = 0x8, scoped, tag = 'scoped memory for tpu_custom_call.1']
    #allocation6 [shape = 'u8[32768]{0}', space=vmem, size = 0x8000, scoped, tag = 'input window, operand 1']
    #allocation7 [shape = 's32[2]{0}', space=sflag, size = 0x8, scoped, tag = 'scoped memory for tpu_custom_call.1']
    #allocation8 [shape = 'u8[32768]{0}', space=vmem, size = 0x8000, scoped, tag = 'input window, operand 2']
    #allocation9 [shape = 'u8[16384]{0}', space=vmem, size = 0x4000, scoped, tag = 'input window, operand 3']
    #allocation10 [shape = 's32[2]{0}', space=sflag, size = 0x8, scoped, tag = 'scoped memory for tpu_custom_call.1']
    #allocation11 [shape = 'u8[16384]{0}', space=vmem, size = 0x4000, scoped, tag = 'input window, operand 4, single buffered']
    #allocation12 [shape = 'u8[512]{0}', space=vmem, size = 0x400, scoped, tag = 'input window, operand 5, single buffered']
    #allocation13 [shape = 's32[1]{0}', space=sflag, size = 0x4, scoped, tag = 'scoped memory for tpu_custom_call.1']
    #allocation14 [shape = 'u8[65536]{0}', space=vmem, size = 0x10000, scoped, tag = 'input window, operand 6, single buffered']
    #allocation15 [shape = 'u8[32768]{0}', space=vmem, size = 0x8000, scoped, tag = 'input window, operand 7, single buffered']
    #allocation16 [shape = 's32[1]{0}', space=sflag, size = 0x4, scoped, tag = 'scoped memory for tpu_custom_call.1']
    #allocation17 [shape = 'u8[32768]{0}', space=vmem, size = 0x8000, scoped, tag = 'input window, operand 10, single buffered']
    #allocation18 [shape = 'u8[16384]{0}', space=vmem, size = 0x4000, scoped, tag = 'output window, operand 0']
    %16 = vsyncpa [#allocation4], 0
    %s17 = scalar_lea.sflag [#allocation4], 1
    %18 = vsyncpa %s17, 0
    %19 = vsyncpa [#allocation7], 0
    %s20 = scalar_lea.sflag [#allocation7], 1
    %21 = vsyncpa %s20, 0
    %22 = vsyncpa [#allocation10], 0
    %s23 = scalar_lea.sflag [#allocation10], 1
    %24 = vsyncpa %s23, 0
    %25 = vsyncpa [#allocation13], 0
    %26 = vsyncpa [#allocation16], 0
    %27 = vsyncpa [#allocation5], 0
    %s28 = scalar_lea.sflag [#allocation5], 1
    %29 = vsyncpa %s28, 0
    loop: start=0, step=1, limit=4
    $region2: #{tpu_custom_call.1} parent=1 // loop_pre_header
      _
    $region3: #{tpu_custom_call.1} parent=1 // loop_header
      %s31 = sphi 0, %s35
      %p32 = scmp.ge.s32.totalorder %s31, 4
      %s41 = sphi 0, %s43
      %s44 = sphi 0, %s41
      %s45 = sphi 0, %s44
      %s61 = sphi 0, %s45
      %s67 = sphi 0, %s69
      %s70 = sphi 0, %s67
      %s71 = sphi 0, %s70
      %s87 = sphi 0, %s71
      %s93 = sphi 0, %s95
      %s96 = sphi 0, %s93
      %s97 = sphi 0, %s96
      %s113 = sphi 0, %s97
      %s119 = sphi 0, %s121
      %s122 = sphi 0, %s119
      %s123 = sphi 0, %s122
      %s139 = sphi 0, %s123
      %s143 = sphi 0, %s143
      %s145 = sphi 0, %s143
      %s146 = sphi 0, %s145
      %s160 = sphi 0, %s146
      %s164 = sphi 0, %s164
      %s166 = sphi 0, %s164
      %s167 = sphi 0, %s166
      %s181 = sphi 0, %s167
      %s185 = sphi 0, %s185
      %s187 = sphi 0, %s185
      %s188 = sphi 0, %s187
      %s202 = sphi 0, %s188
      %s206 = sphi 0, %s206
      %s208 = sphi 0, %s206
      %s209 = sphi 0, %s208
      %s223 = sphi 0, %s209
      %s227 = sphi 0, %s227
      %s229 = sphi 0, %s227
      %s230 = sphi 0, %s229
      %s244 = sphi 0, %s230
      %s248 = sphi 0, %s248
      %s250 = sphi 0, %s248
      %s251 = sphi 0, %s250
      %s265 = sphi 0, %s251
      %s269 = sphi 0, %s269
      %s271 = sphi 0, %s269
      %s272 = sphi 0, %s271
      %s286 = sphi 0, %s272
      %s292 = sphi 0, %s294
      %s295 = sphi 0, %s292
      %s296 = sphi 0, %s295
      %s312 = sphi 0, %s296
    $region4: #{tpu_custom_call.1} parent=1 // loop_header_branch
      %34 = sbr.rel (%p32) target = $region8
    $region5: #{tpu_custom_call.1} parent=1 // loop_body
      %s36 = ssub.s32 %s31, 1
      %s37 = ssub.s32 %s31, 2
      %s38 = sadd.s32 %s31, 1
      %s39 = ssub.s32 %s31, %s38
      %p40 = scmp.eq.s32.totalorder %s39, 0
      %s42 = sadd.s32 %s41, 1
      %s43 = scalar_select %p40, %s41, %s42
      %p46 = pneg %p40
      %p47 = scmp.eq.s32.totalorder %s31, 1
      %p48 = por %p46, %p47
      %p49 = scmp.ne.s32.totalorder %s41, %s44
      %p50 = scmp.eq.s32.totalorder %s31, 0
      %p51 = por %p49, %p50
      %p52 = scmp.ne.s32.totalorder %s41, %s44
      %p53 = scmp.eq.s32.totalorder %s36, 1
      %p54 = por %p52, %p53
      %p55 = scmp.ne.s32.totalorder %s44, %s45
      %p56 = scmp.eq.s32.totalorder %s36, 0
      %p57 = por %p55, %p56
      %p58 = scmp.ne.s32.totalorder %s44, %s45
      %p59 = scmp.eq.s32.totalorder %s37, 1
      %p60 = por %p58, %p59
      %p62 = scmp.ne.s32.totalorder %s45, %s61
      %p63 = scmp.eq.s32.totalorder %s37, 0
      %p64 = por %p62, %p63
      %s65 = ssub.s32 %s31, %s38
      %p66 = scmp.eq.s32.totalorder %s65, 0
      %s68 = sadd.s32 %s67, 1
      %s69 = scalar_select %p66, %s67, %s68
      %p72 = pneg %p66
      %p73 = scmp.eq.s32.totalorder %s31, 1
      %p74 = por %p72, %p73
      %p75 = scmp.ne.s32.totalorder %s67, %s70
      %p76 = scmp.eq.s32.totalorder %s31, 0
      %p77 = por %p75, %p76
      %p78 = scmp.ne.s32.totalorder %s67, %s70
      %p79 = scmp.eq.s32.totalorder %s36, 1
      %p80 = por %p78, %p79
      %p81 = scmp.ne.s32.totalorder %s70, %s71
      %p82 = scmp.eq.s32.totalorder %s36, 0
      %p83 = por %p81, %p82
      %p84 = scmp.ne.s32.totalorder %s70, %s71
      %p85 = scmp.eq.s32.totalorder %s37, 1
      %p86 = por %p84, %p85
      %p88 = scmp.ne.s32.totalorder %s71, %s87
      %p89 = scmp.eq.s32.totalorder %s37, 0
      %p90 = por %p88, %p89
      %s91 = ssub.s32 %s31, %s38
      %p92 = scmp.eq.s32.totalorder %s91, 0
      %s94 = sadd.s32 %s93, 1
      %s95 = scalar_select %p92, %s93, %s94
      %p98 = pneg %p92
      %p99 = scmp.eq.s32.totalorder %s31, 1
      %p100 = por %p98, %p99
      %p101 = scmp.ne.s32.totalorder %s93, %s96
      %p102 = scmp.eq.s32.totalorder %s31, 0
      %p103 = por %p101, %p102
      %p104 = scmp.ne.s32.totalorder %s93, %s96
      %p105 = scmp.eq.s32.totalorder %s36, 1
      %p106 = por %p104, %p105
      %p107 = scmp.ne.s32.totalorder %s96, %s97
      %p108 = scmp.eq.s32.totalorder %s36, 0
      %p109 = por %p107, %p108
      %p110 = scmp.ne.s32.totalorder %s96, %s97
      %p111 = scmp.eq.s32.totalorder %s37, 1
      %p112 = por %p110, %p111
      %p114 = scmp.ne.s32.totalorder %s97, %s113
      %p115 = scmp.eq.s32.totalorder %s37, 0
      %p116 = por %p114, %p115
      %s117 = ssub.s32 %s31, %s38
      %p118 = scmp.eq.s32.totalorder %s117, 0
      %s120 = sadd.s32 %s119, 1
      %s121 = scalar_select %p118, %s119, %s120
      %p124 = pneg %p118
      %p125 = scmp.eq.s32.totalorder %s31, 1
      %p126 = por %p124, %p125
      %p127 = scmp.ne.s32.totalorder %s119, %s122
      %p128 = scmp.eq.s32.totalorder %s31, 0
      %p129 = por %p127, %p128
      %p130 = scmp.ne.s32.totalorder %s119, %s122
      %p131 = scmp.eq.s32.totalorder %s36, 1
      %p132 = por %p130, %p131
      %p133 = scmp.ne.s32.totalorder %s122, %s123
      %p134 = scmp.eq.s32.totalorder %s36, 0
      %p135 = por %p133, %p134
      %p136 = scmp.ne.s32.totalorder %s122, %s123
      %p137 = scmp.eq.s32.totalorder %s37, 1
      %p138 = por %p136, %p137
      %p140 = scmp.ne.s32.totalorder %s123, %s139
      %p141 = scmp.eq.s32.totalorder %s37, 0
      %p142 = por %p140, %p141
      %s144 = sadd.s32 %s143, 1
      %p147 = scmp.eq.s32.totalorder %s31, 1
      %p148 = scmp.ne.s32.totalorder %s143, %s145
      %p149 = scmp.eq.s32.totalorder %s31, 0
      %p150 = por %p148, %p149
      %p151 = scmp.ne.s32.totalorder %s143, %s145
      %p152 = scmp.eq.s32.totalorder %s36, 1
      %p153 = por %p151, %p152
      %p154 = scmp.ne.s32.totalorder %s145, %s146
      %p155 = scmp.eq.s32.totalorder %s36, 0
      %p156 = por %p154, %p155
      %p157 = scmp.ne.s32.totalorder %s145, %s146
      %p158 = scmp.eq.s32.totalorder %s37, 1
      %p159 = por %p157, %p158
      %p161 = scmp.ne.s32.totalorder %s146, %s160
      %p162 = scmp.eq.s32.totalorder %s37, 0
      %p163 = por %p161, %p162
      %s165 = sadd.s32 %s164, 1
      %p168 = scmp.eq.s32.totalorder %s31, 1
      %p169 = scmp.ne.s32.totalorder %s164, %s166
      %p170 = scmp.eq.s32.totalorder %s31, 0
      %p171 = por %p169, %p170
      %p172 = scmp.ne.s32.totalorder %s164, %s166
      %p173 = scmp.eq.s32.totalorder %s36, 1
      %p174 = por %p172, %p173
      %p175 = scmp.ne.s32.totalorder %s166, %s167
      %p176 = scmp.eq.s32.totalorder %s36, 0
      %p177 = por %p175, %p176
      %p178 = scmp.ne.s32.totalorder %s166, %s167
      %p179 = scmp.eq.s32.totalorder %s37, 1
      %p180 = por %p178, %p179
      %p182 = scmp.ne.s32.totalorder %s167, %s181
      %p183 = scmp.eq.s32.totalorder %s37, 0
      %p184 = por %p182, %p183
      %s186 = sadd.s32 %s185, 1
      %p189 = scmp.eq.s32.totalorder %s31, 1
      %p190 = scmp.ne.s32.totalorder %s185, %s187
      %p191 = scmp.eq.s32.totalorder %s31, 0
      %p192 = por %p190, %p191
      %p193 = scmp.ne.s32.totalorder %s185, %s187
      %p194 = scmp.eq.s32.totalorder %s36, 1
      %p195 = por %p193, %p194
      %p196 = scmp.ne.s32.totalorder %s187, %s188
      %p197 = scmp.eq.s32.totalorder %s36, 0
      %p198 = por %p196, %p197
      %p199 = scmp.ne.s32.totalorder %s187, %s188
      %p200 = scmp.eq.s32.totalorder %s37, 1
      %p201 = por %p199, %p200
      %p203 = scmp.ne.s32.totalorder %s188, %s202
      %p204 = scmp.eq.s32.totalorder %s37, 0
      %p205 = por %p203, %p204
      %s207 = sadd.s32 %s206, 1
      %p210 = scmp.eq.s32.totalorder %s31, 1
      %p211 = scmp.ne.s32.totalorder %s206, %s208
      %p212 = scmp.eq.s32.totalorder %s31, 0
      %p213 = por %p211, %p212
      %p214 = scmp.ne.s32.totalorder %s206, %s208
      %p215 = scmp.eq.s32.totalorder %s36, 1
      %p216 = por %p214, %p215
      %p217 = scmp.ne.s32.totalorder %s208, %s209
      %p218 = scmp.eq.s32.totalorder %s36, 0
      %p219 = por %p217, %p218
      %p220 = scmp.ne.s32.totalorder %s208, %s209
      %p221 = scmp.eq.s32.totalorder %s37, 1
      %p222 = por %p220, %p221
      %p224 = scmp.ne.s32.totalorder %s209, %s223
      %p225 = scmp.eq.s32.totalorder %s37, 0
      %p226 = por %p224, %p225
      %s228 = sadd.s32 %s227, 1
      %p231 = scmp.eq.s32.totalorder %s31, 1
      %p232 = scmp.ne.s32.totalorder %s227, %s229
      %p233 = scmp.eq.s32.totalorder %s31, 0
      %p234 = por %p232, %p233
      %p235 = scmp.ne.s32.totalorder %s227, %s229
      %p236 = scmp.eq.s32.totalorder %s36, 1
      %p237 = por %p235, %p236
      %p238 = scmp.ne.s32.totalorder %s229, %s230
      %p239 = scmp.eq.s32.totalorder %s36, 0
      %p240 = por %p238, %p239
      %p241 = scmp.ne.s32.totalorder %s229, %s230
      %p242 = scmp.eq.s32.totalorder %s37, 1
      %p243 = por %p241, %p242
      %p245 = scmp.ne.s32.totalorder %s230, %s244
      %p246 = scmp.eq.s32.totalorder %s37, 0
      %p247 = por %p245, %p246
      %s249 = sadd.s32 %s248, 1
      %p252 = scmp.eq.s32.totalorder %s31, 1
      %p253 = scmp.ne.s32.totalorder %s248, %s250
      %p254 = scmp.eq.s32.totalorder %s31, 0
      %p255 = por %p253, %p254
      %p256 = scmp.ne.s32.totalorder %s248, %s250
      %p257 = scmp.eq.s32.totalorder %s36, 1
      %p258 = por %p256, %p257
      %p259 = scmp.ne.s32.totalorder %s250, %s251
      %p260 = scmp.eq.s32.totalorder %s36, 0
      %p261 = por %p259, %p260
      %p262 = scmp.ne.s32.totalorder %s250, %s251
      %p263 = scmp.eq.s32.totalorder %s37, 1
      %p264 = por %p262, %p263
      %p266 = scmp.ne.s32.totalorder %s251, %s265
      %p267 = scmp.eq.s32.totalorder %s37, 0
      %p268 = por %p266, %p267
      %s270 = sadd.s32 %s269, 1
      %p273 = scmp.eq.s32.totalorder %s31, 1
      %p274 = scmp.ne.s32.totalorder %s269, %s271
      %p275 = scmp.eq.s32.totalorder %s31, 0
      %p276 = por %p274, %p275
      %p277 = scmp.ne.s32.totalorder %s269, %s271
      %p278 = scmp.eq.s32.totalorder %s36, 1
      %p279 = por %p277, %p278
      %p280 = scmp.ne.s32.totalorder %s271, %s272
      %p281 = scmp.eq.s32.totalorder %s36, 0
      %p282 = por %p280, %p281
      %p283 = scmp.ne.s32.totalorder %s271, %s272
      %p284 = scmp.eq.s32.totalorder %s37, 1
      %p285 = por %p283, %p284
      %p287 = scmp.ne.s32.totalorder %s272, %s286
      %p288 = scmp.eq.s32.totalorder %s37, 0
      %p289 = por %p287, %p288
      %s290 = ssub.s32 %s31, %s38
      %p291 = scmp.eq.s32.totalorder %s290, 0
      %s293 = sadd.s32 %s292, 1
      %s294 = scalar_select %p291, %s292, %s293
      %p297 = pneg %p291
      %p298 = scmp.eq.s32.totalorder %s31, 1
      %p299 = por %p297, %p298
      %p300 = scmp.ne.s32.totalorder %s292, %s295
      %p301 = scmp.eq.s32.totalorder %s31, 0
      %p302 = por %p300, %p301
      %p303 = scmp.ne.s32.totalorder %s292, %s295
      %p304 = scmp.eq.s32.totalorder %s36, 1
      %p305 = por %p303, %p304
      %p306 = scmp.ne.s32.totalorder %s295, %s296
      %p307 = scmp.eq.s32.totalorder %s36, 0
      %p308 = por %p306, %p307
      %p309 = scmp.ne.s32.totalorder %s295, %s296
      %p310 = scmp.eq.s32.totalorder %s37, 1
      %p311 = por %p309, %p310
      %p313 = scmp.ne.s32.totalorder %s296, %s312
      %p314 = scmp.eq.s32.totalorder %s37, 0
      %p315 = por %p313, %p314
      %p316 = scmp.le.s32.totalorder 1, %s31
      %p317 = scmp.lt.s32.totalorder %s31, 3
      %p318 = pnand %p316, %p317
      %p319 = pneg %p318
      // Predicated region
      $region9: #{tpu_custom_call.1} parent=5 // pred_check
        _
      $region10: #{tpu_custom_call.1} parent=5 // pred_check_branch
        %321 = sbr.rel (%p318) target = $region12
      $region11: #{tpu_custom_call.1} parent=5 // pred_region
        %s322 = ssub.s32 %s31, 1
        // Predicated region
        $region13: #{tpu_custom_call.1} parent=11 // pred_check
          %p323 = pneg %p156
        $region14: #{tpu_custom_call.1} parent=11 // pred_check_branch
          %325 = sbr.rel (%p323) target = $region16
        $region15: #{tpu_custom_call.1} parent=11 // pred_region
          %327 = vsyncadd [#allocation10], 0
          %s328 = sshll.u32 %s4, 4
          %s329 = int_to_ptr.hbm [resolvable:$true] %s328
          %s330 = sshll.u32 [#allocation11], 4
          %s331 = int_to_ptr.vmem [resolvable:$true] %s330
          %336 = dma.hbm_to_vmem [thread:$0]  %s329, 512, %s331, [#allocation10], 64, 64, 4
        $region16: #{tpu_custom_call.1} parent=11 // pred_fallthru
          _
        // Predicated region
        $region17: #{tpu_custom_call.1} parent=11 // pred_check
          %p337 = pneg %p177
        $region18: #{tpu_custom_call.1} parent=11 // pred_check_branch
          %339 = sbr.rel (%p337) target = $region20
        $region19: #{tpu_custom_call.1} parent=11 // pred_region
          %341 = vsyncadd [#allocation13], 0
          %s343 = sshll.u32 %s5, 4
          %s344 = int_to_ptr.hbm [resolvable:$true] %s343
          %s345 = sshll.u32 [#allocation12], 4
          %s346 = int_to_ptr.vmem [resolvable:$true] %s345
          %348 = dma.hbm_to_vmem [thread:$0]  %s344, 16, %s346, [#allocation13]
        $region20: #{tpu_custom_call.1} parent=11 // pred_fallthru
          _
        // Predicated region
        $region21: #{tpu_custom_call.1} parent=11 // pred_check
          %p349 = pneg %p198
        $region22: #{tpu_custom_call.1} parent=11 // pred_check_branch
          %351 = sbr.rel (%p349) target = $region24
        $region23: #{tpu_custom_call.1} parent=11 // pred_region
          %353 = vsyncadd [#allocation13], 0
          %s354 = sshll.u32 %s6, 4
          %s355 = int_to_ptr.hbm [resolvable:$true] %s354
          %s356 = sshll.u32 [#allocation14], 4
          %s357 = int_to_ptr.vmem [resolvable:$true] %s356
          %362 = dma.hbm_to_vmem [thread:$0]  %s355, 2048, %s357, [#allocation13], 128, 128, 8
        $region24: #{tpu_custom_call.1} parent=11 // pred_fallthru
          _
        // Predicated region
        $region25: #{tpu_custom_call.1} parent=11 // pred_check
          %p363 = pneg %p219
        $region26: #{tpu_custom_call.1} parent=11 // pred_check_branch
          %365 = sbr.rel (%p363) target = $region28
        $region27: #{tpu_custom_call.1} parent=11 // pred_region
          %367 = vsyncadd [#allocation16], 0
          %s368 = sshll.u32 %s7, 4
          %s369 = int_to_ptr.hbm [resolvable:$true] %s368
          %s370 = sshll.u32 [#allocation15], 4
          %s371 = int_to_ptr.vmem [resolvable:$true] %s370
          %376 = dma.hbm_to_vmem [thread:$0]  %s369, 1024, %s371, [#allocation16], 128, 128, 8
        $region28: #{tpu_custom_call.1} parent=11 // pred_fallthru
          _
        // Predicated region
        $region29: #{tpu_custom_call.1} parent=11 // pred_check
          %p377 = pneg %p240
        $region30: #{tpu_custom_call.1} parent=11 // pred_check_branch
          %379 = sbr.rel (%p377) target = $region32
        $region31: #{tpu_custom_call.1} parent=11 // pred_region
          _
        $region32: #{tpu_custom_call.1} parent=11 // pred_fallthru
          _
        // Predicated region
        $region33: #{tpu_custom_call.1} parent=11 // pred_check
          %p380 = pneg %p261
        $region34: #{tpu_custom_call.1} parent=11 // pred_check_branch
          %382 = sbr.rel (%p380) target = $region36
        $region35: #{tpu_custom_call.1} parent=11 // pred_region
          _
        $region36: #{tpu_custom_call.1} parent=11 // pred_fallthru
          _
        // Predicated region
        $region37: #{tpu_custom_call.1} parent=11 // pred_check
          %p383 = pneg %p282
        $region38: #{tpu_custom_call.1} parent=11 // pred_check_branch
          %385 = sbr.rel (%p383) target = $region40
        $region39: #{tpu_custom_call.1} parent=11 // pred_region
          %387 = vsyncadd [#allocation16], 0
          %s388 = sshll.u32 %s10, 4
          %s389 = int_to_ptr.hbm [resolvable:$true] %s388
          %s390 = sshll.u32 [#allocation17], 4
          %s391 = int_to_ptr.vmem [resolvable:$true] %s390
          %396 = dma.hbm_to_vmem [thread:$0]  %s389, 1024, %s391, [#allocation16], 64, 64, 4
        $region40: #{tpu_custom_call.1} parent=11 // pred_fallthru
          _
      $region12: #{tpu_custom_call.1} parent=5 // pred_fallthru
        _
      %p397 = scmp.lt.s32.totalorder %s31, 2
      // Predicated region
      $region41: #{tpu_custom_call.1} parent=5 // pred_check
        %p398 = pneg %p397
      $region42: #{tpu_custom_call.1} parent=5 // pred_check_branch
        %400 = sbr.rel (%p398) target = $region44
      $region43: #{tpu_custom_call.1} parent=5 // pred_region
        // Predicated region
        $region45: #{tpu_custom_call.1} parent=43 // pred_check
          %p401 = pneg %p51
        $region46: #{tpu_custom_call.1} parent=43 // pred_check_branch
          %403 = sbr.rel (%p401) target = $region48
        $region47: #{tpu_custom_call.1} parent=43 // pred_region
          %s404 = sand.u32 %s41, 1
          %s405 = scalar_lea.sflag [#allocation4], %s404
          %s406 = sand.u32 %s41, 1
          %s407 = smul.addr %s406, 16
          %s408 = scalar_lea.vmem [#allocation3], %s407
          %s409 = smul.u32 2, %s31
          %411 = vsyncadd %s405, 0
          %s412 = smul.addr %s409, 8
          %s413 = scalar_lea.hbm %s0, %s412
          %s414 = sshll.u32 %s413, 4
          %s415 = int_to_ptr.hbm [resolvable:$true] %s414
          %s416 = sshll.u32 %s408, 4
          %s417 = int_to_ptr.vmem [resolvable:$true] %s416
          %422 = dma.hbm_to_vmem [thread:$0]  %s415, 256, %s417, %s405, 128, 128, 8
        $region48: #{tpu_custom_call.1} parent=43 // pred_fallthru
          _
        // Predicated region
        $region49: #{tpu_custom_call.1} parent=43 // pred_check
          %p423 = pneg %p77
        $region50: #{tpu_custom_call.1} parent=43 // pred_check_branch
          %425 = sbr.rel (%p423) target = $region52
        $region51: #{tpu_custom_call.1} parent=43 // pred_region
          %s426 = sand.u32 %s31, 1
          %s427 = scalar_lea.sflag [#allocation7], %s426
          %s428 = sand.u32 %s67, 1
          %s429 = smul.addr %s428, 32
          %s430 = scalar_lea.vmem [#allocation6], %s429
          %s431 = smul.u32 2, %s31
          %433 = vsyncadd %s427, 0
          %s434 = smul.addr %s431, 2
          %s435 = smul.addr %s434, 8
          %s436 = scalar_lea.hbm %s1, %s435
          %s437 = sshll.u32 %s436, 4
          %s438 = int_to_ptr.hbm [resolvable:$true] %s437
          %s439 = sshll.u32 %s430, 4
          %s440 = int_to_ptr.vmem [resolvable:$true] %s439
          %445 = dma.hbm_to_vmem [thread:$0]  %s438, 512, %s440, %s427, 128, 128, 8
        $region52: #{tpu_custom_call.1} parent=43 // pred_fallthru
          _
        // Predicated region
        $region53: #{tpu_custom_call.1} parent=43 // pred_check
          %p446 = pneg %p103
        $region54: #{tpu_custom_call.1} parent=43 // pred_check_branch
          %448 = sbr.rel (%p446) target = $region56
        $region55: #{tpu_custom_call.1} parent=43 // pred_region
          %s449 = sand.u32 %s31, 1
          %s450 = scalar_lea.sflag [#allocation7], %s449
          %s451 = sand.u32 %s93, 1
          %s452 = smul.addr %s451, 32
          %s453 = scalar_lea.vmem [#allocation8], %s452
          %s454 = smul.u32 2, %s31
          %456 = vsyncadd %s450, 0
          %s457 = smul.addr %s454, 2
          %s458 = smul.addr %s457, 8
          %s459 = scalar_lea.hbm %s2, %s458
          %s460 = sshll.u32 %s459, 4
          %s461 = int_to_ptr.hbm [resolvable:$true] %s460
          %s462 = sshll.u32 %s453, 4
          %s463 = int_to_ptr.vmem [resolvable:$true] %s462
          %468 = dma.hbm_to_vmem [thread:$0]  %s461, 512, %s463, %s450, 128, 128, 8
        $region56: #{tpu_custom_call.1} parent=43 // pred_fallthru
          _
        // Predicated region
        $region57: #{tpu_custom_call.1} parent=43 // pred_check
          %p469 = pneg %p129
        $region58: #{tpu_custom_call.1} parent=43 // pred_check_branch
          %471 = sbr.rel (%p469) target = $region60
        $region59: #{tpu_custom_call.1} parent=43 // pred_region
          %s472 = sand.u32 %s31, 1
          %s473 = scalar_lea.sflag [#allocation10], %s472
          %s474 = sand.u32 %s119, 1
          %s475 = smul.addr %s474, 16
          %s476 = scalar_lea.vmem [#allocation9], %s475
          %s477 = smul.u32 2, %s31
          %479 = vsyncadd %s473, 0
          %s480 = smul.addr %s477, 8
          %s481 = scalar_lea.hbm %s3, %s480
          %s482 = sshll.u32 %s481, 4
          %s483 = int_to_ptr.hbm [resolvable:$true] %s482
          %s484 = sshll.u32 %s476, 4
          %s485 = int_to_ptr.vmem [resolvable:$true] %s484
          %490 = dma.hbm_to_vmem [thread:$0]  %s483, 256, %s485, %s473, 128, 128, 8
        $region60: #{tpu_custom_call.1} parent=43 // pred_fallthru
          _
      $region44: #{tpu_custom_call.1} parent=5 // pred_fallthru
        _
      %p491 = scmp.le.s32.totalorder 1, %s31
      %p492 = scmp.lt.s32.totalorder %s31, 3
      %p493 = pnand %p491, %p492
      %p494 = pneg %p493
      // Predicated region
      $region61: #{tpu_custom_call.1} parent=5 // pred_check
        _
      $region62: #{tpu_custom_call.1} parent=5 // pred_check_branch
        %496 = sbr.rel (%p493) target = $region64
      $region63: #{tpu_custom_call.1} parent=5 // pred_region
        %s497 = ssub.s32 %s31, 1
        %s498 = sand.u32 %s44, 1
        %s499 = scalar_lea.sflag [#allocation4], %s498
        %s500 = sand.u32 %s44, 1
        %s501 = smul.addr %s500, 16
        %s502 = scalar_lea.vmem [#allocation3], %s501
        // Predicated region
        $region65: #{tpu_custom_call.1} parent=63 // pred_check
          %p503 = pneg %p57
        $region66: #{tpu_custom_call.1} parent=63 // pred_check_branch
          %505 = sbr.rel (%p503) target = $region68
        $region67: #{tpu_custom_call.1} parent=63 // pred_region
          %507 = dma.done %s499, 256
        $region68: #{tpu_custom_call.1} parent=63 // pred_fallthru
          _
        %s508 = sand.u32 %s36, 1
        %s509 = scalar_lea.sflag [#allocation7], %s508
        %s510 = sand.u32 %s70, 1
        %s511 = smul.addr %s510, 32
        %s512 = scalar_lea.vmem [#allocation6], %s511
        // Predicated region
        $region69: #{tpu_custom_call.1} parent=63 // pred_check
          %p513 = pneg %p83
        $region70: #{tpu_custom_call.1} parent=63 // pred_check_branch
          %515 = sbr.rel (%p513) target = $region72
        $region71: #{tpu_custom_call.1} parent=63 // pred_region
          %517 = dma.done %s509, 512
        $region72: #{tpu_custom_call.1} parent=63 // pred_fallthru
          _
        %s518 = sand.u32 %s36, 1
        %s519 = scalar_lea.sflag [#allocation7], %s518
        %s520 = sand.u32 %s96, 1
        %s521 = smul.addr %s520, 32
        %s522 = scalar_lea.vmem [#allocation8], %s521
        // Predicated region
        $region73: #{tpu_custom_call.1} parent=63 // pred_check
          %p523 = pneg %p109
        $region74: #{tpu_custom_call.1} parent=63 // pred_check_branch
          %525 = sbr.rel (%p523) target = $region76
        $region75: #{tpu_custom_call.1} parent=63 // pred_region
          %527 = dma.done %s519, 512
        $region76: #{tpu_custom_call.1} parent=63 // pred_fallthru
          _
        %s528 = sand.u32 %s36, 1
        %s529 = scalar_lea.sflag [#allocation10], %s528
        %s530 = sand.u32 %s122, 1
        %s531 = smul.addr %s530, 16
        %s532 = scalar_lea.vmem [#allocation9], %s531
        // Predicated region
        $region77: #{tpu_custom_call.1} parent=63 // pred_check
          %p533 = pneg %p135
        $region78: #{tpu_custom_call.1} parent=63 // pred_check_branch
          %535 = sbr.rel (%p533) target = $region80
        $region79: #{tpu_custom_call.1} parent=63 // pred_region
          %537 = dma.done %s529, 256
        $region80: #{tpu_custom_call.1} parent=63 // pred_fallthru
          _
        // Predicated region
        $region81: #{tpu_custom_call.1} parent=63 // pred_check
          %p538 = pneg %p156
        $region82: #{tpu_custom_call.1} parent=63 // pred_check_branch
          %540 = sbr.rel (%p538) target = $region84
        $region83: #{tpu_custom_call.1} parent=63 // pred_region
          %542 = dma.done [#allocation10], 512
        $region84: #{tpu_custom_call.1} parent=63 // pred_fallthru
          _
        // Predicated region
        $region85: #{tpu_custom_call.1} parent=63 // pred_check
          %p543 = pneg %p177
        $region86: #{tpu_custom_call.1} parent=63 // pred_check_branch
          %545 = sbr.rel (%p543) target = $region88
        $region87: #{tpu_custom_call.1} parent=63 // pred_region
          %547 = dma.done [#allocation13], 16
        $region88: #{tpu_custom_call.1} parent=63 // pred_fallthru
          _
        // Predicated region
        $region89: #{tpu_custom_call.1} parent=63 // pred_check
          %p548 = pneg %p198
        $region90: #{tpu_custom_call.1} parent=63 // pred_check_branch
          %550 = sbr.rel (%p548) target = $region92
        $region91: #{tpu_custom_call.1} parent=63 // pred_region
          %552 = dma.done [#allocation13], 2048
        $region92: #{tpu_custom_call.1} parent=63 // pred_fallthru
          _
        // Predicated region
        $region93: #{tpu_custom_call.1} parent=63 // pred_check
          %p553 = pneg %p219
        $region94: #{tpu_custom_call.1} parent=63 // pred_check_branch
          %555 = sbr.rel (%p553) target = $region96
        $region95: #{tpu_custom_call.1} parent=63 // pred_region
          %557 = dma.done [#allocation16], 1024
        $region96: #{tpu_custom_call.1} parent=63 // pred_fallthru
          _
        // Predicated region
        $region97: #{tpu_custom_call.1} parent=63 // pred_check
          %p558 = pneg %p282
        $region98: #{tpu_custom_call.1} parent=63 // pred_check_branch
          %560 = sbr.rel (%p558) target = $region100
        $region99: #{tpu_custom_call.1} parent=63 // pred_region
          %562 = dma.done [#allocation16], 1024
        $region100: #{tpu_custom_call.1} parent=63 // pred_fallthru
          _
        %s563 = sand.u32 %s44, 1
        %s564 = scalar_lea.sflag [#allocation4], %s563
        %s565 = sand.u32 %s44, 1
        %s566 = smul.addr %s565, 16
        %s567 = scalar_lea.vmem [#allocation3], %s566
        %p568 = pneg %p57
        %p569 = pneg %p54
        %s570 = sand.u32 %s36, 1
        %s571 = scalar_lea.sflag [#allocation7], %s570
        %s572 = sand.u32 %s70, 1
        %s573 = smul.addr %s572, 32
        %s574 = scalar_lea.vmem [#allocation6], %s573
        %p575 = pneg %p83
        %p576 = pneg %p80
        %s577 = sand.u32 %s36, 1
        %s578 = scalar_lea.sflag [#allocation7], %s577
        %s579 = sand.u32 %s96, 1
        %s580 = smul.addr %s579, 32
        %s581 = scalar_lea.vmem [#allocation8], %s580
        %p582 = pneg %p109
        %p583 = pneg %p106
        %s584 = sand.u32 %s36, 1
        %s585 = scalar_lea.sflag [#allocation10], %s584
        %s586 = sand.u32 %s122, 1
        %s587 = smul.addr %s586, 16
        %s588 = scalar_lea.vmem [#allocation9], %s587
        %p589 = pneg %p135
        %p590 = pneg %p132
        %p591 = pneg %p156
        %p592 = pneg %p153
        %p593 = pneg %p177
        %p594 = pneg %p174
        %p595 = pneg %p198
        %p596 = pneg %p195
        %p597 = pneg %p219
        %p598 = pneg %p216
        %p599 = pneg %p240
        %p600 = pneg %p237
        %p601 = pneg %p261
        %p602 = pneg %p258
        %p603 = pneg %p282
        %p604 = pneg %p279
        %p605 = pneg %p308
        %p606 = pneg %p305
        %s607 = sand.u32 %s295, 1
        %s608 = scalar_lea.sflag [#allocation5], %s607
        %s609 = sand.u32 %s295, 1
        %s610 = smul.addr %s609, 16
        %s611 = scalar_lea.vmem [#allocation18], %s610
        %s612 = smul.u32 2, %s36
        %s613 = smul.u32 2, %s36
        %s614 = smul.u32 2, %s36
        %s615 = smul.u32 2, %s36
        %s616 = smul.u32 2, %s36
        %v618 = vld [vmem:[%s502] sm:$0xff]
        %v619 = vld [vmem:[%s502 + $0x8] sm:$0xff]
        %vm620 = vcmask 523264
        %v621 = vsel %vm620, %v618, 0.0
        %622 = vadd.xlane.f32.xlu0 %v621
        %v623 = vpop.xlane.xlu0 %622
        %v624 = vsel %vm620, %v619, 0.0
        %625 = vadd.xlane.f32.xlu0 %v624
        %v626 = vpop.xlane.xlu0 %625
        %v627 = vrcp.pop 64.0
        %v628 = vmul.f32 64.0, %v627
        %v629 = vsub.f32 1.0, %v628
        %v630 = vmul.f32 %v627, %v629
        %v631 = vadd.f32 %v627, %v630
        %vm632 = vweird.f32 %v627
        %v633 = vsel %vm632, %v627, %v631
        %v634 = vmul.f32 %v623, %v633
        %v635 = vmul.f32 %v626, %v633
        %v636 = vsub.f32 %v618, %v634
        %v637 = vsub.f32 %v619, %v635
        %v638 = vmul.f32 %v636, %v636
        %v639 = vmul.f32 %v637, %v637
        %v640 = vsel %vm620, %v638, 0.0
        %641 = vadd.xlane.f32.xlu0 %v640
        %v642 = vpop.xlane.xlu0 %641
        %v643 = vsel %vm620, %v639, 0.0
        %644 = vadd.xlane.f32.xlu0 %v643
        %v645 = vpop.xlane.xlu0 %644
        %v646 = vmul.f32 %v642, %v633
        %v647 = vmul.f32 %v645, %v633
        %v648 = vadd.f32 %v646, 1e-05
        %v649 = vadd.f32 %v647, 1e-05
        %v650 = vrsqrt.pop %v648
        %v651 = vmul.f32 %v650, %v648
        %v652 = vmul.f32 %v651, %v650
        %v653 = vmul.f32 0.5, %v652
        %v654 = vsub.f32 1.5, %v653
        %v655 = vmul.f32 %v650, %v654
        %vm656 = vweird.f32 %v648
        %vm657 = vweird.f32 %v650
        %vm658 = vmor %vm656, %vm657
        %v659 = vsel %vm658, %v650, %v655
        %v660 = vrsqrt.pop %v649
        %v661 = vmul.f32 %v660, %v649
        %v662 = vmul.f32 %v661, %v660
        %v663 = vmul.f32 0.5, %v662
        %v664 = vsub.f32 1.5, %v663
        %v665 = vmul.f32 %v660, %v664
        %vm666 = vweird.f32 %v649
        %vm667 = vweird.f32 %v660
        %vm668 = vmor %vm666, %vm667
        %v669 = vsel %vm668, %v660, %v665
        %v670 = vmul.f32 %v636, %v659
        %v671 = vmul.f32 %v637, %v669
        %v672 = vpack.c.bf16 %v671, %v670
        %v673 = vld [vmem:[#allocation11] sm:$0xf]
        %v674 = vld [vmem:[#allocation11 + $0x4] sm:$0xf]
        %v675 = vld [vmem:[#allocation11 + $0x8] sm:$0xf]
        %v676 = vld [vmem:[#allocation11 + $0xc] sm:$0xf]
        %v677 = vld [vmem:[#allocation11 + $0x10] sm:$0xf]
        %v678 = vld [vmem:[#allocation11 + $0x14] sm:$0xf]
        %v679 = vld [vmem:[#allocation11 + $0x18] sm:$0xf]
        %v680 = vld [vmem:[#allocation11 + $0x1c] sm:$0xf]
        %v681 = vld [vmem:[#allocation12] sm:$0x1]
        %v683 = vperm.slane %v681, 0
        %v693 = vunpack.c.l.b16 %v673
        %v694 = vunpack.c.l.b16 %v674
        %v695 = vunpack.c.l.b16 %v675
        %v696 = vunpack.c.l.b16 %v676
        %v697 = vunpack.c.l.b16 %v677
        %v698 = vunpack.c.l.b16 %v678
        %v699 = vunpack.c.l.b16 %v679
        %v700 = vunpack.c.l.b16 %v680
        %v701 = vpack.c.b16 %v694, %v693
        %v702 = vpack.c.b16 %v696, %v695
        %v703 = vpack.c.b16 %v698, %v697
        %v704 = vpack.c.b16 %v700, %v699
        %v710 = vsel %vm620, %v672, 0
        %712 = vmatpush.bf16.msra.mxu0 0
        %713 = vmatpush.bf16.msra.mxu0 0
        %714 = vmatpush.bf16.msra.mxu0 0
        %715 = vmatpush.bf16.msra.mxu0 0
        %716 = vmatpush.bf16.msra.mxu0 %v704
        %717 = vmatpush.bf16.msra.mxu0 %v703
        %718 = vmatpush.bf16.msra.mxu0 %v702
        %719 = vmatpush.bf16.msra.mxu0 %v701
        %720 = vmatmul.bf16.gmra.mxu0 %v710
        %v721 = vpop.f32.mrf.mxu0
        %v722 = vadd.f32 %v683, %v721
        %v723 = vpop.f32.mrf.mxu0
        %v724 = vadd.f32 %v683, %v723
        %725 = vdwg.mxu0
        %v726 = vld [vmem:[%s512] sm:$0xff]
        %v727 = vld [vmem:[%s512 + $0x8] sm:$0xff]
        %v728 = vld [vmem:[%s512 + $0x10] sm:$0xff]
        %v729 = vld [vmem:[%s512 + $0x18] sm:$0xff]
        %730 = vadd.xlane.f32.xlu0 %v726
        %v731 = vpop.xlane.xlu0 %730
        %732 = vadd.xlane.f32.xlu0 %v727
        %v733 = vpop.xlane.xlu0 %732
        %734 = vadd.xlane.f32.xlu0 %v728
        %v735 = vpop.xlane.xlu0 %734
        %736 = vadd.xlane.f32.xlu0 %v729
        %v737 = vpop.xlane.xlu0 %736
        %v738 = vrcp.pop 128.0
        %v739 = vmul.f32 128.0, %v738
        %v740 = vsub.f32 1.0, %v739
        %v741 = vmul.f32 %v738, %v740
        %v742 = vadd.f32 %v738, %v741
        %vm743 = vweird.f32 %v738
        %v744 = vsel %vm743, %v738, %v742
        %v745 = vmul.f32 %v731, %v744
        %v746 = vmul.f32 %v733, %v744
        %v747 = vmul.f32 %v735, %v744
        %v748 = vmul.f32 %v737, %v744
        %v749 = vsub.f32 %v726, %v745
        %v750 = vsub.f32 %v727, %v746
        %v751 = vsub.f32 %v728, %v747
        %v752 = vsub.f32 %v729, %v748
        %v753 = vmul.f32 %v749, %v749
        %v754 = vmul.f32 %v750, %v750
        %v755 = vmul.f32 %v751, %v751
        %v756 = vmul.f32 %v752, %v752
        %757 = vadd.xlane.f32.xlu0 %v753
        %v758 = vpop.xlane.xlu0 %757
        %759 = vadd.xlane.f32.xlu0 %v754
        %v760 = vpop.xlane.xlu0 %759
        %761 = vadd.xlane.f32.xlu0 %v755
        %v762 = vpop.xlane.xlu0 %761
        %763 = vadd.xlane.f32.xlu0 %v756
        %v764 = vpop.xlane.xlu0 %763
        %v765 = vmul.f32 %v758, %v744
        %v766 = vmul.f32 %v760, %v744
        %v767 = vmul.f32 %v762, %v744
        %v768 = vmul.f32 %v764, %v744
        %v769 = vadd.f32 %v765, 1e-05
        %v770 = vadd.f32 %v766, 1e-05
        %v771 = vadd.f32 %v767, 1e-05
        %v772 = vadd.f32 %v768, 1e-05
        %v773 = vrsqrt.pop %v769
        %v774 = vmul.f32 %v773, %v769
        %v775 = vmul.f32 %v774, %v773
        %v776 = vmul.f32 0.5, %v775
        %v777 = vsub.f32 1.5, %v776
        %v778 = vmul.f32 %v773, %v777
        %vm779 = vweird.f32 %v769
        %vm780 = vweird.f32 %v773
        %vm781 = vmor %vm779, %vm780
        %v782 = vsel %vm781, %v773, %v778
        %v783 = vrsqrt.pop %v770
        %v784 = vmul.f32 %v783, %v770
        %v785 = vmul.f32 %v784, %v783
        %v786 = vmul.f32 0.5, %v785
        %v787 = vsub.f32 1.5, %v786
        %v788 = vmul.f32 %v783, %v787
        %vm789 = vweird.f32 %v770
        %vm790 = vweird.f32 %v783
        %vm791 = vmor %vm789, %vm790
        %v792 = vsel %vm791, %v783, %v788
        %v793 = vrsqrt.pop %v771
        %v794 = vmul.f32 %v793, %v771
        %v795 = vmul.f32 %v794, %v793
        %v796 = vmul.f32 0.5, %v795
        %v797 = vsub.f32 1.5, %v796
        %v798 = vmul.f32 %v793, %v797
        %vm799 = vweird.f32 %v771
        %vm800 = vweird.f32 %v793
        %vm801 = vmor %vm799, %vm800
        %v802 = vsel %vm801, %v793, %v798
        %v803 = vrsqrt.pop %v772
        %v804 = vmul.f32 %v803, %v772
        %v805 = vmul.f32 %v804, %v803
        %v806 = vmul.f32 0.5, %v805
        %v807 = vsub.f32 1.5, %v806
        %v808 = vmul.f32 %v803, %v807
        %vm809 = vweird.f32 %v772
        %vm810 = vweird.f32 %v803
        %vm811 = vmor %vm809, %vm810
        %v812 = vsel %vm811, %v803, %v808
        %v813 = vmul.f32 %v749, %v782
        %v814 = vmul.f32 %v750, %v792
        %v815 = vmul.f32 %v751, %v802
        %v816 = vmul.f32 %v752, %v812
        %v817 = vpack.c.bf16 %v814, %v813
        %v818 = vpack.c.bf16 %v816, %v815
        %v819 = vld [vmem:[#allocation14] sm:$0xff]
        %v820 = vld [vmem:[#allocation14 + $0x8] sm:$0xff]
        %v821 = vld [vmem:[#allocation14 + $0x10] sm:$0xff]
        %v822 = vld [vmem:[#allocation14 + $0x18] sm:$0xff]
        %v823 = vld [vmem:[#allocation14 + $0x20] sm:$0xff]
        %v824 = vld [vmem:[#allocation14 + $0x28] sm:$0xff]
        %v825 = vld [vmem:[#allocation14 + $0x30] sm:$0xff]
        %v826 = vld [vmem:[#allocation14 + $0x38] sm:$0xff]
        %v827 = vld [vmem:[#allocation14 + $0x40] sm:$0xff]
        %v828 = vld [vmem:[#allocation14 + $0x48] sm:$0xff]
        %v829 = vld [vmem:[#allocation14 + $0x50] sm:$0xff]
        %v830 = vld [vmem:[#allocation14 + $0x58] sm:$0xff]
        %v831 = vld [vmem:[#allocation14 + $0x60] sm:$0xff]
        %v832 = vld [vmem:[#allocation14 + $0x68] sm:$0xff]
        %v833 = vld [vmem:[#allocation14 + $0x70] sm:$0xff]
        %v834 = vld [vmem:[#allocation14 + $0x78] sm:$0xff]
        %v835 = vld [vmem:[%s8] sm:$0x3]
        %v837 = vperm.slane %v835, 0
        %v838 = vperm.slane %v835, 1
        %v857 = vunpack.c.l.b16 %v819
        %v858 = vunpack.c.h.b16 %v819
        %v859 = vunpack.c.l.b16 %v820
        %v860 = vunpack.c.h.b16 %v820
        %v861 = vunpack.c.l.b16 %v821
        %v862 = vunpack.c.h.b16 %v821
        %v863 = vunpack.c.l.b16 %v822
        %v864 = vunpack.c.h.b16 %v822
        %v865 = vunpack.c.l.b16 %v823
        %v866 = vunpack.c.h.b16 %v823
        %v867 = vunpack.c.l.b16 %v824
        %v868 = vunpack.c.h.b16 %v824
        %v869 = vunpack.c.l.b16 %v825
        %v870 = vunpack.c.h.b16 %v825
        %v871 = vunpack.c.l.b16 %v826
        %v872 = vunpack.c.h.b16 %v826
        %v873 = vunpack.c.l.b16 %v827
        %v874 = vunpack.c.h.b16 %v827
        %v875 = vunpack.c.l.b16 %v828
        %v876 = vunpack.c.h.b16 %v828
        %v877 = vunpack.c.l.b16 %v829
        %v878 = vunpack.c.h.b16 %v829
        %v879 = vunpack.c.l.b16 %v830
        %v880 = vunpack.c.h.b16 %v830
        %v881 = vunpack.c.l.b16 %v831
        %v882 = vunpack.c.h.b16 %v831
        %v883 = vunpack.c.l.b16 %v832
        %v884 = vunpack.c.h.b16 %v832
        %v885 = vunpack.c.l.b16 %v833
        %v886 = vunpack.c.h.b16 %v833
        %v887 = vunpack.c.l.b16 %v834
        %v888 = vunpack.c.h.b16 %v834
        %v889 = vpack.c.b16 %v859, %v857
        %v890 = vpack.c.b16 %v860, %v858
        %v891 = vpack.c.b16 %v863, %v861
        %v892 = vpack.c.b16 %v864, %v862
        %v893 = vpack.c.b16 %v867, %v865
        %v894 = vpack.c.b16 %v868, %v866
        %v895 = vpack.c.b16 %v871, %v869
        %v896 = vpack.c.b16 %v872, %v870
        %v897 = vpack.c.b16 %v875, %v873
        %v898 = vpack.c.b16 %v876, %v874
        %v899 = vpack.c.b16 %v879, %v877
        %v900 = vpack.c.b16 %v880, %v878
        %v901 = vpack.c.b16 %v883, %v881
        %v902 = vpack.c.b16 %v884, %v882
        %v903 = vpack.c.b16 %v887, %v885
        %v904 = vpack.c.b16 %v888, %v886
        %921 = vmatpush.bf16.msra.mxu0 %v903
        %922 = vmatpush.bf16.msra.mxu0 %v901
        %923 = vmatpush.bf16.msra.mxu0 %v899
        %924 = vmatpush.bf16.msra.mxu0 %v897
        %925 = vmatpush.bf16.msra.mxu0 %v895
        %926 = vmatpush.bf16.msra.mxu0 %v893
        %927 = vmatpush.bf16.msra.mxu0 %v891
        %928 = vmatpush.bf16.msra.mxu0 %v889
        %929 = vmatmul.bf16.gmra.mxu0 %v817
        %v930 = vpop.f32.mrf.mxu0
        %v931 = vadd.f32 %v837, %v930
        %v932 = vpop.f32.mrf.mxu0
        %v933 = vadd.f32 %v837, %v932
        %934 = vmatmul.bf16.gmra.mxu0 %v818
        %v935 = vpop.f32.mrf.mxu0
        %v936 = vadd.f32 %v837, %v935
        %v937 = vpop.f32.mrf.mxu0
        %v938 = vadd.f32 %v837, %v937
        %939 = vdwg.mxu0
        %940 = vmatpush.bf16.msra.mxu0 %v904
        %941 = vmatpush.bf16.msra.mxu0 %v902
        %942 = vmatpush.bf16.msra.mxu0 %v900
        %943 = vmatpush.bf16.msra.mxu0 %v898
        %944 = vmatpush.bf16.msra.mxu0 %v896
        %945 = vmatpush.bf16.msra.mxu0 %v894
        %946 = vmatpush.bf16.msra.mxu0 %v892
        %947 = vmatpush.bf16.msra.mxu0 %v890
        %948 = vmatmul.bf16.gmra.mxu0 %v817
        %v949 = vpop.f32.mrf.mxu0
        %v950 = vadd.f32 %v838, %v949
        %v951 = vpop.f32.mrf.mxu0
        %v952 = vadd.f32 %v838, %v951
        %953 = vmatmul.bf16.gmra.mxu0 %v818
        %v954 = vpop.f32.mrf.mxu0
        %v955 = vadd.f32 %v838, %v954
        %v956 = vpop.f32.mrf.mxu0
        %v957 = vadd.f32 %v838, %v956
        %958 = vdwg.mxu0
        %v959 = vpack.c.bf16 %v950, %v931
        %v960 = vpack.c.bf16 %v952, %v933
        %v961 = vpack.c.bf16 %v955, %v936
        %v962 = vpack.c.bf16 %v957, %v938
        %963 = vst [vmem:[#allocation2] sm:$0xff] %v959
        %964 = vst [vmem:[#allocation2 + $0x8] sm:$0xff] %v960
        %965 = vst [vmem:[#allocation2 + $0x20] sm:$0xff] %v961
        %966 = vst [vmem:[#allocation2 + $0x28] sm:$0xff] %v962
        %v967 = vld [vmem:[%s522] sm:$0xff]
        %v968 = vld [vmem:[%s522 + $0x8] sm:$0xff]
        %v969 = vld [vmem:[%s522 + $0x10] sm:$0xff]
        %v970 = vld [vmem:[%s522 + $0x18] sm:$0xff]
        %v971 = vsel %vm620, %v967, 0.0
        %972 = vadd.xlane.f32.xlu0 %v971
        %v973 = vpop.xlane.xlu0 %972
        %v974 = vsel %vm620, %v968, 0.0
        %975 = vadd.xlane.f32.xlu0 %v974
        %v976 = vpop.xlane.xlu0 %975
        %v977 = vsel %vm620, %v969, 0.0
        %978 = vadd.xlane.f32.xlu0 %v977
        %v979 = vpop.xlane.xlu0 %978
        %v980 = vsel %vm620, %v970, 0.0
        %981 = vadd.xlane.f32.xlu0 %v980
        %v982 = vpop.xlane.xlu0 %981
        %v983 = vmul.f32 %v973, %v633
        %v984 = vmul.f32 %v976, %v633
        %v985 = vmul.f32 %v979, %v633
        %v986 = vmul.f32 %v982, %v633
        %v987 = vsub.f32 %v967, %v983
        %v988 = vsub.f32 %v968, %v984
        %v989 = vsub.f32 %v969, %v985
        %v990 = vsub.f32 %v970, %v986
        %v991 = vmul.f32 %v987, %v987
        %v992 = vmul.f32 %v988, %v988
        %v993 = vmul.f32 %v989, %v989
        %v994 = vmul.f32 %v990, %v990
        %v995 = vsel %vm620, %v991, 0.0
        %996 = vadd.xlane.f32.xlu0 %v995
        %v997 = vpop.xlane.xlu0 %996
        %v998 = vsel %vm620, %v992, 0.0
        %999 = vadd.xlane.f32.xlu0 %v998
        %v1000 = vpop.xlane.xlu0 %999
        %v1001 = vsel %vm620, %v993, 0.0
        %1002 = vadd.xlane.f32.xlu0 %v1001
        %v1003 = vpop.xlane.xlu0 %1002
        %v1004 = vsel %vm620, %v994, 0.0
        %1005 = vadd.xlane.f32.xlu0 %v1004
        %v1006 = vpop.xlane.xlu0 %1005
        %v1007 = vmul.f32 %v997, %v633
        %v1008 = vmul.f32 %v1000, %v633
        %v1009 = vmul.f32 %v1003, %v633
        %v1010 = vmul.f32 %v1006, %v633
        %v1011 = vadd.f32 %v1007, 1e-05
        %v1012 = vadd.f32 %v1008, 1e-05
        %v1013 = vadd.f32 %v1009, 1e-05
        %v1014 = vadd.f32 %v1010, 1e-05
        %v1015 = vrsqrt.pop %v1011
        %v1016 = vmul.f32 %v1015, %v1011
        %v1017 = vmul.f32 %v1016, %v1015
        %v1018 = vmul.f32 0.5, %v1017
        %v1019 = vsub.f32 1.5, %v1018
        %v1020 = vmul.f32 %v1015, %v1019
        %vm1021 = vweird.f32 %v1011
        %vm1022 = vweird.f32 %v1015
        %vm1023 = vmor %vm1021, %vm1022
        %v1024 = vsel %vm1023, %v1015, %v1020
        %v1025 = vrsqrt.pop %v1012
        %v1026 = vmul.f32 %v1025, %v1012
        %v1027 = vmul.f32 %v1026, %v1025
        %v1028 = vmul.f32 0.5, %v1027
        %v1029 = vsub.f32 1.5, %v1028
        %v1030 = vmul.f32 %v1025, %v1029
        %vm1031 = vweird.f32 %v1012
        %vm1032 = vweird.f32 %v1025
        %vm1033 = vmor %vm1031, %vm1032
        %v1034 = vsel %vm1033, %v1025, %v1030
        %v1035 = vrsqrt.pop %v1013
        %v1036 = vmul.f32 %v1035, %v1013
        %v1037 = vmul.f32 %v1036, %v1035
        %v1038 = vmul.f32 0.5, %v1037
        %v1039 = vsub.f32 1.5, %v1038
        %v1040 = vmul.f32 %v1035, %v1039
        %vm1041 = vweird.f32 %v1013
        %vm1042 = vweird.f32 %v1035
        %vm1043 = vmor %vm1041, %vm1042
        %v1044 = vsel %vm1043, %v1035, %v1040
        %v1045 = vrsqrt.pop %v1014
        %v1046 = vmul.f32 %v1045, %v1014
        %v1047 = vmul.f32 %v1046, %v1045
        %v1048 = vmul.f32 0.5, %v1047
        %v1049 = vsub.f32 1.5, %v1048
        %v1050 = vmul.f32 %v1045, %v1049
        %vm1051 = vweird.f32 %v1014
        %vm1052 = vweird.f32 %v1045
        %vm1053 = vmor %vm1051, %vm1052
        %v1054 = vsel %vm1053, %v1045, %v1050
        %v1055 = vmul.f32 %v987, %v1024
        %v1056 = vmul.f32 %v988, %v1034
        %v1057 = vmul.f32 %v989, %v1044
        %v1058 = vmul.f32 %v990, %v1054
        %v1059 = vpack.c.bf16 %v1056, %v1055
        %v1060 = vpack.c.bf16 %v1058, %v1057
        %v1061 = vld [vmem:[#allocation15] sm:$0xff]
        %v1062 = vld [vmem:[#allocation15 + $0x8] sm:$0xff]
        %v1063 = vld [vmem:[#allocation15 + $0x10] sm:$0xff]
        %v1064 = vld [vmem:[#allocation15 + $0x18] sm:$0xff]
        %v1065 = vld [vmem:[#allocation15 + $0x20] sm:$0xff]
        %v1066 = vld [vmem:[#allocation15 + $0x28] sm:$0xff]
        %v1067 = vld [vmem:[#allocation15 + $0x30] sm:$0xff]
        %v1068 = vld [vmem:[#allocation15 + $0x38] sm:$0xff]
        %v1069 = vld [vmem:[%s9] sm:$0x3]
        %v1071 = vperm.slane %v1069, 0
        %v1072 = vperm.slane %v1069, 1
        %v1083 = vunpack.c.l.b16 %v1061
        %v1084 = vunpack.c.h.b16 %v1061
        %v1085 = vunpack.c.l.b16 %v1062
        %v1086 = vunpack.c.h.b16 %v1062
        %v1087 = vunpack.c.l.b16 %v1063
        %v1088 = vunpack.c.h.b16 %v1063
        %v1089 = vunpack.c.l.b16 %v1064
        %v1090 = vunpack.c.h.b16 %v1064
        %v1091 = vunpack.c.l.b16 %v1065
        %v1092 = vunpack.c.h.b16 %v1065
        %v1093 = vunpack.c.l.b16 %v1066
        %v1094 = vunpack.c.h.b16 %v1066
        %v1095 = vunpack.c.l.b16 %v1067
        %v1096 = vunpack.c.h.b16 %v1067
        %v1097 = vunpack.c.l.b16 %v1068
        %v1098 = vunpack.c.h.b16 %v1068
        %v1099 = vpack.c.b16 %v1085, %v1083
        %v1100 = vpack.c.b16 %v1086, %v1084
        %v1101 = vpack.c.b16 %v1089, %v1087
        %v1102 = vpack.c.b16 %v1090, %v1088
        %v1103 = vpack.c.b16 %v1093, %v1091
        %v1104 = vpack.c.b16 %v1094, %v1092
        %v1105 = vpack.c.b16 %v1097, %v1095
        %v1106 = vpack.c.b16 %v1098, %v1096
        %v1116 = vsel %vm620, %v1059, 0
        %v1119 = vsel %vm620, %v1060, 0
        %1121 = vmatpush.bf16.msra.mxu0 0
        %1122 = vmatpush.bf16.msra.mxu0 0
        %1123 = vmatpush.bf16.msra.mxu0 0
        %1124 = vmatpush.bf16.msra.mxu0 0
        %1125 = vmatpush.bf16.msra.mxu0 %v1105
        %1126 = vmatpush.bf16.msra.mxu0 %v1103
        %1127 = vmatpush.bf16.msra.mxu0 %v1101
        %1128 = vmatpush.bf16.msra.mxu0 %v1099
        %1129 = vmatmul.bf16.gmra.mxu0 %v1116
        %v1130 = vpop.f32.mrf.mxu0
        %v1131 = vadd.f32 %v1071, %v1130
        %v1132 = vpop.f32.mrf.mxu0
        %v1133 = vadd.f32 %v1071, %v1132
        %1134 = vmatmul.bf16.gmra.mxu0 %v1119
        %v1135 = vpop.f32.mrf.mxu0
        %v1136 = vadd.f32 %v1071, %v1135
        %v1137 = vpop.f32.mrf.mxu0
        %v1138 = vadd.f32 %v1071, %v1137
        %1139 = vdwg.mxu0
        %1140 = vmatpush.bf16.msra.mxu0 0
        %1141 = vmatpush.bf16.msra.mxu0 0
        %1142 = vmatpush.bf16.msra.mxu0 0
        %1143 = vmatpush.bf16.msra.mxu0 0
        %1144 = vmatpush.bf16.msra.mxu0 %v1106
        %1145 = vmatpush.bf16.msra.mxu0 %v1104
        %1146 = vmatpush.bf16.msra.mxu0 %v1102
        %1147 = vmatpush.bf16.msra.mxu0 %v1100
        %1148 = vmatmul.bf16.gmra.mxu0 %v1116
        %v1149 = vpop.f32.mrf.mxu0
        %v1150 = vadd.f32 %v1072, %v1149
        %v1151 = vpop.f32.mrf.mxu0
        %v1152 = vadd.f32 %v1072, %v1151
        %1153 = vmatmul.bf16.gmra.mxu0 %v1119
        %v1154 = vpop.f32.mrf.mxu0
        %v1155 = vadd.f32 %v1072, %v1154
        %v1156 = vpop.f32.mrf.mxu0
        %v1157 = vadd.f32 %v1072, %v1156
        %1158 = vdwg.mxu0
        %v1159 = vpack.c.bf16 %v1150, %v1131
        %v1160 = vpack.c.bf16 %v1152, %v1133
        %v1161 = vpack.c.bf16 %v1155, %v1136
        %v1162 = vpack.c.bf16 %v1157, %v1138
        %1163 = vst [vmem:[#allocation2 + $0x10] sm:$0xff] %v1159
        %1164 = vst [vmem:[#allocation2 + $0x18] sm:$0xff] %v1160
        %1165 = vst [vmem:[#allocation2 + $0x30] sm:$0xff] %v1161
        %1166 = vst [vmem:[#allocation2 + $0x38] sm:$0xff] %v1162
        %v1167 = vld [vmem:[#allocation2] sm:$0xff]
        %v1168 = vld [vmem:[#allocation2 + $0x8] sm:$0xff]
        %v1169 = vld [vmem:[#allocation2 + $0x10] sm:$0xff]
        %v1170 = vld [vmem:[#allocation2 + $0x18] sm:$0xff]
        %v1171 = vld [vmem:[#allocation2 + $0x20] sm:$0xff]
        %v1172 = vld [vmem:[#allocation2 + $0x28] sm:$0xff]
        %v1173 = vld [vmem:[#allocation2 + $0x30] sm:$0xff]
        %v1174 = vld [vmem:[#allocation2 + $0x38] sm:$0xff]
        %v1175 = vpack.c.bf16 %v722, %v722
        %v1176 = vpack.c.bf16 %v724, %v724
        %1179 = vrot.lane.b32.xlu0 %v1175, 120
        %v1180 = vpop.permute.xlu0 %1179
        %1181 = vrot.lane.b32.xlu0 %v1176, 120
        %v1182 = vpop.permute.xlu0 %1181
        %1185 = vrot.lane.b32.xlu0 %v1175, 112
        %v1186 = vpop.permute.xlu0 %1185
        %1187 = vrot.lane.b32.xlu0 %v1176, 112
        %v1188 = vpop.permute.xlu0 %1187
        %1191 = vrot.lane.b32.xlu0 %v1175, 104
        %v1192 = vpop.permute.xlu0 %1191
        %1193 = vrot.lane.b32.xlu0 %v1176, 104
        %v1194 = vpop.permute.xlu0 %1193
        %1197 = vrot.lane.b32.xlu0 %v1175, 96
        %v1198 = vpop.permute.xlu0 %1197
        %1199 = vrot.lane.b32.xlu0 %v1176, 96
        %v1200 = vpop.permute.xlu0 %1199
        %1203 = vrot.lane.b32.xlu0 %v1175, 88
        %v1204 = vpop.permute.xlu0 %1203
        %1205 = vrot.lane.b32.xlu0 %v1176, 88
        %v1206 = vpop.permute.xlu0 %1205
        %1209 = vrot.lane.b32.xlu0 %v1175, 80
        %v1210 = vpop.permute.xlu0 %1209
        %1211 = vrot.lane.b32.xlu0 %v1176, 80
        %v1212 = vpop.permute.xlu0 %1211
        %1215 = vrot.lane.b32.xlu0 %v1175, 72
        %v1216 = vpop.permute.xlu0 %1215
        %1217 = vrot.lane.b32.xlu0 %v1176, 72
        %v1218 = vpop.permute.xlu0 %1217
        %1221 = vrot.lane.b32.xlu0 %v1175, 64
        %v1222 = vpop.permute.xlu0 %1221
        %1223 = vrot.lane.b32.xlu0 %v1176, 64
        %v1224 = vpop.permute.xlu0 %1223
        %1227 = vrot.lane.b32.xlu0 %v1175, 56
        %v1228 = vpop.permute.xlu0 %1227
        %1229 = vrot.lane.b32.xlu0 %v1176, 56
        %v1230 = vpop.permute.xlu0 %1229
        %1233 = vrot.lane.b32.xlu0 %v1175, 48
        %v1234 = vpop.permute.xlu0 %1233
        %1235 = vrot.lane.b32.xlu0 %v1176, 48
        %v1236 = vpop.permute.xlu0 %1235
        %1239 = vrot.lane.b32.xlu0 %v1175, 40
        %v1240 = vpop.permute.xlu0 %1239
        %1241 = vrot.lane.b32.xlu0 %v1176, 40
        %v1242 = vpop.permute.xlu0 %1241
        %1245 = vrot.lane.b32.xlu0 %v1175, 32
        %v1246 = vpop.permute.xlu0 %1245
        %1247 = vrot.lane.b32.xlu0 %v1176, 32
        %v1248 = vpop.permute.xlu0 %1247
        %1251 = vrot.lane.b32.xlu0 %v1175, 24
        %v1252 = vpop.permute.xlu0 %1251
        %1253 = vrot.lane.b32.xlu0 %v1176, 24
        %v1254 = vpop.permute.xlu0 %1253
        %1257 = vrot.lane.b32.xlu0 %v1175, 16
        %v1258 = vpop.permute.xlu0 %1257
        %1259 = vrot.lane.b32.xlu0 %v1176, 16
        %v1260 = vpop.permute.xlu0 %1259
        %1263 = vrot.lane.b32.xlu0 %v1175, 8
        %v1264 = vpop.permute.xlu0 %1263
        %1265 = vrot.lane.b32.xlu0 %v1176, 8
        %v1266 = vpop.permute.xlu0 %1265
        %v1269 = vrot.slane %v1198, 4
        %vm1270 = vcmask 1047556
        %v1271 = vsel %vm1270, %v1269, %v1175
        %v1273 = vunpack.c.l.s4 1983009808
        %v1274 = vunpack.c.0.s8 %v1273
        %v1275 = vperm.slane %v1271, %v1274
        %v1276 = vrot.slane %v1210, 4
        %v1277 = vsel %vm1270, %v1276, %v1186
        %v1279 = vunpack.c.l.s4 1983009808
        %v1280 = vunpack.c.0.s8 %v1279
        %v1281 = vperm.slane %v1277, %v1280
        %v1282 = vrot.slane %v1281, 4
        %v1283 = vsel %vm1270, %v1282, %v1275
        %v1284 = vrot.slane %v1275, 4
        %v1285 = vsel %vm1270, %v1281, %v1284
        %v1287 = vunpack.c.l.s4 1934713408
        %v1288 = vunpack.c.0.s8 %v1287
        %v1289 = vperm.slane %v1283, %v1288
        %v1291 = vunpack.c.l.s4 1934713408
        %v1292 = vunpack.c.0.s8 %v1291
        %v1293 = vperm.slane %v1285, %v1292
        %v1294 = vrot.slane %v1289, 4
        %v1295 = vsel %vm1270, 0, %v1294
        %v1296 = vrot.slane %v1293, 4
        %v1297 = vsel %vm1270, 0, %v1296
        %v1298 = vrot.slane %v1204, 4
        %v1299 = vsel %vm1270, %v1298, %v1180
        %v1301 = vunpack.c.l.s4 1983009808
        %v1302 = vunpack.c.0.s8 %v1301
        %v1303 = vperm.slane %v1299, %v1302
        %v1304 = vrot.slane %v1216, 4
        %v1305 = vsel %vm1270, %v1304, %v1192
        %v1307 = vunpack.c.l.s4 1983009808
        %v1308 = vunpack.c.0.s8 %v1307
        %v1309 = vperm.slane %v1305, %v1308
        %v1310 = vrot.slane %v1309, 4
        %v1311 = vsel %vm1270, %v1310, %v1303
        %v1312 = vrot.slane %v1303, 4
        %v1313 = vsel %vm1270, %v1309, %v1312
        %v1315 = vunpack.c.l.s4 1934713408
        %v1316 = vunpack.c.0.s8 %v1315
        %v1317 = vperm.slane %v1311, %v1316
        %v1319 = vunpack.c.l.s4 1934713408
        %v1320 = vunpack.c.0.s8 %v1319
        %v1321 = vperm.slane %v1313, %v1320
        %v1322 = vrot.slane %v1317, 4
        %v1323 = vsel %vm1270, 0, %v1322
        %v1324 = vrot.slane %v1321, 4
        %v1325 = vsel %vm1270, 0, %v1324
        %v1326 = vrot.slane %v1246, 4
        %v1327 = vsel %vm1270, %v1326, %v1222
        %v1329 = vunpack.c.l.s4 1983009808
        %v1330 = vunpack.c.0.s8 %v1329
        %v1331 = vperm.slane %v1327, %v1330
        %v1332 = vrot.slane %v1258, 4
        %v1333 = vsel %vm1270, %v1332, %v1234
        %v1335 = vunpack.c.l.s4 1983009808
        %v1336 = vunpack.c.0.s8 %v1335
        %v1337 = vperm.slane %v1333, %v1336
        %v1338 = vrot.slane %v1337, 4
        %v1339 = vsel %vm1270, %v1338, %v1331
        %v1340 = vrot.slane %v1331, 4
        %v1341 = vsel %vm1270, %v1337, %v1340
        %v1343 = vunpack.c.l.s4 1934713408
        %v1344 = vunpack.c.0.s8 %v1343
        %v1345 = vperm.slane %v1339, %v1344
        %v1347 = vunpack.c.l.s4 1934713408
        %v1348 = vunpack.c.0.s8 %v1347
        %v1349 = vperm.slane %v1341, %v1348
        %v1350 = vrot.slane %v1345, 4
        %v1351 = vsel %vm1270, 0, %v1350
        %v1352 = vrot.slane %v1349, 4
        %v1353 = vsel %vm1270, 0, %v1352
        %v1354 = vrot.slane %v1252, 4
        %v1355 = vsel %vm1270, %v1354, %v1228
        %v1357 = vunpack.c.l.s4 1983009808
        %v1358 = vunpack.c.0.s8 %v1357
        %v1359 = vperm.slane %v1355, %v1358
        %v1360 = vrot.slane %v1264, 4
        %v1361 = vsel %vm1270, %v1360, %v1240
        %v1363 = vunpack.c.l.s4 1983009808
        %v1364 = vunpack.c.0.s8 %v1363
        %v1365 = vperm.slane %v1361, %v1364
        %v1366 = vrot.slane %v1365, 4
        %v1367 = vsel %vm1270, %v1366, %v1359
        %v1368 = vrot.slane %v1359, 4
        %v1369 = vsel %vm1270, %v1365, %v1368
        %v1371 = vunpack.c.l.s4 1934713408
        %v1372 = vunpack.c.0.s8 %v1371
        %v1373 = vperm.slane %v1367, %v1372
        %v1375 = vunpack.c.l.s4 1934713408
        %v1376 = vunpack.c.0.s8 %v1375
        %v1377 = vperm.slane %v1369, %v1376
        %v1378 = vrot.slane %v1373, 4
        %v1379 = vsel %vm1270, 0, %v1378
        %v1380 = vrot.slane %v1377, 4
        %v1381 = vsel %vm1270, 0, %v1380
        %v1382 = vrot.slane %v1200, 4
        %v1383 = vsel %vm1270, %v1382, %v1176
        %v1385 = vunpack.c.l.s4 1983009808
        %v1386 = vunpack.c.0.s8 %v1385
        %v1387 = vperm.slane %v1383, %v1386
        %v1388 = vrot.slane %v1212, 4
        %v1389 = vsel %vm1270, %v1388, %v1188
        %v1391 = vunpack.c.l.s4 1983009808
        %v1392 = vunpack.c.0.s8 %v1391
        %v1393 = vperm.slane %v1389, %v1392
        %v1394 = vrot.slane %v1393, 4
        %v1395 = vsel %vm1270, %v1394, %v1387
        %v1396 = vrot.slane %v1387, 4
        %v1397 = vsel %vm1270, %v1393, %v1396
        %v1399 = vunpack.c.l.s4 1934713408
        %v1400 = vunpack.c.0.s8 %v1399
        %v1401 = vperm.slane %v1395, %v1400
        %v1403 = vunpack.c.l.s4 1934713408
        %v1404 = vunpack.c.0.s8 %v1403
        %v1405 = vperm.slane %v1397, %v1404
        %v1406 = vrot.slane %v1401, 4
        %v1407 = vsel %vm1270, 0, %v1406
        %v1408 = vrot.slane %v1405, 4
        %v1409 = vsel %vm1270, 0, %v1408
        %v1410 = vrot.slane %v1206, 4
        %v1411 = vsel %vm1270, %v1410, %v1182
        %v1413 = vunpack.c.l.s4 1983009808
        %v1414 = vunpack.c.0.s8 %v1413
        %v1415 = vperm.slane %v1411, %v1414
        %v1416 = vrot.slane %v1218, 4
        %v1417 = vsel %vm1270, %v1416, %v1194
        %v1419 = vunpack.c.l.s4 1983009808
        %v1420 = vunpack.c.0.s8 %v1419
        %v1421 = vperm.slane %v1417, %v1420
        %v1422 = vrot.slane %v1421, 4
        %v1423 = vsel %vm1270, %v1422, %v1415
        %v1424 = vrot.slane %v1415, 4
        %v1425 = vsel %vm1270, %v1421, %v1424
        %v1427 = vunpack.c.l.s4 1934713408
        %v1428 = vunpack.c.0.s8 %v1427
        %v1429 = vperm.slane %v1423, %v1428
        %v1431 = vunpack.c.l.s4 1934713408
        %v1432 = vunpack.c.0.s8 %v1431
        %v1433 = vperm.slane %v1425, %v1432
        %v1434 = vrot.slane %v1429, 4
        %v1435 = vsel %vm1270, 0, %v1434
        %v1436 = vrot.slane %v1433, 4
        %v1437 = vsel %vm1270, 0, %v1436
        %v1438 = vrot.slane %v1248, 4
        %v1439 = vsel %vm1270, %v1438, %v1224
        %v1441 = vunpack.c.l.s4 1983009808
        %v1442 = vunpack.c.0.s8 %v1441
        %v1443 = vperm.slane %v1439, %v1442
        %v1444 = vrot.slane %v1260, 4
        %v1445 = vsel %vm1270, %v1444, %v1236
        %v1447 = vunpack.c.l.s4 1983009808
        %v1448 = vunpack.c.0.s8 %v1447
        %v1449 = vperm.slane %v1445, %v1448
        %v1450 = vrot.slane %v1449, 4
        %v1451 = vsel %vm1270, %v1450, %v1443
        %v1452 = vrot.slane %v1443, 4
        %v1453 = vsel %vm1270, %v1449, %v1452
        %v1455 = vunpack.c.l.s4 1934713408
        %v1456 = vunpack.c.0.s8 %v1455
        %v1457 = vperm.slane %v1451, %v1456
        %v1459 = vunpack.c.l.s4 1934713408
        %v1460 = vunpack.c.0.s8 %v1459
        %v1461 = vperm.slane %v1453, %v1460
        %v1462 = vrot.slane %v1457, 4
        %v1463 = vsel %vm1270, 0, %v1462
        %v1464 = vrot.slane %v1461, 4
        %v1465 = vsel %vm1270, 0, %v1464
        %v1466 = vrot.slane %v1254, 4
        %v1467 = vsel %vm1270, %v1466, %v1230
        %v1469 = vunpack.c.l.s4 1983009808
        %v1470 = vunpack.c.0.s8 %v1469
        %v1471 = vperm.slane %v1467, %v1470
        %v1472 = vrot.slane %v1266, 4
        %v1473 = vsel %vm1270, %v1472, %v1242
        %v1475 = vunpack.c.l.s4 1983009808
        %v1476 = vunpack.c.0.s8 %v1475
        %v1477 = vperm.slane %v1473, %v1476
        %v1478 = vrot.slane %v1477, 4
        %v1479 = vsel %vm1270, %v1478, %v1471
        %v1480 = vrot.slane %v1471, 4
        %v1481 = vsel %vm1270, %v1477, %v1480
        %v1483 = vunpack.c.l.s4 1934713408
        %v1484 = vunpack.c.0.s8 %v1483
        %v1485 = vperm.slane %v1479, %v1484
        %v1487 = vunpack.c.l.s4 1934713408
        %v1488 = vunpack.c.0.s8 %v1487
        %v1489 = vperm.slane %v1481, %v1488
        %v1490 = vrot.slane %v1485, 4
        %v1491 = vsel %vm1270, 0, %v1490
        %v1492 = vrot.slane %v1489, 4
        %v1493 = vsel %vm1270, 0, %v1492
        %v1496 = vpack.i.b16 %v1317, %v1289
        %v1498 = vshrl.u32 %v1289, 16
        %v1499 = vshrl.u32 %v1317, 16
        %v1500 = vpack.i.b16 %v1499, %v1498
        %v1504 = vpack.i.b16 %v1323, %v1295
        %v1506 = vshrl.u32 %v1295, 16
        %v1507 = vshrl.u32 %v1323, 16
        %v1508 = vpack.i.b16 %v1507, %v1506
        %v1512 = vpack.i.b16 %v1321, %v1293
        %v1514 = vshrl.u32 %v1293, 16
        %v1515 = vshrl.u32 %v1321, 16
        %v1516 = vpack.i.b16 %v1515, %v1514
        %v1520 = vpack.i.b16 %v1325, %v1297
        %v1522 = vshrl.u32 %v1297, 16
        %v1523 = vshrl.u32 %v1325, 16
        %v1524 = vpack.i.b16 %v1523, %v1522
        %v1528 = vpack.i.b16 %v1429, %v1401
        %v1530 = vshrl.u32 %v1401, 16
        %v1531 = vshrl.u32 %v1429, 16
        %v1532 = vpack.i.b16 %v1531, %v1530
        %v1536 = vpack.i.b16 %v1435, %v1407
        %v1538 = vshrl.u32 %v1407, 16
        %v1539 = vshrl.u32 %v1435, 16
        %v1540 = vpack.i.b16 %v1539, %v1538
        %v1544 = vpack.i.b16 %v1433, %v1405
        %v1546 = vshrl.u32 %v1405, 16
        %v1547 = vshrl.u32 %v1433, 16
        %v1548 = vpack.i.b16 %v1547, %v1546
        %v1552 = vpack.i.b16 %v1437, %v1409
        %v1554 = vshrl.u32 %v1409, 16
        %v1555 = vshrl.u32 %v1437, 16
        %v1556 = vpack.i.b16 %v1555, %v1554
        %v1560 = vpack.i.b16 %v1373, %v1345
        %v1562 = vshrl.u32 %v1345, 16
        %v1563 = vshrl.u32 %v1373, 16
        %v1564 = vpack.i.b16 %v1563, %v1562
        %v1568 = vpack.i.b16 %v1379, %v1351
        %v1570 = vshrl.u32 %v1351, 16
        %v1571 = vshrl.u32 %v1379, 16
        %v1572 = vpack.i.b16 %v1571, %v1570
        %v1576 = vpack.i.b16 %v1377, %v1349
        %v1578 = vshrl.u32 %v1349, 16
        %v1579 = vshrl.u32 %v1377, 16
        %v1580 = vpack.i.b16 %v1579, %v1578
        %v1584 = vpack.i.b16 %v1381, %v1353
        %v1586 = vshrl.u32 %v1353, 16
        %v1587 = vshrl.u32 %v1381, 16
        %v1588 = vpack.i.b16 %v1587, %v1586
        %v1592 = vpack.i.b16 %v1485, %v1457
        %v1594 = vshrl.u32 %v1457, 16
        %v1595 = vshrl.u32 %v1485, 16
        %v1596 = vpack.i.b16 %v1595, %v1594
        %v1600 = vpack.i.b16 %v1491, %v1463
        %v1602 = vshrl.u32 %v1463, 16
        %v1603 = vshrl.u32 %v1491, 16
        %v1604 = vpack.i.b16 %v1603, %v1602
        %v1608 = vpack.i.b16 %v1489, %v1461
        %v1610 = vshrl.u32 %v1461, 16
        %v1611 = vshrl.u32 %v1489, 16
        %v1612 = vpack.i.b16 %v1611, %v1610
        %v1616 = vpack.i.b16 %v1493, %v1465
        %v1618 = vshrl.u32 %v1465, 16
        %v1619 = vshrl.u32 %v1493, 16
        %v1620 = vpack.i.b16 %v1619, %v1618
        %v1622 = vrot.slane %v1512, 4
        %v1623 = vsel %vm1270, %v1622, %v1496
        %v1625 = vunpack.c.l.s4 1983009808
        %v1626 = vunpack.c.0.s8 %v1625
        %v1627 = vperm.slane %v1623, %v1626
        %v1628 = vrot.slane %v1520, 4
        %v1629 = vsel %vm1270, %v1628, %v1504
        %v1631 = vunpack.c.l.s4 1983009808
        %v1632 = vunpack.c.0.s8 %v1631
        %v1633 = vperm.slane %v1629, %v1632
        %v1634 = vrot.slane %v1633, 4
        %v1635 = vsel %vm1270, %v1634, %v1627
        %v1636 = vrot.slane %v1627, 4
        %v1637 = vsel %vm1270, %v1633, %v1636
        %v1639 = vunpack.c.l.s4 1934713408
        %v1640 = vunpack.c.0.s8 %v1639
        %v1641 = vperm.slane %v1635, %v1640
        %v1643 = vunpack.c.l.s4 1934713408
        %v1644 = vunpack.c.0.s8 %v1643
        %v1645 = vperm.slane %v1637, %v1644
        %v1646 = vrot.slane %v1641, 4
        %v1647 = vsel %vm1270, 0, %v1646
        %v1648 = vrot.slane %v1645, 4
        %v1649 = vsel %vm1270, 0, %v1648
        %v1650 = vrot.slane %v1516, 4
        %v1651 = vsel %vm1270, %v1650, %v1500
        %v1653 = vunpack.c.l.s4 1983009808
        %v1654 = vunpack.c.0.s8 %v1653
        %v1655 = vperm.slane %v1651, %v1654
        %v1656 = vrot.slane %v1524, 4
        %v1657 = vsel %vm1270, %v1656, %v1508
        %v1659 = vunpack.c.l.s4 1983009808
        %v1660 = vunpack.c.0.s8 %v1659
        %v1661 = vperm.slane %v1657, %v1660
        %v1662 = vrot.slane %v1661, 4
        %v1663 = vsel %vm1270, %v1662, %v1655
        %v1664 = vrot.slane %v1655, 4
        %v1665 = vsel %vm1270, %v1661, %v1664
        %v1667 = vunpack.c.l.s4 1934713408
        %v1668 = vunpack.c.0.s8 %v1667
        %v1669 = vperm.slane %v1663, %v1668
        %v1671 = vunpack.c.l.s4 1934713408
        %v1672 = vunpack.c.0.s8 %v1671
        %v1673 = vperm.slane %v1665, %v1672
        %v1674 = vrot.slane %v1669, 4
        %v1675 = vsel %vm1270, 0, %v1674
        %v1676 = vrot.slane %v1673, 4
        %v1677 = vsel %vm1270, 0, %v1676
        %v1678 = vrot.slane %v1576, 4
        %v1679 = vsel %vm1270, %v1678, %v1560
        %v1681 = vunpack.c.l.s4 1983009808
        %v1682 = vunpack.c.0.s8 %v1681
        %v1683 = vperm.slane %v1679, %v1682
        %v1684 = vrot.slane %v1584, 4
        %v1685 = vsel %vm1270, %v1684, %v1568
        %v1687 = vunpack.c.l.s4 1983009808
        %v1688 = vunpack.c.0.s8 %v1687
        %v1689 = vperm.slane %v1685, %v1688
        %v1690 = vrot.slane %v1689, 4
        %v1691 = vsel %vm1270, %v1690, %v1683
        %v1692 = vrot.slane %v1683, 4
        %v1693 = vsel %vm1270, %v1689, %v1692
        %v1695 = vunpack.c.l.s4 1934713408
        %v1696 = vunpack.c.0.s8 %v1695
        %v1697 = vperm.slane %v1691, %v1696
        %v1699 = vunpack.c.l.s4 1934713408
        %v1700 = vunpack.c.0.s8 %v1699
        %v1701 = vperm.slane %v1693, %v1700
        %v1702 = vrot.slane %v1697, 4
        %v1703 = vsel %vm1270, 0, %v1702
        %v1704 = vrot.slane %v1701, 4
        %v1705 = vsel %vm1270, 0, %v1704
        %v1706 = vrot.slane %v1580, 4
        %v1707 = vsel %vm1270, %v1706, %v1564
        %v1709 = vunpack.c.l.s4 1983009808
        %v1710 = vunpack.c.0.s8 %v1709
        %v1711 = vperm.slane %v1707, %v1710
        %v1712 = vrot.slane %v1588, 4
        %v1713 = vsel %vm1270, %v1712, %v1572
        %v1715 = vunpack.c.l.s4 1983009808
        %v1716 = vunpack.c.0.s8 %v1715
        %v1717 = vperm.slane %v1713, %v1716
        %v1718 = vrot.slane %v1717, 4
        %v1719 = vsel %vm1270, %v1718, %v1711
        %v1720 = vrot.slane %v1711, 4
        %v1721 = vsel %vm1270, %v1717, %v1720
        %v1723 = vunpack.c.l.s4 1934713408
        %v1724 = vunpack.c.0.s8 %v1723
        %v1725 = vperm.slane %v1719, %v1724
        %v1727 = vunpack.c.l.s4 1934713408
        %v1728 = vunpack.c.0.s8 %v1727
        %v1729 = vperm.slane %v1721, %v1728
        %v1730 = vrot.slane %v1725, 4
        %v1731 = vsel %vm1270, 0, %v1730
        %v1732 = vrot.slane %v1729, 4
        %v1733 = vsel %vm1270, 0, %v1732
        %v1734 = vrot.slane %v1544, 4
        %v1735 = vsel %vm1270, %v1734, %v1528
        %v1737 = vunpack.c.l.s4 1983009808
        %v1738 = vunpack.c.0.s8 %v1737
        %v1739 = vperm.slane %v1735, %v1738
        %v1740 = vrot.slane %v1552, 4
        %v1741 = vsel %vm1270, %v1740, %v1536
        %v1743 = vunpack.c.l.s4 1983009808
        %v1744 = vunpack.c.0.s8 %v1743
        %v1745 = vperm.slane %v1741, %v1744
        %v1746 = vrot.slane %v1745, 4
        %v1747 = vsel %vm1270, %v1746, %v1739
        %v1748 = vrot.slane %v1739, 4
        %v1749 = vsel %vm1270, %v1745, %v1748
        %v1751 = vunpack.c.l.s4 1934713408
        %v1752 = vunpack.c.0.s8 %v1751
        %v1753 = vperm.slane %v1747, %v1752
        %v1755 = vunpack.c.l.s4 1934713408
        %v1756 = vunpack.c.0.s8 %v1755
        %v1757 = vperm.slane %v1749, %v1756
        %v1758 = vrot.slane %v1753, 4
        %v1759 = vsel %vm1270, 0, %v1758
        %v1760 = vrot.slane %v1757, 4
        %v1761 = vsel %vm1270, 0, %v1760
        %v1762 = vrot.slane %v1548, 4
        %v1763 = vsel %vm1270, %v1762, %v1532
        %v1765 = vunpack.c.l.s4 1983009808
        %v1766 = vunpack.c.0.s8 %v1765
        %v1767 = vperm.slane %v1763, %v1766
        %v1768 = vrot.slane %v1556, 4
        %v1769 = vsel %vm1270, %v1768, %v1540
        %v1771 = vunpack.c.l.s4 1983009808
        %v1772 = vunpack.c.0.s8 %v1771
        %v1773 = vperm.slane %v1769, %v1772
        %v1774 = vrot.slane %v1773, 4
        %v1775 = vsel %vm1270, %v1774, %v1767
        %v1776 = vrot.slane %v1767, 4
        %v1777 = vsel %vm1270, %v1773, %v1776
        %v1779 = vunpack.c.l.s4 1934713408
        %v1780 = vunpack.c.0.s8 %v1779
        %v1781 = vperm.slane %v1775, %v1780
        %v1783 = vunpack.c.l.s4 1934713408
        %v1784 = vunpack.c.0.s8 %v1783
        %v1785 = vperm.slane %v1777, %v1784
        %v1786 = vrot.slane %v1781, 4
        %v1787 = vsel %vm1270, 0, %v1786
        %v1788 = vrot.slane %v1785, 4
        %v1789 = vsel %vm1270, 0, %v1788
        %v1790 = vrot.slane %v1608, 4
        %v1791 = vsel %vm1270, %v1790, %v1592
        %v1793 = vunpack.c.l.s4 1983009808
        %v1794 = vunpack.c.0.s8 %v1793
        %v1795 = vperm.slane %v1791, %v1794
        %v1796 = vrot.slane %v1616, 4
        %v1797 = vsel %vm1270, %v1796, %v1600
        %v1799 = vunpack.c.l.s4 1983009808
        %v1800 = vunpack.c.0.s8 %v1799
        %v1801 = vperm.slane %v1797, %v1800
        %v1802 = vrot.slane %v1801, 4
        %v1803 = vsel %vm1270, %v1802, %v1795
        %v1804 = vrot.slane %v1795, 4
        %v1805 = vsel %vm1270, %v1801, %v1804
        %v1807 = vunpack.c.l.s4 1934713408
        %v1808 = vunpack.c.0.s8 %v1807
        %v1809 = vperm.slane %v1803, %v1808
        %v1811 = vunpack.c.l.s4 1934713408
        %v1812 = vunpack.c.0.s8 %v1811
        %v1813 = vperm.slane %v1805, %v1812
        %v1814 = vrot.slane %v1809, 4
        %v1815 = vsel %vm1270, 0, %v1814
        %v1816 = vrot.slane %v1813, 4
        %v1817 = vsel %vm1270, 0, %v1816
        %v1818 = vrot.slane %v1612, 4
        %v1819 = vsel %vm1270, %v1818, %v1596
        %v1821 = vunpack.c.l.s4 1983009808
        %v1822 = vunpack.c.0.s8 %v1821
        %v1823 = vperm.slane %v1819, %v1822
        %v1824 = vrot.slane %v1620, 4
        %v1825 = vsel %vm1270, %v1824, %v1604
        %v1827 = vunpack.c.l.s4 1983009808
        %v1828 = vunpack.c.0.s8 %v1827
        %v1829 = vperm.slane %v1825, %v1828
        %v1830 = vrot.slane %v1829, 4
        %v1831 = vsel %vm1270, %v1830, %v1823
        %v1832 = vrot.slane %v1823, 4
        %v1833 = vsel %vm1270, %v1829, %v1832
        %v1835 = vunpack.c.l.s4 1934713408
        %v1836 = vunpack.c.0.s8 %v1835
        %v1837 = vperm.slane %v1831, %v1836
        %v1839 = vunpack.c.l.s4 1934713408
        %v1840 = vunpack.c.0.s8 %v1839
        %v1841 = vperm.slane %v1833, %v1840
        %v1842 = vrot.slane %v1837, 4
        %v1843 = vsel %vm1270, 0, %v1842
        %v1844 = vrot.slane %v1841, 4
        %v1845 = vsel %vm1270, 0, %v1844
        %v1848 = vpack.i.b16 %v1669, %v1641
        %v1849 = vshrl.u32 %v1641, 16
        %v1850 = vshrl.u32 %v1669, 16
        %v1851 = vpack.i.b16 %v1850, %v1849
        %v1854 = vpack.i.b16 %v1675, %v1647
        %v1855 = vshrl.u32 %v1647, 16
        %v1856 = vshrl.u32 %v1675, 16
        %v1857 = vpack.i.b16 %v1856, %v1855
        %v1860 = vpack.i.b16 %v1673, %v1645
        %v1861 = vshrl.u32 %v1645, 16
        %v1862 = vshrl.u32 %v1673, 16
        %v1863 = vpack.i.b16 %v1862, %v1861
        %v1866 = vpack.i.b16 %v1677, %v1649
        %v1867 = vshrl.u32 %v1649, 16
        %v1868 = vshrl.u32 %v1677, 16
        %v1869 = vpack.i.b16 %v1868, %v1867
        %v1872 = vpack.i.b16 %v1725, %v1697
        %v1873 = vshrl.u32 %v1697, 16
        %v1874 = vshrl.u32 %v1725, 16
        %v1875 = vpack.i.b16 %v1874, %v1873
        %v1878 = vpack.i.b16 %v1731, %v1703
        %v1879 = vshrl.u32 %v1703, 16
        %v1880 = vshrl.u32 %v1731, 16
        %v1881 = vpack.i.b16 %v1880, %v1879
        %v1884 = vpack.i.b16 %v1729, %v1701
        %v1885 = vshrl.u32 %v1701, 16
        %v1886 = vshrl.u32 %v1729, 16
        %v1887 = vpack.i.b16 %v1886, %v1885
        %v1890 = vpack.i.b16 %v1733, %v1705
        %v1891 = vshrl.u32 %v1705, 16
        %v1892 = vshrl.u32 %v1733, 16
        %v1893 = vpack.i.b16 %v1892, %v1891
        %v1896 = vpack.i.b16 %v1781, %v1753
        %v1897 = vshrl.u32 %v1753, 16
        %v1898 = vshrl.u32 %v1781, 16
        %v1899 = vpack.i.b16 %v1898, %v1897
        %v1902 = vpack.i.b16 %v1787, %v1759
        %v1903 = vshrl.u32 %v1759, 16
        %v1904 = vshrl.u32 %v1787, 16
        %v1905 = vpack.i.b16 %v1904, %v1903
        %v1908 = vpack.i.b16 %v1785, %v1757
        %v1909 = vshrl.u32 %v1757, 16
        %v1910 = vshrl.u32 %v1785, 16
        %v1911 = vpack.i.b16 %v1910, %v1909
        %v1914 = vpack.i.b16 %v1789, %v1761
        %v1915 = vshrl.u32 %v1761, 16
        %v1916 = vshrl.u32 %v1789, 16
        %v1917 = vpack.i.b16 %v1916, %v1915
        %v1920 = vpack.i.b16 %v1837, %v1809
        %v1921 = vshrl.u32 %v1809, 16
        %v1922 = vshrl.u32 %v1837, 16
        %v1923 = vpack.i.b16 %v1922, %v1921
        %v1926 = vpack.i.b16 %v1843, %v1815
        %v1927 = vshrl.u32 %v1815, 16
        %v1928 = vshrl.u32 %v1843, 16
        %v1929 = vpack.i.b16 %v1928, %v1927
        %v1932 = vpack.i.b16 %v1841, %v1813
        %v1933 = vshrl.u32 %v1813, 16
        %v1934 = vshrl.u32 %v1841, 16
        %v1935 = vpack.i.b16 %v1934, %v1933
        %v1938 = vpack.i.b16 %v1845, %v1817
        %v1939 = vshrl.u32 %v1817, 16
        %v1940 = vshrl.u32 %v1845, 16
        %v1941 = vpack.i.b16 %v1940, %v1939
        %1950 = vrot.lane.b32.xlu0 %v1167, 120
        %v1951 = vpop.permute.xlu0 %1950
        %1952 = vrot.lane.b32.xlu0 %v1168, 120
        %v1953 = vpop.permute.xlu0 %1952
        %1954 = vrot.lane.b32.xlu0 %v1169, 120
        %v1955 = vpop.permute.xlu0 %1954
        %1956 = vrot.lane.b32.xlu0 %v1170, 120
        %v1957 = vpop.permute.xlu0 %1956
        %1958 = vrot.lane.b32.xlu0 %v1171, 120
        %v1959 = vpop.permute.xlu0 %1958
        %1960 = vrot.lane.b32.xlu0 %v1172, 120
        %v1961 = vpop.permute.xlu0 %1960
        %1962 = vrot.lane.b32.xlu0 %v1173, 120
        %v1963 = vpop.permute.xlu0 %1962
        %1964 = vrot.lane.b32.xlu0 %v1174, 120
        %v1965 = vpop.permute.xlu0 %1964
        %1974 = vrot.lane.b32.xlu0 %v1167, 112
        %v1975 = vpop.permute.xlu0 %1974
        %1976 = vrot.lane.b32.xlu0 %v1168, 112
        %v1977 = vpop.permute.xlu0 %1976
        %1978 = vrot.lane.b32.xlu0 %v1169, 112
        %v1979 = vpop.permute.xlu0 %1978
        %1980 = vrot.lane.b32.xlu0 %v1170, 112
        %v1981 = vpop.permute.xlu0 %1980
        %1982 = vrot.lane.b32.xlu0 %v1171, 112
        %v1983 = vpop.permute.xlu0 %1982
        %1984 = vrot.lane.b32.xlu0 %v1172, 112
        %v1985 = vpop.permute.xlu0 %1984
        %1986 = vrot.lane.b32.xlu0 %v1173, 112
        %v1987 = vpop.permute.xlu0 %1986
        %1988 = vrot.lane.b32.xlu0 %v1174, 112
        %v1989 = vpop.permute.xlu0 %1988
        %1998 = vrot.lane.b32.xlu0 %v1167, 104
        %v1999 = vpop.permute.xlu0 %1998
        %2000 = vrot.lane.b32.xlu0 %v1168, 104
        %v2001 = vpop.permute.xlu0 %2000
        %2002 = vrot.lane.b32.xlu0 %v1169, 104
        %v2003 = vpop.permute.xlu0 %2002
        %2004 = vrot.lane.b32.xlu0 %v1170, 104
        %v2005 = vpop.permute.xlu0 %2004
        %2006 = vrot.lane.b32.xlu0 %v1171, 104
        %v2007 = vpop.permute.xlu0 %2006
        %2008 = vrot.lane.b32.xlu0 %v1172, 104
        %v2009 = vpop.permute.xlu0 %2008
        %2010 = vrot.lane.b32.xlu0 %v1173, 104
        %v2011 = vpop.permute.xlu0 %2010
        %2012 = vrot.lane.b32.xlu0 %v1174, 104
        %v2013 = vpop.permute.xlu0 %2012
        %2022 = vrot.lane.b32.xlu0 %v1167, 96
        %v2023 = vpop.permute.xlu0 %2022
        %2024 = vrot.lane.b32.xlu0 %v1168, 96
        %v2025 = vpop.permute.xlu0 %2024
        %2026 = vrot.lane.b32.xlu0 %v1169, 96
        %v2027 = vpop.permute.xlu0 %2026
        %2028 = vrot.lane.b32.xlu0 %v1170, 96
        %v2029 = vpop.permute.xlu0 %2028
        %2030 = vrot.lane.b32.xlu0 %v1171, 96
        %v2031 = vpop.permute.xlu0 %2030
        %2032 = vrot.lane.b32.xlu0 %v1172, 96
        %v2033 = vpop.permute.xlu0 %2032
        %2034 = vrot.lane.b32.xlu0 %v1173, 96
        %v2035 = vpop.permute.xlu0 %2034
        %2036 = vrot.lane.b32.xlu0 %v1174, 96
        %v2037 = vpop.permute.xlu0 %2036
        %2046 = vrot.lane.b32.xlu0 %v1167, 88
        %v2047 = vpop.permute.xlu0 %2046
        %2048 = vrot.lane.b32.xlu0 %v1168, 88
        %v2049 = vpop.permute.xlu0 %2048
        %2050 = vrot.lane.b32.xlu0 %v1169, 88
        %v2051 = vpop.permute.xlu0 %2050
        %2052 = vrot.lane.b32.xlu0 %v1170, 88
        %v2053 = vpop.permute.xlu0 %2052
        %2054 = vrot.lane.b32.xlu0 %v1171, 88
        %v2055 = vpop.permute.xlu0 %2054
        %2056 = vrot.lane.b32.xlu0 %v1172, 88
        %v2057 = vpop.permute.xlu0 %2056
        %2058 = vrot.lane.b32.xlu0 %v1173, 88
        %v2059 = vpop.permute.xlu0 %2058
        %2060 = vrot.lane.b32.xlu0 %v1174, 88
        %v2061 = vpop.permute.xlu0 %2060
        %2070 = vrot.lane.b32.xlu0 %v1167, 80
        %v2071 = vpop.permute.xlu0 %2070
        %2072 = vrot.lane.b32.xlu0 %v1168, 80
        %v2073 = vpop.permute.xlu0 %2072
        %2074 = vrot.lane.b32.xlu0 %v1169, 80
        %v2075 = vpop.permute.xlu0 %2074
        %2076 = vrot.lane.b32.xlu0 %v1170, 80
        %v2077 = vpop.permute.xlu0 %2076
        %2078 = vrot.lane.b32.xlu0 %v1171, 80
        %v2079 = vpop.permute.xlu0 %2078
        %2080 = vrot.lane.b32.xlu0 %v1172, 80
        %v2081 = vpop.permute.xlu0 %2080
        %2082 = vrot.lane.b32.xlu0 %v1173, 80
        %v2083 = vpop.permute.xlu0 %2082
        %2084 = vrot.lane.b32.xlu0 %v1174, 80
        %v2085 = vpop.permute.xlu0 %2084
        %2094 = vrot.lane.b32.xlu0 %v1167, 72
        %v2095 = vpop.permute.xlu0 %2094
        %2096 = vrot.lane.b32.xlu0 %v1168, 72
        %v2097 = vpop.permute.xlu0 %2096
        %2098 = vrot.lane.b32.xlu0 %v1169, 72
        %v2099 = vpop.permute.xlu0 %2098
        %2100 = vrot.lane.b32.xlu0 %v1170, 72
        %v2101 = vpop.permute.xlu0 %2100
        %2102 = vrot.lane.b32.xlu0 %v1171, 72
        %v2103 = vpop.permute.xlu0 %2102
        %2104 = vrot.lane.b32.xlu0 %v1172, 72
        %v2105 = vpop.permute.xlu0 %2104
        %2106 = vrot.lane.b32.xlu0 %v1173, 72
        %v2107 = vpop.permute.xlu0 %2106
        %2108 = vrot.lane.b32.xlu0 %v1174, 72
        %v2109 = vpop.permute.xlu0 %2108
        %2118 = vrot.lane.b32.xlu0 %v1167, 64
        %v2119 = vpop.permute.xlu0 %2118
        %2120 = vrot.lane.b32.xlu0 %v1168, 64
        %v2121 = vpop.permute.xlu0 %2120
        %2122 = vrot.lane.b32.xlu0 %v1169, 64
        %v2123 = vpop.permute.xlu0 %2122
        %2124 = vrot.lane.b32.xlu0 %v1170, 64
        %v2125 = vpop.permute.xlu0 %2124
        %2126 = vrot.lane.b32.xlu0 %v1171, 64
        %v2127 = vpop.permute.xlu0 %2126
        %2128 = vrot.lane.b32.xlu0 %v1172, 64
        %v2129 = vpop.permute.xlu0 %2128
        %2130 = vrot.lane.b32.xlu0 %v1173, 64
        %v2131 = vpop.permute.xlu0 %2130
        %2132 = vrot.lane.b32.xlu0 %v1174, 64
        %v2133 = vpop.permute.xlu0 %2132
        %2142 = vrot.lane.b32.xlu0 %v1167, 56
        %v2143 = vpop.permute.xlu0 %2142
        %2144 = vrot.lane.b32.xlu0 %v1168, 56
        %v2145 = vpop.permute.xlu0 %2144
        %2146 = vrot.lane.b32.xlu0 %v1169, 56
        %v2147 = vpop.permute.xlu0 %2146
        %2148 = vrot.lane.b32.xlu0 %v1170, 56
        %v2149 = vpop.permute.xlu0 %2148
        %2150 = vrot.lane.b32.xlu0 %v1171, 56
        %v2151 = vpop.permute.xlu0 %2150
        %2152 = vrot.lane.b32.xlu0 %v1172, 56
        %v2153 = vpop.permute.xlu0 %2152
        %2154 = vrot.lane.b32.xlu0 %v1173, 56
        %v2155 = vpop.permute.xlu0 %2154
        %2156 = vrot.lane.b32.xlu0 %v1174, 56
        %v2157 = vpop.permute.xlu0 %2156
        %2166 = vrot.lane.b32.xlu0 %v1167, 48
        %v2167 = vpop.permute.xlu0 %2166
        %2168 = vrot.lane.b32.xlu0 %v1168, 48
        %v2169 = vpop.permute.xlu0 %2168
        %2170 = vrot.lane.b32.xlu0 %v1169, 48
        %v2171 = vpop.permute.xlu0 %2170
        %2172 = vrot.lane.b32.xlu0 %v1170, 48
        %v2173 = vpop.permute.xlu0 %2172
        %2174 = vrot.lane.b32.xlu0 %v1171, 48
        %v2175 = vpop.permute.xlu0 %2174
        %2176 = vrot.lane.b32.xlu0 %v1172, 48
        %v2177 = vpop.permute.xlu0 %2176
        %2178 = vrot.lane.b32.xlu0 %v1173, 48
        %v2179 = vpop.permute.xlu0 %2178
        %2180 = vrot.lane.b32.xlu0 %v1174, 48
        %v2181 = vpop.permute.xlu0 %2180
        %2190 = vrot.lane.b32.xlu0 %v1167, 40
        %v2191 = vpop.permute.xlu0 %2190
        %2192 = vrot.lane.b32.xlu0 %v1168, 40
        %v2193 = vpop.permute.xlu0 %2192
        %2194 = vrot.lane.b32.xlu0 %v1169, 40
        %v2195 = vpop.permute.xlu0 %2194
        %2196 = vrot.lane.b32.xlu0 %v1170, 40
        %v2197 = vpop.permute.xlu0 %2196
        %2198 = vrot.lane.b32.xlu0 %v1171, 40
        %v2199 = vpop.permute.xlu0 %2198
        %2200 = vrot.lane.b32.xlu0 %v1172, 40
        %v2201 = vpop.permute.xlu0 %2200
        %2202 = vrot.lane.b32.xlu0 %v1173, 40
        %v2203 = vpop.permute.xlu0 %2202
        %2204 = vrot.lane.b32.xlu0 %v1174, 40
        %v2205 = vpop.permute.xlu0 %2204
        %2214 = vrot.lane.b32.xlu0 %v1167, 32
        %v2215 = vpop.permute.xlu0 %2214
        %2216 = vrot.lane.b32.xlu0 %v1168, 32
        %v2217 = vpop.permute.xlu0 %2216
        %2218 = vrot.lane.b32.xlu0 %v1169, 32
        %v2219 = vpop.permute.xlu0 %2218
        %2220 = vrot.lane.b32.xlu0 %v1170, 32
        %v2221 = vpop.permute.xlu0 %2220
        %2222 = vrot.lane.b32.xlu0 %v1171, 32
        %v2223 = vpop.permute.xlu0 %2222
        %2224 = vrot.lane.b32.xlu0 %v1172, 32
        %v2225 = vpop.permute.xlu0 %2224
        %2226 = vrot.lane.b32.xlu0 %v1173, 32
        %v2227 = vpop.permute.xlu0 %2226
        %2228 = vrot.lane.b32.xlu0 %v1174, 32
        %v2229 = vpop.permute.xlu0 %2228
        %2238 = vrot.lane.b32.xlu0 %v1167, 24
        %v2239 = vpop.permute.xlu0 %2238
        %2240 = vrot.lane.b32.xlu0 %v1168, 24
        %v2241 = vpop.permute.xlu0 %2240
        %2242 = vrot.lane.b32.xlu0 %v1169, 24
        %v2243 = vpop.permute.xlu0 %2242
        %2244 = vrot.lane.b32.xlu0 %v1170, 24
        %v2245 = vpop.permute.xlu0 %2244
        %2246 = vrot.lane.b32.xlu0 %v1171, 24
        %v2247 = vpop.permute.xlu0 %2246
        %2248 = vrot.lane.b32.xlu0 %v1172, 24
        %v2249 = vpop.permute.xlu0 %2248
        %2250 = vrot.lane.b32.xlu0 %v1173, 24
        %v2251 = vpop.permute.xlu0 %2250
        %2252 = vrot.lane.b32.xlu0 %v1174, 24
        %v2253 = vpop.permute.xlu0 %2252
        %2262 = vrot.lane.b32.xlu0 %v1167, 16
        %v2263 = vpop.permute.xlu0 %2262
        %2264 = vrot.lane.b32.xlu0 %v1168, 16
        %v2265 = vpop.permute.xlu0 %2264
        %2266 = vrot.lane.b32.xlu0 %v1169, 16
        %v2267 = vpop.permute.xlu0 %2266
        %2268 = vrot.lane.b32.xlu0 %v1170, 16
        %v2269 = vpop.permute.xlu0 %2268
        %2270 = vrot.lane.b32.xlu0 %v1171, 16
        %v2271 = vpop.permute.xlu0 %2270
        %2272 = vrot.lane.b32.xlu0 %v1172, 16
        %v2273 = vpop.permute.xlu0 %2272
        %2274 = vrot.lane.b32.xlu0 %v1173, 16
        %v2275 = vpop.permute.xlu0 %2274
        %2276 = vrot.lane.b32.xlu0 %v1174, 16
        %v2277 = vpop.permute.xlu0 %2276
        %2286 = vrot.lane.b32.xlu0 %v1167, 8
        %v2287 = vpop.permute.xlu0 %2286
        %2288 = vrot.lane.b32.xlu0 %v1168, 8
        %v2289 = vpop.permute.xlu0 %2288
        %2290 = vrot.lane.b32.xlu0 %v1169, 8
        %v2291 = vpop.permute.xlu0 %2290
        %2292 = vrot.lane.b32.xlu0 %v1170, 8
        %v2293 = vpop.permute.xlu0 %2292
        %2294 = vrot.lane.b32.xlu0 %v1171, 8
        %v2295 = vpop.permute.xlu0 %2294
        %2296 = vrot.lane.b32.xlu0 %v1172, 8
        %v2297 = vpop.permute.xlu0 %2296
        %2298 = vrot.lane.b32.xlu0 %v1173, 8
        %v2299 = vpop.permute.xlu0 %2298
        %2300 = vrot.lane.b32.xlu0 %v1174, 8
        %v2301 = vpop.permute.xlu0 %2300
        %v2310 = vrot.slane %v2023, 4
        %v2311 = vsel %vm1270, %v2310, %v1167
        %v2313 = vunpack.c.l.s4 1983009808
        %v2314 = vunpack.c.0.s8 %v2313
        %v2315 = vperm.slane %v2311, %v2314
        %v2316 = vrot.slane %v2071, 4
        %v2317 = vsel %vm1270, %v2316, %v1975
        %v2319 = vunpack.c.l.s4 1983009808
        %v2320 = vunpack.c.0.s8 %v2319
        %v2321 = vperm.slane %v2317, %v2320
        %v2322 = vrot.slane %v2321, 4
        %v2323 = vsel %vm1270, %v2322, %v2315
        %v2324 = vrot.slane %v2315, 4
        %v2325 = vsel %vm1270, %v2321, %v2324
        %v2327 = vunpack.c.l.s4 1934713408
        %v2328 = vunpack.c.0.s8 %v2327
        %v2329 = vperm.slane %v2323, %v2328
        %v2331 = vunpack.c.l.s4 1934713408
        %v2332 = vunpack.c.0.s8 %v2331
        %v2333 = vperm.slane %v2325, %v2332
        %v2334 = vrot.slane %v2329, 4
        %v2335 = vsel %vm1270, 0, %v2334
        %v2336 = vrot.slane %v2333, 4
        %v2337 = vsel %vm1270, 0, %v2336
        %v2338 = vrot.slane %v2047, 4
        %v2339 = vsel %vm1270, %v2338, %v1951
        %v2341 = vunpack.c.l.s4 1983009808
        %v2342 = vunpack.c.0.s8 %v2341
        %v2343 = vperm.slane %v2339, %v2342
        %v2344 = vrot.slane %v2095, 4
        %v2345 = vsel %vm1270, %v2344, %v1999
        %v2347 = vunpack.c.l.s4 1983009808
        %v2348 = vunpack.c.0.s8 %v2347
        %v2349 = vperm.slane %v2345, %v2348
        %v2350 = vrot.slane %v2349, 4
        %v2351 = vsel %vm1270, %v2350, %v2343
        %v2352 = vrot.slane %v2343, 4
        %v2353 = vsel %vm1270, %v2349, %v2352
        %v2355 = vunpack.c.l.s4 1934713408
        %v2356 = vunpack.c.0.s8 %v2355
        %v2357 = vperm.slane %v2351, %v2356
        %v2359 = vunpack.c.l.s4 1934713408
        %v2360 = vunpack.c.0.s8 %v2359
        %v2361 = vperm.slane %v2353, %v2360
        %v2362 = vrot.slane %v2357, 4
        %v2363 = vsel %vm1270, 0, %v2362
        %v2364 = vrot.slane %v2361, 4
        %v2365 = vsel %vm1270, 0, %v2364
        %v2366 = vrot.slane %v2215, 4
        %v2367 = vsel %vm1270, %v2366, %v2119
        %v2369 = vunpack.c.l.s4 1983009808
        %v2370 = vunpack.c.0.s8 %v2369
        %v2371 = vperm.slane %v2367, %v2370
        %v2372 = vrot.slane %v2263, 4
        %v2373 = vsel %vm1270, %v2372, %v2167
        %v2375 = vunpack.c.l.s4 1983009808
        %v2376 = vunpack.c.0.s8 %v2375
        %v2377 = vperm.slane %v2373, %v2376
        %v2378 = vrot.slane %v2377, 4
        %v2379 = vsel %vm1270, %v2378, %v2371
        %v2380 = vrot.slane %v2371, 4
        %v2381 = vsel %vm1270, %v2377, %v2380
        %v2383 = vunpack.c.l.s4 1934713408
        %v2384 = vunpack.c.0.s8 %v2383
        %v2385 = vperm.slane %v2379, %v2384
        %v2387 = vunpack.c.l.s4 1934713408
        %v2388 = vunpack.c.0.s8 %v2387
        %v2389 = vperm.slane %v2381, %v2388
        %v2390 = vrot.slane %v2385, 4
        %v2391 = vsel %vm1270, 0, %v2390
        %v2392 = vrot.slane %v2389, 4
        %v2393 = vsel %vm1270, 0, %v2392
        %v2394 = vrot.slane %v2239, 4
        %v2395 = vsel %vm1270, %v2394, %v2143
        %v2397 = vunpack.c.l.s4 1983009808
        %v2398 = vunpack.c.0.s8 %v2397
        %v2399 = vperm.slane %v2395, %v2398
        %v2400 = vrot.slane %v2287, 4
        %v2401 = vsel %vm1270, %v2400, %v2191
        %v2403 = vunpack.c.l.s4 1983009808
        %v2404 = vunpack.c.0.s8 %v2403
        %v2405 = vperm.slane %v2401, %v2404
        %v2406 = vrot.slane %v2405, 4
        %v2407 = vsel %vm1270, %v2406, %v2399
        %v2408 = vrot.slane %v2399, 4
        %v2409 = vsel %vm1270, %v2405, %v2408
        %v2411 = vunpack.c.l.s4 1934713408
        %v2412 = vunpack.c.0.s8 %v2411
        %v2413 = vperm.slane %v2407, %v2412
        %v2415 = vunpack.c.l.s4 1934713408
        %v2416 = vunpack.c.0.s8 %v2415
        %v2417 = vperm.slane %v2409, %v2416
        %v2418 = vrot.slane %v2413, 4
        %v2419 = vsel %vm1270, 0, %v2418
        %v2420 = vrot.slane %v2417, 4
        %v2421 = vsel %vm1270, 0, %v2420
        %v2422 = vrot.slane %v2025, 4
        %v2423 = vsel %vm1270, %v2422, %v1168
        %v2425 = vunpack.c.l.s4 1983009808
        %v2426 = vunpack.c.0.s8 %v2425
        %v2427 = vperm.slane %v2423, %v2426
        %v2428 = vrot.slane %v2073, 4
        %v2429 = vsel %vm1270, %v2428, %v1977
        %v2431 = vunpack.c.l.s4 1983009808
        %v2432 = vunpack.c.0.s8 %v2431
        %v2433 = vperm.slane %v2429, %v2432
        %v2434 = vrot.slane %v2433, 4
        %v2435 = vsel %vm1270, %v2434, %v2427
        %v2436 = vrot.slane %v2427, 4
        %v2437 = vsel %vm1270, %v2433, %v2436
        %v2439 = vunpack.c.l.s4 1934713408
        %v2440 = vunpack.c.0.s8 %v2439
        %v2441 = vperm.slane %v2435, %v2440
        %v2443 = vunpack.c.l.s4 1934713408
        %v2444 = vunpack.c.0.s8 %v2443
        %v2445 = vperm.slane %v2437, %v2444
        %v2446 = vrot.slane %v2441, 4
        %v2447 = vsel %vm1270, 0, %v2446
        %v2448 = vrot.slane %v2445, 4
        %v2449 = vsel %vm1270, 0, %v2448
        %v2450 = vrot.slane %v2049, 4
        %v2451 = vsel %vm1270, %v2450, %v1953
        %v2453 = vunpack.c.l.s4 1983009808
        %v2454 = vunpack.c.0.s8 %v2453
        %v2455 = vperm.slane %v2451, %v2454
        %v2456 = vrot.slane %v2097, 4
        %v2457 = vsel %vm1270, %v2456, %v2001
        %v2459 = vunpack.c.l.s4 1983009808
        %v2460 = vunpack.c.0.s8 %v2459
        %v2461 = vperm.slane %v2457, %v2460
        %v2462 = vrot.slane %v2461, 4
        %v2463 = vsel %vm1270, %v2462, %v2455
        %v2464 = vrot.slane %v2455, 4
        %v2465 = vsel %vm1270, %v2461, %v2464
        %v2467 = vunpack.c.l.s4 1934713408
        %v2468 = vunpack.c.0.s8 %v2467
        %v2469 = vperm.slane %v2463, %v2468
        %v2471 = vunpack.c.l.s4 1934713408
        %v2472 = vunpack.c.0.s8 %v2471
        %v2473 = vperm.slane %v2465, %v2472
        %v2474 = vrot.slane %v2469, 4
        %v2475 = vsel %vm1270, 0, %v2474
        %v2476 = vrot.slane %v2473, 4
        %v2477 = vsel %vm1270, 0, %v2476
        %v2478 = vrot.slane %v2217, 4
        %v2479 = vsel %vm1270, %v2478, %v2121
        %v2481 = vunpack.c.l.s4 1983009808
        %v2482 = vunpack.c.0.s8 %v2481
        %v2483 = vperm.slane %v2479, %v2482
        %v2484 = vrot.slane %v2265, 4
        %v2485 = vsel %vm1270, %v2484, %v2169
        %v2487 = vunpack.c.l.s4 1983009808
        %v2488 = vunpack.c.0.s8 %v2487
        %v2489 = vperm.slane %v2485, %v2488
        %v2490 = vrot.slane %v2489, 4
        %v2491 = vsel %vm1270, %v2490, %v2483
        %v2492 = vrot.slane %v2483, 4
        %v2493 = vsel %vm1270, %v2489, %v2492
        %v2495 = vunpack.c.l.s4 1934713408
        %v2496 = vunpack.c.0.s8 %v2495
        %v2497 = vperm.slane %v2491, %v2496
        %v2499 = vunpack.c.l.s4 1934713408
        %v2500 = vunpack.c.0.s8 %v2499
        %v2501 = vperm.slane %v2493, %v2500
        %v2502 = vrot.slane %v2497, 4
        %v2503 = vsel %vm1270, 0, %v2502
        %v2504 = vrot.slane %v2501, 4
        %v2505 = vsel %vm1270, 0, %v2504
        %v2506 = vrot.slane %v2241, 4
        %v2507 = vsel %vm1270, %v2506, %v2145
        %v2509 = vunpack.c.l.s4 1983009808
        %v2510 = vunpack.c.0.s8 %v2509
        %v2511 = vperm.slane %v2507, %v2510
        %v2512 = vrot.slane %v2289, 4
        %v2513 = vsel %vm1270, %v2512, %v2193
        %v2515 = vunpack.c.l.s4 1983009808
        %v2516 = vunpack.c.0.s8 %v2515
        %v2517 = vperm.slane %v2513, %v2516
        %v2518 = vrot.slane %v2517, 4
        %v2519 = vsel %vm1270, %v2518, %v2511
        %v2520 = vrot.slane %v2511, 4
        %v2521 = vsel %vm1270, %v2517, %v2520
        %v2523 = vunpack.c.l.s4 1934713408
        %v2524 = vunpack.c.0.s8 %v2523
        %v2525 = vperm.slane %v2519, %v2524
        %v2527 = vunpack.c.l.s4 1934713408
        %v2528 = vunpack.c.0.s8 %v2527
        %v2529 = vperm.slane %v2521, %v2528
        %v2530 = vrot.slane %v2525, 4
        %v2531 = vsel %vm1270, 0, %v2530
        %v2532 = vrot.slane %v2529, 4
        %v2533 = vsel %vm1270, 0, %v2532
        %v2534 = vrot.slane %v2027, 4
        %v2535 = vsel %vm1270, %v2534, %v1169
        %v2537 = vunpack.c.l.s4 1983009808
        %v2538 = vunpack.c.0.s8 %v2537
        %v2539 = vperm.slane %v2535, %v2538
        %v2540 = vrot.slane %v2075, 4
        %v2541 = vsel %vm1270, %v2540, %v1979
        %v2543 = vunpack.c.l.s4 1983009808
        %v2544 = vunpack.c.0.s8 %v2543
        %v2545 = vperm.slane %v2541, %v2544
        %v2546 = vrot.slane %v2545, 4
        %v2547 = vsel %vm1270, %v2546, %v2539
        %v2548 = vrot.slane %v2539, 4
        %v2549 = vsel %vm1270, %v2545, %v2548
        %v2551 = vunpack.c.l.s4 1934713408
        %v2552 = vunpack.c.0.s8 %v2551
        %v2553 = vperm.slane %v2547, %v2552
        %v2555 = vunpack.c.l.s4 1934713408
        %v2556 = vunpack.c.0.s8 %v2555
        %v2557 = vperm.slane %v2549, %v2556
        %v2558 = vrot.slane %v2553, 4
        %v2559 = vsel %vm1270, 0, %v2558
        %v2560 = vrot.slane %v2557, 4
        %v2561 = vsel %vm1270, 0, %v2560
        %v2562 = vrot.slane %v2051, 4
        %v2563 = vsel %vm1270, %v2562, %v1955
        %v2565 = vunpack.c.l.s4 1983009808
        %v2566 = vunpack.c.0.s8 %v2565
        %v2567 = vperm.slane %v2563, %v2566
        %v2568 = vrot.slane %v2099, 4
        %v2569 = vsel %vm1270, %v2568, %v2003
        %v2571 = vunpack.c.l.s4 1983009808
        %v2572 = vunpack.c.0.s8 %v2571
        %v2573 = vperm.slane %v2569, %v2572
        %v2574 = vrot.slane %v2573, 4
        %v2575 = vsel %vm1270, %v2574, %v2567
        %v2576 = vrot.slane %v2567, 4
        %v2577 = vsel %vm1270, %v2573, %v2576
        %v2579 = vunpack.c.l.s4 1934713408
        %v2580 = vunpack.c.0.s8 %v2579
        %v2581 = vperm.slane %v2575, %v2580
        %v2583 = vunpack.c.l.s4 1934713408
        %v2584 = vunpack.c.0.s8 %v2583
        %v2585 = vperm.slane %v2577, %v2584
        %v2586 = vrot.slane %v2581, 4
        %v2587 = vsel %vm1270, 0, %v2586
        %v2588 = vrot.slane %v2585, 4
        %v2589 = vsel %vm1270, 0, %v2588
        %v2590 = vrot.slane %v2219, 4
        %v2591 = vsel %vm1270, %v2590, %v2123
        %v2593 = vunpack.c.l.s4 1983009808
        %v2594 = vunpack.c.0.s8 %v2593
        %v2595 = vperm.slane %v2591, %v2594
        %v2596 = vrot.slane %v2267, 4
        %v2597 = vsel %vm1270, %v2596, %v2171
        %v2599 = vunpack.c.l.s4 1983009808
        %v2600 = vunpack.c.0.s8 %v2599
        %v2601 = vperm.slane %v2597, %v2600
        %v2602 = vrot.slane %v2601, 4
        %v2603 = vsel %vm1270, %v2602, %v2595
        %v2604 = vrot.slane %v2595, 4
        %v2605 = vsel %vm1270, %v2601, %v2604
        %v2607 = vunpack.c.l.s4 1934713408
        %v2608 = vunpack.c.0.s8 %v2607
        %v2609 = vperm.slane %v2603, %v2608
        %v2611 = vunpack.c.l.s4 1934713408
        %v2612 = vunpack.c.0.s8 %v2611
        %v2613 = vperm.slane %v2605, %v2612
        %v2614 = vrot.slane %v2609, 4
        %v2615 = vsel %vm1270, 0, %v2614
        %v2616 = vrot.slane %v2613, 4
        %v2617 = vsel %vm1270, 0, %v2616
        %v2618 = vrot.slane %v2243, 4
        %v2619 = vsel %vm1270, %v2618, %v2147
        %v2621 = vunpack.c.l.s4 1983009808
        %v2622 = vunpack.c.0.s8 %v2621
        %v2623 = vperm.slane %v2619, %v2622
        %v2624 = vrot.slane %v2291, 4
        %v2625 = vsel %vm1270, %v2624, %v2195
        %v2627 = vunpack.c.l.s4 1983009808
        %v2628 = vunpack.c.0.s8 %v2627
        %v2629 = vperm.slane %v2625, %v2628
        %v2630 = vrot.slane %v2629, 4
        %v2631 = vsel %vm1270, %v2630, %v2623
        %v2632 = vrot.slane %v2623, 4
        %v2633 = vsel %vm1270, %v2629, %v2632
        %v2635 = vunpack.c.l.s4 1934713408
        %v2636 = vunpack.c.0.s8 %v2635
        %v2637 = vperm.slane %v2631, %v2636
        %v2639 = vunpack.c.l.s4 1934713408
        %v2640 = vunpack.c.0.s8 %v2639
        %v2641 = vperm.slane %v2633, %v2640
        %v2642 = vrot.slane %v2637, 4
        %v2643 = vsel %vm1270, 0, %v2642
        %v2644 = vrot.slane %v2641, 4
        %v2645 = vsel %vm1270, 0, %v2644
        %v2646 = vrot.slane %v2029, 4
        %v2647 = vsel %vm1270, %v2646, %v1170
        %v2649 = vunpack.c.l.s4 1983009808
        %v2650 = vunpack.c.0.s8 %v2649
        %v2651 = vperm.slane %v2647, %v2650
        %v2652 = vrot.slane %v2077, 4
        %v2653 = vsel %vm1270, %v2652, %v1981
        %v2655 = vunpack.c.l.s4 1983009808
        %v2656 = vunpack.c.0.s8 %v2655
        %v2657 = vperm.slane %v2653, %v2656
        %v2658 = vrot.slane %v2657, 4
        %v2659 = vsel %vm1270, %v2658, %v2651
        %v2660 = vrot.slane %v2651, 4
        %v2661 = vsel %vm1270, %v2657, %v2660
        %v2663 = vunpack.c.l.s4 1934713408
        %v2664 = vunpack.c.0.s8 %v2663
        %v2665 = vperm.slane %v2659, %v2664
        %v2667 = vunpack.c.l.s4 1934713408
        %v2668 = vunpack.c.0.s8 %v2667
        %v2669 = vperm.slane %v2661, %v2668
        %v2670 = vrot.slane %v2665, 4
        %v2671 = vsel %vm1270, 0, %v2670
        %v2672 = vrot.slane %v2669, 4
        %v2673 = vsel %vm1270, 0, %v2672
        %v2674 = vrot.slane %v2053, 4
        %v2675 = vsel %vm1270, %v2674, %v1957
        %v2677 = vunpack.c.l.s4 1983009808
        %v2678 = vunpack.c.0.s8 %v2677
        %v2679 = vperm.slane %v2675, %v2678
        %v2680 = vrot.slane %v2101, 4
        %v2681 = vsel %vm1270, %v2680, %v2005
        %v2683 = vunpack.c.l.s4 1983009808
        %v2684 = vunpack.c.0.s8 %v2683
        %v2685 = vperm.slane %v2681, %v2684
        %v2686 = vrot.slane %v2685, 4
        %v2687 = vsel %vm1270, %v2686, %v2679
        %v2688 = vrot.slane %v2679, 4
        %v2689 = vsel %vm1270, %v2685, %v2688
        %v2691 = vunpack.c.l.s4 1934713408
        %v2692 = vunpack.c.0.s8 %v2691
        %v2693 = vperm.slane %v2687, %v2692
        %v2695 = vunpack.c.l.s4 1934713408
        %v2696 = vunpack.c.0.s8 %v2695
        %v2697 = vperm.slane %v2689, %v2696
        %v2698 = vrot.slane %v2693, 4
        %v2699 = vsel %vm1270, 0, %v2698
        %v2700 = vrot.slane %v2697, 4
        %v2701 = vsel %vm1270, 0, %v2700
        %v2702 = vrot.slane %v2221, 4
        %v2703 = vsel %vm1270, %v2702, %v2125
        %v2705 = vunpack.c.l.s4 1983009808
        %v2706 = vunpack.c.0.s8 %v2705
        %v2707 = vperm.slane %v2703, %v2706
        %v2708 = vrot.slane %v2269, 4
        %v2709 = vsel %vm1270, %v2708, %v2173
        %v2711 = vunpack.c.l.s4 1983009808
        %v2712 = vunpack.c.0.s8 %v2711
        %v2713 = vperm.slane %v2709, %v2712
        %v2714 = vrot.slane %v2713, 4
        %v2715 = vsel %vm1270, %v2714, %v2707
        %v2716 = vrot.slane %v2707, 4
        %v2717 = vsel %vm1270, %v2713, %v2716
        %v2719 = vunpack.c.l.s4 1934713408
        %v2720 = vunpack.c.0.s8 %v2719
        %v2721 = vperm.slane %v2715, %v2720
        %v2723 = vunpack.c.l.s4 1934713408
        %v2724 = vunpack.c.0.s8 %v2723
        %v2725 = vperm.slane %v2717, %v2724
        %v2726 = vrot.slane %v2721, 4
        %v2727 = vsel %vm1270, 0, %v2726
        %v2728 = vrot.slane %v2725, 4
        %v2729 = vsel %vm1270, 0, %v2728
        %v2730 = vrot.slane %v2245, 4
        %v2731 = vsel %vm1270, %v2730, %v2149
        %v2733 = vunpack.c.l.s4 1983009808
        %v2734 = vunpack.c.0.s8 %v2733
        %v2735 = vperm.slane %v2731, %v2734
        %v2736 = vrot.slane %v2293, 4
        %v2737 = vsel %vm1270, %v2736, %v2197
        %v2739 = vunpack.c.l.s4 1983009808
        %v2740 = vunpack.c.0.s8 %v2739
        %v2741 = vperm.slane %v2737, %v2740
        %v2742 = vrot.slane %v2741, 4
        %v2743 = vsel %vm1270, %v2742, %v2735
        %v2744 = vrot.slane %v2735, 4
        %v2745 = vsel %vm1270, %v2741, %v2744
        %v2747 = vunpack.c.l.s4 1934713408
        %v2748 = vunpack.c.0.s8 %v2747
        %v2749 = vperm.slane %v2743, %v2748
        %v2751 = vunpack.c.l.s4 1934713408
        %v2752 = vunpack.c.0.s8 %v2751
        %v2753 = vperm.slane %v2745, %v2752
        %v2754 = vrot.slane %v2749, 4
        %v2755 = vsel %vm1270, 0, %v2754
        %v2756 = vrot.slane %v2753, 4
        %v2757 = vsel %vm1270, 0, %v2756
        %v2758 = vrot.slane %v2031, 4
        %v2759 = vsel %vm1270, %v2758, %v1171
        %v2761 = vunpack.c.l.s4 1983009808
        %v2762 = vunpack.c.0.s8 %v2761
        %v2763 = vperm.slane %v2759, %v2762
        %v2764 = vrot.slane %v2079, 4
        %v2765 = vsel %vm1270, %v2764, %v1983
        %v2767 = vunpack.c.l.s4 1983009808
        %v2768 = vunpack.c.0.s8 %v2767
        %v2769 = vperm.slane %v2765, %v2768
        %v2770 = vrot.slane %v2769, 4
        %v2771 = vsel %vm1270, %v2770, %v2763
        %v2772 = vrot.slane %v2763, 4
        %v2773 = vsel %vm1270, %v2769, %v2772
        %v2775 = vunpack.c.l.s4 1934713408
        %v2776 = vunpack.c.0.s8 %v2775
        %v2777 = vperm.slane %v2771, %v2776
        %v2779 = vunpack.c.l.s4 1934713408
        %v2780 = vunpack.c.0.s8 %v2779
        %v2781 = vperm.slane %v2773, %v2780
        %v2782 = vrot.slane %v2777, 4
        %v2783 = vsel %vm1270, 0, %v2782
        %v2784 = vrot.slane %v2781, 4
        %v2785 = vsel %vm1270, 0, %v2784
        %v2786 = vrot.slane %v2055, 4
        %v2787 = vsel %vm1270, %v2786, %v1959
        %v2789 = vunpack.c.l.s4 1983009808
        %v2790 = vunpack.c.0.s8 %v2789
        %v2791 = vperm.slane %v2787, %v2790
        %v2792 = vrot.slane %v2103, 4
        %v2793 = vsel %vm1270, %v2792, %v2007
        %v2795 = vunpack.c.l.s4 1983009808
        %v2796 = vunpack.c.0.s8 %v2795
        %v2797 = vperm.slane %v2793, %v2796
        %v2798 = vrot.slane %v2797, 4
        %v2799 = vsel %vm1270, %v2798, %v2791
        %v2800 = vrot.slane %v2791, 4
        %v2801 = vsel %vm1270, %v2797, %v2800
        %v2803 = vunpack.c.l.s4 1934713408
        %v2804 = vunpack.c.0.s8 %v2803
        %v2805 = vperm.slane %v2799, %v2804
        %v2807 = vunpack.c.l.s4 1934713408
        %v2808 = vunpack.c.0.s8 %v2807
        %v2809 = vperm.slane %v2801, %v2808
        %v2810 = vrot.slane %v2805, 4
        %v2811 = vsel %vm1270, 0, %v2810
        %v2812 = vrot.slane %v2809, 4
        %v2813 = vsel %vm1270, 0, %v2812
        %v2814 = vrot.slane %v2223, 4
        %v2815 = vsel %vm1270, %v2814, %v2127
        %v2817 = vunpack.c.l.s4 1983009808
        %v2818 = vunpack.c.0.s8 %v2817
        %v2819 = vperm.slane %v2815, %v2818
        %v2820 = vrot.slane %v2271, 4
        %v2821 = vsel %vm1270, %v2820, %v2175
        %v2823 = vunpack.c.l.s4 1983009808
        %v2824 = vunpack.c.0.s8 %v2823
        %v2825 = vperm.slane %v2821, %v2824
        %v2826 = vrot.slane %v2825, 4
        %v2827 = vsel %vm1270, %v2826, %v2819
        %v2828 = vrot.slane %v2819, 4
        %v2829 = vsel %vm1270, %v2825, %v2828
        %v2831 = vunpack.c.l.s4 1934713408
        %v2832 = vunpack.c.0.s8 %v2831
        %v2833 = vperm.slane %v2827, %v2832
        %v2835 = vunpack.c.l.s4 1934713408
        %v2836 = vunpack.c.0.s8 %v2835
        %v2837 = vperm.slane %v2829, %v2836
        %v2838 = vrot.slane %v2833, 4
        %v2839 = vsel %vm1270, 0, %v2838
        %v2840 = vrot.slane %v2837, 4
        %v2841 = vsel %vm1270, 0, %v2840
        %v2842 = vrot.slane %v2247, 4
        %v2843 = vsel %vm1270, %v2842, %v2151
        %v2845 = vunpack.c.l.s4 1983009808
        %v2846 = vunpack.c.0.s8 %v2845
        %v2847 = vperm.slane %v2843, %v2846
        %v2848 = vrot.slane %v2295, 4
        %v2849 = vsel %vm1270, %v2848, %v2199
        %v2851 = vunpack.c.l.s4 1983009808
        %v2852 = vunpack.c.0.s8 %v2851
        %v2853 = vperm.slane %v2849, %v2852
        %v2854 = vrot.slane %v2853, 4
        %v2855 = vsel %vm1270, %v2854, %v2847
        %v2856 = vrot.slane %v2847, 4
        %v2857 = vsel %vm1270, %v2853, %v2856
        %v2859 = vunpack.c.l.s4 1934713408
        %v2860 = vunpack.c.0.s8 %v2859
        %v2861 = vperm.slane %v2855, %v2860
        %v2863 = vunpack.c.l.s4 1934713408
        %v2864 = vunpack.c.0.s8 %v2863
        %v2865 = vperm.slane %v2857, %v2864
        %v2866 = vrot.slane %v2861, 4
        %v2867 = vsel %vm1270, 0, %v2866
        %v2868 = vrot.slane %v2865, 4
        %v2869 = vsel %vm1270, 0, %v2868
        %v2870 = vrot.slane %v2033, 4
        %v2871 = vsel %vm1270, %v2870, %v1172
        %v2873 = vunpack.c.l.s4 1983009808
        %v2874 = vunpack.c.0.s8 %v2873
        %v2875 = vperm.slane %v2871, %v2874
        %v2876 = vrot.slane %v2081, 4
        %v2877 = vsel %vm1270, %v2876, %v1985
        %v2879 = vunpack.c.l.s4 1983009808
        %v2880 = vunpack.c.0.s8 %v2879
        %v2881 = vperm.slane %v2877, %v2880
        %v2882 = vrot.slane %v2881, 4
        %v2883 = vsel %vm1270, %v2882, %v2875
        %v2884 = vrot.slane %v2875, 4
        %v2885 = vsel %vm1270, %v2881, %v2884
        %v2887 = vunpack.c.l.s4 1934713408
        %v2888 = vunpack.c.0.s8 %v2887
        %v2889 = vperm.slane %v2883, %v2888
        %v2891 = vunpack.c.l.s4 1934713408
        %v2892 = vunpack.c.0.s8 %v2891
        %v2893 = vperm.slane %v2885, %v2892
        %v2894 = vrot.slane %v2889, 4
        %v2895 = vsel %vm1270, 0, %v2894
        %v2896 = vrot.slane %v2893, 4
        %v2897 = vsel %vm1270, 0, %v2896
        %v2898 = vrot.slane %v2057, 4
        %v2899 = vsel %vm1270, %v2898, %v1961
        %v2901 = vunpack.c.l.s4 1983009808
        %v2902 = vunpack.c.0.s8 %v2901
        %v2903 = vperm.slane %v2899, %v2902
        %v2904 = vrot.slane %v2105, 4
        %v2905 = vsel %vm1270, %v2904, %v2009
        %v2907 = vunpack.c.l.s4 1983009808
        %v2908 = vunpack.c.0.s8 %v2907
        %v2909 = vperm.slane %v2905, %v2908
        %v2910 = vrot.slane %v2909, 4
        %v2911 = vsel %vm1270, %v2910, %v2903
        %v2912 = vrot.slane %v2903, 4
        %v2913 = vsel %vm1270, %v2909, %v2912
        %v2915 = vunpack.c.l.s4 1934713408
        %v2916 = vunpack.c.0.s8 %v2915
        %v2917 = vperm.slane %v2911, %v2916
        %v2919 = vunpack.c.l.s4 1934713408
        %v2920 = vunpack.c.0.s8 %v2919
        %v2921 = vperm.slane %v2913, %v2920
        %v2922 = vrot.slane %v2917, 4
        %v2923 = vsel %vm1270, 0, %v2922
        %v2924 = vrot.slane %v2921, 4
        %v2925 = vsel %vm1270, 0, %v2924
        %v2926 = vrot.slane %v2225, 4
        %v2927 = vsel %vm1270, %v2926, %v2129
        %v2929 = vunpack.c.l.s4 1983009808
        %v2930 = vunpack.c.0.s8 %v2929
        %v2931 = vperm.slane %v2927, %v2930
        %v2932 = vrot.slane %v2273, 4
        %v2933 = vsel %vm1270, %v2932, %v2177
        %v2935 = vunpack.c.l.s4 1983009808
        %v2936 = vunpack.c.0.s8 %v2935
        %v2937 = vperm.slane %v2933, %v2936
        %v2938 = vrot.slane %v2937, 4
        %v2939 = vsel %vm1270, %v2938, %v2931
        %v2940 = vrot.slane %v2931, 4
        %v2941 = vsel %vm1270, %v2937, %v2940
        %v2943 = vunpack.c.l.s4 1934713408
        %v2944 = vunpack.c.0.s8 %v2943
        %v2945 = vperm.slane %v2939, %v2944
        %v2947 = vunpack.c.l.s4 1934713408
        %v2948 = vunpack.c.0.s8 %v2947
        %v2949 = vperm.slane %v2941, %v2948
        %v2950 = vrot.slane %v2945, 4
        %v2951 = vsel %vm1270, 0, %v2950
        %v2952 = vrot.slane %v2949, 4
        %v2953 = vsel %vm1270, 0, %v2952
        %v2954 = vrot.slane %v2249, 4
        %v2955 = vsel %vm1270, %v2954, %v2153
        %v2957 = vunpack.c.l.s4 1983009808
        %v2958 = vunpack.c.0.s8 %v2957
        %v2959 = vperm.slane %v2955, %v2958
        %v2960 = vrot.slane %v2297, 4
        %v2961 = vsel %vm1270, %v2960, %v2201
        %v2963 = vunpack.c.l.s4 1983009808
        %v2964 = vunpack.c.0.s8 %v2963
        %v2965 = vperm.slane %v2961, %v2964
        %v2966 = vrot.slane %v2965, 4
        %v2967 = vsel %vm1270, %v2966, %v2959
        %v2968 = vrot.slane %v2959, 4
        %v2969 = vsel %vm1270, %v2965, %v2968
        %v2971 = vunpack.c.l.s4 1934713408
        %v2972 = vunpack.c.0.s8 %v2971
        %v2973 = vperm.slane %v2967, %v2972
        %v2975 = vunpack.c.l.s4 1934713408
        %v2976 = vunpack.c.0.s8 %v2975
        %v2977 = vperm.slane %v2969, %v2976
        %v2978 = vrot.slane %v2973, 4
        %v2979 = vsel %vm1270, 0, %v2978
        %v2980 = vrot.slane %v2977, 4
        %v2981 = vsel %vm1270, 0, %v2980
        %v2982 = vrot.slane %v2035, 4
        %v2983 = vsel %vm1270, %v2982, %v1173
        %v2985 = vunpack.c.l.s4 1983009808
        %v2986 = vunpack.c.0.s8 %v2985
        %v2987 = vperm.slane %v2983, %v2986
        %v2988 = vrot.slane %v2083, 4
        %v2989 = vsel %vm1270, %v2988, %v1987
        %v2991 = vunpack.c.l.s4 1983009808
        %v2992 = vunpack.c.0.s8 %v2991
        %v2993 = vperm.slane %v2989, %v2992
        %v2994 = vrot.slane %v2993, 4
        %v2995 = vsel %vm1270, %v2994, %v2987
        %v2996 = vrot.slane %v2987, 4
        %v2997 = vsel %vm1270, %v2993, %v2996
        %v2999 = vunpack.c.l.s4 1934713408
        %v3000 = vunpack.c.0.s8 %v2999
        %v3001 = vperm.slane %v2995, %v3000
        %v3003 = vunpack.c.l.s4 1934713408
        %v3004 = vunpack.c.0.s8 %v3003
        %v3005 = vperm.slane %v2997, %v3004
        %v3006 = vrot.slane %v3001, 4
        %v3007 = vsel %vm1270, 0, %v3006
        %v3008 = vrot.slane %v3005, 4
        %v3009 = vsel %vm1270, 0, %v3008
        %v3010 = vrot.slane %v2059, 4
        %v3011 = vsel %vm1270, %v3010, %v1963
        %v3013 = vunpack.c.l.s4 1983009808
        %v3014 = vunpack.c.0.s8 %v3013
        %v3015 = vperm.slane %v3011, %v3014
        %v3016 = vrot.slane %v2107, 4
        %v3017 = vsel %vm1270, %v3016, %v2011
        %v3019 = vunpack.c.l.s4 1983009808
        %v3020 = vunpack.c.0.s8 %v3019
        %v3021 = vperm.slane %v3017, %v3020
        %v3022 = vrot.slane %v3021, 4
        %v3023 = vsel %vm1270, %v3022, %v3015
        %v3024 = vrot.slane %v3015, 4
        %v3025 = vsel %vm1270, %v3021, %v3024
        %v3027 = vunpack.c.l.s4 1934713408
        %v3028 = vunpack.c.0.s8 %v3027
        %v3029 = vperm.slane %v3023, %v3028
        %v3031 = vunpack.c.l.s4 1934713408
        %v3032 = vunpack.c.0.s8 %v3031
        %v3033 = vperm.slane %v3025, %v3032
        %v3034 = vrot.slane %v3029, 4
        %v3035 = vsel %vm1270, 0, %v3034
        %v3036 = vrot.slane %v3033, 4
        %v3037 = vsel %vm1270, 0, %v3036
        %v3038 = vrot.slane %v2227, 4
        %v3039 = vsel %vm1270, %v3038, %v2131
        %v3041 = vunpack.c.l.s4 1983009808
        %v3042 = vunpack.c.0.s8 %v3041
        %v3043 = vperm.slane %v3039, %v3042
        %v3044 = vrot.slane %v2275, 4
        %v3045 = vsel %vm1270, %v3044, %v2179
        %v3047 = vunpack.c.l.s4 1983009808
        %v3048 = vunpack.c.0.s8 %v3047
        %v3049 = vperm.slane %v3045, %v3048
        %v3050 = vrot.slane %v3049, 4
        %v3051 = vsel %vm1270, %v3050, %v3043
        %v3052 = vrot.slane %v3043, 4
        %v3053 = vsel %vm1270, %v3049, %v3052
        %v3055 = vunpack.c.l.s4 1934713408
        %v3056 = vunpack.c.0.s8 %v3055
        %v3057 = vperm.slane %v3051, %v3056
        %v3059 = vunpack.c.l.s4 1934713408
        %v3060 = vunpack.c.0.s8 %v3059
        %v3061 = vperm.slane %v3053, %v3060
        %v3062 = vrot.slane %v3057, 4
        %v3063 = vsel %vm1270, 0, %v3062
        %v3064 = vrot.slane %v3061, 4
        %v3065 = vsel %vm1270, 0, %v3064
        %v3066 = vrot.slane %v2251, 4
        %v3067 = vsel %vm1270, %v3066, %v2155
        %v3069 = vunpack.c.l.s4 1983009808
        %v3070 = vunpack.c.0.s8 %v3069
        %v3071 = vperm.slane %v3067, %v3070
        %v3072 = vrot.slane %v2299, 4
        %v3073 = vsel %vm1270, %v3072, %v2203
        %v3075 = vunpack.c.l.s4 1983009808
        %v3076 = vunpack.c.0.s8 %v3075
        %v3077 = vperm.slane %v3073, %v3076
        %v3078 = vrot.slane %v3077, 4
        %v3079 = vsel %vm1270, %v3078, %v3071
        %v3080 = vrot.slane %v3071, 4
        %v3081 = vsel %vm1270, %v3077, %v3080
        %v3083 = vunpack.c.l.s4 1934713408
        %v3084 = vunpack.c.0.s8 %v3083
        %v3085 = vperm.slane %v3079, %v3084
        %v3087 = vunpack.c.l.s4 1934713408
        %v3088 = vunpack.c.0.s8 %v3087
        %v3089 = vperm.slane %v3081, %v3088
        %v3090 = vrot.slane %v3085, 4
        %v3091 = vsel %vm1270, 0, %v3090
        %v3092 = vrot.slane %v3089, 4
        %v3093 = vsel %vm1270, 0, %v3092
        %v3094 = vrot.slane %v2037, 4
        %v3095 = vsel %vm1270, %v3094, %v1174
        %v3097 = vunpack.c.l.s4 1983009808
        %v3098 = vunpack.c.0.s8 %v3097
        %v3099 = vperm.slane %v3095, %v3098
        %v3100 = vrot.slane %v2085, 4
        %v3101 = vsel %vm1270, %v3100, %v1989
        %v3103 = vunpack.c.l.s4 1983009808
        %v3104 = vunpack.c.0.s8 %v3103
        %v3105 = vperm.slane %v3101, %v3104
        %v3106 = vrot.slane %v3105, 4
        %v3107 = vsel %vm1270, %v3106, %v3099
        %v3108 = vrot.slane %v3099, 4
        %v3109 = vsel %vm1270, %v3105, %v3108
        %v3111 = vunpack.c.l.s4 1934713408
        %v3112 = vunpack.c.0.s8 %v3111
        %v3113 = vperm.slane %v3107, %v3112
        %v3115 = vunpack.c.l.s4 1934713408
        %v3116 = vunpack.c.0.s8 %v3115
        %v3117 = vperm.slane %v3109, %v3116
        %v3118 = vrot.slane %v3113, 4
        %v3119 = vsel %vm1270, 0, %v3118
        %v3120 = vrot.slane %v3117, 4
        %v3121 = vsel %vm1270, 0, %v3120
        %v3122 = vrot.slane %v2061, 4
        %v3123 = vsel %vm1270, %v3122, %v1965
        %v3125 = vunpack.c.l.s4 1983009808
        %v3126 = vunpack.c.0.s8 %v3125
        %v3127 = vperm.slane %v3123, %v3126
        %v3128 = vrot.slane %v2109, 4
        %v3129 = vsel %vm1270, %v3128, %v2013
        %v3131 = vunpack.c.l.s4 1983009808
        %v3132 = vunpack.c.0.s8 %v3131
        %v3133 = vperm.slane %v3129, %v3132
        %v3134 = vrot.slane %v3133, 4
        %v3135 = vsel %vm1270, %v3134, %v3127
        %v3136 = vrot.slane %v3127, 4
        %v3137 = vsel %vm1270, %v3133, %v3136
        %v3139 = vunpack.c.l.s4 1934713408
        %v3140 = vunpack.c.0.s8 %v3139
        %v3141 = vperm.slane %v3135, %v3140
        %v3143 = vunpack.c.l.s4 1934713408
        %v3144 = vunpack.c.0.s8 %v3143
        %v3145 = vperm.slane %v3137, %v3144
        %v3146 = vrot.slane %v3141, 4
        %v3147 = vsel %vm1270, 0, %v3146
        %v3148 = vrot.slane %v3145, 4
        %v3149 = vsel %vm1270, 0, %v3148
        %v3150 = vrot.slane %v2229, 4
        %v3151 = vsel %vm1270, %v3150, %v2133
        %v3153 = vunpack.c.l.s4 1983009808
        %v3154 = vunpack.c.0.s8 %v3153
        %v3155 = vperm.slane %v3151, %v3154
        %v3156 = vrot.slane %v2277, 4
        %v3157 = vsel %vm1270, %v3156, %v2181
        %v3159 = vunpack.c.l.s4 1983009808
        %v3160 = vunpack.c.0.s8 %v3159
        %v3161 = vperm.slane %v3157, %v3160
        %v3162 = vrot.slane %v3161, 4
        %v3163 = vsel %vm1270, %v3162, %v3155
        %v3164 = vrot.slane %v3155, 4
        %v3165 = vsel %vm1270, %v3161, %v3164
        %v3167 = vunpack.c.l.s4 1934713408
        %v3168 = vunpack.c.0.s8 %v3167
        %v3169 = vperm.slane %v3163, %v3168
        %v3171 = vunpack.c.l.s4 1934713408
        %v3172 = vunpack.c.0.s8 %v3171
        %v3173 = vperm.slane %v3165, %v3172
        %v3174 = vrot.slane %v3169, 4
        %v3175 = vsel %vm1270, 0, %v3174
        %v3176 = vrot.slane %v3173, 4
        %v3177 = vsel %vm1270, 0, %v3176
        %v3178 = vrot.slane %v2253, 4
        %v3179 = vsel %vm1270, %v3178, %v2157
        %v3181 = vunpack.c.l.s4 1983009808
        %v3182 = vunpack.c.0.s8 %v3181
        %v3183 = vperm.slane %v3179, %v3182
        %v3184 = vrot.slane %v2301, 4
        %v3185 = vsel %vm1270, %v3184, %v2205
        %v3187 = vunpack.c.l.s4 1983009808
        %v3188 = vunpack.c.0.s8 %v3187
        %v3189 = vperm.slane %v3185, %v3188
        %v3190 = vrot.slane %v3189, 4
        %v3191 = vsel %vm1270, %v3190, %v3183
        %v3192 = vrot.slane %v3183, 4
        %v3193 = vsel %vm1270, %v3189, %v3192
        %v3195 = vunpack.c.l.s4 1934713408
        %v3196 = vunpack.c.0.s8 %v3195
        %v3197 = vperm.slane %v3191, %v3196
        %v3199 = vunpack.c.l.s4 1934713408
        %v3200 = vunpack.c.0.s8 %v3199
        %v3201 = vperm.slane %v3193, %v3200
        %v3202 = vrot.slane %v3197, 4
        %v3203 = vsel %vm1270, 0, %v3202
        %v3204 = vrot.slane %v3201, 4
        %v3205 = vsel %vm1270, 0, %v3204
        %v3208 = vpack.i.b16 %v2357, %v2329
        %v3210 = vshrl.u32 %v2329, 16
        %v3211 = vshrl.u32 %v2357, 16
        %v3212 = vpack.i.b16 %v3211, %v3210
        %v3216 = vpack.i.b16 %v2363, %v2335
        %v3218 = vshrl.u32 %v2335, 16
        %v3219 = vshrl.u32 %v2363, 16
        %v3220 = vpack.i.b16 %v3219, %v3218
        %v3224 = vpack.i.b16 %v2361, %v2333
        %v3226 = vshrl.u32 %v2333, 16
        %v3227 = vshrl.u32 %v2361, 16
        %v3228 = vpack.i.b16 %v3227, %v3226
        %v3232 = vpack.i.b16 %v2365, %v2337
        %v3234 = vshrl.u32 %v2337, 16
        %v3235 = vshrl.u32 %v2365, 16
        %v3236 = vpack.i.b16 %v3235, %v3234
        %v3240 = vpack.i.b16 %v2469, %v2441
        %v3242 = vshrl.u32 %v2441, 16
        %v3243 = vshrl.u32 %v2469, 16
        %v3244 = vpack.i.b16 %v3243, %v3242
        %v3248 = vpack.i.b16 %v2475, %v2447
        %v3250 = vshrl.u32 %v2447, 16
        %v3251 = vshrl.u32 %v2475, 16
        %v3252 = vpack.i.b16 %v3251, %v3250
        %v3256 = vpack.i.b16 %v2473, %v2445
        %v3258 = vshrl.u32 %v2445, 16
        %v3259 = vshrl.u32 %v2473, 16
        %v3260 = vpack.i.b16 %v3259, %v3258
        %v3264 = vpack.i.b16 %v2477, %v2449
        %v3266 = vshrl.u32 %v2449, 16
        %v3267 = vshrl.u32 %v2477, 16
        %v3268 = vpack.i.b16 %v3267, %v3266
        %v3272 = vpack.i.b16 %v2581, %v2553
        %v3274 = vshrl.u32 %v2553, 16
        %v3275 = vshrl.u32 %v2581, 16
        %v3276 = vpack.i.b16 %v3275, %v3274
        %v3280 = vpack.i.b16 %v2587, %v2559
        %v3282 = vshrl.u32 %v2559, 16
        %v3283 = vshrl.u32 %v2587, 16
        %v3284 = vpack.i.b16 %v3283, %v3282
        %v3288 = vpack.i.b16 %v2585, %v2557
        %v3290 = vshrl.u32 %v2557, 16
        %v3291 = vshrl.u32 %v2585, 16
        %v3292 = vpack.i.b16 %v3291, %v3290
        %v3296 = vpack.i.b16 %v2589, %v2561
        %v3298 = vshrl.u32 %v2561, 16
        %v3299 = vshrl.u32 %v2589, 16
        %v3300 = vpack.i.b16 %v3299, %v3298
        %v3304 = vpack.i.b16 %v2693, %v2665
        %v3306 = vshrl.u32 %v2665, 16
        %v3307 = vshrl.u32 %v2693, 16
        %v3308 = vpack.i.b16 %v3307, %v3306
        %v3312 = vpack.i.b16 %v2699, %v2671
        %v3314 = vshrl.u32 %v2671, 16
        %v3315 = vshrl.u32 %v2699, 16
        %v3316 = vpack.i.b16 %v3315, %v3314
        %v3320 = vpack.i.b16 %v2697, %v2669
        %v3322 = vshrl.u32 %v2669, 16
        %v3323 = vshrl.u32 %v2697, 16
        %v3324 = vpack.i.b16 %v3323, %v3322
        %v3328 = vpack.i.b16 %v2701, %v2673
        %v3330 = vshrl.u32 %v2673, 16
        %v3331 = vshrl.u32 %v2701, 16
        %v3332 = vpack.i.b16 %v3331, %v3330
        %v3336 = vpack.i.b16 %v2413, %v2385
        %v3338 = vshrl.u32 %v2385, 16
        %v3339 = vshrl.u32 %v2413, 16
        %v3340 = vpack.i.b16 %v3339, %v3338
        %v3344 = vpack.i.b16 %v2419, %v2391
        %v3346 = vshrl.u32 %v2391, 16
        %v3347 = vshrl.u32 %v2419, 16
        %v3348 = vpack.i.b16 %v3347, %v3346
        %v3352 = vpack.i.b16 %v2417, %v2389
        %v3354 = vshrl.u32 %v2389, 16
        %v3355 = vshrl.u32 %v2417, 16
        %v3356 = vpack.i.b16 %v3355, %v3354
        %v3360 = vpack.i.b16 %v2421, %v2393
        %v3362 = vshrl.u32 %v2393, 16
        %v3363 = vshrl.u32 %v2421, 16
        %v3364 = vpack.i.b16 %v3363, %v3362
        %v3368 = vpack.i.b16 %v2525, %v2497
        %v3370 = vshrl.u32 %v2497, 16
        %v3371 = vshrl.u32 %v2525, 16
        %v3372 = vpack.i.b16 %v3371, %v3370
        %v3376 = vpack.i.b16 %v2531, %v2503
        %v3378 = vshrl.u32 %v2503, 16
        %v3379 = vshrl.u32 %v2531, 16
        %v3380 = vpack.i.b16 %v3379, %v3378
        %v3384 = vpack.i.b16 %v2529, %v2501
        %v3386 = vshrl.u32 %v2501, 16
        %v3387 = vshrl.u32 %v2529, 16
        %v3388 = vpack.i.b16 %v3387, %v3386
        %v3392 = vpack.i.b16 %v2533, %v2505
        %v3394 = vshrl.u32 %v2505, 16
        %v3395 = vshrl.u32 %v2533, 16
        %v3396 = vpack.i.b16 %v3395, %v3394
        %v3400 = vpack.i.b16 %v2637, %v2609
        %v3402 = vshrl.u32 %v2609, 16
        %v3403 = vshrl.u32 %v2637, 16
        %v3404 = vpack.i.b16 %v3403, %v3402
        %v3408 = vpack.i.b16 %v2643, %v2615
        %v3410 = vshrl.u32 %v2615, 16
        %v3411 = vshrl.u32 %v2643, 16
        %v3412 = vpack.i.b16 %v3411, %v3410
        %v3416 = vpack.i.b16 %v2641, %v2613
        %v3418 = vshrl.u32 %v2613, 16
        %v3419 = vshrl.u32 %v2641, 16
        %v3420 = vpack.i.b16 %v3419, %v3418
        %v3424 = vpack.i.b16 %v2645, %v2617
        %v3426 = vshrl.u32 %v2617, 16
        %v3427 = vshrl.u32 %v2645, 16
        %v3428 = vpack.i.b16 %v3427, %v3426
        %v3432 = vpack.i.b16 %v2749, %v2721
        %v3434 = vshrl.u32 %v2721, 16
        %v3435 = vshrl.u32 %v2749, 16
        %v3436 = vpack.i.b16 %v3435, %v3434
        %v3440 = vpack.i.b16 %v2755, %v2727
        %v3442 = vshrl.u32 %v2727, 16
        %v3443 = vshrl.u32 %v2755, 16
        %v3444 = vpack.i.b16 %v3443, %v3442
        %v3448 = vpack.i.b16 %v2753, %v2725
        %v3450 = vshrl.u32 %v2725, 16
        %v3451 = vshrl.u32 %v2753, 16
        %v3452 = vpack.i.b16 %v3451, %v3450
        %v3456 = vpack.i.b16 %v2757, %v2729
        %v3458 = vshrl.u32 %v2729, 16
        %v3459 = vshrl.u32 %v2757, 16
        %v3460 = vpack.i.b16 %v3459, %v3458
        %v3464 = vpack.i.b16 %v2805, %v2777
        %v3466 = vshrl.u32 %v2777, 16
        %v3467 = vshrl.u32 %v2805, 16
        %v3468 = vpack.i.b16 %v3467, %v3466
        %v3472 = vpack.i.b16 %v2811, %v2783
        %v3474 = vshrl.u32 %v2783, 16
        %v3475 = vshrl.u32 %v2811, 16
        %v3476 = vpack.i.b16 %v3475, %v3474
        %v3480 = vpack.i.b16 %v2809, %v2781
        %v3482 = vshrl.u32 %v2781, 16
        %v3483 = vshrl.u32 %v2809, 16
        %v3484 = vpack.i.b16 %v3483, %v3482
        %v3488 = vpack.i.b16 %v2813, %v2785
        %v3490 = vshrl.u32 %v2785, 16
        %v3491 = vshrl.u32 %v2813, 16
        %v3492 = vpack.i.b16 %v3491, %v3490
        %v3496 = vpack.i.b16 %v2917, %v2889
        %v3498 = vshrl.u32 %v2889, 16
        %v3499 = vshrl.u32 %v2917, 16
        %v3500 = vpack.i.b16 %v3499, %v3498
        %v3504 = vpack.i.b16 %v2923, %v2895
        %v3506 = vshrl.u32 %v2895, 16
        %v3507 = vshrl.u32 %v2923, 16
        %v3508 = vpack.i.b16 %v3507, %v3506
        %v3512 = vpack.i.b16 %v2921, %v2893
        %v3514 = vshrl.u32 %v2893, 16
        %v3515 = vshrl.u32 %v2921, 16
        %v3516 = vpack.i.b16 %v3515, %v3514
        %v3520 = vpack.i.b16 %v2925, %v2897
        %v3522 = vshrl.u32 %v2897, 16
        %v3523 = vshrl.u32 %v2925, 16
        %v3524 = vpack.i.b16 %v3523, %v3522
        %v3528 = vpack.i.b16 %v3029, %v3001
        %v3530 = vshrl.u32 %v3001, 16
        %v3531 = vshrl.u32 %v3029, 16
        %v3532 = vpack.i.b16 %v3531, %v3530
        %v3536 = vpack.i.b16 %v3035, %v3007
        %v3538 = vshrl.u32 %v3007, 16
        %v3539 = vshrl.u32 %v3035, 16
        %v3540 = vpack.i.b16 %v3539, %v3538
        %v3544 = vpack.i.b16 %v3033, %v3005
        %v3546 = vshrl.u32 %v3005, 16
        %v3547 = vshrl.u32 %v3033, 16
        %v3548 = vpack.i.b16 %v3547, %v3546
        %v3552 = vpack.i.b16 %v3037, %v3009
        %v3554 = vshrl.u32 %v3009, 16
        %v3555 = vshrl.u32 %v3037, 16
        %v3556 = vpack.i.b16 %v3555, %v3554
        %v3560 = vpack.i.b16 %v3141, %v3113
        %v3562 = vshrl.u32 %v3113, 16
        %v3563 = vshrl.u32 %v3141, 16
        %v3564 = vpack.i.b16 %v3563, %v3562
        %v3568 = vpack.i.b16 %v3147, %v3119
        %v3570 = vshrl.u32 %v3119, 16
        %v3571 = vshrl.u32 %v3147, 16
        %v3572 = vpack.i.b16 %v3571, %v3570
        %v3576 = vpack.i.b16 %v3145, %v3117
        %v3578 = vshrl.u32 %v3117, 16
        %v3579 = vshrl.u32 %v3145, 16
        %v3580 = vpack.i.b16 %v3579, %v3578
        %v3584 = vpack.i.b16 %v3149, %v3121
        %v3586 = vshrl.u32 %v3121, 16
        %v3587 = vshrl.u32 %v3149, 16
        %v3588 = vpack.i.b16 %v3587, %v3586
        %v3592 = vpack.i.b16 %v2861, %v2833
        %v3594 = vshrl.u32 %v2833, 16
        %v3595 = vshrl.u32 %v2861, 16
        %v3596 = vpack.i.b16 %v3595, %v3594
        %v3600 = vpack.i.b16 %v2867, %v2839
        %v3602 = vshrl.u32 %v2839, 16
        %v3603 = vshrl.u32 %v2867, 16
        %v3604 = vpack.i.b16 %v3603, %v3602
        %v3608 = vpack.i.b16 %v2865, %v2837
        %v3610 = vshrl.u32 %v2837, 16
        %v3611 = vshrl.u32 %v2865, 16
        %v3612 = vpack.i.b16 %v3611, %v3610
        %v3616 = vpack.i.b16 %v2869, %v2841
        %v3618 = vshrl.u32 %v2841, 16
        %v3619 = vshrl.u32 %v2869, 16
        %v3620 = vpack.i.b16 %v3619, %v3618
        %v3624 = vpack.i.b16 %v2973, %v2945
        %v3626 = vshrl.u32 %v2945, 16
        %v3627 = vshrl.u32 %v2973, 16
        %v3628 = vpack.i.b16 %v3627, %v3626
        %v3632 = vpack.i.b16 %v2979, %v2951
        %v3634 = vshrl.u32 %v2951, 16
        %v3635 = vshrl.u32 %v2979, 16
        %v3636 = vpack.i.b16 %v3635, %v3634
        %v3640 = vpack.i.b16 %v2977, %v2949
        %v3642 = vshrl.u32 %v2949, 16
        %v3643 = vshrl.u32 %v2977, 16
        %v3644 = vpack.i.b16 %v3643, %v3642
        %v3648 = vpack.i.b16 %v2981, %v2953
        %v3650 = vshrl.u32 %v2953, 16
        %v3651 = vshrl.u32 %v2981, 16
        %v3652 = vpack.i.b16 %v3651, %v3650
        %v3656 = vpack.i.b16 %v3085, %v3057
        %v3658 = vshrl.u32 %v3057, 16
        %v3659 = vshrl.u32 %v3085, 16
        %v3660 = vpack.i.b16 %v3659, %v3658
        %v3664 = vpack.i.b16 %v3091, %v3063
        %v3666 = vshrl.u32 %v3063, 16
        %v3667 = vshrl.u32 %v3091, 16
        %v3668 = vpack.i.b16 %v3667, %v3666
        %v3672 = vpack.i.b16 %v3089, %v3061
        %v3674 = vshrl.u32 %v3061, 16
        %v3675 = vshrl.u32 %v3089, 16
        %v3676 = vpack.i.b16 %v3675, %v3674
        %v3680 = vpack.i.b16 %v3093, %v3065
        %v3682 = vshrl.u32 %v3065, 16
        %v3683 = vshrl.u32 %v3093, 16
        %v3684 = vpack.i.b16 %v3683, %v3682
        %v3688 = vpack.i.b16 %v3197, %v3169
        %v3690 = vshrl.u32 %v3169, 16
        %v3691 = vshrl.u32 %v3197, 16
        %v3692 = vpack.i.b16 %v3691, %v3690
        %v3696 = vpack.i.b16 %v3203, %v3175
        %v3698 = vshrl.u32 %v3175, 16
        %v3699 = vshrl.u32 %v3203, 16
        %v3700 = vpack.i.b16 %v3699, %v3698
        %v3704 = vpack.i.b16 %v3201, %v3173
        %v3706 = vshrl.u32 %v3173, 16
        %v3707 = vshrl.u32 %v3201, 16
        %v3708 = vpack.i.b16 %v3707, %v3706
        %v3712 = vpack.i.b16 %v3205, %v3177
        %v3714 = vshrl.u32 %v3177, 16
        %v3715 = vshrl.u32 %v3205, 16
        %v3716 = vpack.i.b16 %v3715, %v3714
        %v3718 = vrot.slane %v3224, 4
        %v3719 = vsel %vm1270, %v3718, %v3208
        %v3721 = vunpack.c.l.s4 1983009808
        %v3722 = vunpack.c.0.s8 %v3721
        %v3723 = vperm.slane %v3719, %v3722
        %v3724 = vrot.slane %v3232, 4
        %v3725 = vsel %vm1270, %v3724, %v3216
        %v3727 = vunpack.c.l.s4 1983009808
        %v3728 = vunpack.c.0.s8 %v3727
        %v3729 = vperm.slane %v3725, %v3728
        %v3730 = vrot.slane %v3729, 4
        %v3731 = vsel %vm1270, %v3730, %v3723
        %v3732 = vrot.slane %v3723, 4
        %v3733 = vsel %vm1270, %v3729, %v3732
        %v3735 = vunpack.c.l.s4 1934713408
        %v3736 = vunpack.c.0.s8 %v3735
        %v3737 = vperm.slane %v3731, %v3736
        %v3739 = vunpack.c.l.s4 1934713408
        %v3740 = vunpack.c.0.s8 %v3739
        %v3741 = vperm.slane %v3733, %v3740
        %v3742 = vrot.slane %v3737, 4
        %v3743 = vsel %vm1270, 0, %v3742
        %v3744 = vrot.slane %v3741, 4
        %v3745 = vsel %vm1270, 0, %v3744
        %v3746 = vrot.slane %v3228, 4
        %v3747 = vsel %vm1270, %v3746, %v3212
        %v3749 = vunpack.c.l.s4 1983009808
        %v3750 = vunpack.c.0.s8 %v3749
        %v3751 = vperm.slane %v3747, %v3750
        %v3752 = vrot.slane %v3236, 4
        %v3753 = vsel %vm1270, %v3752, %v3220
        %v3755 = vunpack.c.l.s4 1983009808
        %v3756 = vunpack.c.0.s8 %v3755
        %v3757 = vperm.slane %v3753, %v3756
        %v3758 = vrot.slane %v3757, 4
        %v3759 = vsel %vm1270, %v3758, %v3751
        %v3760 = vrot.slane %v3751, 4
        %v3761 = vsel %vm1270, %v3757, %v3760
        %v3763 = vunpack.c.l.s4 1934713408
        %v3764 = vunpack.c.0.s8 %v3763
        %v3765 = vperm.slane %v3759, %v3764
        %v3767 = vunpack.c.l.s4 1934713408
        %v3768 = vunpack.c.0.s8 %v3767
        %v3769 = vperm.slane %v3761, %v3768
        %v3770 = vrot.slane %v3765, 4
        %v3771 = vsel %vm1270, 0, %v3770
        %v3772 = vrot.slane %v3769, 4
        %v3773 = vsel %vm1270, 0, %v3772
        %v3774 = vrot.slane %v3256, 4
        %v3775 = vsel %vm1270, %v3774, %v3240
        %v3777 = vunpack.c.l.s4 1983009808
        %v3778 = vunpack.c.0.s8 %v3777
        %v3779 = vperm.slane %v3775, %v3778
        %v3780 = vrot.slane %v3264, 4
        %v3781 = vsel %vm1270, %v3780, %v3248
        %v3783 = vunpack.c.l.s4 1983009808
        %v3784 = vunpack.c.0.s8 %v3783
        %v3785 = vperm.slane %v3781, %v3784
        %v3786 = vrot.slane %v3785, 4
        %v3787 = vsel %vm1270, %v3786, %v3779
        %v3788 = vrot.slane %v3779, 4
        %v3789 = vsel %vm1270, %v3785, %v3788
        %v3791 = vunpack.c.l.s4 1934713408
        %v3792 = vunpack.c.0.s8 %v3791
        %v3793 = vperm.slane %v3787, %v3792
        %v3795 = vunpack.c.l.s4 1934713408
        %v3796 = vunpack.c.0.s8 %v3795
        %v3797 = vperm.slane %v3789, %v3796
        %v3798 = vrot.slane %v3793, 4
        %v3799 = vsel %vm1270, 0, %v3798
        %v3800 = vrot.slane %v3797, 4
        %v3801 = vsel %vm1270, 0, %v3800
        %v3802 = vrot.slane %v3260, 4
        %v3803 = vsel %vm1270, %v3802, %v3244
        %v3805 = vunpack.c.l.s4 1983009808
        %v3806 = vunpack.c.0.s8 %v3805
        %v3807 = vperm.slane %v3803, %v3806
        %v3808 = vrot.slane %v3268, 4
        %v3809 = vsel %vm1270, %v3808, %v3252
        %v3811 = vunpack.c.l.s4 1983009808
        %v3812 = vunpack.c.0.s8 %v3811
        %v3813 = vperm.slane %v3809, %v3812
        %v3814 = vrot.slane %v3813, 4
        %v3815 = vsel %vm1270, %v3814, %v3807
        %v3816 = vrot.slane %v3807, 4
        %v3817 = vsel %vm1270, %v3813, %v3816
        %v3819 = vunpack.c.l.s4 1934713408
        %v3820 = vunpack.c.0.s8 %v3819
        %v3821 = vperm.slane %v3815, %v3820
        %v3823 = vunpack.c.l.s4 1934713408
        %v3824 = vunpack.c.0.s8 %v3823
        %v3825 = vperm.slane %v3817, %v3824
        %v3826 = vrot.slane %v3821, 4
        %v3827 = vsel %vm1270, 0, %v3826
        %v3828 = vrot.slane %v3825, 4
        %v3829 = vsel %vm1270, 0, %v3828
        %v3830 = vrot.slane %v3288, 4
        %v3831 = vsel %vm1270, %v3830, %v3272
        %v3833 = vunpack.c.l.s4 1983009808
        %v3834 = vunpack.c.0.s8 %v3833
        %v3835 = vperm.slane %v3831, %v3834
        %v3836 = vrot.slane %v3296, 4
        %v3837 = vsel %vm1270, %v3836, %v3280
        %v3839 = vunpack.c.l.s4 1983009808
        %v3840 = vunpack.c.0.s8 %v3839
        %v3841 = vperm.slane %v3837, %v3840
        %v3842 = vrot.slane %v3841, 4
        %v3843 = vsel %vm1270, %v3842, %v3835
        %v3844 = vrot.slane %v3835, 4
        %v3845 = vsel %vm1270, %v3841, %v3844
        %v3847 = vunpack.c.l.s4 1934713408
        %v3848 = vunpack.c.0.s8 %v3847
        %v3849 = vperm.slane %v3843, %v3848
        %v3851 = vunpack.c.l.s4 1934713408
        %v3852 = vunpack.c.0.s8 %v3851
        %v3853 = vperm.slane %v3845, %v3852
        %v3854 = vrot.slane %v3849, 4
        %v3855 = vsel %vm1270, 0, %v3854
        %v3856 = vrot.slane %v3853, 4
        %v3857 = vsel %vm1270, 0, %v3856
        %v3858 = vrot.slane %v3292, 4
        %v3859 = vsel %vm1270, %v3858, %v3276
        %v3861 = vunpack.c.l.s4 1983009808
        %v3862 = vunpack.c.0.s8 %v3861
        %v3863 = vperm.slane %v3859, %v3862
        %v3864 = vrot.slane %v3300, 4
        %v3865 = vsel %vm1270, %v3864, %v3284
        %v3867 = vunpack.c.l.s4 1983009808
        %v3868 = vunpack.c.0.s8 %v3867
        %v3869 = vperm.slane %v3865, %v3868
        %v3870 = vrot.slane %v3869, 4
        %v3871 = vsel %vm1270, %v3870, %v3863
        %v3872 = vrot.slane %v3863, 4
        %v3873 = vsel %vm1270, %v3869, %v3872
        %v3875 = vunpack.c.l.s4 1934713408
        %v3876 = vunpack.c.0.s8 %v3875
        %v3877 = vperm.slane %v3871, %v3876
        %v3879 = vunpack.c.l.s4 1934713408
        %v3880 = vunpack.c.0.s8 %v3879
        %v3881 = vperm.slane %v3873, %v3880
        %v3882 = vrot.slane %v3877, 4
        %v3883 = vsel %vm1270, 0, %v3882
        %v3884 = vrot.slane %v3881, 4
        %v3885 = vsel %vm1270, 0, %v3884
        %v3886 = vrot.slane %v3320, 4
        %v3887 = vsel %vm1270, %v3886, %v3304
        %v3889 = vunpack.c.l.s4 1983009808
        %v3890 = vunpack.c.0.s8 %v3889
        %v3891 = vperm.slane %v3887, %v3890
        %v3892 = vrot.slane %v3328, 4
        %v3893 = vsel %vm1270, %v3892, %v3312
        %v3895 = vunpack.c.l.s4 1983009808
        %v3896 = vunpack.c.0.s8 %v3895
        %v3897 = vperm.slane %v3893, %v3896
        %v3898 = vrot.slane %v3897, 4
        %v3899 = vsel %vm1270, %v3898, %v3891
        %v3900 = vrot.slane %v3891, 4
        %v3901 = vsel %vm1270, %v3897, %v3900
        %v3903 = vunpack.c.l.s4 1934713408
        %v3904 = vunpack.c.0.s8 %v3903
        %v3905 = vperm.slane %v3899, %v3904
        %v3907 = vunpack.c.l.s4 1934713408
        %v3908 = vunpack.c.0.s8 %v3907
        %v3909 = vperm.slane %v3901, %v3908
        %v3910 = vrot.slane %v3905, 4
        %v3911 = vsel %vm1270, 0, %v3910
        %v3912 = vrot.slane %v3909, 4
        %v3913 = vsel %vm1270, 0, %v3912
        %v3914 = vrot.slane %v3324, 4
        %v3915 = vsel %vm1270, %v3914, %v3308
        %v3917 = vunpack.c.l.s4 1983009808
        %v3918 = vunpack.c.0.s8 %v3917
        %v3919 = vperm.slane %v3915, %v3918
        %v3920 = vrot.slane %v3332, 4
        %v3921 = vsel %vm1270, %v3920, %v3316
        %v3923 = vunpack.c.l.s4 1983009808
        %v3924 = vunpack.c.0.s8 %v3923
        %v3925 = vperm.slane %v3921, %v3924
        %v3926 = vrot.slane %v3925, 4
        %v3927 = vsel %vm1270, %v3926, %v3919
        %v3928 = vrot.slane %v3919, 4
        %v3929 = vsel %vm1270, %v3925, %v3928
        %v3931 = vunpack.c.l.s4 1934713408
        %v3932 = vunpack.c.0.s8 %v3931
        %v3933 = vperm.slane %v3927, %v3932
        %v3935 = vunpack.c.l.s4 1934713408
        %v3936 = vunpack.c.0.s8 %v3935
        %v3937 = vperm.slane %v3929, %v3936
        %v3938 = vrot.slane %v3933, 4
        %v3939 = vsel %vm1270, 0, %v3938
        %v3940 = vrot.slane %v3937, 4
        %v3941 = vsel %vm1270, 0, %v3940
        %v3942 = vrot.slane %v3352, 4
        %v3943 = vsel %vm1270, %v3942, %v3336
        %v3945 = vunpack.c.l.s4 1983009808
        %v3946 = vunpack.c.0.s8 %v3945
        %v3947 = vperm.slane %v3943, %v3946
        %v3948 = vrot.slane %v3360, 4
        %v3949 = vsel %vm1270, %v3948, %v3344
        %v3951 = vunpack.c.l.s4 1983009808
        %v3952 = vunpack.c.0.s8 %v3951
        %v3953 = vperm.slane %v3949, %v3952
        %v3954 = vrot.slane %v3953, 4
        %v3955 = vsel %vm1270, %v3954, %v3947
        %v3956 = vrot.slane %v3947, 4
        %v3957 = vsel %vm1270, %v3953, %v3956
        %v3959 = vunpack.c.l.s4 1934713408
        %v3960 = vunpack.c.0.s8 %v3959
        %v3961 = vperm.slane %v3955, %v3960
        %v3963 = vunpack.c.l.s4 1934713408
        %v3964 = vunpack.c.0.s8 %v3963
        %v3965 = vperm.slane %v3957, %v3964
        %v3966 = vrot.slane %v3961, 4
        %v3967 = vsel %vm1270, 0, %v3966
        %v3968 = vrot.slane %v3965, 4
        %v3969 = vsel %vm1270, 0, %v3968
        %v3970 = vrot.slane %v3356, 4
        %v3971 = vsel %vm1270, %v3970, %v3340
        %v3973 = vunpack.c.l.s4 1983009808
        %v3974 = vunpack.c.0.s8 %v3973
        %v3975 = vperm.slane %v3971, %v3974
        %v3976 = vrot.slane %v3364, 4
        %v3977 = vsel %vm1270, %v3976, %v3348
        %v3979 = vunpack.c.l.s4 1983009808
        %v3980 = vunpack.c.0.s8 %v3979
        %v3981 = vperm.slane %v3977, %v3980
        %v3982 = vrot.slane %v3981, 4
        %v3983 = vsel %vm1270, %v3982, %v3975
        %v3984 = vrot.slane %v3975, 4
        %v3985 = vsel %vm1270, %v3981, %v3984
        %v3987 = vunpack.c.l.s4 1934713408
        %v3988 = vunpack.c.0.s8 %v3987
        %v3989 = vperm.slane %v3983, %v3988
        %v3991 = vunpack.c.l.s4 1934713408
        %v3992 = vunpack.c.0.s8 %v3991
        %v3993 = vperm.slane %v3985, %v3992
        %v3994 = vrot.slane %v3989, 4
        %v3995 = vsel %vm1270, 0, %v3994
        %v3996 = vrot.slane %v3993, 4
        %v3997 = vsel %vm1270, 0, %v3996
        %v3998 = vrot.slane %v3384, 4
        %v3999 = vsel %vm1270, %v3998, %v3368
        %v4001 = vunpack.c.l.s4 1983009808
        %v4002 = vunpack.c.0.s8 %v4001
        %v4003 = vperm.slane %v3999, %v4002
        %v4004 = vrot.slane %v3392, 4
        %v4005 = vsel %vm1270, %v4004, %v3376
        %v4007 = vunpack.c.l.s4 1983009808
        %v4008 = vunpack.c.0.s8 %v4007
        %v4009 = vperm.slane %v4005, %v4008
        %v4010 = vrot.slane %v4009, 4
        %v4011 = vsel %vm1270, %v4010, %v4003
        %v4012 = vrot.slane %v4003, 4
        %v4013 = vsel %vm1270, %v4009, %v4012
        %v4015 = vunpack.c.l.s4 1934713408
        %v4016 = vunpack.c.0.s8 %v4015
        %v4017 = vperm.slane %v4011, %v4016
        %v4019 = vunpack.c.l.s4 1934713408
        %v4020 = vunpack.c.0.s8 %v4019
        %v4021 = vperm.slane %v4013, %v4020
        %v4022 = vrot.slane %v4017, 4
        %v4023 = vsel %vm1270, 0, %v4022
        %v4024 = vrot.slane %v4021, 4
        %v4025 = vsel %vm1270, 0, %v4024
        %v4026 = vrot.slane %v3388, 4
        %v4027 = vsel %vm1270, %v4026, %v3372
        %v4029 = vunpack.c.l.s4 1983009808
        %v4030 = vunpack.c.0.s8 %v4029
        %v4031 = vperm.slane %v4027, %v4030
        %v4032 = vrot.slane %v3396, 4
        %v4033 = vsel %vm1270, %v4032, %v3380
        %v4035 = vunpack.c.l.s4 1983009808
        %v4036 = vunpack.c.0.s8 %v4035
        %v4037 = vperm.slane %v4033, %v4036
        %v4038 = vrot.slane %v4037, 4
        %v4039 = vsel %vm1270, %v4038, %v4031
        %v4040 = vrot.slane %v4031, 4
        %v4041 = vsel %vm1270, %v4037, %v4040
        %v4043 = vunpack.c.l.s4 1934713408
        %v4044 = vunpack.c.0.s8 %v4043
        %v4045 = vperm.slane %v4039, %v4044
        %v4047 = vunpack.c.l.s4 1934713408
        %v4048 = vunpack.c.0.s8 %v4047
        %v4049 = vperm.slane %v4041, %v4048
        %v4050 = vrot.slane %v4045, 4
        %v4051 = vsel %vm1270, 0, %v4050
        %v4052 = vrot.slane %v4049, 4
        %v4053 = vsel %vm1270, 0, %v4052
        %v4054 = vrot.slane %v3416, 4
        %v4055 = vsel %vm1270, %v4054, %v3400
        %v4057 = vunpack.c.l.s4 1983009808
        %v4058 = vunpack.c.0.s8 %v4057
        %v4059 = vperm.slane %v4055, %v4058
        %v4060 = vrot.slane %v3424, 4
        %v4061 = vsel %vm1270, %v4060, %v3408
        %v4063 = vunpack.c.l.s4 1983009808
        %v4064 = vunpack.c.0.s8 %v4063
        %v4065 = vperm.slane %v4061, %v4064
        %v4066 = vrot.slane %v4065, 4
        %v4067 = vsel %vm1270, %v4066, %v4059
        %v4068 = vrot.slane %v4059, 4
        %v4069 = vsel %vm1270, %v4065, %v4068
        %v4071 = vunpack.c.l.s4 1934713408
        %v4072 = vunpack.c.0.s8 %v4071
        %v4073 = vperm.slane %v4067, %v4072
        %v4075 = vunpack.c.l.s4 1934713408
        %v4076 = vunpack.c.0.s8 %v4075
        %v4077 = vperm.slane %v4069, %v4076
        %v4078 = vrot.slane %v4073, 4
        %v4079 = vsel %vm1270, 0, %v4078
        %v4080 = vrot.slane %v4077, 4
        %v4081 = vsel %vm1270, 0, %v4080
        %v4082 = vrot.slane %v3420, 4
        %v4083 = vsel %vm1270, %v4082, %v3404
        %v4085 = vunpack.c.l.s4 1983009808
        %v4086 = vunpack.c.0.s8 %v4085
        %v4087 = vperm.slane %v4083, %v4086
        %v4088 = vrot.slane %v3428, 4
        %v4089 = vsel %vm1270, %v4088, %v3412
        %v4091 = vunpack.c.l.s4 1983009808
        %v4092 = vunpack.c.0.s8 %v4091
        %v4093 = vperm.slane %v4089, %v4092
        %v4094 = vrot.slane %v4093, 4
        %v4095 = vsel %vm1270, %v4094, %v4087
        %v4096 = vrot.slane %v4087, 4
        %v4097 = vsel %vm1270, %v4093, %v4096
        %v4099 = vunpack.c.l.s4 1934713408
        %v4100 = vunpack.c.0.s8 %v4099
        %v4101 = vperm.slane %v4095, %v4100
        %v4103 = vunpack.c.l.s4 1934713408
        %v4104 = vunpack.c.0.s8 %v4103
        %v4105 = vperm.slane %v4097, %v4104
        %v4106 = vrot.slane %v4101, 4
        %v4107 = vsel %vm1270, 0, %v4106
        %v4108 = vrot.slane %v4105, 4
        %v4109 = vsel %vm1270, 0, %v4108
        %v4110 = vrot.slane %v3448, 4
        %v4111 = vsel %vm1270, %v4110, %v3432
        %v4113 = vunpack.c.l.s4 1983009808
        %v4114 = vunpack.c.0.s8 %v4113
        %v4115 = vperm.slane %v4111, %v4114
        %v4116 = vrot.slane %v3456, 4
        %v4117 = vsel %vm1270, %v4116, %v3440
        %v4119 = vunpack.c.l.s4 1983009808
        %v4120 = vunpack.c.0.s8 %v4119
        %v4121 = vperm.slane %v4117, %v4120
        %v4122 = vrot.slane %v4121, 4
        %v4123 = vsel %vm1270, %v4122, %v4115
        %v4124 = vrot.slane %v4115, 4
        %v4125 = vsel %vm1270, %v4121, %v4124
        %v4127 = vunpack.c.l.s4 1934713408
        %v4128 = vunpack.c.0.s8 %v4127
        %v4129 = vperm.slane %v4123, %v4128
        %v4131 = vunpack.c.l.s4 1934713408
        %v4132 = vunpack.c.0.s8 %v4131
        %v4133 = vperm.slane %v4125, %v4132
        %v4134 = vrot.slane %v4129, 4
        %v4135 = vsel %vm1270, 0, %v4134
        %v4136 = vrot.slane %v4133, 4
        %v4137 = vsel %vm1270, 0, %v4136
        %v4138 = vrot.slane %v3452, 4
        %v4139 = vsel %vm1270, %v4138, %v3436
        %v4141 = vunpack.c.l.s4 1983009808
        %v4142 = vunpack.c.0.s8 %v4141
        %v4143 = vperm.slane %v4139, %v4142
        %v4144 = vrot.slane %v3460, 4
        %v4145 = vsel %vm1270, %v4144, %v3444
        %v4147 = vunpack.c.l.s4 1983009808
        %v4148 = vunpack.c.0.s8 %v4147
        %v4149 = vperm.slane %v4145, %v4148
        %v4150 = vrot.slane %v4149, 4
        %v4151 = vsel %vm1270, %v4150, %v4143
        %v4152 = vrot.slane %v4143, 4
        %v4153 = vsel %vm1270, %v4149, %v4152
        %v4155 = vunpack.c.l.s4 1934713408
        %v4156 = vunpack.c.0.s8 %v4155
        %v4157 = vperm.slane %v4151, %v4156
        %v4159 = vunpack.c.l.s4 1934713408
        %v4160 = vunpack.c.0.s8 %v4159
        %v4161 = vperm.slane %v4153, %v4160
        %v4162 = vrot.slane %v4157, 4
        %v4163 = vsel %vm1270, 0, %v4162
        %v4164 = vrot.slane %v4161, 4
        %v4165 = vsel %vm1270, 0, %v4164
        %v4166 = vrot.slane %v3480, 4
        %v4167 = vsel %vm1270, %v4166, %v3464
        %v4169 = vunpack.c.l.s4 1983009808
        %v4170 = vunpack.c.0.s8 %v4169
        %v4171 = vperm.slane %v4167, %v4170
        %v4172 = vrot.slane %v3488, 4
        %v4173 = vsel %vm1270, %v4172, %v3472
        %v4175 = vunpack.c.l.s4 1983009808
        %v4176 = vunpack.c.0.s8 %v4175
        %v4177 = vperm.slane %v4173, %v4176
        %v4178 = vrot.slane %v4177, 4
        %v4179 = vsel %vm1270, %v4178, %v4171
        %v4180 = vrot.slane %v4171, 4
        %v4181 = vsel %vm1270, %v4177, %v4180
        %v4183 = vunpack.c.l.s4 1934713408
        %v4184 = vunpack.c.0.s8 %v4183
        %v4185 = vperm.slane %v4179, %v4184
        %v4187 = vunpack.c.l.s4 1934713408
        %v4188 = vunpack.c.0.s8 %v4187
        %v4189 = vperm.slane %v4181, %v4188
        %v4190 = vrot.slane %v4185, 4
        %v4191 = vsel %vm1270, 0, %v4190
        %v4192 = vrot.slane %v4189, 4
        %v4193 = vsel %vm1270, 0, %v4192
        %v4194 = vrot.slane %v3484, 4
        %v4195 = vsel %vm1270, %v4194, %v3468
        %v4197 = vunpack.c.l.s4 1983009808
        %v4198 = vunpack.c.0.s8 %v4197
        %v4199 = vperm.slane %v4195, %v4198
        %v4200 = vrot.slane %v3492, 4
        %v4201 = vsel %vm1270, %v4200, %v3476
        %v4203 = vunpack.c.l.s4 1983009808
        %v4204 = vunpack.c.0.s8 %v4203
        %v4205 = vperm.slane %v4201, %v4204
        %v4206 = vrot.slane %v4205, 4
        %v4207 = vsel %vm1270, %v4206, %v4199
        %v4208 = vrot.slane %v4199, 4
        %v4209 = vsel %vm1270, %v4205, %v4208
        %v4211 = vunpack.c.l.s4 1934713408
        %v4212 = vunpack.c.0.s8 %v4211
        %v4213 = vperm.slane %v4207, %v4212
        %v4215 = vunpack.c.l.s4 1934713408
        %v4216 = vunpack.c.0.s8 %v4215
        %v4217 = vperm.slane %v4209, %v4216
        %v4218 = vrot.slane %v4213, 4
        %v4219 = vsel %vm1270, 0, %v4218
        %v4220 = vrot.slane %v4217, 4
        %v4221 = vsel %vm1270, 0, %v4220
        %v4222 = vrot.slane %v3512, 4
        %v4223 = vsel %vm1270, %v4222, %v3496
        %v4225 = vunpack.c.l.s4 1983009808
        %v4226 = vunpack.c.0.s8 %v4225
        %v4227 = vperm.slane %v4223, %v4226
        %v4228 = vrot.slane %v3520, 4
        %v4229 = vsel %vm1270, %v4228, %v3504
        %v4231 = vunpack.c.l.s4 1983009808
        %v4232 = vunpack.c.0.s8 %v4231
        %v4233 = vperm.slane %v4229, %v4232
        %v4234 = vrot.slane %v4233, 4
        %v4235 = vsel %vm1270, %v4234, %v4227
        %v4236 = vrot.slane %v4227, 4
        %v4237 = vsel %vm1270, %v4233, %v4236
        %v4239 = vunpack.c.l.s4 1934713408
        %v4240 = vunpack.c.0.s8 %v4239
        %v4241 = vperm.slane %v4235, %v4240
        %v4243 = vunpack.c.l.s4 1934713408
        %v4244 = vunpack.c.0.s8 %v4243
        %v4245 = vperm.slane %v4237, %v4244
        %v4246 = vrot.slane %v4241, 4
        %v4247 = vsel %vm1270, 0, %v4246
        %v4248 = vrot.slane %v4245, 4
        %v4249 = vsel %vm1270, 0, %v4248
        %v4250 = vrot.slane %v3516, 4
        %v4251 = vsel %vm1270, %v4250, %v3500
        %v4253 = vunpack.c.l.s4 1983009808
        %v4254 = vunpack.c.0.s8 %v4253
        %v4255 = vperm.slane %v4251, %v4254
        %v4256 = vrot.slane %v3524, 4
        %v4257 = vsel %vm1270, %v4256, %v3508
        %v4259 = vunpack.c.l.s4 1983009808
        %v4260 = vunpack.c.0.s8 %v4259
        %v4261 = vperm.slane %v4257, %v4260
        %v4262 = vrot.slane %v4261, 4
        %v4263 = vsel %vm1270, %v4262, %v4255
        %v4264 = vrot.slane %v4255, 4
        %v4265 = vsel %vm1270, %v4261, %v4264
        %v4267 = vunpack.c.l.s4 1934713408
        %v4268 = vunpack.c.0.s8 %v4267
        %v4269 = vperm.slane %v4263, %v4268
        %v4271 = vunpack.c.l.s4 1934713408
        %v4272 = vunpack.c.0.s8 %v4271
        %v4273 = vperm.slane %v4265, %v4272
        %v4274 = vrot.slane %v4269, 4
        %v4275 = vsel %vm1270, 0, %v4274
        %v4276 = vrot.slane %v4273, 4
        %v4277 = vsel %vm1270, 0, %v4276
        %v4278 = vrot.slane %v3544, 4
        %v4279 = vsel %vm1270, %v4278, %v3528
        %v4281 = vunpack.c.l.s4 1983009808
        %v4282 = vunpack.c.0.s8 %v4281
        %v4283 = vperm.slane %v4279, %v4282
        %v4284 = vrot.slane %v3552, 4
        %v4285 = vsel %vm1270, %v4284, %v3536
        %v4287 = vunpack.c.l.s4 1983009808
        %v4288 = vunpack.c.0.s8 %v4287
        %v4289 = vperm.slane %v4285, %v4288
        %v4290 = vrot.slane %v4289, 4
        %v4291 = vsel %vm1270, %v4290, %v4283
        %v4292 = vrot.slane %v4283, 4
        %v4293 = vsel %vm1270, %v4289, %v4292
        %v4295 = vunpack.c.l.s4 1934713408
        %v4296 = vunpack.c.0.s8 %v4295
        %v4297 = vperm.slane %v4291, %v4296
        %v4299 = vunpack.c.l.s4 1934713408
        %v4300 = vunpack.c.0.s8 %v4299
        %v4301 = vperm.slane %v4293, %v4300
        %v4302 = vrot.slane %v4297, 4
        %v4303 = vsel %vm1270, 0, %v4302
        %v4304 = vrot.slane %v4301, 4
        %v4305 = vsel %vm1270, 0, %v4304
        %v4306 = vrot.slane %v3548, 4
        %v4307 = vsel %vm1270, %v4306, %v3532
        %v4309 = vunpack.c.l.s4 1983009808
        %v4310 = vunpack.c.0.s8 %v4309
        %v4311 = vperm.slane %v4307, %v4310
        %v4312 = vrot.slane %v3556, 4
        %v4313 = vsel %vm1270, %v4312, %v3540
        %v4315 = vunpack.c.l.s4 1983009808
        %v4316 = vunpack.c.0.s8 %v4315
        %v4317 = vperm.slane %v4313, %v4316
        %v4318 = vrot.slane %v4317, 4
        %v4319 = vsel %vm1270, %v4318, %v4311
        %v4320 = vrot.slane %v4311, 4
        %v4321 = vsel %vm1270, %v4317, %v4320
        %v4323 = vunpack.c.l.s4 1934713408
        %v4324 = vunpack.c.0.s8 %v4323
        %v4325 = vperm.slane %v4319, %v4324
        %v4327 = vunpack.c.l.s4 1934713408
        %v4328 = vunpack.c.0.s8 %v4327
        %v4329 = vperm.slane %v4321, %v4328
        %v4330 = vrot.slane %v4325, 4
        %v4331 = vsel %vm1270, 0, %v4330
        %v4332 = vrot.slane %v4329, 4
        %v4333 = vsel %vm1270, 0, %v4332
        %v4334 = vrot.slane %v3576, 4
        %v4335 = vsel %vm1270, %v4334, %v3560
        %v4337 = vunpack.c.l.s4 1983009808
        %v4338 = vunpack.c.0.s8 %v4337
        %v4339 = vperm.slane %v4335, %v4338
        %v4340 = vrot.slane %v3584, 4
        %v4341 = vsel %vm1270, %v4340, %v3568
        %v4343 = vunpack.c.l.s4 1983009808
        %v4344 = vunpack.c.0.s8 %v4343
        %v4345 = vperm.slane %v4341, %v4344
        %v4346 = vrot.slane %v4345, 4
        %v4347 = vsel %vm1270, %v4346, %v4339
        %v4348 = vrot.slane %v4339, 4
        %v4349 = vsel %vm1270, %v4345, %v4348
        %v4351 = vunpack.c.l.s4 1934713408
        %v4352 = vunpack.c.0.s8 %v4351
        %v4353 = vperm.slane %v4347, %v4352
        %v4355 = vunpack.c.l.s4 1934713408
        %v4356 = vunpack.c.0.s8 %v4355
        %v4357 = vperm.slane %v4349, %v4356
        %v4358 = vrot.slane %v4353, 4
        %v4359 = vsel %vm1270, 0, %v4358
        %v4360 = vrot.slane %v4357, 4
        %v4361 = vsel %vm1270, 0, %v4360
        %v4362 = vrot.slane %v3580, 4
        %v4363 = vsel %vm1270, %v4362, %v3564
        %v4365 = vunpack.c.l.s4 1983009808
        %v4366 = vunpack.c.0.s8 %v4365
        %v4367 = vperm.slane %v4363, %v4366
        %v4368 = vrot.slane %v3588, 4
        %v4369 = vsel %vm1270, %v4368, %v3572
        %v4371 = vunpack.c.l.s4 1983009808
        %v4372 = vunpack.c.0.s8 %v4371
        %v4373 = vperm.slane %v4369, %v4372
        %v4374 = vrot.slane %v4373, 4
        %v4375 = vsel %vm1270, %v4374, %v4367
        %v4376 = vrot.slane %v4367, 4
        %v4377 = vsel %vm1270, %v4373, %v4376
        %v4379 = vunpack.c.l.s4 1934713408
        %v4380 = vunpack.c.0.s8 %v4379
        %v4381 = vperm.slane %v4375, %v4380
        %v4383 = vunpack.c.l.s4 1934713408
        %v4384 = vunpack.c.0.s8 %v4383
        %v4385 = vperm.slane %v4377, %v4384
        %v4386 = vrot.slane %v4381, 4
        %v4387 = vsel %vm1270, 0, %v4386
        %v4388 = vrot.slane %v4385, 4
        %v4389 = vsel %vm1270, 0, %v4388
        %v4390 = vrot.slane %v3608, 4
        %v4391 = vsel %vm1270, %v4390, %v3592
        %v4393 = vunpack.c.l.s4 1983009808
        %v4394 = vunpack.c.0.s8 %v4393
        %v4395 = vperm.slane %v4391, %v4394
        %v4396 = vrot.slane %v3616, 4
        %v4397 = vsel %vm1270, %v4396, %v3600
        %v4399 = vunpack.c.l.s4 1983009808
        %v4400 = vunpack.c.0.s8 %v4399
        %v4401 = vperm.slane %v4397, %v4400
        %v4402 = vrot.slane %v4401, 4
        %v4403 = vsel %vm1270, %v4402, %v4395
        %v4404 = vrot.slane %v4395, 4
        %v4405 = vsel %vm1270, %v4401, %v4404
        %v4407 = vunpack.c.l.s4 1934713408
        %v4408 = vunpack.c.0.s8 %v4407
        %v4409 = vperm.slane %v4403, %v4408
        %v4411 = vunpack.c.l.s4 1934713408
        %v4412 = vunpack.c.0.s8 %v4411
        %v4413 = vperm.slane %v4405, %v4412
        %v4414 = vrot.slane %v4409, 4
        %v4415 = vsel %vm1270, 0, %v4414
        %v4416 = vrot.slane %v4413, 4
        %v4417 = vsel %vm1270, 0, %v4416
        %v4418 = vrot.slane %v3612, 4
        %v4419 = vsel %vm1270, %v4418, %v3596
        %v4421 = vunpack.c.l.s4 1983009808
        %v4422 = vunpack.c.0.s8 %v4421
        %v4423 = vperm.slane %v4419, %v4422
        %v4424 = vrot.slane %v3620, 4
        %v4425 = vsel %vm1270, %v4424, %v3604
        %v4427 = vunpack.c.l.s4 1983009808
        %v4428 = vunpack.c.0.s8 %v4427
        %v4429 = vperm.slane %v4425, %v4428
        %v4430 = vrot.slane %v4429, 4
        %v4431 = vsel %vm1270, %v4430, %v4423
        %v4432 = vrot.slane %v4423, 4
        %v4433 = vsel %vm1270, %v4429, %v4432
        %v4435 = vunpack.c.l.s4 1934713408
        %v4436 = vunpack.c.0.s8 %v4435
        %v4437 = vperm.slane %v4431, %v4436
        %v4439 = vunpack.c.l.s4 1934713408
        %v4440 = vunpack.c.0.s8 %v4439
        %v4441 = vperm.slane %v4433, %v4440
        %v4442 = vrot.slane %v4437, 4
        %v4443 = vsel %vm1270, 0, %v4442
        %v4444 = vrot.slane %v4441, 4
        %v4445 = vsel %vm1270, 0, %v4444
        %v4446 = vrot.slane %v3640, 4
        %v4447 = vsel %vm1270, %v4446, %v3624
        %v4449 = vunpack.c.l.s4 1983009808
        %v4450 = vunpack.c.0.s8 %v4449
        %v4451 = vperm.slane %v4447, %v4450
        %v4452 = vrot.slane %v3648, 4
        %v4453 = vsel %vm1270, %v4452, %v3632
        %v4455 = vunpack.c.l.s4 1983009808
        %v4456 = vunpack.c.0.s8 %v4455
        %v4457 = vperm.slane %v4453, %v4456
        %v4458 = vrot.slane %v4457, 4
        %v4459 = vsel %vm1270, %v4458, %v4451
        %v4460 = vrot.slane %v4451, 4
        %v4461 = vsel %vm1270, %v4457, %v4460
        %v4463 = vunpack.c.l.s4 1934713408
        %v4464 = vunpack.c.0.s8 %v4463
        %v4465 = vperm.slane %v4459, %v4464
        %v4467 = vunpack.c.l.s4 1934713408
        %v4468 = vunpack.c.0.s8 %v4467
        %v4469 = vperm.slane %v4461, %v4468
        %v4470 = vrot.slane %v4465, 4
        %v4471 = vsel %vm1270, 0, %v4470
        %v4472 = vrot.slane %v4469, 4
        %v4473 = vsel %vm1270, 0, %v4472
        %v4474 = vrot.slane %v3644, 4
        %v4475 = vsel %vm1270, %v4474, %v3628
        %v4477 = vunpack.c.l.s4 1983009808
        %v4478 = vunpack.c.0.s8 %v4477
        %v4479 = vperm.slane %v4475, %v4478
        %v4480 = vrot.slane %v3652, 4
        %v4481 = vsel %vm1270, %v4480, %v3636
        %v4483 = vunpack.c.l.s4 1983009808
        %v4484 = vunpack.c.0.s8 %v4483
        %v4485 = vperm.slane %v4481, %v4484
        %v4486 = vrot.slane %v4485, 4
        %v4487 = vsel %vm1270, %v4486, %v4479
        %v4488 = vrot.slane %v4479, 4
        %v4489 = vsel %vm1270, %v4485, %v4488
        %v4491 = vunpack.c.l.s4 1934713408
        %v4492 = vunpack.c.0.s8 %v4491
        %v4493 = vperm.slane %v4487, %v4492
        %v4495 = vunpack.c.l.s4 1934713408
        %v4496 = vunpack.c.0.s8 %v4495
        %v4497 = vperm.slane %v4489, %v4496
        %v4498 = vrot.slane %v4493, 4
        %v4499 = vsel %vm1270, 0, %v4498
        %v4500 = vrot.slane %v4497, 4
        %v4501 = vsel %vm1270, 0, %v4500
        %v4502 = vrot.slane %v3672, 4
        %v4503 = vsel %vm1270, %v4502, %v3656
        %v4505 = vunpack.c.l.s4 1983009808
        %v4506 = vunpack.c.0.s8 %v4505
        %v4507 = vperm.slane %v4503, %v4506
        %v4508 = vrot.slane %v3680, 4
        %v4509 = vsel %vm1270, %v4508, %v3664
        %v4511 = vunpack.c.l.s4 1983009808
        %v4512 = vunpack.c.0.s8 %v4511
        %v4513 = vperm.slane %v4509, %v4512
        %v4514 = vrot.slane %v4513, 4
        %v4515 = vsel %vm1270, %v4514, %v4507
        %v4516 = vrot.slane %v4507, 4
        %v4517 = vsel %vm1270, %v4513, %v4516
        %v4519 = vunpack.c.l.s4 1934713408
        %v4520 = vunpack.c.0.s8 %v4519
        %v4521 = vperm.slane %v4515, %v4520
        %v4523 = vunpack.c.l.s4 1934713408
        %v4524 = vunpack.c.0.s8 %v4523
        %v4525 = vperm.slane %v4517, %v4524
        %v4526 = vrot.slane %v4521, 4
        %v4527 = vsel %vm1270, 0, %v4526
        %v4528 = vrot.slane %v4525, 4
        %v4529 = vsel %vm1270, 0, %v4528
        %v4530 = vrot.slane %v3676, 4
        %v4531 = vsel %vm1270, %v4530, %v3660
        %v4533 = vunpack.c.l.s4 1983009808
        %v4534 = vunpack.c.0.s8 %v4533
        %v4535 = vperm.slane %v4531, %v4534
        %v4536 = vrot.slane %v3684, 4
        %v4537 = vsel %vm1270, %v4536, %v3668
        %v4539 = vunpack.c.l.s4 1983009808
        %v4540 = vunpack.c.0.s8 %v4539
        %v4541 = vperm.slane %v4537, %v4540
        %v4542 = vrot.slane %v4541, 4
        %v4543 = vsel %vm1270, %v4542, %v4535
        %v4544 = vrot.slane %v4535, 4
        %v4545 = vsel %vm1270, %v4541, %v4544
        %v4547 = vunpack.c.l.s4 1934713408
        %v4548 = vunpack.c.0.s8 %v4547
        %v4549 = vperm.slane %v4543, %v4548
        %v4551 = vunpack.c.l.s4 1934713408
        %v4552 = vunpack.c.0.s8 %v4551
        %v4553 = vperm.slane %v4545, %v4552
        %v4554 = vrot.slane %v4549, 4
        %v4555 = vsel %vm1270, 0, %v4554
        %v4556 = vrot.slane %v4553, 4
        %v4557 = vsel %vm1270, 0, %v4556
        %v4558 = vrot.slane %v3704, 4
        %v4559 = vsel %vm1270, %v4558, %v3688
        %v4561 = vunpack.c.l.s4 1983009808
        %v4562 = vunpack.c.0.s8 %v4561
        %v4563 = vperm.slane %v4559, %v4562
        %v4564 = vrot.slane %v3712, 4
        %v4565 = vsel %vm1270, %v4564, %v3696
        %v4567 = vunpack.c.l.s4 1983009808
        %v4568 = vunpack.c.0.s8 %v4567
        %v4569 = vperm.slane %v4565, %v4568
        %v4570 = vrot.slane %v4569, 4
        %v4571 = vsel %vm1270, %v4570, %v4563
        %v4572 = vrot.slane %v4563, 4
        %v4573 = vsel %vm1270, %v4569, %v4572
        %v4575 = vunpack.c.l.s4 1934713408
        %v4576 = vunpack.c.0.s8 %v4575
        %v4577 = vperm.slane %v4571, %v4576
        %v4579 = vunpack.c.l.s4 1934713408
        %v4580 = vunpack.c.0.s8 %v4579
        %v4581 = vperm.slane %v4573, %v4580
        %v4582 = vrot.slane %v4577, 4
        %v4583 = vsel %vm1270, 0, %v4582
        %v4584 = vrot.slane %v4581, 4
        %v4585 = vsel %vm1270, 0, %v4584
        %v4586 = vrot.slane %v3708, 4
        %v4587 = vsel %vm1270, %v4586, %v3692
        %v4589 = vunpack.c.l.s4 1983009808
        %v4590 = vunpack.c.0.s8 %v4589
        %v4591 = vperm.slane %v4587, %v4590
        %v4592 = vrot.slane %v3716, 4
        %v4593 = vsel %vm1270, %v4592, %v3700
        %v4595 = vunpack.c.l.s4 1983009808
        %v4596 = vunpack.c.0.s8 %v4595
        %v4597 = vperm.slane %v4593, %v4596
        %v4598 = vrot.slane %v4597, 4
        %v4599 = vsel %vm1270, %v4598, %v4591
        %v4600 = vrot.slane %v4591, 4
        %v4601 = vsel %vm1270, %v4597, %v4600
        %v4603 = vunpack.c.l.s4 1934713408
        %v4604 = vunpack.c.0.s8 %v4603
        %v4605 = vperm.slane %v4599, %v4604
        %v4607 = vunpack.c.l.s4 1934713408
        %v4608 = vunpack.c.0.s8 %v4607
        %v4609 = vperm.slane %v4601, %v4608
        %v4610 = vrot.slane %v4605, 4
        %v4611 = vsel %vm1270, 0, %v4610
        %v4612 = vrot.slane %v4609, 4
        %v4613 = vsel %vm1270, 0, %v4612
        %v4616 = vpack.i.b16 %v3765, %v3737
        %v4617 = vshrl.u32 %v3737, 16
        %v4618 = vshrl.u32 %v3765, 16
        %v4619 = vpack.i.b16 %v4618, %v4617
        %v4622 = vpack.i.b16 %v3771, %v3743
        %v4623 = vshrl.u32 %v3743, 16
        %v4624 = vshrl.u32 %v3771, 16
        %v4625 = vpack.i.b16 %v4624, %v4623
        %v4628 = vpack.i.b16 %v3769, %v3741
        %v4629 = vshrl.u32 %v3741, 16
        %v4630 = vshrl.u32 %v3769, 16
        %v4631 = vpack.i.b16 %v4630, %v4629
        %v4634 = vpack.i.b16 %v3773, %v3745
        %v4635 = vshrl.u32 %v3745, 16
        %v4636 = vshrl.u32 %v3773, 16
        %v4637 = vpack.i.b16 %v4636, %v4635
        %v4640 = vpack.i.b16 %v3989, %v3961
        %v4641 = vshrl.u32 %v3961, 16
        %v4642 = vshrl.u32 %v3989, 16
        %v4643 = vpack.i.b16 %v4642, %v4641
        %v4646 = vpack.i.b16 %v3995, %v3967
        %v4647 = vshrl.u32 %v3967, 16
        %v4648 = vshrl.u32 %v3995, 16
        %v4649 = vpack.i.b16 %v4648, %v4647
        %v4652 = vpack.i.b16 %v3993, %v3965
        %v4653 = vshrl.u32 %v3965, 16
        %v4654 = vshrl.u32 %v3993, 16
        %v4655 = vpack.i.b16 %v4654, %v4653
        %v4658 = vpack.i.b16 %v3997, %v3969
        %v4659 = vshrl.u32 %v3969, 16
        %v4660 = vshrl.u32 %v3997, 16
        %v4661 = vpack.i.b16 %v4660, %v4659
        %v4664 = vpack.i.b16 %v3821, %v3793
        %v4665 = vshrl.u32 %v3793, 16
        %v4666 = vshrl.u32 %v3821, 16
        %v4667 = vpack.i.b16 %v4666, %v4665
        %v4670 = vpack.i.b16 %v3827, %v3799
        %v4671 = vshrl.u32 %v3799, 16
        %v4672 = vshrl.u32 %v3827, 16
        %v4673 = vpack.i.b16 %v4672, %v4671
        %v4676 = vpack.i.b16 %v3825, %v3797
        %v4677 = vshrl.u32 %v3797, 16
        %v4678 = vshrl.u32 %v3825, 16
        %v4679 = vpack.i.b16 %v4678, %v4677
        %v4682 = vpack.i.b16 %v3829, %v3801
        %v4683 = vshrl.u32 %v3801, 16
        %v4684 = vshrl.u32 %v3829, 16
        %v4685 = vpack.i.b16 %v4684, %v4683
        %v4688 = vpack.i.b16 %v4045, %v4017
        %v4689 = vshrl.u32 %v4017, 16
        %v4690 = vshrl.u32 %v4045, 16
        %v4691 = vpack.i.b16 %v4690, %v4689
        %v4694 = vpack.i.b16 %v4051, %v4023
        %v4695 = vshrl.u32 %v4023, 16
        %v4696 = vshrl.u32 %v4051, 16
        %v4697 = vpack.i.b16 %v4696, %v4695
        %v4700 = vpack.i.b16 %v4049, %v4021
        %v4701 = vshrl.u32 %v4021, 16
        %v4702 = vshrl.u32 %v4049, 16
        %v4703 = vpack.i.b16 %v4702, %v4701
        %v4706 = vpack.i.b16 %v4053, %v4025
        %v4707 = vshrl.u32 %v4025, 16
        %v4708 = vshrl.u32 %v4053, 16
        %v4709 = vpack.i.b16 %v4708, %v4707
        %v4712 = vpack.i.b16 %v3877, %v3849
        %v4713 = vshrl.u32 %v3849, 16
        %v4714 = vshrl.u32 %v3877, 16
        %v4715 = vpack.i.b16 %v4714, %v4713
        %v4718 = vpack.i.b16 %v3883, %v3855
        %v4719 = vshrl.u32 %v3855, 16
        %v4720 = vshrl.u32 %v3883, 16
        %v4721 = vpack.i.b16 %v4720, %v4719
        %v4724 = vpack.i.b16 %v3881, %v3853
        %v4725 = vshrl.u32 %v3853, 16
        %v4726 = vshrl.u32 %v3881, 16
        %v4727 = vpack.i.b16 %v4726, %v4725
        %v4730 = vpack.i.b16 %v3885, %v3857
        %v4731 = vshrl.u32 %v3857, 16
        %v4732 = vshrl.u32 %v3885, 16
        %v4733 = vpack.i.b16 %v4732, %v4731
        %v4736 = vpack.i.b16 %v4101, %v4073
        %v4737 = vshrl.u32 %v4073, 16
        %v4738 = vshrl.u32 %v4101, 16
        %v4739 = vpack.i.b16 %v4738, %v4737
        %v4742 = vpack.i.b16 %v4107, %v4079
        %v4743 = vshrl.u32 %v4079, 16
        %v4744 = vshrl.u32 %v4107, 16
        %v4745 = vpack.i.b16 %v4744, %v4743
        %v4748 = vpack.i.b16 %v4105, %v4077
        %v4749 = vshrl.u32 %v4077, 16
        %v4750 = vshrl.u32 %v4105, 16
        %v4751 = vpack.i.b16 %v4750, %v4749
        %v4754 = vpack.i.b16 %v4109, %v4081
        %v4755 = vshrl.u32 %v4081, 16
        %v4756 = vshrl.u32 %v4109, 16
        %v4757 = vpack.i.b16 %v4756, %v4755
        %v4760 = vpack.i.b16 %v3933, %v3905
        %v4761 = vshrl.u32 %v3905, 16
        %v4762 = vshrl.u32 %v3933, 16
        %v4763 = vpack.i.b16 %v4762, %v4761
        %v4766 = vpack.i.b16 %v3939, %v3911
        %v4767 = vshrl.u32 %v3911, 16
        %v4768 = vshrl.u32 %v3939, 16
        %v4769 = vpack.i.b16 %v4768, %v4767
        %v4772 = vpack.i.b16 %v3937, %v3909
        %v4773 = vshrl.u32 %v3909, 16
        %v4774 = vshrl.u32 %v3937, 16
        %v4775 = vpack.i.b16 %v4774, %v4773
        %v4778 = vpack.i.b16 %v3941, %v3913
        %v4779 = vshrl.u32 %v3913, 16
        %v4780 = vshrl.u32 %v3941, 16
        %v4781 = vpack.i.b16 %v4780, %v4779
        %v4784 = vpack.i.b16 %v4157, %v4129
        %v4785 = vshrl.u32 %v4129, 16
        %v4786 = vshrl.u32 %v4157, 16
        %v4787 = vpack.i.b16 %v4786, %v4785
        %v4790 = vpack.i.b16 %v4163, %v4135
        %v4791 = vshrl.u32 %v4135, 16
        %v4792 = vshrl.u32 %v4163, 16
        %v4793 = vpack.i.b16 %v4792, %v4791
        %v4796 = vpack.i.b16 %v4161, %v4133
        %v4797 = vshrl.u32 %v4133, 16
        %v4798 = vshrl.u32 %v4161, 16
        %v4799 = vpack.i.b16 %v4798, %v4797
        %v4802 = vpack.i.b16 %v4165, %v4137
        %v4803 = vshrl.u32 %v4137, 16
        %v4804 = vshrl.u32 %v4165, 16
        %v4805 = vpack.i.b16 %v4804, %v4803
        %v4808 = vpack.i.b16 %v4213, %v4185
        %v4809 = vshrl.u32 %v4185, 16
        %v4810 = vshrl.u32 %v4213, 16
        %v4811 = vpack.i.b16 %v4810, %v4809
        %v4814 = vpack.i.b16 %v4219, %v4191
        %v4815 = vshrl.u32 %v4191, 16
        %v4816 = vshrl.u32 %v4219, 16
        %v4817 = vpack.i.b16 %v4816, %v4815
        %v4820 = vpack.i.b16 %v4217, %v4189
        %v4821 = vshrl.u32 %v4189, 16
        %v4822 = vshrl.u32 %v4217, 16
        %v4823 = vpack.i.b16 %v4822, %v4821
        %v4826 = vpack.i.b16 %v4221, %v4193
        %v4827 = vshrl.u32 %v4193, 16
        %v4828 = vshrl.u32 %v4221, 16
        %v4829 = vpack.i.b16 %v4828, %v4827
        %v4832 = vpack.i.b16 %v4437, %v4409
        %v4833 = vshrl.u32 %v4409, 16
        %v4834 = vshrl.u32 %v4437, 16
        %v4835 = vpack.i.b16 %v4834, %v4833
        %v4838 = vpack.i.b16 %v4443, %v4415
        %v4839 = vshrl.u32 %v4415, 16
        %v4840 = vshrl.u32 %v4443, 16
        %v4841 = vpack.i.b16 %v4840, %v4839
        %v4844 = vpack.i.b16 %v4441, %v4413
        %v4845 = vshrl.u32 %v4413, 16
        %v4846 = vshrl.u32 %v4441, 16
        %v4847 = vpack.i.b16 %v4846, %v4845
        %v4850 = vpack.i.b16 %v4445, %v4417
        %v4851 = vshrl.u32 %v4417, 16
        %v4852 = vshrl.u32 %v4445, 16
        %v4853 = vpack.i.b16 %v4852, %v4851
        %v4856 = vpack.i.b16 %v4269, %v4241
        %v4857 = vshrl.u32 %v4241, 16
        %v4858 = vshrl.u32 %v4269, 16
        %v4859 = vpack.i.b16 %v4858, %v4857
        %v4862 = vpack.i.b16 %v4275, %v4247
        %v4863 = vshrl.u32 %v4247, 16
        %v4864 = vshrl.u32 %v4275, 16
        %v4865 = vpack.i.b16 %v4864, %v4863
        %v4868 = vpack.i.b16 %v4273, %v4245
        %v4869 = vshrl.u32 %v4245, 16
        %v4870 = vshrl.u32 %v4273, 16
        %v4871 = vpack.i.b16 %v4870, %v4869
        %v4874 = vpack.i.b16 %v4277, %v4249
        %v4875 = vshrl.u32 %v4249, 16
        %v4876 = vshrl.u32 %v4277, 16
        %v4877 = vpack.i.b16 %v4876, %v4875
        %v4880 = vpack.i.b16 %v4493, %v4465
        %v4881 = vshrl.u32 %v4465, 16
        %v4882 = vshrl.u32 %v4493, 16
        %v4883 = vpack.i.b16 %v4882, %v4881
        %v4886 = vpack.i.b16 %v4499, %v4471
        %v4887 = vshrl.u32 %v4471, 16
        %v4888 = vshrl.u32 %v4499, 16
        %v4889 = vpack.i.b16 %v4888, %v4887
        %v4892 = vpack.i.b16 %v4497, %v4469
        %v4893 = vshrl.u32 %v4469, 16
        %v4894 = vshrl.u32 %v4497, 16
        %v4895 = vpack.i.b16 %v4894, %v4893
        %v4898 = vpack.i.b16 %v4501, %v4473
        %v4899 = vshrl.u32 %v4473, 16
        %v4900 = vshrl.u32 %v4501, 16
        %v4901 = vpack.i.b16 %v4900, %v4899
        %v4904 = vpack.i.b16 %v4325, %v4297
        %v4905 = vshrl.u32 %v4297, 16
        %v4906 = vshrl.u32 %v4325, 16
        %v4907 = vpack.i.b16 %v4906, %v4905
        %v4910 = vpack.i.b16 %v4331, %v4303
        %v4911 = vshrl.u32 %v4303, 16
        %v4912 = vshrl.u32 %v4331, 16
        %v4913 = vpack.i.b16 %v4912, %v4911
        %v4916 = vpack.i.b16 %v4329, %v4301
        %v4917 = vshrl.u32 %v4301, 16
        %v4918 = vshrl.u32 %v4329, 16
        %v4919 = vpack.i.b16 %v4918, %v4917
        %v4922 = vpack.i.b16 %v4333, %v4305
        %v4923 = vshrl.u32 %v4305, 16
        %v4924 = vshrl.u32 %v4333, 16
        %v4925 = vpack.i.b16 %v4924, %v4923
        %v4928 = vpack.i.b16 %v4549, %v4521
        %v4929 = vshrl.u32 %v4521, 16
        %v4930 = vshrl.u32 %v4549, 16
        %v4931 = vpack.i.b16 %v4930, %v4929
        %v4934 = vpack.i.b16 %v4555, %v4527
        %v4935 = vshrl.u32 %v4527, 16
        %v4936 = vshrl.u32 %v4555, 16
        %v4937 = vpack.i.b16 %v4936, %v4935
        %v4940 = vpack.i.b16 %v4553, %v4525
        %v4941 = vshrl.u32 %v4525, 16
        %v4942 = vshrl.u32 %v4553, 16
        %v4943 = vpack.i.b16 %v4942, %v4941
        %v4946 = vpack.i.b16 %v4557, %v4529
        %v4947 = vshrl.u32 %v4529, 16
        %v4948 = vshrl.u32 %v4557, 16
        %v4949 = vpack.i.b16 %v4948, %v4947
        %v4952 = vpack.i.b16 %v4381, %v4353
        %v4953 = vshrl.u32 %v4353, 16
        %v4954 = vshrl.u32 %v4381, 16
        %v4955 = vpack.i.b16 %v4954, %v4953
        %v4958 = vpack.i.b16 %v4387, %v4359
        %v4959 = vshrl.u32 %v4359, 16
        %v4960 = vshrl.u32 %v4387, 16
        %v4961 = vpack.i.b16 %v4960, %v4959
        %v4964 = vpack.i.b16 %v4385, %v4357
        %v4965 = vshrl.u32 %v4357, 16
        %v4966 = vshrl.u32 %v4385, 16
        %v4967 = vpack.i.b16 %v4966, %v4965
        %v4970 = vpack.i.b16 %v4389, %v4361
        %v4971 = vshrl.u32 %v4361, 16
        %v4972 = vshrl.u32 %v4389, 16
        %v4973 = vpack.i.b16 %v4972, %v4971
        %v4976 = vpack.i.b16 %v4605, %v4577
        %v4977 = vshrl.u32 %v4577, 16
        %v4978 = vshrl.u32 %v4605, 16
        %v4979 = vpack.i.b16 %v4978, %v4977
        %v4982 = vpack.i.b16 %v4611, %v4583
        %v4983 = vshrl.u32 %v4583, 16
        %v4984 = vshrl.u32 %v4611, 16
        %v4985 = vpack.i.b16 %v4984, %v4983
        %v4988 = vpack.i.b16 %v4609, %v4581
        %v4989 = vshrl.u32 %v4581, 16
        %v4990 = vshrl.u32 %v4609, 16
        %v4991 = vpack.i.b16 %v4990, %v4989
        %v4994 = vpack.i.b16 %v4613, %v4585
        %v4995 = vshrl.u32 %v4585, 16
        %v4996 = vshrl.u32 %v4613, 16
        %v4997 = vpack.i.b16 %v4996, %v4995
        %v4998 = vrot.slane %v1167, 4
        %v4999 = vrot.slane %v1168, 4
        %v5000 = vrot.slane %v1169, 4
        %v5001 = vrot.slane %v1170, 4
        %v5002 = vrot.slane %v1171, 4
        %v5003 = vrot.slane %v1172, 4
        %v5004 = vrot.slane %v1173, 4
        %v5005 = vrot.slane %v1174, 4
        %v5014 = vrot.slane %v1951, 4
        %v5015 = vrot.slane %v1953, 4
        %v5016 = vrot.slane %v1955, 4
        %v5017 = vrot.slane %v1957, 4
        %v5018 = vrot.slane %v1959, 4
        %v5019 = vrot.slane %v1961, 4
        %v5020 = vrot.slane %v1963, 4
        %v5021 = vrot.slane %v1965, 4
        %v5030 = vrot.slane %v1975, 4
        %v5031 = vrot.slane %v1977, 4
        %v5032 = vrot.slane %v1979, 4
        %v5033 = vrot.slane %v1981, 4
        %v5034 = vrot.slane %v1983, 4
        %v5035 = vrot.slane %v1985, 4
        %v5036 = vrot.slane %v1987, 4
        %v5037 = vrot.slane %v1989, 4
        %v5046 = vrot.slane %v1999, 4
        %v5047 = vrot.slane %v2001, 4
        %v5048 = vrot.slane %v2003, 4
        %v5049 = vrot.slane %v2005, 4
        %v5050 = vrot.slane %v2007, 4
        %v5051 = vrot.slane %v2009, 4
        %v5052 = vrot.slane %v2011, 4
        %v5053 = vrot.slane %v2013, 4
        %v5062 = vrot.slane %v2023, 4
        %v5063 = vrot.slane %v2025, 4
        %v5064 = vrot.slane %v2027, 4
        %v5065 = vrot.slane %v2029, 4
        %v5066 = vrot.slane %v2031, 4
        %v5067 = vrot.slane %v2033, 4
        %v5068 = vrot.slane %v2035, 4
        %v5069 = vrot.slane %v2037, 4
        %v5078 = vrot.slane %v2047, 4
        %v5079 = vrot.slane %v2049, 4
        %v5080 = vrot.slane %v2051, 4
        %v5081 = vrot.slane %v2053, 4
        %v5082 = vrot.slane %v2055, 4
        %v5083 = vrot.slane %v2057, 4
        %v5084 = vrot.slane %v2059, 4
        %v5085 = vrot.slane %v2061, 4
        %v5094 = vrot.slane %v2071, 4
        %v5095 = vrot.slane %v2073, 4
        %v5096 = vrot.slane %v2075, 4
        %v5097 = vrot.slane %v2077, 4
        %v5098 = vrot.slane %v2079, 4
        %v5099 = vrot.slane %v2081, 4
        %v5100 = vrot.slane %v2083, 4
        %v5101 = vrot.slane %v2085, 4
        %v5110 = vrot.slane %v2095, 4
        %v5111 = vrot.slane %v2097, 4
        %v5112 = vrot.slane %v2099, 4
        %v5113 = vrot.slane %v2101, 4
        %v5114 = vrot.slane %v2103, 4
        %v5115 = vrot.slane %v2105, 4
        %v5116 = vrot.slane %v2107, 4
        %v5117 = vrot.slane %v2109, 4
        %v5126 = vrot.slane %v2119, 4
        %v5127 = vrot.slane %v2121, 4
        %v5128 = vrot.slane %v2123, 4
        %v5129 = vrot.slane %v2125, 4
        %v5130 = vrot.slane %v2127, 4
        %v5131 = vrot.slane %v2129, 4
        %v5132 = vrot.slane %v2131, 4
        %v5133 = vrot.slane %v2133, 4
        %v5142 = vrot.slane %v2143, 4
        %v5143 = vrot.slane %v2145, 4
        %v5144 = vrot.slane %v2147, 4
        %v5145 = vrot.slane %v2149, 4
        %v5146 = vrot.slane %v2151, 4
        %v5147 = vrot.slane %v2153, 4
        %v5148 = vrot.slane %v2155, 4
        %v5149 = vrot.slane %v2157, 4
        %v5158 = vrot.slane %v2167, 4
        %v5159 = vrot.slane %v2169, 4
        %v5160 = vrot.slane %v2171, 4
        %v5161 = vrot.slane %v2173, 4
        %v5162 = vrot.slane %v2175, 4
        %v5163 = vrot.slane %v2177, 4
        %v5164 = vrot.slane %v2179, 4
        %v5165 = vrot.slane %v2181, 4
        %v5174 = vrot.slane %v2191, 4
        %v5175 = vrot.slane %v2193, 4
        %v5176 = vrot.slane %v2195, 4
        %v5177 = vrot.slane %v2197, 4
        %v5178 = vrot.slane %v2199, 4
        %v5179 = vrot.slane %v2201, 4
        %v5180 = vrot.slane %v2203, 4
        %v5181 = vrot.slane %v2205, 4
        %v5190 = vrot.slane %v2215, 4
        %v5191 = vrot.slane %v2217, 4
        %v5192 = vrot.slane %v2219, 4
        %v5193 = vrot.slane %v2221, 4
        %v5194 = vrot.slane %v2223, 4
        %v5195 = vrot.slane %v2225, 4
        %v5196 = vrot.slane %v2227, 4
        %v5197 = vrot.slane %v2229, 4
        %v5206 = vrot.slane %v2239, 4
        %v5207 = vrot.slane %v2241, 4
        %v5208 = vrot.slane %v2243, 4
        %v5209 = vrot.slane %v2245, 4
        %v5210 = vrot.slane %v2247, 4
        %v5211 = vrot.slane %v2249, 4
        %v5212 = vrot.slane %v2251, 4
        %v5213 = vrot.slane %v2253, 4
        %v5222 = vrot.slane %v2263, 4
        %v5223 = vrot.slane %v2265, 4
        %v5224 = vrot.slane %v2267, 4
        %v5225 = vrot.slane %v2269, 4
        %v5226 = vrot.slane %v2271, 4
        %v5227 = vrot.slane %v2273, 4
        %v5228 = vrot.slane %v2275, 4
        %v5229 = vrot.slane %v2277, 4
        %v5238 = vrot.slane %v2287, 4
        %v5239 = vrot.slane %v2289, 4
        %v5240 = vrot.slane %v2291, 4
        %v5241 = vrot.slane %v2293, 4
        %v5242 = vrot.slane %v2295, 4
        %v5243 = vrot.slane %v2297, 4
        %v5244 = vrot.slane %v2299, 4
        %v5245 = vrot.slane %v2301, 4
        %v5254 = vrot.slane %v5062, 4
        %v5255 = vsel %vm1270, %v5254, %v4998
        %v5257 = vunpack.c.l.s4 1983009808
        %v5258 = vunpack.c.0.s8 %v5257
        %v5259 = vperm.slane %v5255, %v5258
        %v5260 = vrot.slane %v5094, 4
        %v5261 = vsel %vm1270, %v5260, %v5030
        %v5263 = vunpack.c.l.s4 1983009808
        %v5264 = vunpack.c.0.s8 %v5263
        %v5265 = vperm.slane %v5261, %v5264
        %v5266 = vrot.slane %v5265, 4
        %v5267 = vsel %vm1270, %v5266, %v5259
        %v5268 = vrot.slane %v5259, 4
        %v5269 = vsel %vm1270, %v5265, %v5268
        %v5271 = vunpack.c.l.s4 1934713408
        %v5272 = vunpack.c.0.s8 %v5271
        %v5273 = vperm.slane %v5267, %v5272
        %v5275 = vunpack.c.l.s4 1934713408
        %v5276 = vunpack.c.0.s8 %v5275
        %v5277 = vperm.slane %v5269, %v5276
        %v5278 = vrot.slane %v5273, 4
        %v5279 = vsel %vm1270, 0, %v5278
        %v5280 = vrot.slane %v5277, 4
        %v5281 = vsel %vm1270, 0, %v5280
        %v5282 = vrot.slane %v5078, 4
        %v5283 = vsel %vm1270, %v5282, %v5014
        %v5285 = vunpack.c.l.s4 1983009808
        %v5286 = vunpack.c.0.s8 %v5285
        %v5287 = vperm.slane %v5283, %v5286
        %v5288 = vrot.slane %v5110, 4
        %v5289 = vsel %vm1270, %v5288, %v5046
        %v5291 = vunpack.c.l.s4 1983009808
        %v5292 = vunpack.c.0.s8 %v5291
        %v5293 = vperm.slane %v5289, %v5292
        %v5294 = vrot.slane %v5293, 4
        %v5295 = vsel %vm1270, %v5294, %v5287
        %v5296 = vrot.slane %v5287, 4
        %v5297 = vsel %vm1270, %v5293, %v5296
        %v5299 = vunpack.c.l.s4 1934713408
        %v5300 = vunpack.c.0.s8 %v5299
        %v5301 = vperm.slane %v5295, %v5300
        %v5303 = vunpack.c.l.s4 1934713408
        %v5304 = vunpack.c.0.s8 %v5303
        %v5305 = vperm.slane %v5297, %v5304
        %v5306 = vrot.slane %v5301, 4
        %v5307 = vsel %vm1270, 0, %v5306
        %v5308 = vrot.slane %v5305, 4
        %v5309 = vsel %vm1270, 0, %v5308
        %v5310 = vrot.slane %v5190, 4
        %v5311 = vsel %vm1270, %v5310, %v5126
        %v5313 = vunpack.c.l.s4 1983009808
        %v5314 = vunpack.c.0.s8 %v5313
        %v5315 = vperm.slane %v5311, %v5314
        %v5316 = vrot.slane %v5222, 4
        %v5317 = vsel %vm1270, %v5316, %v5158
        %v5319 = vunpack.c.l.s4 1983009808
        %v5320 = vunpack.c.0.s8 %v5319
        %v5321 = vperm.slane %v5317, %v5320
        %v5322 = vrot.slane %v5321, 4
        %v5323 = vsel %vm1270, %v5322, %v5315
        %v5324 = vrot.slane %v5315, 4
        %v5325 = vsel %vm1270, %v5321, %v5324
        %v5327 = vunpack.c.l.s4 1934713408
        %v5328 = vunpack.c.0.s8 %v5327
        %v5329 = vperm.slane %v5323, %v5328
        %v5331 = vunpack.c.l.s4 1934713408
        %v5332 = vunpack.c.0.s8 %v5331
        %v5333 = vperm.slane %v5325, %v5332
        %v5334 = vrot.slane %v5329, 4
        %v5335 = vsel %vm1270, 0, %v5334
        %v5336 = vrot.slane %v5333, 4
        %v5337 = vsel %vm1270, 0, %v5336
        %v5338 = vrot.slane %v5206, 4
        %v5339 = vsel %vm1270, %v5338, %v5142
        %v5341 = vunpack.c.l.s4 1983009808
        %v5342 = vunpack.c.0.s8 %v5341
        %v5343 = vperm.slane %v5339, %v5342
        %v5344 = vrot.slane %v5238, 4
        %v5345 = vsel %vm1270, %v5344, %v5174
        %v5347 = vunpack.c.l.s4 1983009808
        %v5348 = vunpack.c.0.s8 %v5347
        %v5349 = vperm.slane %v5345, %v5348
        %v5350 = vrot.slane %v5349, 4
        %v5351 = vsel %vm1270, %v5350, %v5343
        %v5352 = vrot.slane %v5343, 4
        %v5353 = vsel %vm1270, %v5349, %v5352
        %v5355 = vunpack.c.l.s4 1934713408
        %v5356 = vunpack.c.0.s8 %v5355
        %v5357 = vperm.slane %v5351, %v5356
        %v5359 = vunpack.c.l.s4 1934713408
        %v5360 = vunpack.c.0.s8 %v5359
        %v5361 = vperm.slane %v5353, %v5360
        %v5362 = vrot.slane %v5357, 4
        %v5363 = vsel %vm1270, 0, %v5362
        %v5364 = vrot.slane %v5361, 4
        %v5365 = vsel %vm1270, 0, %v5364
        %v5366 = vrot.slane %v5063, 4
        %v5367 = vsel %vm1270, %v5366, %v4999
        %v5369 = vunpack.c.l.s4 1983009808
        %v5370 = vunpack.c.0.s8 %v5369
        %v5371 = vperm.slane %v5367, %v5370
        %v5372 = vrot.slane %v5095, 4
        %v5373 = vsel %vm1270, %v5372, %v5031
        %v5375 = vunpack.c.l.s4 1983009808
        %v5376 = vunpack.c.0.s8 %v5375
        %v5377 = vperm.slane %v5373, %v5376
        %v5378 = vrot.slane %v5377, 4
        %v5379 = vsel %vm1270, %v5378, %v5371
        %v5380 = vrot.slane %v5371, 4
        %v5381 = vsel %vm1270, %v5377, %v5380
        %v5383 = vunpack.c.l.s4 1934713408
        %v5384 = vunpack.c.0.s8 %v5383
        %v5385 = vperm.slane %v5379, %v5384
        %v5387 = vunpack.c.l.s4 1934713408
        %v5388 = vunpack.c.0.s8 %v5387
        %v5389 = vperm.slane %v5381, %v5388
        %v5390 = vrot.slane %v5385, 4
        %v5391 = vsel %vm1270, 0, %v5390
        %v5392 = vrot.slane %v5389, 4
        %v5393 = vsel %vm1270, 0, %v5392
        %v5394 = vrot.slane %v5079, 4
        %v5395 = vsel %vm1270, %v5394, %v5015
        %v5397 = vunpack.c.l.s4 1983009808
        %v5398 = vunpack.c.0.s8 %v5397
        %v5399 = vperm.slane %v5395, %v5398
        %v5400 = vrot.slane %v5111, 4
        %v5401 = vsel %vm1270, %v5400, %v5047
        %v5403 = vunpack.c.l.s4 1983009808
        %v5404 = vunpack.c.0.s8 %v5403
        %v5405 = vperm.slane %v5401, %v5404
        %v5406 = vrot.slane %v5405, 4
        %v5407 = vsel %vm1270, %v5406, %v5399
        %v5408 = vrot.slane %v5399, 4
        %v5409 = vsel %vm1270, %v5405, %v5408
        %v5411 = vunpack.c.l.s4 1934713408
        %v5412 = vunpack.c.0.s8 %v5411
        %v5413 = vperm.slane %v5407, %v5412
        %v5415 = vunpack.c.l.s4 1934713408
        %v5416 = vunpack.c.0.s8 %v5415
        %v5417 = vperm.slane %v5409, %v5416
        %v5418 = vrot.slane %v5413, 4
        %v5419 = vsel %vm1270, 0, %v5418
        %v5420 = vrot.slane %v5417, 4
        %v5421 = vsel %vm1270, 0, %v5420
        %v5422 = vrot.slane %v5191, 4
        %v5423 = vsel %vm1270, %v5422, %v5127
        %v5425 = vunpack.c.l.s4 1983009808
        %v5426 = vunpack.c.0.s8 %v5425
        %v5427 = vperm.slane %v5423, %v5426
        %v5428 = vrot.slane %v5223, 4
        %v5429 = vsel %vm1270, %v5428, %v5159
        %v5431 = vunpack.c.l.s4 1983009808
        %v5432 = vunpack.c.0.s8 %v5431
        %v5433 = vperm.slane %v5429, %v5432
        %v5434 = vrot.slane %v5433, 4
        %v5435 = vsel %vm1270, %v5434, %v5427
        %v5436 = vrot.slane %v5427, 4
        %v5437 = vsel %vm1270, %v5433, %v5436
        %v5439 = vunpack.c.l.s4 1934713408
        %v5440 = vunpack.c.0.s8 %v5439
        %v5441 = vperm.slane %v5435, %v5440
        %v5443 = vunpack.c.l.s4 1934713408
        %v5444 = vunpack.c.0.s8 %v5443
        %v5445 = vperm.slane %v5437, %v5444
        %v5446 = vrot.slane %v5441, 4
        %v5447 = vsel %vm1270, 0, %v5446
        %v5448 = vrot.slane %v5445, 4
        %v5449 = vsel %vm1270, 0, %v5448
        %v5450 = vrot.slane %v5207, 4
        %v5451 = vsel %vm1270, %v5450, %v5143
        %v5453 = vunpack.c.l.s4 1983009808
        %v5454 = vunpack.c.0.s8 %v5453
        %v5455 = vperm.slane %v5451, %v5454
        %v5456 = vrot.slane %v5239, 4
        %v5457 = vsel %vm1270, %v5456, %v5175
        %v5459 = vunpack.c.l.s4 1983009808
        %v5460 = vunpack.c.0.s8 %v5459
        %v5461 = vperm.slane %v5457, %v5460
        %v5462 = vrot.slane %v5461, 4
        %v5463 = vsel %vm1270, %v5462, %v5455
        %v5464 = vrot.slane %v5455, 4
        %v5465 = vsel %vm1270, %v5461, %v5464
        %v5467 = vunpack.c.l.s4 1934713408
        %v5468 = vunpack.c.0.s8 %v5467
        %v5469 = vperm.slane %v5463, %v5468
        %v5471 = vunpack.c.l.s4 1934713408
        %v5472 = vunpack.c.0.s8 %v5471
        %v5473 = vperm.slane %v5465, %v5472
        %v5474 = vrot.slane %v5469, 4
        %v5475 = vsel %vm1270, 0, %v5474
        %v5476 = vrot.slane %v5473, 4
        %v5477 = vsel %vm1270, 0, %v5476
        %v5478 = vrot.slane %v5064, 4
        %v5479 = vsel %vm1270, %v5478, %v5000
        %v5481 = vunpack.c.l.s4 1983009808
        %v5482 = vunpack.c.0.s8 %v5481
        %v5483 = vperm.slane %v5479, %v5482
        %v5484 = vrot.slane %v5096, 4
        %v5485 = vsel %vm1270, %v5484, %v5032
        %v5487 = vunpack.c.l.s4 1983009808
        %v5488 = vunpack.c.0.s8 %v5487
        %v5489 = vperm.slane %v5485, %v5488
        %v5490 = vrot.slane %v5489, 4
        %v5491 = vsel %vm1270, %v5490, %v5483
        %v5492 = vrot.slane %v5483, 4
        %v5493 = vsel %vm1270, %v5489, %v5492
        %v5495 = vunpack.c.l.s4 1934713408
        %v5496 = vunpack.c.0.s8 %v5495
        %v5497 = vperm.slane %v5491, %v5496
        %v5499 = vunpack.c.l.s4 1934713408
        %v5500 = vunpack.c.0.s8 %v5499
        %v5501 = vperm.slane %v5493, %v5500
        %v5502 = vrot.slane %v5497, 4
        %v5503 = vsel %vm1270, 0, %v5502
        %v5504 = vrot.slane %v5501, 4
        %v5505 = vsel %vm1270, 0, %v5504
        %v5506 = vrot.slane %v5080, 4
        %v5507 = vsel %vm1270, %v5506, %v5016
        %v5509 = vunpack.c.l.s4 1983009808
        %v5510 = vunpack.c.0.s8 %v5509
        %v5511 = vperm.slane %v5507, %v5510
        %v5512 = vrot.slane %v5112, 4
        %v5513 = vsel %vm1270, %v5512, %v5048
        %v5515 = vunpack.c.l.s4 1983009808
        %v5516 = vunpack.c.0.s8 %v5515
        %v5517 = vperm.slane %v5513, %v5516
        %v5518 = vrot.slane %v5517, 4
        %v5519 = vsel %vm1270, %v5518, %v5511
        %v5520 = vrot.slane %v5511, 4
        %v5521 = vsel %vm1270, %v5517, %v5520
        %v5523 = vunpack.c.l.s4 1934713408
        %v5524 = vunpack.c.0.s8 %v5523
        %v5525 = vperm.slane %v5519, %v5524
        %v5527 = vunpack.c.l.s4 1934713408
        %v5528 = vunpack.c.0.s8 %v5527
        %v5529 = vperm.slane %v5521, %v5528
        %v5530 = vrot.slane %v5525, 4
        %v5531 = vsel %vm1270, 0, %v5530
        %v5532 = vrot.slane %v5529, 4
        %v5533 = vsel %vm1270, 0, %v5532
        %v5534 = vrot.slane %v5192, 4
        %v5535 = vsel %vm1270, %v5534, %v5128
        %v5537 = vunpack.c.l.s4 1983009808
        %v5538 = vunpack.c.0.s8 %v5537
        %v5539 = vperm.slane %v5535, %v5538
        %v5540 = vrot.slane %v5224, 4
        %v5541 = vsel %vm1270, %v5540, %v5160
        %v5543 = vunpack.c.l.s4 1983009808
        %v5544 = vunpack.c.0.s8 %v5543
        %v5545 = vperm.slane %v5541, %v5544
        %v5546 = vrot.slane %v5545, 4
        %v5547 = vsel %vm1270, %v5546, %v5539
        %v5548 = vrot.slane %v5539, 4
        %v5549 = vsel %vm1270, %v5545, %v5548
        %v5551 = vunpack.c.l.s4 1934713408
        %v5552 = vunpack.c.0.s8 %v5551
        %v5553 = vperm.slane %v5547, %v5552
        %v5555 = vunpack.c.l.s4 1934713408
        %v5556 = vunpack.c.0.s8 %v5555
        %v5557 = vperm.slane %v5549, %v5556
        %v5558 = vrot.slane %v5553, 4
        %v5559 = vsel %vm1270, 0, %v5558
        %v5560 = vrot.slane %v5557, 4
        %v5561 = vsel %vm1270, 0, %v5560
        %v5562 = vrot.slane %v5208, 4
        %v5563 = vsel %vm1270, %v5562, %v5144
        %v5565 = vunpack.c.l.s4 1983009808
        %v5566 = vunpack.c.0.s8 %v5565
        %v5567 = vperm.slane %v5563, %v5566
        %v5568 = vrot.slane %v5240, 4
        %v5569 = vsel %vm1270, %v5568, %v5176
        %v5571 = vunpack.c.l.s4 1983009808
        %v5572 = vunpack.c.0.s8 %v5571
        %v5573 = vperm.slane %v5569, %v5572
        %v5574 = vrot.slane %v5573, 4
        %v5575 = vsel %vm1270, %v5574, %v5567
        %v5576 = vrot.slane %v5567, 4
        %v5577 = vsel %vm1270, %v5573, %v5576
        %v5579 = vunpack.c.l.s4 1934713408
        %v5580 = vunpack.c.0.s8 %v5579
        %v5581 = vperm.slane %v5575, %v5580
        %v5583 = vunpack.c.l.s4 1934713408
        %v5584 = vunpack.c.0.s8 %v5583
        %v5585 = vperm.slane %v5577, %v5584
        %v5586 = vrot.slane %v5581, 4
        %v5587 = vsel %vm1270, 0, %v5586
        %v5588 = vrot.slane %v5585, 4
        %v5589 = vsel %vm1270, 0, %v5588
        %v5590 = vrot.slane %v5065, 4
        %v5591 = vsel %vm1270, %v5590, %v5001
        %v5593 = vunpack.c.l.s4 1983009808
        %v5594 = vunpack.c.0.s8 %v5593
        %v5595 = vperm.slane %v5591, %v5594
        %v5596 = vrot.slane %v5097, 4
        %v5597 = vsel %vm1270, %v5596, %v5033
        %v5599 = vunpack.c.l.s4 1983009808
        %v5600 = vunpack.c.0.s8 %v5599
        %v5601 = vperm.slane %v5597, %v5600
        %v5602 = vrot.slane %v5601, 4
        %v5603 = vsel %vm1270, %v5602, %v5595
        %v5604 = vrot.slane %v5595, 4
        %v5605 = vsel %vm1270, %v5601, %v5604
        %v5607 = vunpack.c.l.s4 1934713408
        %v5608 = vunpack.c.0.s8 %v5607
        %v5609 = vperm.slane %v5603, %v5608
        %v5611 = vunpack.c.l.s4 1934713408
        %v5612 = vunpack.c.0.s8 %v5611
        %v5613 = vperm.slane %v5605, %v5612
        %v5614 = vrot.slane %v5609, 4
        %v5615 = vsel %vm1270, 0, %v5614
        %v5616 = vrot.slane %v5613, 4
        %v5617 = vsel %vm1270, 0, %v5616
        %v5618 = vrot.slane %v5081, 4
        %v5619 = vsel %vm1270, %v5618, %v5017
        %v5621 = vunpack.c.l.s4 1983009808
        %v5622 = vunpack.c.0.s8 %v5621
        %v5623 = vperm.slane %v5619, %v5622
        %v5624 = vrot.slane %v5113, 4
        %v5625 = vsel %vm1270, %v5624, %v5049
        %v5627 = vunpack.c.l.s4 1983009808
        %v5628 = vunpack.c.0.s8 %v5627
        %v5629 = vperm.slane %v5625, %v5628
        %v5630 = vrot.slane %v5629, 4
        %v5631 = vsel %vm1270, %v5630, %v5623
        %v5632 = vrot.slane %v5623, 4
        %v5633 = vsel %vm1270, %v5629, %v5632
        %v5635 = vunpack.c.l.s4 1934713408
        %v5636 = vunpack.c.0.s8 %v5635
        %v5637 = vperm.slane %v5631, %v5636
        %v5639 = vunpack.c.l.s4 1934713408
        %v5640 = vunpack.c.0.s8 %v5639
        %v5641 = vperm.slane %v5633, %v5640
        %v5642 = vrot.slane %v5637, 4
        %v5643 = vsel %vm1270, 0, %v5642
        %v5644 = vrot.slane %v5641, 4
        %v5645 = vsel %vm1270, 0, %v5644
        %v5646 = vrot.slane %v5193, 4
        %v5647 = vsel %vm1270, %v5646, %v5129
        %v5649 = vunpack.c.l.s4 1983009808
        %v5650 = vunpack.c.0.s8 %v5649
        %v5651 = vperm.slane %v5647, %v5650
        %v5652 = vrot.slane %v5225, 4
        %v5653 = vsel %vm1270, %v5652, %v5161
        %v5655 = vunpack.c.l.s4 1983009808
        %v5656 = vunpack.c.0.s8 %v5655
        %v5657 = vperm.slane %v5653, %v5656
        %v5658 = vrot.slane %v5657, 4
        %v5659 = vsel %vm1270, %v5658, %v5651
        %v5660 = vrot.slane %v5651, 4
        %v5661 = vsel %vm1270, %v5657, %v5660
        %v5663 = vunpack.c.l.s4 1934713408
        %v5664 = vunpack.c.0.s8 %v5663
        %v5665 = vperm.slane %v5659, %v5664
        %v5667 = vunpack.c.l.s4 1934713408
        %v5668 = vunpack.c.0.s8 %v5667
        %v5669 = vperm.slane %v5661, %v5668
        %v5670 = vrot.slane %v5665, 4
        %v5671 = vsel %vm1270, 0, %v5670
        %v5672 = vrot.slane %v5669, 4
        %v5673 = vsel %vm1270, 0, %v5672
        %v5674 = vrot.slane %v5209, 4
        %v5675 = vsel %vm1270, %v5674, %v5145
        %v5677 = vunpack.c.l.s4 1983009808
        %v5678 = vunpack.c.0.s8 %v5677
        %v5679 = vperm.slane %v5675, %v5678
        %v5680 = vrot.slane %v5241, 4
        %v5681 = vsel %vm1270, %v5680, %v5177
        %v5683 = vunpack.c.l.s4 1983009808
        %v5684 = vunpack.c.0.s8 %v5683
        %v5685 = vperm.slane %v5681, %v5684
        %v5686 = vrot.slane %v5685, 4
        %v5687 = vsel %vm1270, %v5686, %v5679
        %v5688 = vrot.slane %v5679, 4
        %v5689 = vsel %vm1270, %v5685, %v5688
        %v5691 = vunpack.c.l.s4 1934713408
        %v5692 = vunpack.c.0.s8 %v5691
        %v5693 = vperm.slane %v5687, %v5692
        %v5695 = vunpack.c.l.s4 1934713408
        %v5696 = vunpack.c.0.s8 %v5695
        %v5697 = vperm.slane %v5689, %v5696
        %v5698 = vrot.slane %v5693, 4
        %v5699 = vsel %vm1270, 0, %v5698
        %v5700 = vrot.slane %v5697, 4
        %v5701 = vsel %vm1270, 0, %v5700
        %v5702 = vrot.slane %v5066, 4
        %v5703 = vsel %vm1270, %v5702, %v5002
        %v5705 = vunpack.c.l.s4 1983009808
        %v5706 = vunpack.c.0.s8 %v5705
        %v5707 = vperm.slane %v5703, %v5706
        %v5708 = vrot.slane %v5098, 4
        %v5709 = vsel %vm1270, %v5708, %v5034
        %v5711 = vunpack.c.l.s4 1983009808
        %v5712 = vunpack.c.0.s8 %v5711
        %v5713 = vperm.slane %v5709, %v5712
        %v5714 = vrot.slane %v5713, 4
        %v5715 = vsel %vm1270, %v5714, %v5707
        %v5716 = vrot.slane %v5707, 4
        %v5717 = vsel %vm1270, %v5713, %v5716
        %v5719 = vunpack.c.l.s4 1934713408
        %v5720 = vunpack.c.0.s8 %v5719
        %v5721 = vperm.slane %v5715, %v5720
        %v5723 = vunpack.c.l.s4 1934713408
        %v5724 = vunpack.c.0.s8 %v5723
        %v5725 = vperm.slane %v5717, %v5724
        %v5726 = vrot.slane %v5721, 4
        %v5727 = vsel %vm1270, 0, %v5726
        %v5728 = vrot.slane %v5725, 4
        %v5729 = vsel %vm1270, 0, %v5728
        %v5730 = vrot.slane %v5082, 4
        %v5731 = vsel %vm1270, %v5730, %v5018
        %v5733 = vunpack.c.l.s4 1983009808
        %v5734 = vunpack.c.0.s8 %v5733
        %v5735 = vperm.slane %v5731, %v5734
        %v5736 = vrot.slane %v5114, 4
        %v5737 = vsel %vm1270, %v5736, %v5050
        %v5739 = vunpack.c.l.s4 1983009808
        %v5740 = vunpack.c.0.s8 %v5739
        %v5741 = vperm.slane %v5737, %v5740
        %v5742 = vrot.slane %v5741, 4
        %v5743 = vsel %vm1270, %v5742, %v5735
        %v5744 = vrot.slane %v5735, 4
        %v5745 = vsel %vm1270, %v5741, %v5744
        %v5747 = vunpack.c.l.s4 1934713408
        %v5748 = vunpack.c.0.s8 %v5747
        %v5749 = vperm.slane %v5743, %v5748
        %v5751 = vunpack.c.l.s4 1934713408
        %v5752 = vunpack.c.0.s8 %v5751
        %v5753 = vperm.slane %v5745, %v5752
        %v5754 = vrot.slane %v5749, 4
        %v5755 = vsel %vm1270, 0, %v5754
        %v5756 = vrot.slane %v5753, 4
        %v5757 = vsel %vm1270, 0, %v5756
        %v5758 = vrot.slane %v5194, 4
        %v5759 = vsel %vm1270, %v5758, %v5130
        %v5761 = vunpack.c.l.s4 1983009808
        %v5762 = vunpack.c.0.s8 %v5761
        %v5763 = vperm.slane %v5759, %v5762
        %v5764 = vrot.slane %v5226, 4
        %v5765 = vsel %vm1270, %v5764, %v5162
        %v5767 = vunpack.c.l.s4 1983009808
        %v5768 = vunpack.c.0.s8 %v5767
        %v5769 = vperm.slane %v5765, %v5768
        %v5770 = vrot.slane %v5769, 4
        %v5771 = vsel %vm1270, %v5770, %v5763
        %v5772 = vrot.slane %v5763, 4
        %v5773 = vsel %vm1270, %v5769, %v5772
        %v5775 = vunpack.c.l.s4 1934713408
        %v5776 = vunpack.c.0.s8 %v5775
        %v5777 = vperm.slane %v5771, %v5776
        %v5779 = vunpack.c.l.s4 1934713408
        %v5780 = vunpack.c.0.s8 %v5779
        %v5781 = vperm.slane %v5773, %v5780
        %v5782 = vrot.slane %v5777, 4
        %v5783 = vsel %vm1270, 0, %v5782
        %v5784 = vrot.slane %v5781, 4
        %v5785 = vsel %vm1270, 0, %v5784
        %v5786 = vrot.slane %v5210, 4
        %v5787 = vsel %vm1270, %v5786, %v5146
        %v5789 = vunpack.c.l.s4 1983009808
        %v5790 = vunpack.c.0.s8 %v5789
        %v5791 = vperm.slane %v5787, %v5790
        %v5792 = vrot.slane %v5242, 4
        %v5793 = vsel %vm1270, %v5792, %v5178
        %v5795 = vunpack.c.l.s4 1983009808
        %v5796 = vunpack.c.0.s8 %v5795
        %v5797 = vperm.slane %v5793, %v5796
        %v5798 = vrot.slane %v5797, 4
        %v5799 = vsel %vm1270, %v5798, %v5791
        %v5800 = vrot.slane %v5791, 4
        %v5801 = vsel %vm1270, %v5797, %v5800
        %v5803 = vunpack.c.l.s4 1934713408
        %v5804 = vunpack.c.0.s8 %v5803
        %v5805 = vperm.slane %v5799, %v5804
        %v5807 = vunpack.c.l.s4 1934713408
        %v5808 = vunpack.c.0.s8 %v5807
        %v5809 = vperm.slane %v5801, %v5808
        %v5810 = vrot.slane %v5805, 4
        %v5811 = vsel %vm1270, 0, %v5810
        %v5812 = vrot.slane %v5809, 4
        %v5813 = vsel %vm1270, 0, %v5812
        %v5814 = vrot.slane %v5067, 4
        %v5815 = vsel %vm1270, %v5814, %v5003
        %v5817 = vunpack.c.l.s4 1983009808
        %v5818 = vunpack.c.0.s8 %v5817
        %v5819 = vperm.slane %v5815, %v5818
        %v5820 = vrot.slane %v5099, 4
        %v5821 = vsel %vm1270, %v5820, %v5035
        %v5823 = vunpack.c.l.s4 1983009808
        %v5824 = vunpack.c.0.s8 %v5823
        %v5825 = vperm.slane %v5821, %v5824
        %v5826 = vrot.slane %v5825, 4
        %v5827 = vsel %vm1270, %v5826, %v5819
        %v5828 = vrot.slane %v5819, 4
        %v5829 = vsel %vm1270, %v5825, %v5828
        %v5831 = vunpack.c.l.s4 1934713408
        %v5832 = vunpack.c.0.s8 %v5831
        %v5833 = vperm.slane %v5827, %v5832
        %v5835 = vunpack.c.l.s4 1934713408
        %v5836 = vunpack.c.0.s8 %v5835
        %v5837 = vperm.slane %v5829, %v5836
        %v5838 = vrot.slane %v5833, 4
        %v5839 = vsel %vm1270, 0, %v5838
        %v5840 = vrot.slane %v5837, 4
        %v5841 = vsel %vm1270, 0, %v5840
        %v5842 = vrot.slane %v5083, 4
        %v5843 = vsel %vm1270, %v5842, %v5019
        %v5845 = vunpack.c.l.s4 1983009808
        %v5846 = vunpack.c.0.s8 %v5845
        %v5847 = vperm.slane %v5843, %v5846
        %v5848 = vrot.slane %v5115, 4
        %v5849 = vsel %vm1270, %v5848, %v5051
        %v5851 = vunpack.c.l.s4 1983009808
        %v5852 = vunpack.c.0.s8 %v5851
        %v5853 = vperm.slane %v5849, %v5852
        %v5854 = vrot.slane %v5853, 4
        %v5855 = vsel %vm1270, %v5854, %v5847
        %v5856 = vrot.slane %v5847, 4
        %v5857 = vsel %vm1270, %v5853, %v5856
        %v5859 = vunpack.c.l.s4 1934713408
        %v5860 = vunpack.c.0.s8 %v5859
        %v5861 = vperm.slane %v5855, %v5860
        %v5863 = vunpack.c.l.s4 1934713408
        %v5864 = vunpack.c.0.s8 %v5863
        %v5865 = vperm.slane %v5857, %v5864
        %v5866 = vrot.slane %v5861, 4
        %v5867 = vsel %vm1270, 0, %v5866
        %v5868 = vrot.slane %v5865, 4
        %v5869 = vsel %vm1270, 0, %v5868
        %v5870 = vrot.slane %v5195, 4
        %v5871 = vsel %vm1270, %v5870, %v5131
        %v5873 = vunpack.c.l.s4 1983009808
        %v5874 = vunpack.c.0.s8 %v5873
        %v5875 = vperm.slane %v5871, %v5874
        %v5876 = vrot.slane %v5227, 4
        %v5877 = vsel %vm1270, %v5876, %v5163
        %v5879 = vunpack.c.l.s4 1983009808
        %v5880 = vunpack.c.0.s8 %v5879
        %v5881 = vperm.slane %v5877, %v5880
        %v5882 = vrot.slane %v5881, 4
        %v5883 = vsel %vm1270, %v5882, %v5875
        %v5884 = vrot.slane %v5875, 4
        %v5885 = vsel %vm1270, %v5881, %v5884
        %v5887 = vunpack.c.l.s4 1934713408
        %v5888 = vunpack.c.0.s8 %v5887
        %v5889 = vperm.slane %v5883, %v5888
        %v5891 = vunpack.c.l.s4 1934713408
        %v5892 = vunpack.c.0.s8 %v5891
        %v5893 = vperm.slane %v5885, %v5892
        %v5894 = vrot.slane %v5889, 4
        %v5895 = vsel %vm1270, 0, %v5894
        %v5896 = vrot.slane %v5893, 4
        %v5897 = vsel %vm1270, 0, %v5896
        %v5898 = vrot.slane %v5211, 4
        %v5899 = vsel %vm1270, %v5898, %v5147
        %v5901 = vunpack.c.l.s4 1983009808
        %v5902 = vunpack.c.0.s8 %v5901
        %v5903 = vperm.slane %v5899, %v5902
        %v5904 = vrot.slane %v5243, 4
        %v5905 = vsel %vm1270, %v5904, %v5179
        %v5907 = vunpack.c.l.s4 1983009808
        %v5908 = vunpack.c.0.s8 %v5907
        %v5909 = vperm.slane %v5905, %v5908
        %v5910 = vrot.slane %v5909, 4
        %v5911 = vsel %vm1270, %v5910, %v5903
        %v5912 = vrot.slane %v5903, 4
        %v5913 = vsel %vm1270, %v5909, %v5912
        %v5915 = vunpack.c.l.s4 1934713408
        %v5916 = vunpack.c.0.s8 %v5915
        %v5917 = vperm.slane %v5911, %v5916
        %v5919 = vunpack.c.l.s4 1934713408
        %v5920 = vunpack.c.0.s8 %v5919
        %v5921 = vperm.slane %v5913, %v5920
        %v5922 = vrot.slane %v5917, 4
        %v5923 = vsel %vm1270, 0, %v5922
        %v5924 = vrot.slane %v5921, 4
        %v5925 = vsel %vm1270, 0, %v5924
        %v5926 = vrot.slane %v5068, 4
        %v5927 = vsel %vm1270, %v5926, %v5004
        %v5929 = vunpack.c.l.s4 1983009808
        %v5930 = vunpack.c.0.s8 %v5929
        %v5931 = vperm.slane %v5927, %v5930
        %v5932 = vrot.slane %v5100, 4
        %v5933 = vsel %vm1270, %v5932, %v5036
        %v5935 = vunpack.c.l.s4 1983009808
        %v5936 = vunpack.c.0.s8 %v5935
        %v5937 = vperm.slane %v5933, %v5936
        %v5938 = vrot.slane %v5937, 4
        %v5939 = vsel %vm1270, %v5938, %v5931
        %v5940 = vrot.slane %v5931, 4
        %v5941 = vsel %vm1270, %v5937, %v5940
        %v5943 = vunpack.c.l.s4 1934713408
        %v5944 = vunpack.c.0.s8 %v5943
        %v5945 = vperm.slane %v5939, %v5944
        %v5947 = vunpack.c.l.s4 1934713408
        %v5948 = vunpack.c.0.s8 %v5947
        %v5949 = vperm.slane %v5941, %v5948
        %v5950 = vrot.slane %v5945, 4
        %v5951 = vsel %vm1270, 0, %v5950
        %v5952 = vrot.slane %v5949, 4
        %v5953 = vsel %vm1270, 0, %v5952
        %v5954 = vrot.slane %v5084, 4
        %v5955 = vsel %vm1270, %v5954, %v5020
        %v5957 = vunpack.c.l.s4 1983009808
        %v5958 = vunpack.c.0.s8 %v5957
        %v5959 = vperm.slane %v5955, %v5958
        %v5960 = vrot.slane %v5116, 4
        %v5961 = vsel %vm1270, %v5960, %v5052
        %v5963 = vunpack.c.l.s4 1983009808
        %v5964 = vunpack.c.0.s8 %v5963
        %v5965 = vperm.slane %v5961, %v5964
        %v5966 = vrot.slane %v5965, 4
        %v5967 = vsel %vm1270, %v5966, %v5959
        %v5968 = vrot.slane %v5959, 4
        %v5969 = vsel %vm1270, %v5965, %v5968
        %v5971 = vunpack.c.l.s4 1934713408
        %v5972 = vunpack.c.0.s8 %v5971
        %v5973 = vperm.slane %v5967, %v5972
        %v5975 = vunpack.c.l.s4 1934713408
        %v5976 = vunpack.c.0.s8 %v5975
        %v5977 = vperm.slane %v5969, %v5976
        %v5978 = vrot.slane %v5973, 4
        %v5979 = vsel %vm1270, 0, %v5978
        %v5980 = vrot.slane %v5977, 4
        %v5981 = vsel %vm1270, 0, %v5980
        %v5982 = vrot.slane %v5196, 4
        %v5983 = vsel %vm1270, %v5982, %v5132
        %v5985 = vunpack.c.l.s4 1983009808
        %v5986 = vunpack.c.0.s8 %v5985
        %v5987 = vperm.slane %v5983, %v5986
        %v5988 = vrot.slane %v5228, 4
        %v5989 = vsel %vm1270, %v5988, %v5164
        %v5991 = vunpack.c.l.s4 1983009808
        %v5992 = vunpack.c.0.s8 %v5991
        %v5993 = vperm.slane %v5989, %v5992
        %v5994 = vrot.slane %v5993, 4
        %v5995 = vsel %vm1270, %v5994, %v5987
        %v5996 = vrot.slane %v5987, 4
        %v5997 = vsel %vm1270, %v5993, %v5996
        %v5999 = vunpack.c.l.s4 1934713408
        %v6000 = vunpack.c.0.s8 %v5999
        %v6001 = vperm.slane %v5995, %v6000
        %v6003 = vunpack.c.l.s4 1934713408
        %v6004 = vunpack.c.0.s8 %v6003
        %v6005 = vperm.slane %v5997, %v6004
        %v6006 = vrot.slane %v6001, 4
        %v6007 = vsel %vm1270, 0, %v6006
        %v6008 = vrot.slane %v6005, 4
        %v6009 = vsel %vm1270, 0, %v6008
        %v6010 = vrot.slane %v5212, 4
        %v6011 = vsel %vm1270, %v6010, %v5148
        %v6013 = vunpack.c.l.s4 1983009808
        %v6014 = vunpack.c.0.s8 %v6013
        %v6015 = vperm.slane %v6011, %v6014
        %v6016 = vrot.slane %v5244, 4
        %v6017 = vsel %vm1270, %v6016, %v5180
        %v6019 = vunpack.c.l.s4 1983009808
        %v6020 = vunpack.c.0.s8 %v6019
        %v6021 = vperm.slane %v6017, %v6020
        %v6022 = vrot.slane %v6021, 4
        %v6023 = vsel %vm1270, %v6022, %v6015
        %v6024 = vrot.slane %v6015, 4
        %v6025 = vsel %vm1270, %v6021, %v6024
        %v6027 = vunpack.c.l.s4 1934713408
        %v6028 = vunpack.c.0.s8 %v6027
        %v6029 = vperm.slane %v6023, %v6028
        %v6031 = vunpack.c.l.s4 1934713408
        %v6032 = vunpack.c.0.s8 %v6031
        %v6033 = vperm.slane %v6025, %v6032
        %v6034 = vrot.slane %v6029, 4
        %v6035 = vsel %vm1270, 0, %v6034
        %v6036 = vrot.slane %v6033, 4
        %v6037 = vsel %vm1270, 0, %v6036
        %v6038 = vrot.slane %v5069, 4
        %v6039 = vsel %vm1270, %v6038, %v5005
        %v6041 = vunpack.c.l.s4 1983009808
        %v6042 = vunpack.c.0.s8 %v6041
        %v6043 = vperm.slane %v6039, %v6042
        %v6044 = vrot.slane %v5101, 4
        %v6045 = vsel %vm1270, %v6044, %v5037
        %v6047 = vunpack.c.l.s4 1983009808
        %v6048 = vunpack.c.0.s8 %v6047
        %v6049 = vperm.slane %v6045, %v6048
        %v6050 = vrot.slane %v6049, 4
        %v6051 = vsel %vm1270, %v6050, %v6043
        %v6052 = vrot.slane %v6043, 4
        %v6053 = vsel %vm1270, %v6049, %v6052
        %v6055 = vunpack.c.l.s4 1934713408
        %v6056 = vunpack.c.0.s8 %v6055
        %v6057 = vperm.slane %v6051, %v6056
        %v6059 = vunpack.c.l.s4 1934713408
        %v6060 = vunpack.c.0.s8 %v6059
        %v6061 = vperm.slane %v6053, %v6060
        %v6062 = vrot.slane %v6057, 4
        %v6063 = vsel %vm1270, 0, %v6062
        %v6064 = vrot.slane %v6061, 4
        %v6065 = vsel %vm1270, 0, %v6064
        %v6066 = vrot.slane %v5085, 4
        %v6067 = vsel %vm1270, %v6066, %v5021
        %v6069 = vunpack.c.l.s4 1983009808
        %v6070 = vunpack.c.0.s8 %v6069
        %v6071 = vperm.slane %v6067, %v6070
        %v6072 = vrot.slane %v5117, 4
        %v6073 = vsel %vm1270, %v6072, %v5053
        %v6075 = vunpack.c.l.s4 1983009808
        %v6076 = vunpack.c.0.s8 %v6075
        %v6077 = vperm.slane %v6073, %v6076
        %v6078 = vrot.slane %v6077, 4
        %v6079 = vsel %vm1270, %v6078, %v6071
        %v6080 = vrot.slane %v6071, 4
        %v6081 = vsel %vm1270, %v6077, %v6080
        %v6083 = vunpack.c.l.s4 1934713408
        %v6084 = vunpack.c.0.s8 %v6083
        %v6085 = vperm.slane %v6079, %v6084
        %v6087 = vunpack.c.l.s4 1934713408
        %v6088 = vunpack.c.0.s8 %v6087
        %v6089 = vperm.slane %v6081, %v6088
        %v6090 = vrot.slane %v6085, 4
        %v6091 = vsel %vm1270, 0, %v6090
        %v6092 = vrot.slane %v6089, 4
        %v6093 = vsel %vm1270, 0, %v6092
        %v6094 = vrot.slane %v5197, 4
        %v6095 = vsel %vm1270, %v6094, %v5133
        %v6097 = vunpack.c.l.s4 1983009808
        %v6098 = vunpack.c.0.s8 %v6097
        %v6099 = vperm.slane %v6095, %v6098
        %v6100 = vrot.slane %v5229, 4
        %v6101 = vsel %vm1270, %v6100, %v5165
        %v6103 = vunpack.c.l.s4 1983009808
        %v6104 = vunpack.c.0.s8 %v6103
        %v6105 = vperm.slane %v6101, %v6104
        %v6106 = vrot.slane %v6105, 4
        %v6107 = vsel %vm1270, %v6106, %v6099
        %v6108 = vrot.slane %v6099, 4
        %v6109 = vsel %vm1270, %v6105, %v6108
        %v6111 = vunpack.c.l.s4 1934713408
        %v6112 = vunpack.c.0.s8 %v6111
        %v6113 = vperm.slane %v6107, %v6112
        %v6115 = vunpack.c.l.s4 1934713408
        %v6116 = vunpack.c.0.s8 %v6115
        %v6117 = vperm.slane %v6109, %v6116
        %v6118 = vrot.slane %v6113, 4
        %v6119 = vsel %vm1270, 0, %v6118
        %v6120 = vrot.slane %v6117, 4
        %v6121 = vsel %vm1270, 0, %v6120
        %v6122 = vrot.slane %v5213, 4
        %v6123 = vsel %vm1270, %v6122, %v5149
        %v6125 = vunpack.c.l.s4 1983009808
        %v6126 = vunpack.c.0.s8 %v6125
        %v6127 = vperm.slane %v6123, %v6126
        %v6128 = vrot.slane %v5245, 4
        %v6129 = vsel %vm1270, %v6128, %v5181
        %v6131 = vunpack.c.l.s4 1983009808
        %v6132 = vunpack.c.0.s8 %v6131
        %v6133 = vperm.slane %v6129, %v6132
        %v6134 = vrot.slane %v6133, 4
        %v6135 = vsel %vm1270, %v6134, %v6127
        %v6136 = vrot.slane %v6127, 4
        %v6137 = vsel %vm1270, %v6133, %v6136
        %v6139 = vunpack.c.l.s4 1934713408
        %v6140 = vunpack.c.0.s8 %v6139
        %v6141 = vperm.slane %v6135, %v6140
        %v6143 = vunpack.c.l.s4 1934713408
        %v6144 = vunpack.c.0.s8 %v6143
        %v6145 = vperm.slane %v6137, %v6144
        %v6146 = vrot.slane %v6141, 4
        %v6147 = vsel %vm1270, 0, %v6146
        %v6148 = vrot.slane %v6145, 4
        %v6149 = vsel %vm1270, 0, %v6148
        %v6152 = vpack.i.b16 %v5301, %v5273
        %v6154 = vshrl.u32 %v5273, 16
        %v6155 = vshrl.u32 %v5301, 16
        %v6156 = vpack.i.b16 %v6155, %v6154
        %v6160 = vpack.i.b16 %v5307, %v5279
        %v6162 = vshrl.u32 %v5279, 16
        %v6163 = vshrl.u32 %v5307, 16
        %v6164 = vpack.i.b16 %v6163, %v6162
        %v6168 = vpack.i.b16 %v5305, %v5277
        %v6170 = vshrl.u32 %v5277, 16
        %v6171 = vshrl.u32 %v5305, 16
        %v6172 = vpack.i.b16 %v6171, %v6170
        %v6176 = vpack.i.b16 %v5309, %v5281
        %v6178 = vshrl.u32 %v5281, 16
        %v6179 = vshrl.u32 %v5309, 16
        %v6180 = vpack.i.b16 %v6179, %v6178
        %v6184 = vpack.i.b16 %v5413, %v5385
        %v6186 = vshrl.u32 %v5385, 16
        %v6187 = vshrl.u32 %v5413, 16
        %v6188 = vpack.i.b16 %v6187, %v6186
        %v6192 = vpack.i.b16 %v5419, %v5391
        %v6194 = vshrl.u32 %v5391, 16
        %v6195 = vshrl.u32 %v5419, 16
        %v6196 = vpack.i.b16 %v6195, %v6194
        %v6200 = vpack.i.b16 %v5417, %v5389
        %v6202 = vshrl.u32 %v5389, 16
        %v6203 = vshrl.u32 %v5417, 16
        %v6204 = vpack.i.b16 %v6203, %v6202
        %v6208 = vpack.i.b16 %v5421, %v5393
        %v6210 = vshrl.u32 %v5393, 16
        %v6211 = vshrl.u32 %v5421, 16
        %v6212 = vpack.i.b16 %v6211, %v6210
        %v6216 = vpack.i.b16 %v5525, %v5497
        %v6218 = vshrl.u32 %v5497, 16
        %v6219 = vshrl.u32 %v5525, 16
        %v6220 = vpack.i.b16 %v6219, %v6218
        %v6224 = vpack.i.b16 %v5531, %v5503
        %v6226 = vshrl.u32 %v5503, 16
        %v6227 = vshrl.u32 %v5531, 16
        %v6228 = vpack.i.b16 %v6227, %v6226
        %v6232 = vpack.i.b16 %v5529, %v5501
        %v6234 = vshrl.u32 %v5501, 16
        %v6235 = vshrl.u32 %v5529, 16
        %v6236 = vpack.i.b16 %v6235, %v6234
        %v6240 = vpack.i.b16 %v5533, %v5505
        %v6242 = vshrl.u32 %v5505, 16
        %v6243 = vshrl.u32 %v5533, 16
        %v6244 = vpack.i.b16 %v6243, %v6242
        %v6248 = vpack.i.b16 %v5637, %v5609
        %v6250 = vshrl.u32 %v5609, 16
        %v6251 = vshrl.u32 %v5637, 16
        %v6252 = vpack.i.b16 %v6251, %v6250
        %v6256 = vpack.i.b16 %v5643, %v5615
        %v6258 = vshrl.u32 %v5615, 16
        %v6259 = vshrl.u32 %v5643, 16
        %v6260 = vpack.i.b16 %v6259, %v6258
        %v6264 = vpack.i.b16 %v5641, %v5613
        %v6266 = vshrl.u32 %v5613, 16
        %v6267 = vshrl.u32 %v5641, 16
        %v6268 = vpack.i.b16 %v6267, %v6266
        %v6272 = vpack.i.b16 %v5645, %v5617
        %v6274 = vshrl.u32 %v5617, 16
        %v6275 = vshrl.u32 %v5645, 16
        %v6276 = vpack.i.b16 %v6275, %v6274
        %v6280 = vpack.i.b16 %v5357, %v5329
        %v6282 = vshrl.u32 %v5329, 16
        %v6283 = vshrl.u32 %v5357, 16
        %v6284 = vpack.i.b16 %v6283, %v6282
        %v6288 = vpack.i.b16 %v5363, %v5335
        %v6290 = vshrl.u32 %v5335, 16
        %v6291 = vshrl.u32 %v5363, 16
        %v6292 = vpack.i.b16 %v6291, %v6290
        %v6296 = vpack.i.b16 %v5361, %v5333
        %v6298 = vshrl.u32 %v5333, 16
        %v6299 = vshrl.u32 %v5361, 16
        %v6300 = vpack.i.b16 %v6299, %v6298
        %v6304 = vpack.i.b16 %v5365, %v5337
        %v6306 = vshrl.u32 %v5337, 16
        %v6307 = vshrl.u32 %v5365, 16
        %v6308 = vpack.i.b16 %v6307, %v6306
        %v6312 = vpack.i.b16 %v5469, %v5441
        %v6314 = vshrl.u32 %v5441, 16
        %v6315 = vshrl.u32 %v5469, 16
        %v6316 = vpack.i.b16 %v6315, %v6314
        %v6320 = vpack.i.b16 %v5475, %v5447
        %v6322 = vshrl.u32 %v5447, 16
        %v6323 = vshrl.u32 %v5475, 16
        %v6324 = vpack.i.b16 %v6323, %v6322
        %v6328 = vpack.i.b16 %v5473, %v5445
        %v6330 = vshrl.u32 %v5445, 16
        %v6331 = vshrl.u32 %v5473, 16
        %v6332 = vpack.i.b16 %v6331, %v6330
        %v6336 = vpack.i.b16 %v5477, %v5449
        %v6338 = vshrl.u32 %v5449, 16
        %v6339 = vshrl.u32 %v5477, 16
        %v6340 = vpack.i.b16 %v6339, %v6338
        %v6344 = vpack.i.b16 %v5581, %v5553
        %v6346 = vshrl.u32 %v5553, 16
        %v6347 = vshrl.u32 %v5581, 16
        %v6348 = vpack.i.b16 %v6347, %v6346
        %v6352 = vpack.i.b16 %v5587, %v5559
        %v6354 = vshrl.u32 %v5559, 16
        %v6355 = vshrl.u32 %v5587, 16
        %v6356 = vpack.i.b16 %v6355, %v6354
        %v6360 = vpack.i.b16 %v5585, %v5557
        %v6362 = vshrl.u32 %v5557, 16
        %v6363 = vshrl.u32 %v5585, 16
        %v6364 = vpack.i.b16 %v6363, %v6362
        %v6368 = vpack.i.b16 %v5589, %v5561
        %v6370 = vshrl.u32 %v5561, 16
        %v6371 = vshrl.u32 %v5589, 16
        %v6372 = vpack.i.b16 %v6371, %v6370
        %v6376 = vpack.i.b16 %v5693, %v5665
        %v6378 = vshrl.u32 %v5665, 16
        %v6379 = vshrl.u32 %v5693, 16
        %v6380 = vpack.i.b16 %v6379, %v6378
        %v6384 = vpack.i.b16 %v5699, %v5671
        %v6386 = vshrl.u32 %v5671, 16
        %v6387 = vshrl.u32 %v5699, 16
        %v6388 = vpack.i.b16 %v6387, %v6386
        %v6392 = vpack.i.b16 %v5697, %v5669
        %v6394 = vshrl.u32 %v5669, 16
        %v6395 = vshrl.u32 %v5697, 16
        %v6396 = vpack.i.b16 %v6395, %v6394
        %v6400 = vpack.i.b16 %v5701, %v5673
        %v6402 = vshrl.u32 %v5673, 16
        %v6403 = vshrl.u32 %v5701, 16
        %v6404 = vpack.i.b16 %v6403, %v6402
        %v6408 = vpack.i.b16 %v5749, %v5721
        %v6410 = vshrl.u32 %v5721, 16
        %v6411 = vshrl.u32 %v5749, 16
        %v6412 = vpack.i.b16 %v6411, %v6410
        %v6416 = vpack.i.b16 %v5755, %v5727
        %v6418 = vshrl.u32 %v5727, 16
        %v6419 = vshrl.u32 %v5755, 16
        %v6420 = vpack.i.b16 %v6419, %v6418
        %v6424 = vpack.i.b16 %v5753, %v5725
        %v6426 = vshrl.u32 %v5725, 16
        %v6427 = vshrl.u32 %v5753, 16
        %v6428 = vpack.i.b16 %v6427, %v6426
        %v6432 = vpack.i.b16 %v5757, %v5729
        %v6434 = vshrl.u32 %v5729, 16
        %v6435 = vshrl.u32 %v5757, 16
        %v6436 = vpack.i.b16 %v6435, %v6434
        %v6440 = vpack.i.b16 %v5861, %v5833
        %v6442 = vshrl.u32 %v5833, 16
        %v6443 = vshrl.u32 %v5861, 16
        %v6444 = vpack.i.b16 %v6443, %v6442
        %v6448 = vpack.i.b16 %v5867, %v5839
        %v6450 = vshrl.u32 %v5839, 16
        %v6451 = vshrl.u32 %v5867, 16
        %v6452 = vpack.i.b16 %v6451, %v6450
        %v6456 = vpack.i.b16 %v5865, %v5837
        %v6458 = vshrl.u32 %v5837, 16
        %v6459 = vshrl.u32 %v5865, 16
        %v6460 = vpack.i.b16 %v6459, %v6458
        %v6464 = vpack.i.b16 %v5869, %v5841
        %v6466 = vshrl.u32 %v5841, 16
        %v6467 = vshrl.u32 %v5869, 16
        %v6468 = vpack.i.b16 %v6467, %v6466
        %v6472 = vpack.i.b16 %v5973, %v5945
        %v6474 = vshrl.u32 %v5945, 16
        %v6475 = vshrl.u32 %v5973, 16
        %v6476 = vpack.i.b16 %v6475, %v6474
        %v6480 = vpack.i.b16 %v5979, %v5951
        %v6482 = vshrl.u32 %v5951, 16
        %v6483 = vshrl.u32 %v5979, 16
        %v6484 = vpack.i.b16 %v6483, %v6482
        %v6488 = vpack.i.b16 %v5977, %v5949
        %v6490 = vshrl.u32 %v5949, 16
        %v6491 = vshrl.u32 %v5977, 16
        %v6492 = vpack.i.b16 %v6491, %v6490
        %v6496 = vpack.i.b16 %v5981, %v5953
        %v6498 = vshrl.u32 %v5953, 16
        %v6499 = vshrl.u32 %v5981, 16
        %v6500 = vpack.i.b16 %v6499, %v6498
        %v6504 = vpack.i.b16 %v6085, %v6057
        %v6506 = vshrl.u32 %v6057, 16
        %v6507 = vshrl.u32 %v6085, 16
        %v6508 = vpack.i.b16 %v6507, %v6506
        %v6512 = vpack.i.b16 %v6091, %v6063
        %v6514 = vshrl.u32 %v6063, 16
        %v6515 = vshrl.u32 %v6091, 16
        %v6516 = vpack.i.b16 %v6515, %v6514
        %v6520 = vpack.i.b16 %v6089, %v6061
        %v6522 = vshrl.u32 %v6061, 16
        %v6523 = vshrl.u32 %v6089, 16
        %v6524 = vpack.i.b16 %v6523, %v6522
        %v6528 = vpack.i.b16 %v6093, %v6065
        %v6530 = vshrl.u32 %v6065, 16
        %v6531 = vshrl.u32 %v6093, 16
        %v6532 = vpack.i.b16 %v6531, %v6530
        %v6536 = vpack.i.b16 %v5805, %v5777
        %v6538 = vshrl.u32 %v5777, 16
        %v6539 = vshrl.u32 %v5805, 16
        %v6540 = vpack.i.b16 %v6539, %v6538
        %v6544 = vpack.i.b16 %v5811, %v5783
        %v6546 = vshrl.u32 %v5783, 16
        %v6547 = vshrl.u32 %v5811, 16
        %v6548 = vpack.i.b16 %v6547, %v6546
        %v6552 = vpack.i.b16 %v5809, %v5781
        %v6554 = vshrl.u32 %v5781, 16
        %v6555 = vshrl.u32 %v5809, 16
        %v6556 = vpack.i.b16 %v6555, %v6554
        %v6560 = vpack.i.b16 %v5813, %v5785
        %v6562 = vshrl.u32 %v5785, 16
        %v6563 = vshrl.u32 %v5813, 16
        %v6564 = vpack.i.b16 %v6563, %v6562
        %v6568 = vpack.i.b16 %v5917, %v5889
        %v6570 = vshrl.u32 %v5889, 16
        %v6571 = vshrl.u32 %v5917, 16
        %v6572 = vpack.i.b16 %v6571, %v6570
        %v6576 = vpack.i.b16 %v5923, %v5895
        %v6578 = vshrl.u32 %v5895, 16
        %v6579 = vshrl.u32 %v5923, 16
        %v6580 = vpack.i.b16 %v6579, %v6578
        %v6584 = vpack.i.b16 %v5921, %v5893
        %v6586 = vshrl.u32 %v5893, 16
        %v6587 = vshrl.u32 %v5921, 16
        %v6588 = vpack.i.b16 %v6587, %v6586
        %v6592 = vpack.i.b16 %v5925, %v5897
        %v6594 = vshrl.u32 %v5897, 16
        %v6595 = vshrl.u32 %v5925, 16
        %v6596 = vpack.i.b16 %v6595, %v6594
        %v6600 = vpack.i.b16 %v6029, %v6001
        %v6602 = vshrl.u32 %v6001, 16
        %v6603 = vshrl.u32 %v6029, 16
        %v6604 = vpack.i.b16 %v6603, %v6602
        %v6608 = vpack.i.b16 %v6035, %v6007
        %v6610 = vshrl.u32 %v6007, 16
        %v6611 = vshrl.u32 %v6035, 16
        %v6612 = vpack.i.b16 %v6611, %v6610
        %v6616 = vpack.i.b16 %v6033, %v6005
        %v6618 = vshrl.u32 %v6005, 16
        %v6619 = vshrl.u32 %v6033, 16
        %v6620 = vpack.i.b16 %v6619, %v6618
        %v6624 = vpack.i.b16 %v6037, %v6009
        %v6626 = vshrl.u32 %v6009, 16
        %v6627 = vshrl.u32 %v6037, 16
        %v6628 = vpack.i.b16 %v6627, %v6626
        %v6632 = vpack.i.b16 %v6141, %v6113
        %v6634 = vshrl.u32 %v6113, 16
        %v6635 = vshrl.u32 %v6141, 16
        %v6636 = vpack.i.b16 %v6635, %v6634
        %v6640 = vpack.i.b16 %v6147, %v6119
        %v6642 = vshrl.u32 %v6119, 16
        %v6643 = vshrl.u32 %v6147, 16
        %v6644 = vpack.i.b16 %v6643, %v6642
        %v6648 = vpack.i.b16 %v6145, %v6117
        %v6650 = vshrl.u32 %v6117, 16
        %v6651 = vshrl.u32 %v6145, 16
        %v6652 = vpack.i.b16 %v6651, %v6650
        %v6656 = vpack.i.b16 %v6149, %v6121
        %v6658 = vshrl.u32 %v6121, 16
        %v6659 = vshrl.u32 %v6149, 16
        %v6660 = vpack.i.b16 %v6659, %v6658
        %v6662 = vrot.slane %v6168, 4
        %v6663 = vsel %vm1270, %v6662, %v6152
        %v6665 = vunpack.c.l.s4 1983009808
        %v6666 = vunpack.c.0.s8 %v6665
        %v6667 = vperm.slane %v6663, %v6666
        %v6668 = vrot.slane %v6176, 4
        %v6669 = vsel %vm1270, %v6668, %v6160
        %v6671 = vunpack.c.l.s4 1983009808
        %v6672 = vunpack.c.0.s8 %v6671
        %v6673 = vperm.slane %v6669, %v6672
        %v6674 = vrot.slane %v6673, 4
        %v6675 = vsel %vm1270, %v6674, %v6667
        %v6676 = vrot.slane %v6667, 4
        %v6677 = vsel %vm1270, %v6673, %v6676
        %v6679 = vunpack.c.l.s4 1934713408
        %v6680 = vunpack.c.0.s8 %v6679
        %v6681 = vperm.slane %v6675, %v6680
        %v6683 = vunpack.c.l.s4 1934713408
        %v6684 = vunpack.c.0.s8 %v6683
        %v6685 = vperm.slane %v6677, %v6684
        %v6686 = vrot.slane %v6681, 4
        %v6687 = vsel %vm1270, 0, %v6686
        %v6688 = vrot.slane %v6685, 4
        %v6689 = vsel %vm1270, 0, %v6688
        %v6690 = vrot.slane %v6172, 4
        %v6691 = vsel %vm1270, %v6690, %v6156
        %v6693 = vunpack.c.l.s4 1983009808
        %v6694 = vunpack.c.0.s8 %v6693
        %v6695 = vperm.slane %v6691, %v6694
        %v6696 = vrot.slane %v6180, 4
        %v6697 = vsel %vm1270, %v6696, %v6164
        %v6699 = vunpack.c.l.s4 1983009808
        %v6700 = vunpack.c.0.s8 %v6699
        %v6701 = vperm.slane %v6697, %v6700
        %v6702 = vrot.slane %v6701, 4
        %v6703 = vsel %vm1270, %v6702, %v6695
        %v6704 = vrot.slane %v6695, 4
        %v6705 = vsel %vm1270, %v6701, %v6704
        %v6707 = vunpack.c.l.s4 1934713408
        %v6708 = vunpack.c.0.s8 %v6707
        %v6709 = vperm.slane %v6703, %v6708
        %v6711 = vunpack.c.l.s4 1934713408
        %v6712 = vunpack.c.0.s8 %v6711
        %v6713 = vperm.slane %v6705, %v6712
        %v6714 = vrot.slane %v6709, 4
        %v6715 = vsel %vm1270, 0, %v6714
        %v6716 = vrot.slane %v6713, 4
        %v6717 = vsel %vm1270, 0, %v6716
        %v6718 = vrot.slane %v6200, 4
        %v6719 = vsel %vm1270, %v6718, %v6184
        %v6721 = vunpack.c.l.s4 1983009808
        %v6722 = vunpack.c.0.s8 %v6721
        %v6723 = vperm.slane %v6719, %v6722
        %v6724 = vrot.slane %v6208, 4
        %v6725 = vsel %vm1270, %v6724, %v6192
        %v6727 = vunpack.c.l.s4 1983009808
        %v6728 = vunpack.c.0.s8 %v6727
        %v6729 = vperm.slane %v6725, %v6728
        %v6730 = vrot.slane %v6729, 4
        %v6731 = vsel %vm1270, %v6730, %v6723
        %v6732 = vrot.slane %v6723, 4
        %v6733 = vsel %vm1270, %v6729, %v6732
        %v6735 = vunpack.c.l.s4 1934713408
        %v6736 = vunpack.c.0.s8 %v6735
        %v6737 = vperm.slane %v6731, %v6736
        %v6739 = vunpack.c.l.s4 1934713408
        %v6740 = vunpack.c.0.s8 %v6739
        %v6741 = vperm.slane %v6733, %v6740
        %v6742 = vrot.slane %v6737, 4
        %v6743 = vsel %vm1270, 0, %v6742
        %v6744 = vrot.slane %v6741, 4
        %v6745 = vsel %vm1270, 0, %v6744
        %v6746 = vrot.slane %v6204, 4
        %v6747 = vsel %vm1270, %v6746, %v6188
        %v6749 = vunpack.c.l.s4 1983009808
        %v6750 = vunpack.c.0.s8 %v6749
        %v6751 = vperm.slane %v6747, %v6750
        %v6752 = vrot.slane %v6212, 4
        %v6753 = vsel %vm1270, %v6752, %v6196
        %v6755 = vunpack.c.l.s4 1983009808
        %v6756 = vunpack.c.0.s8 %v6755
        %v6757 = vperm.slane %v6753, %v6756
        %v6758 = vrot.slane %v6757, 4
        %v6759 = vsel %vm1270, %v6758, %v6751
        %v6760 = vrot.slane %v6751, 4
        %v6761 = vsel %vm1270, %v6757, %v6760
        %v6763 = vunpack.c.l.s4 1934713408
        %v6764 = vunpack.c.0.s8 %v6763
        %v6765 = vperm.slane %v6759, %v6764
        %v6767 = vunpack.c.l.s4 1934713408
        %v6768 = vunpack.c.0.s8 %v6767
        %v6769 = vperm.slane %v6761, %v6768
        %v6770 = vrot.slane %v6765, 4
        %v6771 = vsel %vm1270, 0, %v6770
        %v6772 = vrot.slane %v6769, 4
        %v6773 = vsel %vm1270, 0, %v6772
        %v6774 = vrot.slane %v6232, 4
        %v6775 = vsel %vm1270, %v6774, %v6216
        %v6777 = vunpack.c.l.s4 1983009808
        %v6778 = vunpack.c.0.s8 %v6777
        %v6779 = vperm.slane %v6775, %v6778
        %v6780 = vrot.slane %v6240, 4
        %v6781 = vsel %vm1270, %v6780, %v6224
        %v6783 = vunpack.c.l.s4 1983009808
        %v6784 = vunpack.c.0.s8 %v6783
        %v6785 = vperm.slane %v6781, %v6784
        %v6786 = vrot.slane %v6785, 4
        %v6787 = vsel %vm1270, %v6786, %v6779
        %v6788 = vrot.slane %v6779, 4
        %v6789 = vsel %vm1270, %v6785, %v6788
        %v6791 = vunpack.c.l.s4 1934713408
        %v6792 = vunpack.c.0.s8 %v6791
        %v6793 = vperm.slane %v6787, %v6792
        %v6795 = vunpack.c.l.s4 1934713408
        %v6796 = vunpack.c.0.s8 %v6795
        %v6797 = vperm.slane %v6789, %v6796
        %v6798 = vrot.slane %v6793, 4
        %v6799 = vsel %vm1270, 0, %v6798
        %v6800 = vrot.slane %v6797, 4
        %v6801 = vsel %vm1270, 0, %v6800
        %v6802 = vrot.slane %v6236, 4
        %v6803 = vsel %vm1270, %v6802, %v6220
        %v6805 = vunpack.c.l.s4 1983009808
        %v6806 = vunpack.c.0.s8 %v6805
        %v6807 = vperm.slane %v6803, %v6806
        %v6808 = vrot.slane %v6244, 4
        %v6809 = vsel %vm1270, %v6808, %v6228
        %v6811 = vunpack.c.l.s4 1983009808
        %v6812 = vunpack.c.0.s8 %v6811
        %v6813 = vperm.slane %v6809, %v6812
        %v6814 = vrot.slane %v6813, 4
        %v6815 = vsel %vm1270, %v6814, %v6807
        %v6816 = vrot.slane %v6807, 4
        %v6817 = vsel %vm1270, %v6813, %v6816
        %v6819 = vunpack.c.l.s4 1934713408
        %v6820 = vunpack.c.0.s8 %v6819
        %v6821 = vperm.slane %v6815, %v6820
        %v6823 = vunpack.c.l.s4 1934713408
        %v6824 = vunpack.c.0.s8 %v6823
        %v6825 = vperm.slane %v6817, %v6824
        %v6826 = vrot.slane %v6821, 4
        %v6827 = vsel %vm1270, 0, %v6826
        %v6828 = vrot.slane %v6825, 4
        %v6829 = vsel %vm1270, 0, %v6828
        %v6830 = vrot.slane %v6264, 4
        %v6831 = vsel %vm1270, %v6830, %v6248
        %v6833 = vunpack.c.l.s4 1983009808
        %v6834 = vunpack.c.0.s8 %v6833
        %v6835 = vperm.slane %v6831, %v6834
        %v6836 = vrot.slane %v6272, 4
        %v6837 = vsel %vm1270, %v6836, %v6256
        %v6839 = vunpack.c.l.s4 1983009808
        %v6840 = vunpack.c.0.s8 %v6839
        %v6841 = vperm.slane %v6837, %v6840
        %v6842 = vrot.slane %v6841, 4
        %v6843 = vsel %vm1270, %v6842, %v6835
        %v6844 = vrot.slane %v6835, 4
        %v6845 = vsel %vm1270, %v6841, %v6844
        %v6847 = vunpack.c.l.s4 1934713408
        %v6848 = vunpack.c.0.s8 %v6847
        %v6849 = vperm.slane %v6843, %v6848
        %v6851 = vunpack.c.l.s4 1934713408
        %v6852 = vunpack.c.0.s8 %v6851
        %v6853 = vperm.slane %v6845, %v6852
        %v6854 = vrot.slane %v6849, 4
        %v6855 = vsel %vm1270, 0, %v6854
        %v6856 = vrot.slane %v6853, 4
        %v6857 = vsel %vm1270, 0, %v6856
        %v6858 = vrot.slane %v6268, 4
        %v6859 = vsel %vm1270, %v6858, %v6252
        %v6861 = vunpack.c.l.s4 1983009808
        %v6862 = vunpack.c.0.s8 %v6861
        %v6863 = vperm.slane %v6859, %v6862
        %v6864 = vrot.slane %v6276, 4
        %v6865 = vsel %vm1270, %v6864, %v6260
        %v6867 = vunpack.c.l.s4 1983009808
        %v6868 = vunpack.c.0.s8 %v6867
        %v6869 = vperm.slane %v6865, %v6868
        %v6870 = vrot.slane %v6869, 4
        %v6871 = vsel %vm1270, %v6870, %v6863
        %v6872 = vrot.slane %v6863, 4
        %v6873 = vsel %vm1270, %v6869, %v6872
        %v6875 = vunpack.c.l.s4 1934713408
        %v6876 = vunpack.c.0.s8 %v6875
        %v6877 = vperm.slane %v6871, %v6876
        %v6879 = vunpack.c.l.s4 1934713408
        %v6880 = vunpack.c.0.s8 %v6879
        %v6881 = vperm.slane %v6873, %v6880
        %v6882 = vrot.slane %v6877, 4
        %v6883 = vsel %vm1270, 0, %v6882
        %v6884 = vrot.slane %v6881, 4
        %v6885 = vsel %vm1270, 0, %v6884
        %v6886 = vrot.slane %v6296, 4
        %v6887 = vsel %vm1270, %v6886, %v6280
        %v6889 = vunpack.c.l.s4 1983009808
        %v6890 = vunpack.c.0.s8 %v6889
        %v6891 = vperm.slane %v6887, %v6890
        %v6892 = vrot.slane %v6304, 4
        %v6893 = vsel %vm1270, %v6892, %v6288
        %v6895 = vunpack.c.l.s4 1983009808
        %v6896 = vunpack.c.0.s8 %v6895
        %v6897 = vperm.slane %v6893, %v6896
        %v6898 = vrot.slane %v6897, 4
        %v6899 = vsel %vm1270, %v6898, %v6891
        %v6900 = vrot.slane %v6891, 4
        %v6901 = vsel %vm1270, %v6897, %v6900
        %v6903 = vunpack.c.l.s4 1934713408
        %v6904 = vunpack.c.0.s8 %v6903
        %v6905 = vperm.slane %v6899, %v6904
        %v6907 = vunpack.c.l.s4 1934713408
        %v6908 = vunpack.c.0.s8 %v6907
        %v6909 = vperm.slane %v6901, %v6908
        %v6910 = vrot.slane %v6905, 4
        %v6911 = vsel %vm1270, 0, %v6910
        %v6912 = vrot.slane %v6909, 4
        %v6913 = vsel %vm1270, 0, %v6912
        %v6914 = vrot.slane %v6300, 4
        %v6915 = vsel %vm1270, %v6914, %v6284
        %v6917 = vunpack.c.l.s4 1983009808
        %v6918 = vunpack.c.0.s8 %v6917
        %v6919 = vperm.slane %v6915, %v6918
        %v6920 = vrot.slane %v6308, 4
        %v6921 = vsel %vm1270, %v6920, %v6292
        %v6923 = vunpack.c.l.s4 1983009808
        %v6924 = vunpack.c.0.s8 %v6923
        %v6925 = vperm.slane %v6921, %v6924
        %v6926 = vrot.slane %v6925, 4
        %v6927 = vsel %vm1270, %v6926, %v6919
        %v6928 = vrot.slane %v6919, 4
        %v6929 = vsel %vm1270, %v6925, %v6928
        %v6931 = vunpack.c.l.s4 1934713408
        %v6932 = vunpack.c.0.s8 %v6931
        %v6933 = vperm.slane %v6927, %v6932
        %v6935 = vunpack.c.l.s4 1934713408
        %v6936 = vunpack.c.0.s8 %v6935
        %v6937 = vperm.slane %v6929, %v6936
        %v6938 = vrot.slane %v6933, 4
        %v6939 = vsel %vm1270, 0, %v6938
        %v6940 = vrot.slane %v6937, 4
        %v6941 = vsel %vm1270, 0, %v6940
        %v6942 = vrot.slane %v6328, 4
        %v6943 = vsel %vm1270, %v6942, %v6312
        %v6945 = vunpack.c.l.s4 1983009808
        %v6946 = vunpack.c.0.s8 %v6945
        %v6947 = vperm.slane %v6943, %v6946
        %v6948 = vrot.slane %v6336, 4
        %v6949 = vsel %vm1270, %v6948, %v6320
        %v6951 = vunpack.c.l.s4 1983009808
        %v6952 = vunpack.c.0.s8 %v6951
        %v6953 = vperm.slane %v6949, %v6952
        %v6954 = vrot.slane %v6953, 4
        %v6955 = vsel %vm1270, %v6954, %v6947
        %v6956 = vrot.slane %v6947, 4
        %v6957 = vsel %vm1270, %v6953, %v6956
        %v6959 = vunpack.c.l.s4 1934713408
        %v6960 = vunpack.c.0.s8 %v6959
        %v6961 = vperm.slane %v6955, %v6960
        %v6963 = vunpack.c.l.s4 1934713408
        %v6964 = vunpack.c.0.s8 %v6963
        %v6965 = vperm.slane %v6957, %v6964
        %v6966 = vrot.slane %v6961, 4
        %v6967 = vsel %vm1270, 0, %v6966
        %v6968 = vrot.slane %v6965, 4
        %v6969 = vsel %vm1270, 0, %v6968
        %v6970 = vrot.slane %v6332, 4
        %v6971 = vsel %vm1270, %v6970, %v6316
        %v6973 = vunpack.c.l.s4 1983009808
        %v6974 = vunpack.c.0.s8 %v6973
        %v6975 = vperm.slane %v6971, %v6974
        %v6976 = vrot.slane %v6340, 4
        %v6977 = vsel %vm1270, %v6976, %v6324
        %v6979 = vunpack.c.l.s4 1983009808
        %v6980 = vunpack.c.0.s8 %v6979
        %v6981 = vperm.slane %v6977, %v6980
        %v6982 = vrot.slane %v6981, 4
        %v6983 = vsel %vm1270, %v6982, %v6975
        %v6984 = vrot.slane %v6975, 4
        %v6985 = vsel %vm1270, %v6981, %v6984
        %v6987 = vunpack.c.l.s4 1934713408
        %v6988 = vunpack.c.0.s8 %v6987
        %v6989 = vperm.slane %v6983, %v6988
        %v6991 = vunpack.c.l.s4 1934713408
        %v6992 = vunpack.c.0.s8 %v6991
        %v6993 = vperm.slane %v6985, %v6992
        %v6994 = vrot.slane %v6989, 4
        %v6995 = vsel %vm1270, 0, %v6994
        %v6996 = vrot.slane %v6993, 4
        %v6997 = vsel %vm1270, 0, %v6996
        %v6998 = vrot.slane %v6360, 4
        %v6999 = vsel %vm1270, %v6998, %v6344
        %v7001 = vunpack.c.l.s4 1983009808
        %v7002 = vunpack.c.0.s8 %v7001
        %v7003 = vperm.slane %v6999, %v7002
        %v7004 = vrot.slane %v6368, 4
        %v7005 = vsel %vm1270, %v7004, %v6352
        %v7007 = vunpack.c.l.s4 1983009808
        %v7008 = vunpack.c.0.s8 %v7007
        %v7009 = vperm.slane %v7005, %v7008
        %v7010 = vrot.slane %v7009, 4
        %v7011 = vsel %vm1270, %v7010, %v7003
        %v7012 = vrot.slane %v7003, 4
        %v7013 = vsel %vm1270, %v7009, %v7012
        %v7015 = vunpack.c.l.s4 1934713408
        %v7016 = vunpack.c.0.s8 %v7015
        %v7017 = vperm.slane %v7011, %v7016
        %v7019 = vunpack.c.l.s4 1934713408
        %v7020 = vunpack.c.0.s8 %v7019
        %v7021 = vperm.slane %v7013, %v7020
        %v7022 = vrot.slane %v7017, 4
        %v7023 = vsel %vm1270, 0, %v7022
        %v7024 = vrot.slane %v7021, 4
        %v7025 = vsel %vm1270, 0, %v7024
        %v7026 = vrot.slane %v6364, 4
        %v7027 = vsel %vm1270, %v7026, %v6348
        %v7029 = vunpack.c.l.s4 1983009808
        %v7030 = vunpack.c.0.s8 %v7029
        %v7031 = vperm.slane %v7027, %v7030
        %v7032 = vrot.slane %v6372, 4
        %v7033 = vsel %vm1270, %v7032, %v6356
        %v7035 = vunpack.c.l.s4 1983009808
        %v7036 = vunpack.c.0.s8 %v7035
        %v7037 = vperm.slane %v7033, %v7036
        %v7038 = vrot.slane %v7037, 4
        %v7039 = vsel %vm1270, %v7038, %v7031
        %v7040 = vrot.slane %v7031, 4
        %v7041 = vsel %vm1270, %v7037, %v7040
        %v7043 = vunpack.c.l.s4 1934713408
        %v7044 = vunpack.c.0.s8 %v7043
        %v7045 = vperm.slane %v7039, %v7044
        %v7047 = vunpack.c.l.s4 1934713408
        %v7048 = vunpack.c.0.s8 %v7047
        %v7049 = vperm.slane %v7041, %v7048
        %v7050 = vrot.slane %v7045, 4
        %v7051 = vsel %vm1270, 0, %v7050
        %v7052 = vrot.slane %v7049, 4
        %v7053 = vsel %vm1270, 0, %v7052
        %v7054 = vrot.slane %v6392, 4
        %v7055 = vsel %vm1270, %v7054, %v6376
        %v7057 = vunpack.c.l.s4 1983009808
        %v7058 = vunpack.c.0.s8 %v7057
        %v7059 = vperm.slane %v7055, %v7058
        %v7060 = vrot.slane %v6400, 4
        %v7061 = vsel %vm1270, %v7060, %v6384
        %v7063 = vunpack.c.l.s4 1983009808
        %v7064 = vunpack.c.0.s8 %v7063
        %v7065 = vperm.slane %v7061, %v7064
        %v7066 = vrot.slane %v7065, 4
        %v7067 = vsel %vm1270, %v7066, %v7059
        %v7068 = vrot.slane %v7059, 4
        %v7069 = vsel %vm1270, %v7065, %v7068
        %v7071 = vunpack.c.l.s4 1934713408
        %v7072 = vunpack.c.0.s8 %v7071
        %v7073 = vperm.slane %v7067, %v7072
        %v7075 = vunpack.c.l.s4 1934713408
        %v7076 = vunpack.c.0.s8 %v7075
        %v7077 = vperm.slane %v7069, %v7076
        %v7078 = vrot.slane %v7073, 4
        %v7079 = vsel %vm1270, 0, %v7078
        %v7080 = vrot.slane %v7077, 4
        %v7081 = vsel %vm1270, 0, %v7080
        %v7082 = vrot.slane %v6396, 4
        %v7083 = vsel %vm1270, %v7082, %v6380
        %v7085 = vunpack.c.l.s4 1983009808
        %v7086 = vunpack.c.0.s8 %v7085
        %v7087 = vperm.slane %v7083, %v7086
        %v7088 = vrot.slane %v6404, 4
        %v7089 = vsel %vm1270, %v7088, %v6388
        %v7091 = vunpack.c.l.s4 1983009808
        %v7092 = vunpack.c.0.s8 %v7091
        %v7093 = vperm.slane %v7089, %v7092
        %v7094 = vrot.slane %v7093, 4
        %v7095 = vsel %vm1270, %v7094, %v7087
        %v7096 = vrot.slane %v7087, 4
        %v7097 = vsel %vm1270, %v7093, %v7096
        %v7099 = vunpack.c.l.s4 1934713408
        %v7100 = vunpack.c.0.s8 %v7099
        %v7101 = vperm.slane %v7095, %v7100
        %v7103 = vunpack.c.l.s4 1934713408
        %v7104 = vunpack.c.0.s8 %v7103
        %v7105 = vperm.slane %v7097, %v7104
        %v7106 = vrot.slane %v7101, 4
        %v7107 = vsel %vm1270, 0, %v7106
        %v7108 = vrot.slane %v7105, 4
        %v7109 = vsel %vm1270, 0, %v7108
        %v7110 = vrot.slane %v6424, 4
        %v7111 = vsel %vm1270, %v7110, %v6408
        %v7113 = vunpack.c.l.s4 1983009808
        %v7114 = vunpack.c.0.s8 %v7113
        %v7115 = vperm.slane %v7111, %v7114
        %v7116 = vrot.slane %v6432, 4
        %v7117 = vsel %vm1270, %v7116, %v6416
        %v7119 = vunpack.c.l.s4 1983009808
        %v7120 = vunpack.c.0.s8 %v7119
        %v7121 = vperm.slane %v7117, %v7120
        %v7122 = vrot.slane %v7121, 4
        %v7123 = vsel %vm1270, %v7122, %v7115
        %v7124 = vrot.slane %v7115, 4
        %v7125 = vsel %vm1270, %v7121, %v7124
        %v7127 = vunpack.c.l.s4 1934713408
        %v7128 = vunpack.c.0.s8 %v7127
        %v7129 = vperm.slane %v7123, %v7128
        %v7131 = vunpack.c.l.s4 1934713408
        %v7132 = vunpack.c.0.s8 %v7131
        %v7133 = vperm.slane %v7125, %v7132
        %v7134 = vrot.slane %v7129, 4
        %v7135 = vsel %vm1270, 0, %v7134
        %v7136 = vrot.slane %v7133, 4
        %v7137 = vsel %vm1270, 0, %v7136
        %v7138 = vrot.slane %v6428, 4
        %v7139 = vsel %vm1270, %v7138, %v6412
        %v7141 = vunpack.c.l.s4 1983009808
        %v7142 = vunpack.c.0.s8 %v7141
        %v7143 = vperm.slane %v7139, %v7142
        %v7144 = vrot.slane %v6436, 4
        %v7145 = vsel %vm1270, %v7144, %v6420
        %v7147 = vunpack.c.l.s4 1983009808
        %v7148 = vunpack.c.0.s8 %v7147
        %v7149 = vperm.slane %v7145, %v7148
        %v7150 = vrot.slane %v7149, 4
        %v7151 = vsel %vm1270, %v7150, %v7143
        %v7152 = vrot.slane %v7143, 4
        %v7153 = vsel %vm1270, %v7149, %v7152
        %v7155 = vunpack.c.l.s4 1934713408
        %v7156 = vunpack.c.0.s8 %v7155
        %v7157 = vperm.slane %v7151, %v7156
        %v7159 = vunpack.c.l.s4 1934713408
        %v7160 = vunpack.c.0.s8 %v7159
        %v7161 = vperm.slane %v7153, %v7160
        %v7162 = vrot.slane %v7157, 4
        %v7163 = vsel %vm1270, 0, %v7162
        %v7164 = vrot.slane %v7161, 4
        %v7165 = vsel %vm1270, 0, %v7164
        %v7166 = vrot.slane %v6456, 4
        %v7167 = vsel %vm1270, %v7166, %v6440
        %v7169 = vunpack.c.l.s4 1983009808
        %v7170 = vunpack.c.0.s8 %v7169
        %v7171 = vperm.slane %v7167, %v7170
        %v7172 = vrot.slane %v6464, 4
        %v7173 = vsel %vm1270, %v7172, %v6448
        %v7175 = vunpack.c.l.s4 1983009808
        %v7176 = vunpack.c.0.s8 %v7175
        %v7177 = vperm.slane %v7173, %v7176
        %v7178 = vrot.slane %v7177, 4
        %v7179 = vsel %vm1270, %v7178, %v7171
        %v7180 = vrot.slane %v7171, 4
        %v7181 = vsel %vm1270, %v7177, %v7180
        %v7183 = vunpack.c.l.s4 1934713408
        %v7184 = vunpack.c.0.s8 %v7183
        %v7185 = vperm.slane %v7179, %v7184
        %v7187 = vunpack.c.l.s4 1934713408
        %v7188 = vunpack.c.0.s8 %v7187
        %v7189 = vperm.slane %v7181, %v7188
        %v7190 = vrot.slane %v7185, 4
        %v7191 = vsel %vm1270, 0, %v7190
        %v7192 = vrot.slane %v7189, 4
        %v7193 = vsel %vm1270, 0, %v7192
        %v7194 = vrot.slane %v6460, 4
        %v7195 = vsel %vm1270, %v7194, %v6444
        %v7197 = vunpack.c.l.s4 1983009808
        %v7198 = vunpack.c.0.s8 %v7197
        %v7199 = vperm.slane %v7195, %v7198
        %v7200 = vrot.slane %v6468, 4
        %v7201 = vsel %vm1270, %v7200, %v6452
        %v7203 = vunpack.c.l.s4 1983009808
        %v7204 = vunpack.c.0.s8 %v7203
        %v7205 = vperm.slane %v7201, %v7204
        %v7206 = vrot.slane %v7205, 4
        %v7207 = vsel %vm1270, %v7206, %v7199
        %v7208 = vrot.slane %v7199, 4
        %v7209 = vsel %vm1270, %v7205, %v7208
        %v7211 = vunpack.c.l.s4 1934713408
        %v7212 = vunpack.c.0.s8 %v7211
        %v7213 = vperm.slane %v7207, %v7212
        %v7215 = vunpack.c.l.s4 1934713408
        %v7216 = vunpack.c.0.s8 %v7215
        %v7217 = vperm.slane %v7209, %v7216
        %v7218 = vrot.slane %v7213, 4
        %v7219 = vsel %vm1270, 0, %v7218
        %v7220 = vrot.slane %v7217, 4
        %v7221 = vsel %vm1270, 0, %v7220
        %v7222 = vrot.slane %v6488, 4
        %v7223 = vsel %vm1270, %v7222, %v6472
        %v7225 = vunpack.c.l.s4 1983009808
        %v7226 = vunpack.c.0.s8 %v7225
        %v7227 = vperm.slane %v7223, %v7226
        %v7228 = vrot.slane %v6496, 4
        %v7229 = vsel %vm1270, %v7228, %v6480
        %v7231 = vunpack.c.l.s4 1983009808
        %v7232 = vunpack.c.0.s8 %v7231
        %v7233 = vperm.slane %v7229, %v7232
        %v7234 = vrot.slane %v7233, 4
        %v7235 = vsel %vm1270, %v7234, %v7227
        %v7236 = vrot.slane %v7227, 4
        %v7237 = vsel %vm1270, %v7233, %v7236
        %v7239 = vunpack.c.l.s4 1934713408
        %v7240 = vunpack.c.0.s8 %v7239
        %v7241 = vperm.slane %v7235, %v7240
        %v7243 = vunpack.c.l.s4 1934713408
        %v7244 = vunpack.c.0.s8 %v7243
        %v7245 = vperm.slane %v7237, %v7244
        %v7246 = vrot.slane %v7241, 4
        %v7247 = vsel %vm1270, 0, %v7246
        %v7248 = vrot.slane %v7245, 4
        %v7249 = vsel %vm1270, 0, %v7248
        %v7250 = vrot.slane %v6492, 4
        %v7251 = vsel %vm1270, %v7250, %v6476
        %v7253 = vunpack.c.l.s4 1983009808
        %v7254 = vunpack.c.0.s8 %v7253
        %v7255 = vperm.slane %v7251, %v7254
        %v7256 = vrot.slane %v6500, 4
        %v7257 = vsel %vm1270, %v7256, %v6484
        %v7259 = vunpack.c.l.s4 1983009808
        %v7260 = vunpack.c.0.s8 %v7259
        %v7261 = vperm.slane %v7257, %v7260
        %v7262 = vrot.slane %v7261, 4
        %v7263 = vsel %vm1270, %v7262, %v7255
        %v7264 = vrot.slane %v7255, 4
        %v7265 = vsel %vm1270, %v7261, %v7264
        %v7267 = vunpack.c.l.s4 1934713408
        %v7268 = vunpack.c.0.s8 %v7267
        %v7269 = vperm.slane %v7263, %v7268
        %v7271 = vunpack.c.l.s4 1934713408
        %v7272 = vunpack.c.0.s8 %v7271
        %v7273 = vperm.slane %v7265, %v7272
        %v7274 = vrot.slane %v7269, 4
        %v7275 = vsel %vm1270, 0, %v7274
        %v7276 = vrot.slane %v7273, 4
        %v7277 = vsel %vm1270, 0, %v7276
        %v7278 = vrot.slane %v6520, 4
        %v7279 = vsel %vm1270, %v7278, %v6504
        %v7281 = vunpack.c.l.s4 1983009808
        %v7282 = vunpack.c.0.s8 %v7281
        %v7283 = vperm.slane %v7279, %v7282
        %v7284 = vrot.slane %v6528, 4
        %v7285 = vsel %vm1270, %v7284, %v6512
        %v7287 = vunpack.c.l.s4 1983009808
        %v7288 = vunpack.c.0.s8 %v7287
        %v7289 = vperm.slane %v7285, %v7288
        %v7290 = vrot.slane %v7289, 4
        %v7291 = vsel %vm1270, %v7290, %v7283
        %v7292 = vrot.slane %v7283, 4
        %v7293 = vsel %vm1270, %v7289, %v7292
        %v7295 = vunpack.c.l.s4 1934713408
        %v7296 = vunpack.c.0.s8 %v7295
        %v7297 = vperm.slane %v7291, %v7296
        %v7299 = vunpack.c.l.s4 1934713408
        %v7300 = vunpack.c.0.s8 %v7299
        %v7301 = vperm.slane %v7293, %v7300
        %v7302 = vrot.slane %v7297, 4
        %v7303 = vsel %vm1270, 0, %v7302
        %v7304 = vrot.slane %v7301, 4
        %v7305 = vsel %vm1270, 0, %v7304
        %v7306 = vrot.slane %v6524, 4
        %v7307 = vsel %vm1270, %v7306, %v6508
        %v7309 = vunpack.c.l.s4 1983009808
        %v7310 = vunpack.c.0.s8 %v7309
        %v7311 = vperm.slane %v7307, %v7310
        %v7312 = vrot.slane %v6532, 4
        %v7313 = vsel %vm1270, %v7312, %v6516
        %v7315 = vunpack.c.l.s4 1983009808
        %v7316 = vunpack.c.0.s8 %v7315
        %v7317 = vperm.slane %v7313, %v7316
        %v7318 = vrot.slane %v7317, 4
        %v7319 = vsel %vm1270, %v7318, %v7311
        %v7320 = vrot.slane %v7311, 4
        %v7321 = vsel %vm1270, %v7317, %v7320
        %v7323 = vunpack.c.l.s4 1934713408
        %v7324 = vunpack.c.0.s8 %v7323
        %v7325 = vperm.slane %v7319, %v7324
        %v7327 = vunpack.c.l.s4 1934713408
        %v7328 = vunpack.c.0.s8 %v7327
        %v7329 = vperm.slane %v7321, %v7328
        %v7330 = vrot.slane %v7325, 4
        %v7331 = vsel %vm1270, 0, %v7330
        %v7332 = vrot.slane %v7329, 4
        %v7333 = vsel %vm1270, 0, %v7332
        %v7334 = vrot.slane %v6552, 4
        %v7335 = vsel %vm1270, %v7334, %v6536
        %v7337 = vunpack.c.l.s4 1983009808
        %v7338 = vunpack.c.0.s8 %v7337
        %v7339 = vperm.slane %v7335, %v7338
        %v7340 = vrot.slane %v6560, 4
        %v7341 = vsel %vm1270, %v7340, %v6544
        %v7343 = vunpack.c.l.s4 1983009808
        %v7344 = vunpack.c.0.s8 %v7343
        %v7345 = vperm.slane %v7341, %v7344
        %v7346 = vrot.slane %v7345, 4
        %v7347 = vsel %vm1270, %v7346, %v7339
        %v7348 = vrot.slane %v7339, 4
        %v7349 = vsel %vm1270, %v7345, %v7348
        %v7351 = vunpack.c.l.s4 1934713408
        %v7352 = vunpack.c.0.s8 %v7351
        %v7353 = vperm.slane %v7347, %v7352
        %v7355 = vunpack.c.l.s4 1934713408
        %v7356 = vunpack.c.0.s8 %v7355
        %v7357 = vperm.slane %v7349, %v7356
        %v7358 = vrot.slane %v7353, 4
        %v7359 = vsel %vm1270, 0, %v7358
        %v7360 = vrot.slane %v7357, 4
        %v7361 = vsel %vm1270, 0, %v7360
        %v7362 = vrot.slane %v6556, 4
        %v7363 = vsel %vm1270, %v7362, %v6540
        %v7365 = vunpack.c.l.s4 1983009808
        %v7366 = vunpack.c.0.s8 %v7365
        %v7367 = vperm.slane %v7363, %v7366
        %v7368 = vrot.slane %v6564, 4
        %v7369 = vsel %vm1270, %v7368, %v6548
        %v7371 = vunpack.c.l.s4 1983009808
        %v7372 = vunpack.c.0.s8 %v7371
        %v7373 = vperm.slane %v7369, %v7372
        %v7374 = vrot.slane %v7373, 4
        %v7375 = vsel %vm1270, %v7374, %v7367
        %v7376 = vrot.slane %v7367, 4
        %v7377 = vsel %vm1270, %v7373, %v7376
        %v7379 = vunpack.c.l.s4 1934713408
        %v7380 = vunpack.c.0.s8 %v7379
        %v7381 = vperm.slane %v7375, %v7380
        %v7383 = vunpack.c.l.s4 1934713408
        %v7384 = vunpack.c.0.s8 %v7383
        %v7385 = vperm.slane %v7377, %v7384
        %v7386 = vrot.slane %v7381, 4
        %v7387 = vsel %vm1270, 0, %v7386
        %v7388 = vrot.slane %v7385, 4
        %v7389 = vsel %vm1270, 0, %v7388
        %v7390 = vrot.slane %v6584, 4
        %v7391 = vsel %vm1270, %v7390, %v6568
        %v7393 = vunpack.c.l.s4 1983009808
        %v7394 = vunpack.c.0.s8 %v7393
        %v7395 = vperm.slane %v7391, %v7394
        %v7396 = vrot.slane %v6592, 4
        %v7397 = vsel %vm1270, %v7396, %v6576
        %v7399 = vunpack.c.l.s4 1983009808
        %v7400 = vunpack.c.0.s8 %v7399
        %v7401 = vperm.slane %v7397, %v7400
        %v7402 = vrot.slane %v7401, 4
        %v7403 = vsel %vm1270, %v7402, %v7395
        %v7404 = vrot.slane %v7395, 4
        %v7405 = vsel %vm1270, %v7401, %v7404
        %v7407 = vunpack.c.l.s4 1934713408
        %v7408 = vunpack.c.0.s8 %v7407
        %v7409 = vperm.slane %v7403, %v7408
        %v7411 = vunpack.c.l.s4 1934713408
        %v7412 = vunpack.c.0.s8 %v7411
        %v7413 = vperm.slane %v7405, %v7412
        %v7414 = vrot.slane %v7409, 4
        %v7415 = vsel %vm1270, 0, %v7414
        %v7416 = vrot.slane %v7413, 4
        %v7417 = vsel %vm1270, 0, %v7416
        %v7418 = vrot.slane %v6588, 4
        %v7419 = vsel %vm1270, %v7418, %v6572
        %v7421 = vunpack.c.l.s4 1983009808
        %v7422 = vunpack.c.0.s8 %v7421
        %v7423 = vperm.slane %v7419, %v7422
        %v7424 = vrot.slane %v6596, 4
        %v7425 = vsel %vm1270, %v7424, %v6580
        %v7427 = vunpack.c.l.s4 1983009808
        %v7428 = vunpack.c.0.s8 %v7427
        %v7429 = vperm.slane %v7425, %v7428
        %v7430 = vrot.slane %v7429, 4
        %v7431 = vsel %vm1270, %v7430, %v7423
        %v7432 = vrot.slane %v7423, 4
        %v7433 = vsel %vm1270, %v7429, %v7432
        %v7435 = vunpack.c.l.s4 1934713408
        %v7436 = vunpack.c.0.s8 %v7435
        %v7437 = vperm.slane %v7431, %v7436
        %v7439 = vunpack.c.l.s4 1934713408
        %v7440 = vunpack.c.0.s8 %v7439
        %v7441 = vperm.slane %v7433, %v7440
        %v7442 = vrot.slane %v7437, 4
        %v7443 = vsel %vm1270, 0, %v7442
        %v7444 = vrot.slane %v7441, 4
        %v7445 = vsel %vm1270, 0, %v7444
        %v7446 = vrot.slane %v6616, 4
        %v7447 = vsel %vm1270, %v7446, %v6600
        %v7449 = vunpack.c.l.s4 1983009808
        %v7450 = vunpack.c.0.s8 %v7449
        %v7451 = vperm.slane %v7447, %v7450
        %v7452 = vrot.slane %v6624, 4
        %v7453 = vsel %vm1270, %v7452, %v6608
        %v7455 = vunpack.c.l.s4 1983009808
        %v7456 = vunpack.c.0.s8 %v7455
        %v7457 = vperm.slane %v7453, %v7456
        %v7458 = vrot.slane %v7457, 4
        %v7459 = vsel %vm1270, %v7458, %v7451
        %v7460 = vrot.slane %v7451, 4
        %v7461 = vsel %vm1270, %v7457, %v7460
        %v7463 = vunpack.c.l.s4 1934713408
        %v7464 = vunpack.c.0.s8 %v7463
        %v7465 = vperm.slane %v7459, %v7464
        %v7467 = vunpack.c.l.s4 1934713408
        %v7468 = vunpack.c.0.s8 %v7467
        %v7469 = vperm.slane %v7461, %v7468
        %v7470 = vrot.slane %v7465, 4
        %v7471 = vsel %vm1270, 0, %v7470
        %v7472 = vrot.slane %v7469, 4
        %v7473 = vsel %vm1270, 0, %v7472
        %v7474 = vrot.slane %v6620, 4
        %v7475 = vsel %vm1270, %v7474, %v6604
        %v7477 = vunpack.c.l.s4 1983009808
        %v7478 = vunpack.c.0.s8 %v7477
        %v7479 = vperm.slane %v7475, %v7478
        %v7480 = vrot.slane %v6628, 4
        %v7481 = vsel %vm1270, %v7480, %v6612
        %v7483 = vunpack.c.l.s4 1983009808
        %v7484 = vunpack.c.0.s8 %v7483
        %v7485 = vperm.slane %v7481, %v7484
        %v7486 = vrot.slane %v7485, 4
        %v7487 = vsel %vm1270, %v7486, %v7479
        %v7488 = vrot.slane %v7479, 4
        %v7489 = vsel %vm1270, %v7485, %v7488
        %v7491 = vunpack.c.l.s4 1934713408
        %v7492 = vunpack.c.0.s8 %v7491
        %v7493 = vperm.slane %v7487, %v7492
        %v7495 = vunpack.c.l.s4 1934713408
        %v7496 = vunpack.c.0.s8 %v7495
        %v7497 = vperm.slane %v7489, %v7496
        %v7498 = vrot.slane %v7493, 4
        %v7499 = vsel %vm1270, 0, %v7498
        %v7500 = vrot.slane %v7497, 4
        %v7501 = vsel %vm1270, 0, %v7500
        %v7502 = vrot.slane %v6648, 4
        %v7503 = vsel %vm1270, %v7502, %v6632
        %v7505 = vunpack.c.l.s4 1983009808
        %v7506 = vunpack.c.0.s8 %v7505
        %v7507 = vperm.slane %v7503, %v7506
        %v7508 = vrot.slane %v6656, 4
        %v7509 = vsel %vm1270, %v7508, %v6640
        %v7511 = vunpack.c.l.s4 1983009808
        %v7512 = vunpack.c.0.s8 %v7511
        %v7513 = vperm.slane %v7509, %v7512
        %v7514 = vrot.slane %v7513, 4
        %v7515 = vsel %vm1270, %v7514, %v7507
        %v7516 = vrot.slane %v7507, 4
        %v7517 = vsel %vm1270, %v7513, %v7516
        %v7519 = vunpack.c.l.s4 1934713408
        %v7520 = vunpack.c.0.s8 %v7519
        %v7521 = vperm.slane %v7515, %v7520
        %v7523 = vunpack.c.l.s4 1934713408
        %v7524 = vunpack.c.0.s8 %v7523
        %v7525 = vperm.slane %v7517, %v7524
        %v7526 = vrot.slane %v7521, 4
        %v7527 = vsel %vm1270, 0, %v7526
        %v7528 = vrot.slane %v7525, 4
        %v7529 = vsel %vm1270, 0, %v7528
        %v7530 = vrot.slane %v6652, 4
        %v7531 = vsel %vm1270, %v7530, %v6636
        %v7533 = vunpack.c.l.s4 1983009808
        %v7534 = vunpack.c.0.s8 %v7533
        %v7535 = vperm.slane %v7531, %v7534
        %v7536 = vrot.slane %v6660, 4
        %v7537 = vsel %vm1270, %v7536, %v6644
        %v7539 = vunpack.c.l.s4 1983009808
        %v7540 = vunpack.c.0.s8 %v7539
        %v7541 = vperm.slane %v7537, %v7540
        %v7542 = vrot.slane %v7541, 4
        %v7543 = vsel %vm1270, %v7542, %v7535
        %v7544 = vrot.slane %v7535, 4
        %v7545 = vsel %vm1270, %v7541, %v7544
        %v7547 = vunpack.c.l.s4 1934713408
        %v7548 = vunpack.c.0.s8 %v7547
        %v7549 = vperm.slane %v7543, %v7548
        %v7551 = vunpack.c.l.s4 1934713408
        %v7552 = vunpack.c.0.s8 %v7551
        %v7553 = vperm.slane %v7545, %v7552
        %v7554 = vrot.slane %v7549, 4
        %v7555 = vsel %vm1270, 0, %v7554
        %v7556 = vrot.slane %v7553, 4
        %v7557 = vsel %vm1270, 0, %v7556
        %v7560 = vpack.i.b16 %v6709, %v6681
        %v7561 = vshrl.u32 %v6681, 16
        %v7562 = vshrl.u32 %v6709, 16
        %v7563 = vpack.i.b16 %v7562, %v7561
        %v7566 = vpack.i.b16 %v6715, %v6687
        %v7567 = vshrl.u32 %v6687, 16
        %v7568 = vshrl.u32 %v6715, 16
        %v7569 = vpack.i.b16 %v7568, %v7567
        %v7572 = vpack.i.b16 %v6713, %v6685
        %v7573 = vshrl.u32 %v6685, 16
        %v7574 = vshrl.u32 %v6713, 16
        %v7575 = vpack.i.b16 %v7574, %v7573
        %v7578 = vpack.i.b16 %v6717, %v6689
        %v7579 = vshrl.u32 %v6689, 16
        %v7580 = vshrl.u32 %v6717, 16
        %v7581 = vpack.i.b16 %v7580, %v7579
        %v7584 = vpack.i.b16 %v6933, %v6905
        %v7585 = vshrl.u32 %v6905, 16
        %v7586 = vshrl.u32 %v6933, 16
        %v7587 = vpack.i.b16 %v7586, %v7585
        %v7590 = vpack.i.b16 %v6939, %v6911
        %v7591 = vshrl.u32 %v6911, 16
        %v7592 = vshrl.u32 %v6939, 16
        %v7593 = vpack.i.b16 %v7592, %v7591
        %v7596 = vpack.i.b16 %v6937, %v6909
        %v7597 = vshrl.u32 %v6909, 16
        %v7598 = vshrl.u32 %v6937, 16
        %v7599 = vpack.i.b16 %v7598, %v7597
        %v7602 = vpack.i.b16 %v6941, %v6913
        %v7603 = vshrl.u32 %v6913, 16
        %v7604 = vshrl.u32 %v6941, 16
        %v7605 = vpack.i.b16 %v7604, %v7603
        %v7608 = vpack.i.b16 %v6765, %v6737
        %v7609 = vshrl.u32 %v6737, 16
        %v7610 = vshrl.u32 %v6765, 16
        %v7611 = vpack.i.b16 %v7610, %v7609
        %v7614 = vpack.i.b16 %v6771, %v6743
        %v7615 = vshrl.u32 %v6743, 16
        %v7616 = vshrl.u32 %v6771, 16
        %v7617 = vpack.i.b16 %v7616, %v7615
        %v7620 = vpack.i.b16 %v6769, %v6741
        %v7621 = vshrl.u32 %v6741, 16
        %v7622 = vshrl.u32 %v6769, 16
        %v7623 = vpack.i.b16 %v7622, %v7621
        %v7626 = vpack.i.b16 %v6773, %v6745
        %v7627 = vshrl.u32 %v6745, 16
        %v7628 = vshrl.u32 %v6773, 16
        %v7629 = vpack.i.b16 %v7628, %v7627
        %v7632 = vpack.i.b16 %v6989, %v6961
        %v7633 = vshrl.u32 %v6961, 16
        %v7634 = vshrl.u32 %v6989, 16
        %v7635 = vpack.i.b16 %v7634, %v7633
        %v7638 = vpack.i.b16 %v6995, %v6967
        %v7639 = vshrl.u32 %v6967, 16
        %v7640 = vshrl.u32 %v6995, 16
        %v7641 = vpack.i.b16 %v7640, %v7639
        %v7644 = vpack.i.b16 %v6993, %v6965
        %v7645 = vshrl.u32 %v6965, 16
        %v7646 = vshrl.u32 %v6993, 16
        %v7647 = vpack.i.b16 %v7646, %v7645
        %v7650 = vpack.i.b16 %v6997, %v6969
        %v7651 = vshrl.u32 %v6969, 16
        %v7652 = vshrl.u32 %v6997, 16
        %v7653 = vpack.i.b16 %v7652, %v7651
        %v7656 = vpack.i.b16 %v6821, %v6793
        %v7657 = vshrl.u32 %v6793, 16
        %v7658 = vshrl.u32 %v6821, 16
        %v7659 = vpack.i.b16 %v7658, %v7657
        %v7662 = vpack.i.b16 %v6827, %v6799
        %v7663 = vshrl.u32 %v6799, 16
        %v7664 = vshrl.u32 %v6827, 16
        %v7665 = vpack.i.b16 %v7664, %v7663
        %v7668 = vpack.i.b16 %v6825, %v6797
        %v7669 = vshrl.u32 %v6797, 16
        %v7670 = vshrl.u32 %v6825, 16
        %v7671 = vpack.i.b16 %v7670, %v7669
        %v7674 = vpack.i.b16 %v6829, %v6801
        %v7675 = vshrl.u32 %v6801, 16
        %v7676 = vshrl.u32 %v6829, 16
        %v7677 = vpack.i.b16 %v7676, %v7675
        %v7680 = vpack.i.b16 %v7045, %v7017
        %v7681 = vshrl.u32 %v7017, 16
        %v7682 = vshrl.u32 %v7045, 16
        %v7683 = vpack.i.b16 %v7682, %v7681
        %v7686 = vpack.i.b16 %v7051, %v7023
        %v7687 = vshrl.u32 %v7023, 16
        %v7688 = vshrl.u32 %v7051, 16
        %v7689 = vpack.i.b16 %v7688, %v7687
        %v7692 = vpack.i.b16 %v7049, %v7021
        %v7693 = vshrl.u32 %v7021, 16
        %v7694 = vshrl.u32 %v7049, 16
        %v7695 = vpack.i.b16 %v7694, %v7693
        %v7698 = vpack.i.b16 %v7053, %v7025
        %v7699 = vshrl.u32 %v7025, 16
        %v7700 = vshrl.u32 %v7053, 16
        %v7701 = vpack.i.b16 %v7700, %v7699
        %v7704 = vpack.i.b16 %v6877, %v6849
        %v7705 = vshrl.u32 %v6849, 16
        %v7706 = vshrl.u32 %v6877, 16
        %v7707 = vpack.i.b16 %v7706, %v7705
        %v7710 = vpack.i.b16 %v6883, %v6855
        %v7711 = vshrl.u32 %v6855, 16
        %v7712 = vshrl.u32 %v6883, 16
        %v7713 = vpack.i.b16 %v7712, %v7711
        %v7716 = vpack.i.b16 %v6881, %v6853
        %v7717 = vshrl.u32 %v6853, 16
        %v7718 = vshrl.u32 %v6881, 16
        %v7719 = vpack.i.b16 %v7718, %v7717
        %v7722 = vpack.i.b16 %v6885, %v6857
        %v7723 = vshrl.u32 %v6857, 16
        %v7724 = vshrl.u32 %v6885, 16
        %v7725 = vpack.i.b16 %v7724, %v7723
        %v7728 = vpack.i.b16 %v7101, %v7073
        %v7729 = vshrl.u32 %v7073, 16
        %v7730 = vshrl.u32 %v7101, 16
        %v7731 = vpack.i.b16 %v7730, %v7729
        %v7734 = vpack.i.b16 %v7107, %v7079
        %v7735 = vshrl.u32 %v7079, 16
        %v7736 = vshrl.u32 %v7107, 16
        %v7737 = vpack.i.b16 %v7736, %v7735
        %v7740 = vpack.i.b16 %v7105, %v7077
        %v7741 = vshrl.u32 %v7077, 16
        %v7742 = vshrl.u32 %v7105, 16
        %v7743 = vpack.i.b16 %v7742, %v7741
        %v7746 = vpack.i.b16 %v7109, %v7081
        %v7747 = vshrl.u32 %v7081, 16
        %v7748 = vshrl.u32 %v7109, 16
        %v7749 = vpack.i.b16 %v7748, %v7747
        %v7752 = vpack.i.b16 %v7157, %v7129
        %v7753 = vshrl.u32 %v7129, 16
        %v7754 = vshrl.u32 %v7157, 16
        %v7755 = vpack.i.b16 %v7754, %v7753
        %v7758 = vpack.i.b16 %v7163, %v7135
        %v7759 = vshrl.u32 %v7135, 16
        %v7760 = vshrl.u32 %v7163, 16
        %v7761 = vpack.i.b16 %v7760, %v7759
        %v7764 = vpack.i.b16 %v7161, %v7133
        %v7765 = vshrl.u32 %v7133, 16
        %v7766 = vshrl.u32 %v7161, 16
        %v7767 = vpack.i.b16 %v7766, %v7765
        %v7770 = vpack.i.b16 %v7165, %v7137
        %v7771 = vshrl.u32 %v7137, 16
        %v7772 = vshrl.u32 %v7165, 16
        %v7773 = vpack.i.b16 %v7772, %v7771
        %v7776 = vpack.i.b16 %v7381, %v7353
        %v7777 = vshrl.u32 %v7353, 16
        %v7778 = vshrl.u32 %v7381, 16
        %v7779 = vpack.i.b16 %v7778, %v7777
        %v7782 = vpack.i.b16 %v7387, %v7359
        %v7783 = vshrl.u32 %v7359, 16
        %v7784 = vshrl.u32 %v7387, 16
        %v7785 = vpack.i.b16 %v7784, %v7783
        %v7788 = vpack.i.b16 %v7385, %v7357
        %v7789 = vshrl.u32 %v7357, 16
        %v7790 = vshrl.u32 %v7385, 16
        %v7791 = vpack.i.b16 %v7790, %v7789
        %v7794 = vpack.i.b16 %v7389, %v7361
        %v7795 = vshrl.u32 %v7361, 16
        %v7796 = vshrl.u32 %v7389, 16
        %v7797 = vpack.i.b16 %v7796, %v7795
        %v7800 = vpack.i.b16 %v7213, %v7185
        %v7801 = vshrl.u32 %v7185, 16
        %v7802 = vshrl.u32 %v7213, 16
        %v7803 = vpack.i.b16 %v7802, %v7801
        %v7806 = vpack.i.b16 %v7219, %v7191
        %v7807 = vshrl.u32 %v7191, 16
        %v7808 = vshrl.u32 %v7219, 16
        %v7809 = vpack.i.b16 %v7808, %v7807
        %v7812 = vpack.i.b16 %v7217, %v7189
        %v7813 = vshrl.u32 %v7189, 16
        %v7814 = vshrl.u32 %v7217, 16
        %v7815 = vpack.i.b16 %v7814, %v7813
        %v7818 = vpack.i.b16 %v7221, %v7193
        %v7819 = vshrl.u32 %v7193, 16
        %v7820 = vshrl.u32 %v7221, 16
        %v7821 = vpack.i.b16 %v7820, %v7819
        %v7824 = vpack.i.b16 %v7437, %v7409
        %v7825 = vshrl.u32 %v7409, 16
        %v7826 = vshrl.u32 %v7437, 16
        %v7827 = vpack.i.b16 %v7826, %v7825
        %v7830 = vpack.i.b16 %v7443, %v7415
        %v7831 = vshrl.u32 %v7415, 16
        %v7832 = vshrl.u32 %v7443, 16
        %v7833 = vpack.i.b16 %v7832, %v7831
        %v7836 = vpack.i.b16 %v7441, %v7413
        %v7837 = vshrl.u32 %v7413, 16
        %v7838 = vshrl.u32 %v7441, 16
        %v7839 = vpack.i.b16 %v7838, %v7837
        %v7842 = vpack.i.b16 %v7445, %v7417
        %v7843 = vshrl.u32 %v7417, 16
        %v7844 = vshrl.u32 %v7445, 16
        %v7845 = vpack.i.b16 %v7844, %v7843
        %v7848 = vpack.i.b16 %v7269, %v7241
        %v7849 = vshrl.u32 %v7241, 16
        %v7850 = vshrl.u32 %v7269, 16
        %v7851 = vpack.i.b16 %v7850, %v7849
        %v7854 = vpack.i.b16 %v7275, %v7247
        %v7855 = vshrl.u32 %v7247, 16
        %v7856 = vshrl.u32 %v7275, 16
        %v7857 = vpack.i.b16 %v7856, %v7855
        %v7860 = vpack.i.b16 %v7273, %v7245
        %v7861 = vshrl.u32 %v7245, 16
        %v7862 = vshrl.u32 %v7273, 16
        %v7863 = vpack.i.b16 %v7862, %v7861
        %v7866 = vpack.i.b16 %v7277, %v7249
        %v7867 = vshrl.u32 %v7249, 16
        %v7868 = vshrl.u32 %v7277, 16
        %v7869 = vpack.i.b16 %v7868, %v7867
        %v7872 = vpack.i.b16 %v7493, %v7465
        %v7873 = vshrl.u32 %v7465, 16
        %v7874 = vshrl.u32 %v7493, 16
        %v7875 = vpack.i.b16 %v7874, %v7873
        %v7878 = vpack.i.b16 %v7499, %v7471
        %v7879 = vshrl.u32 %v7471, 16
        %v7880 = vshrl.u32 %v7499, 16
        %v7881 = vpack.i.b16 %v7880, %v7879
        %v7884 = vpack.i.b16 %v7497, %v7469
        %v7885 = vshrl.u32 %v7469, 16
        %v7886 = vshrl.u32 %v7497, 16
        %v7887 = vpack.i.b16 %v7886, %v7885
        %v7890 = vpack.i.b16 %v7501, %v7473
        %v7891 = vshrl.u32 %v7473, 16
        %v7892 = vshrl.u32 %v7501, 16
        %v7893 = vpack.i.b16 %v7892, %v7891
        %v7896 = vpack.i.b16 %v7325, %v7297
        %v7897 = vshrl.u32 %v7297, 16
        %v7898 = vshrl.u32 %v7325, 16
        %v7899 = vpack.i.b16 %v7898, %v7897
        %v7902 = vpack.i.b16 %v7331, %v7303
        %v7903 = vshrl.u32 %v7303, 16
        %v7904 = vshrl.u32 %v7331, 16
        %v7905 = vpack.i.b16 %v7904, %v7903
        %v7908 = vpack.i.b16 %v7329, %v7301
        %v7909 = vshrl.u32 %v7301, 16
        %v7910 = vshrl.u32 %v7329, 16
        %v7911 = vpack.i.b16 %v7910, %v7909
        %v7914 = vpack.i.b16 %v7333, %v7305
        %v7915 = vshrl.u32 %v7305, 16
        %v7916 = vshrl.u32 %v7333, 16
        %v7917 = vpack.i.b16 %v7916, %v7915
        %v7920 = vpack.i.b16 %v7549, %v7521
        %v7921 = vshrl.u32 %v7521, 16
        %v7922 = vshrl.u32 %v7549, 16
        %v7923 = vpack.i.b16 %v7922, %v7921
        %v7926 = vpack.i.b16 %v7555, %v7527
        %v7927 = vshrl.u32 %v7527, 16
        %v7928 = vshrl.u32 %v7555, 16
        %v7929 = vpack.i.b16 %v7928, %v7927
        %v7932 = vpack.i.b16 %v7553, %v7525
        %v7933 = vshrl.u32 %v7525, 16
        %v7934 = vshrl.u32 %v7553, 16
        %v7935 = vpack.i.b16 %v7934, %v7933
        %v7938 = vpack.i.b16 %v7557, %v7529
        %v7939 = vshrl.u32 %v7529, 16
        %v7940 = vshrl.u32 %v7557, 16
        %v7941 = vpack.i.b16 %v7940, %v7939
        %v7942 = vunpack.c.l.b16 %v4616
        %v7943 = vunpack.c.l.b16 %v4664
        %v7944 = vunpack.c.l.b16 %v4712
        %v7945 = vunpack.c.l.b16 %v4760
        %v7946 = vpack.c.b16 %v7943, %v7942
        %v7947 = vpack.c.b16 %v7945, %v7944
        %vm7948 = vcmask 64512
        %v7950 = vsel %vm7948, %v1848, 0
        %v7953 = vsel %vm7948, %v7946, 0
        %v7956 = vsel %vm7948, %v7947, 0
        %7958 = vmatpush.bf16.xpose.msra.mxu0 0
        %7959 = vmatpush.bf16.xpose.msra.mxu0 0
        %7960 = vmatpush.bf16.xpose.msra.mxu0 0
        %7961 = vmatpush.bf16.xpose.msra.mxu0 0
        %7962 = vmatpush.bf16.xpose.msra.mxu0 0
        %7963 = vmatpush.bf16.xpose.msra.mxu0 0
        %7964 = vmatpush.bf16.xpose.msra.mxu0 %v7956
        %7965 = vmatpush.bf16.xpose.msra.mxu0 %v7953
        %7966 = vmatmul.bf16.gmra.mxu0 %v7950
        %v7967 = vpop.f32.mrf.mxu0
        %v7968 = vadd.f32 0.0, %v7967
        %v7969 = vpop.f32.mrf.mxu0
        %7970 = vdwg.mxu0
        %v7971 = vunpack.c.l.b16 %v4619
        %v7972 = vunpack.c.l.b16 %v4667
        %v7973 = vunpack.c.l.b16 %v4715
        %v7974 = vunpack.c.l.b16 %v4763
        %v7975 = vpack.c.b16 %v7972, %v7971
        %v7976 = vpack.c.b16 %v7974, %v7973
        %v7978 = vsel %vm7948, %v1851, 0
        %v7981 = vsel %vm7948, %v7975, 0
        %v7984 = vsel %vm7948, %v7976, 0
        %7986 = vmatpush.bf16.xpose.msra.mxu0 0
        %7987 = vmatpush.bf16.xpose.msra.mxu0 0
        %7988 = vmatpush.bf16.xpose.msra.mxu0 0
        %7989 = vmatpush.bf16.xpose.msra.mxu0 0
        %7990 = vmatpush.bf16.xpose.msra.mxu0 0
        %7991 = vmatpush.bf16.xpose.msra.mxu0 0
        %7992 = vmatpush.bf16.xpose.msra.mxu0 %v7984
        %7993 = vmatpush.bf16.xpose.msra.mxu0 %v7981
        %7994 = vmatmul.bf16.gmra.mxu0 %v7978
        %v7995 = vpop.f32.mrf.mxu0
        %v7996 = vadd.f32 0.0, %v7995
        %v7997 = vpop.f32.mrf.mxu0
        %7998 = vdwg.mxu0
        %v7999 = vunpack.c.l.b16 %v4622
        %v8000 = vunpack.c.l.b16 %v4670
        %v8001 = vunpack.c.l.b16 %v4718
        %v8002 = vunpack.c.l.b16 %v4766
        %v8003 = vpack.c.b16 %v8000, %v7999
        %v8004 = vpack.c.b16 %v8002, %v8001
        %v8006 = vsel %vm7948, %v1854, 0
        %v8009 = vsel %vm7948, %v8003, 0
        %v8012 = vsel %vm7948, %v8004, 0
        %8014 = vmatpush.bf16.xpose.msra.mxu0 0
        %8015 = vmatpush.bf16.xpose.msra.mxu0 0
        %8016 = vmatpush.bf16.xpose.msra.mxu0 0
        %8017 = vmatpush.bf16.xpose.msra.mxu0 0
        %8018 = vmatpush.bf16.xpose.msra.mxu0 0
        %8019 = vmatpush.bf16.xpose.msra.mxu0 0
        %8020 = vmatpush.bf16.xpose.msra.mxu0 %v8012
        %8021 = vmatpush.bf16.xpose.msra.mxu0 %v8009
        %8022 = vmatmul.bf16.gmra.mxu0 %v8006
        %v8023 = vpop.f32.mrf.mxu0
        %v8024 = vadd.f32 0.0, %v8023
        %v8025 = vpop.f32.mrf.mxu0
        %8026 = vdwg.mxu0
        %v8027 = vunpack.c.l.b16 %v4625
        %v8028 = vunpack.c.l.b16 %v4673
        %v8029 = vunpack.c.l.b16 %v4721
        %v8030 = vunpack.c.l.b16 %v4769
        %v8031 = vpack.c.b16 %v8028, %v8027
        %v8032 = vpack.c.b16 %v8030, %v8029
        %v8034 = vsel %vm7948, %v1857, 0
        %v8037 = vsel %vm7948, %v8031, 0
        %v8040 = vsel %vm7948, %v8032, 0
        %8042 = vmatpush.bf16.xpose.msra.mxu0 0
        %8043 = vmatpush.bf16.xpose.msra.mxu0 0
        %8044 = vmatpush.bf16.xpose.msra.mxu0 0
        %8045 = vmatpush.bf16.xpose.msra.mxu0 0
        %8046 = vmatpush.bf16.xpose.msra.mxu0 0
        %8047 = vmatpush.bf16.xpose.msra.mxu0 0
        %8048 = vmatpush.bf16.xpose.msra.mxu0 %v8040
        %8049 = vmatpush.bf16.xpose.msra.mxu0 %v8037
        %8050 = vmatmul.bf16.gmra.mxu0 %v8034
        %v8051 = vpop.f32.mrf.mxu0
        %v8052 = vadd.f32 0.0, %v8051
        %v8053 = vpop.f32.mrf.mxu0
        %8054 = vdwg.mxu0
        %v8055 = vunpack.c.l.b16 %v4628
        %v8056 = vunpack.c.l.b16 %v4676
        %v8057 = vunpack.c.l.b16 %v4724
        %v8058 = vunpack.c.l.b16 %v4772
        %v8059 = vpack.c.b16 %v8056, %v8055
        %v8060 = vpack.c.b16 %v8058, %v8057
        %v8062 = vsel %vm7948, %v1860, 0
        %v8065 = vsel %vm7948, %v8059, 0
        %v8068 = vsel %vm7948, %v8060, 0
        %8070 = vmatpush.bf16.xpose.msra.mxu0 0
        %8071 = vmatpush.bf16.xpose.msra.mxu0 0
        %8072 = vmatpush.bf16.xpose.msra.mxu0 0
        %8073 = vmatpush.bf16.xpose.msra.mxu0 0
        %8074 = vmatpush.bf16.xpose.msra.mxu0 0
        %8075 = vmatpush.bf16.xpose.msra.mxu0 0
        %8076 = vmatpush.bf16.xpose.msra.mxu0 %v8068
        %8077 = vmatpush.bf16.xpose.msra.mxu0 %v8065
        %8078 = vmatmul.bf16.gmra.mxu0 %v8062
        %v8079 = vpop.f32.mrf.mxu0
        %v8080 = vadd.f32 0.0, %v8079
        %v8081 = vpop.f32.mrf.mxu0
        %8082 = vdwg.mxu0
        %v8083 = vunpack.c.l.b16 %v4631
        %v8084 = vunpack.c.l.b16 %v4679
        %v8085 = vunpack.c.l.b16 %v4727
        %v8086 = vunpack.c.l.b16 %v4775
        %v8087 = vpack.c.b16 %v8084, %v8083
        %v8088 = vpack.c.b16 %v8086, %v8085
        %v8090 = vsel %vm7948, %v1863, 0
        %v8093 = vsel %vm7948, %v8087, 0
        %v8096 = vsel %vm7948, %v8088, 0
        %8098 = vmatpush.bf16.xpose.msra.mxu0 0
        %8099 = vmatpush.bf16.xpose.msra.mxu0 0
        %8100 = vmatpush.bf16.xpose.msra.mxu0 0
        %8101 = vmatpush.bf16.xpose.msra.mxu0 0
        %8102 = vmatpush.bf16.xpose.msra.mxu0 0
        %8103 = vmatpush.bf16.xpose.msra.mxu0 0
        %8104 = vmatpush.bf16.xpose.msra.mxu0 %v8096
        %8105 = vmatpush.bf16.xpose.msra.mxu0 %v8093
        %8106 = vmatmul.bf16.gmra.mxu0 %v8090
        %v8107 = vpop.f32.mrf.mxu0
        %v8108 = vadd.f32 0.0, %v8107
        %v8109 = vpop.f32.mrf.mxu0
        %8110 = vdwg.mxu0
        %v8111 = vunpack.c.l.b16 %v4634
        %v8112 = vunpack.c.l.b16 %v4682
        %v8113 = vunpack.c.l.b16 %v4730
        %v8114 = vunpack.c.l.b16 %v4778
        %v8115 = vpack.c.b16 %v8112, %v8111
        %v8116 = vpack.c.b16 %v8114, %v8113
        %v8118 = vsel %vm7948, %v1866, 0
        %v8121 = vsel %vm7948, %v8115, 0
        %v8124 = vsel %vm7948, %v8116, 0
        %8126 = vmatpush.bf16.xpose.msra.mxu0 0
        %8127 = vmatpush.bf16.xpose.msra.mxu0 0
        %8128 = vmatpush.bf16.xpose.msra.mxu0 0
        %8129 = vmatpush.bf16.xpose.msra.mxu0 0
        %8130 = vmatpush.bf16.xpose.msra.mxu0 0
        %8131 = vmatpush.bf16.xpose.msra.mxu0 0
        %8132 = vmatpush.bf16.xpose.msra.mxu0 %v8124
        %8133 = vmatpush.bf16.xpose.msra.mxu0 %v8121
        %8134 = vmatmul.bf16.gmra.mxu0 %v8118
        %v8135 = vpop.f32.mrf.mxu0
        %v8136 = vadd.f32 0.0, %v8135
        %v8137 = vpop.f32.mrf.mxu0
        %8138 = vdwg.mxu0
        %v8139 = vunpack.c.l.b16 %v4637
        %v8140 = vunpack.c.l.b16 %v4685
        %v8141 = vunpack.c.l.b16 %v4733
        %v8142 = vunpack.c.l.b16 %v4781
        %v8143 = vpack.c.b16 %v8140, %v8139
        %v8144 = vpack.c.b16 %v8142, %v8141
        %v8146 = vsel %vm7948, %v1869, 0
        %v8149 = vsel %vm7948, %v8143, 0
        %v8152 = vsel %vm7948, %v8144, 0
        %8154 = vmatpush.bf16.xpose.msra.mxu0 0
        %8155 = vmatpush.bf16.xpose.msra.mxu0 0
        %8156 = vmatpush.bf16.xpose.msra.mxu0 0
        %8157 = vmatpush.bf16.xpose.msra.mxu0 0
        %8158 = vmatpush.bf16.xpose.msra.mxu0 0
        %8159 = vmatpush.bf16.xpose.msra.mxu0 0
        %8160 = vmatpush.bf16.xpose.msra.mxu0 %v8152
        %8161 = vmatpush.bf16.xpose.msra.mxu0 %v8149
        %8162 = vmatmul.bf16.gmra.mxu0 %v8146
        %v8163 = vpop.f32.mrf.mxu0
        %v8164 = vadd.f32 0.0, %v8163
        %v8165 = vpop.f32.mrf.mxu0
        %8166 = vdwg.mxu0
        %v8167 = vunpack.c.l.b16 %v4640
        %v8168 = vunpack.c.l.b16 %v4688
        %v8169 = vunpack.c.l.b16 %v4736
        %v8170 = vunpack.c.l.b16 %v4784
        %v8171 = vpack.c.b16 %v8168, %v8167
        %v8172 = vpack.c.b16 %v8170, %v8169
        %v8174 = vsel %vm7948, %v1872, 0
        %v8177 = vsel %vm7948, %v8171, 0
        %v8180 = vsel %vm7948, %v8172, 0
        %8182 = vmatpush.bf16.xpose.msra.mxu0 0
        %8183 = vmatpush.bf16.xpose.msra.mxu0 0
        %8184 = vmatpush.bf16.xpose.msra.mxu0 0
        %8185 = vmatpush.bf16.xpose.msra.mxu0 0
        %8186 = vmatpush.bf16.xpose.msra.mxu0 0
        %8187 = vmatpush.bf16.xpose.msra.mxu0 0
        %8188 = vmatpush.bf16.xpose.msra.mxu0 %v8180
        %8189 = vmatpush.bf16.xpose.msra.mxu0 %v8177
        %8190 = vmatmul.bf16.gmra.mxu0 %v8174
        %v8191 = vpop.f32.mrf.mxu0
        %v8192 = vadd.f32 0.0, %v8191
        %v8193 = vpop.f32.mrf.mxu0
        %8194 = vdwg.mxu0
        %v8195 = vunpack.c.l.b16 %v4643
        %v8196 = vunpack.c.l.b16 %v4691
        %v8197 = vunpack.c.l.b16 %v4739
        %v8198 = vunpack.c.l.b16 %v4787
        %v8199 = vpack.c.b16 %v8196, %v8195
        %v8200 = vpack.c.b16 %v8198, %v8197
        %v8202 = vsel %vm7948, %v1875, 0
        %v8205 = vsel %vm7948, %v8199, 0
        %v8208 = vsel %vm7948, %v8200, 0
        %8210 = vmatpush.bf16.xpose.msra.mxu0 0
        %8211 = vmatpush.bf16.xpose.msra.mxu0 0
        %8212 = vmatpush.bf16.xpose.msra.mxu0 0
        %8213 = vmatpush.bf16.xpose.msra.mxu0 0
        %8214 = vmatpush.bf16.xpose.msra.mxu0 0
        %8215 = vmatpush.bf16.xpose.msra.mxu0 0
        %8216 = vmatpush.bf16.xpose.msra.mxu0 %v8208
        %8217 = vmatpush.bf16.xpose.msra.mxu0 %v8205
        %8218 = vmatmul.bf16.gmra.mxu0 %v8202
        %v8219 = vpop.f32.mrf.mxu0
        %v8220 = vadd.f32 0.0, %v8219
        %v8221 = vpop.f32.mrf.mxu0
        %8222 = vdwg.mxu0
        %v8223 = vunpack.c.l.b16 %v4646
        %v8224 = vunpack.c.l.b16 %v4694
        %v8225 = vunpack.c.l.b16 %v4742
        %v8226 = vunpack.c.l.b16 %v4790
        %v8227 = vpack.c.b16 %v8224, %v8223
        %v8228 = vpack.c.b16 %v8226, %v8225
        %v8230 = vsel %vm7948, %v1878, 0
        %v8233 = vsel %vm7948, %v8227, 0
        %v8236 = vsel %vm7948, %v8228, 0
        %8238 = vmatpush.bf16.xpose.msra.mxu0 0
        %8239 = vmatpush.bf16.xpose.msra.mxu0 0
        %8240 = vmatpush.bf16.xpose.msra.mxu0 0
        %8241 = vmatpush.bf16.xpose.msra.mxu0 0
        %8242 = vmatpush.bf16.xpose.msra.mxu0 0
        %8243 = vmatpush.bf16.xpose.msra.mxu0 0
        %8244 = vmatpush.bf16.xpose.msra.mxu0 %v8236
        %8245 = vmatpush.bf16.xpose.msra.mxu0 %v8233
        %8246 = vmatmul.bf16.gmra.mxu0 %v8230
        %v8247 = vpop.f32.mrf.mxu0
        %v8248 = vadd.f32 0.0, %v8247
        %v8249 = vpop.f32.mrf.mxu0
        %8250 = vdwg.mxu0
        %v8251 = vunpack.c.l.b16 %v4649
        %v8252 = vunpack.c.l.b16 %v4697
        %v8253 = vunpack.c.l.b16 %v4745
        %v8254 = vunpack.c.l.b16 %v4793
        %v8255 = vpack.c.b16 %v8252, %v8251
        %v8256 = vpack.c.b16 %v8254, %v8253
        %v8258 = vsel %vm7948, %v1881, 0
        %v8261 = vsel %vm7948, %v8255, 0
        %v8264 = vsel %vm7948, %v8256, 0
        %8266 = vmatpush.bf16.xpose.msra.mxu0 0
        %8267 = vmatpush.bf16.xpose.msra.mxu0 0
        %8268 = vmatpush.bf16.xpose.msra.mxu0 0
        %8269 = vmatpush.bf16.xpose.msra.mxu0 0
        %8270 = vmatpush.bf16.xpose.msra.mxu0 0
        %8271 = vmatpush.bf16.xpose.msra.mxu0 0
        %8272 = vmatpush.bf16.xpose.msra.mxu0 %v8264
        %8273 = vmatpush.bf16.xpose.msra.mxu0 %v8261
        %8274 = vmatmul.bf16.gmra.mxu0 %v8258
        %v8275 = vpop.f32.mrf.mxu0
        %v8276 = vadd.f32 0.0, %v8275
        %v8277 = vpop.f32.mrf.mxu0
        %8278 = vdwg.mxu0
        %v8279 = vunpack.c.l.b16 %v4652
        %v8280 = vunpack.c.l.b16 %v4700
        %v8281 = vunpack.c.l.b16 %v4748
        %v8282 = vunpack.c.l.b16 %v4796
        %v8283 = vpack.c.b16 %v8280, %v8279
        %v8284 = vpack.c.b16 %v8282, %v8281
        %v8286 = vsel %vm7948, %v1884, 0
        %v8289 = vsel %vm7948, %v8283, 0
        %v8292 = vsel %vm7948, %v8284, 0
        %8294 = vmatpush.bf16.xpose.msra.mxu0 0
        %8295 = vmatpush.bf16.xpose.msra.mxu0 0
        %8296 = vmatpush.bf16.xpose.msra.mxu0 0
        %8297 = vmatpush.bf16.xpose.msra.mxu0 0
        %8298 = vmatpush.bf16.xpose.msra.mxu0 0
        %8299 = vmatpush.bf16.xpose.msra.mxu0 0
        %8300 = vmatpush.bf16.xpose.msra.mxu0 %v8292
        %8301 = vmatpush.bf16.xpose.msra.mxu0 %v8289
        %8302 = vmatmul.bf16.gmra.mxu0 %v8286
        %v8303 = vpop.f32.mrf.mxu0
        %v8304 = vadd.f32 0.0, %v8303
        %v8305 = vpop.f32.mrf.mxu0
        %8306 = vdwg.mxu0
        %v8307 = vunpack.c.l.b16 %v4655
        %v8308 = vunpack.c.l.b16 %v4703
        %v8309 = vunpack.c.l.b16 %v4751
        %v8310 = vunpack.c.l.b16 %v4799
        %v8311 = vpack.c.b16 %v8308, %v8307
        %v8312 = vpack.c.b16 %v8310, %v8309
        %v8314 = vsel %vm7948, %v1887, 0
        %v8317 = vsel %vm7948, %v8311, 0
        %v8320 = vsel %vm7948, %v8312, 0
        %8322 = vmatpush.bf16.xpose.msra.mxu0 0
        %8323 = vmatpush.bf16.xpose.msra.mxu0 0
        %8324 = vmatpush.bf16.xpose.msra.mxu0 0
        %8325 = vmatpush.bf16.xpose.msra.mxu0 0
        %8326 = vmatpush.bf16.xpose.msra.mxu0 0
        %8327 = vmatpush.bf16.xpose.msra.mxu0 0
        %8328 = vmatpush.bf16.xpose.msra.mxu0 %v8320
        %8329 = vmatpush.bf16.xpose.msra.mxu0 %v8317
        %8330 = vmatmul.bf16.gmra.mxu0 %v8314
        %v8331 = vpop.f32.mrf.mxu0
        %v8332 = vadd.f32 0.0, %v8331
        %v8333 = vpop.f32.mrf.mxu0
        %8334 = vdwg.mxu0
        %v8335 = vunpack.c.l.b16 %v4658
        %v8336 = vunpack.c.l.b16 %v4706
        %v8337 = vunpack.c.l.b16 %v4754
        %v8338 = vunpack.c.l.b16 %v4802
        %v8339 = vpack.c.b16 %v8336, %v8335
        %v8340 = vpack.c.b16 %v8338, %v8337
        %v8342 = vsel %vm7948, %v1890, 0
        %v8345 = vsel %vm7948, %v8339, 0
        %v8348 = vsel %vm7948, %v8340, 0
        %8350 = vmatpush.bf16.xpose.msra.mxu0 0
        %8351 = vmatpush.bf16.xpose.msra.mxu0 0
        %8352 = vmatpush.bf16.xpose.msra.mxu0 0
        %8353 = vmatpush.bf16.xpose.msra.mxu0 0
        %8354 = vmatpush.bf16.xpose.msra.mxu0 0
        %8355 = vmatpush.bf16.xpose.msra.mxu0 0
        %8356 = vmatpush.bf16.xpose.msra.mxu0 %v8348
        %8357 = vmatpush.bf16.xpose.msra.mxu0 %v8345
        %8358 = vmatmul.bf16.gmra.mxu0 %v8342
        %v8359 = vpop.f32.mrf.mxu0
        %v8360 = vadd.f32 0.0, %v8359
        %v8361 = vpop.f32.mrf.mxu0
        %8362 = vdwg.mxu0
        %v8363 = vunpack.c.l.b16 %v4661
        %v8364 = vunpack.c.l.b16 %v4709
        %v8365 = vunpack.c.l.b16 %v4757
        %v8366 = vunpack.c.l.b16 %v4805
        %v8367 = vpack.c.b16 %v8364, %v8363
        %v8368 = vpack.c.b16 %v8366, %v8365
        %v8370 = vsel %vm7948, %v1893, 0
        %v8373 = vsel %vm7948, %v8367, 0
        %v8376 = vsel %vm7948, %v8368, 0
        %8378 = vmatpush.bf16.xpose.msra.mxu0 0
        %8379 = vmatpush.bf16.xpose.msra.mxu0 0
        %8380 = vmatpush.bf16.xpose.msra.mxu0 0
        %8381 = vmatpush.bf16.xpose.msra.mxu0 0
        %8382 = vmatpush.bf16.xpose.msra.mxu0 0
        %8383 = vmatpush.bf16.xpose.msra.mxu0 0
        %8384 = vmatpush.bf16.xpose.msra.mxu0 %v8376
        %8385 = vmatpush.bf16.xpose.msra.mxu0 %v8373
        %8386 = vmatmul.bf16.gmra.mxu0 %v8370
        %v8387 = vpop.f32.mrf.mxu0
        %v8388 = vadd.f32 0.0, %v8387
        %v8389 = vpop.f32.mrf.mxu0
        %8390 = vdwg.mxu0
        %v8391 = vunpack.c.l.b16 %v4808
        %v8392 = vunpack.c.l.b16 %v4856
        %v8393 = vunpack.c.l.b16 %v4904
        %v8394 = vunpack.c.l.b16 %v4952
        %v8395 = vpack.c.b16 %v8392, %v8391
        %v8396 = vpack.c.b16 %v8394, %v8393
        %v8398 = vsel %vm7948, %v1896, 0
        %v8401 = vsel %vm7948, %v8395, 0
        %v8404 = vsel %vm7948, %v8396, 0
        %8406 = vmatpush.bf16.xpose.msra.mxu0 0
        %8407 = vmatpush.bf16.xpose.msra.mxu0 0
        %8408 = vmatpush.bf16.xpose.msra.mxu0 0
        %8409 = vmatpush.bf16.xpose.msra.mxu0 0
        %8410 = vmatpush.bf16.xpose.msra.mxu0 0
        %8411 = vmatpush.bf16.xpose.msra.mxu0 0
        %8412 = vmatpush.bf16.xpose.msra.mxu0 %v8404
        %8413 = vmatpush.bf16.xpose.msra.mxu0 %v8401
        %8414 = vmatmul.bf16.gmra.mxu0 %v8398
        %v8415 = vpop.f32.mrf.mxu0
        %v8416 = vadd.f32 0.0, %v8415
        %v8417 = vpop.f32.mrf.mxu0
        %8418 = vdwg.mxu0
        %v8419 = vunpack.c.l.b16 %v4811
        %v8420 = vunpack.c.l.b16 %v4859
        %v8421 = vunpack.c.l.b16 %v4907
        %v8422 = vunpack.c.l.b16 %v4955
        %v8423 = vpack.c.b16 %v8420, %v8419
        %v8424 = vpack.c.b16 %v8422, %v8421
        %v8426 = vsel %vm7948, %v1899, 0
        %v8429 = vsel %vm7948, %v8423, 0
        %v8432 = vsel %vm7948, %v8424, 0
        %8434 = vmatpush.bf16.xpose.msra.mxu0 0
        %8435 = vmatpush.bf16.xpose.msra.mxu0 0
        %8436 = vmatpush.bf16.xpose.msra.mxu0 0
        %8437 = vmatpush.bf16.xpose.msra.mxu0 0
        %8438 = vmatpush.bf16.xpose.msra.mxu0 0
        %8439 = vmatpush.bf16.xpose.msra.mxu0 0
        %8440 = vmatpush.bf16.xpose.msra.mxu0 %v8432
        %8441 = vmatpush.bf16.xpose.msra.mxu0 %v8429
        %8442 = vmatmul.bf16.gmra.mxu0 %v8426
        %v8443 = vpop.f32.mrf.mxu0
        %v8444 = vadd.f32 0.0, %v8443
        %v8445 = vpop.f32.mrf.mxu0
        %8446 = vdwg.mxu0
        %v8447 = vunpack.c.l.b16 %v4814
        %v8448 = vunpack.c.l.b16 %v4862
        %v8449 = vunpack.c.l.b16 %v4910
        %v8450 = vunpack.c.l.b16 %v4958
        %v8451 = vpack.c.b16 %v8448, %v8447
        %v8452 = vpack.c.b16 %v8450, %v8449
        %v8454 = vsel %vm7948, %v1902, 0
        %v8457 = vsel %vm7948, %v8451, 0
        %v8460 = vsel %vm7948, %v8452, 0
        %8462 = vmatpush.bf16.xpose.msra.mxu0 0
        %8463 = vmatpush.bf16.xpose.msra.mxu0 0
        %8464 = vmatpush.bf16.xpose.msra.mxu0 0
        %8465 = vmatpush.bf16.xpose.msra.mxu0 0
        %8466 = vmatpush.bf16.xpose.msra.mxu0 0
        %8467 = vmatpush.bf16.xpose.msra.mxu0 0
        %8468 = vmatpush.bf16.xpose.msra.mxu0 %v8460
        %8469 = vmatpush.bf16.xpose.msra.mxu0 %v8457
        %8470 = vmatmul.bf16.gmra.mxu0 %v8454
        %v8471 = vpop.f32.mrf.mxu0
        %v8472 = vadd.f32 0.0, %v8471
        %v8473 = vpop.f32.mrf.mxu0
        %8474 = vdwg.mxu0
        %v8475 = vunpack.c.l.b16 %v4817
        %v8476 = vunpack.c.l.b16 %v4865
        %v8477 = vunpack.c.l.b16 %v4913
        %v8478 = vunpack.c.l.b16 %v4961
        %v8479 = vpack.c.b16 %v8476, %v8475
        %v8480 = vpack.c.b16 %v8478, %v8477
        %v8482 = vsel %vm7948, %v1905, 0
        %v8485 = vsel %vm7948, %v8479, 0
        %v8488 = vsel %vm7948, %v8480, 0
        %8490 = vmatpush.bf16.xpose.msra.mxu0 0
        %8491 = vmatpush.bf16.xpose.msra.mxu0 0
        %8492 = vmatpush.bf16.xpose.msra.mxu0 0
        %8493 = vmatpush.bf16.xpose.msra.mxu0 0
        %8494 = vmatpush.bf16.xpose.msra.mxu0 0
        %8495 = vmatpush.bf16.xpose.msra.mxu0 0
        %8496 = vmatpush.bf16.xpose.msra.mxu0 %v8488
        %8497 = vmatpush.bf16.xpose.msra.mxu0 %v8485
        %8498 = vmatmul.bf16.gmra.mxu0 %v8482
        %v8499 = vpop.f32.mrf.mxu0
        %v8500 = vadd.f32 0.0, %v8499
        %v8501 = vpop.f32.mrf.mxu0
        %8502 = vdwg.mxu0
        %v8503 = vunpack.c.l.b16 %v4820
        %v8504 = vunpack.c.l.b16 %v4868
        %v8505 = vunpack.c.l.b16 %v4916
        %v8506 = vunpack.c.l.b16 %v4964
        %v8507 = vpack.c.b16 %v8504, %v8503
        %v8508 = vpack.c.b16 %v8506, %v8505
        %v8510 = vsel %vm7948, %v1908, 0
        %v8513 = vsel %vm7948, %v8507, 0
        %v8516 = vsel %vm7948, %v8508, 0
        %8518 = vmatpush.bf16.xpose.msra.mxu0 0
        %8519 = vmatpush.bf16.xpose.msra.mxu0 0
        %8520 = vmatpush.bf16.xpose.msra.mxu0 0
        %8521 = vmatpush.bf16.xpose.msra.mxu0 0
        %8522 = vmatpush.bf16.xpose.msra.mxu0 0
        %8523 = vmatpush.bf16.xpose.msra.mxu0 0
        %8524 = vmatpush.bf16.xpose.msra.mxu0 %v8516
        %8525 = vmatpush.bf16.xpose.msra.mxu0 %v8513
        %8526 = vmatmul.bf16.gmra.mxu0 %v8510
        %v8527 = vpop.f32.mrf.mxu0
        %v8528 = vadd.f32 0.0, %v8527
        %v8529 = vpop.f32.mrf.mxu0
        %8530 = vdwg.mxu0
        %v8531 = vunpack.c.l.b16 %v4823
        %v8532 = vunpack.c.l.b16 %v4871
        %v8533 = vunpack.c.l.b16 %v4919
        %v8534 = vunpack.c.l.b16 %v4967
        %v8535 = vpack.c.b16 %v8532, %v8531
        %v8536 = vpack.c.b16 %v8534, %v8533
        %v8538 = vsel %vm7948, %v1911, 0
        %v8541 = vsel %vm7948, %v8535, 0
        %v8544 = vsel %vm7948, %v8536, 0
        %8546 = vmatpush.bf16.xpose.msra.mxu0 0
        %8547 = vmatpush.bf16.xpose.msra.mxu0 0
        %8548 = vmatpush.bf16.xpose.msra.mxu0 0
        %8549 = vmatpush.bf16.xpose.msra.mxu0 0
        %8550 = vmatpush.bf16.xpose.msra.mxu0 0
        %8551 = vmatpush.bf16.xpose.msra.mxu0 0
        %8552 = vmatpush.bf16.xpose.msra.mxu0 %v8544
        %8553 = vmatpush.bf16.xpose.msra.mxu0 %v8541
        %8554 = vmatmul.bf16.gmra.mxu0 %v8538
        %v8555 = vpop.f32.mrf.mxu0
        %v8556 = vadd.f32 0.0, %v8555
        %v8557 = vpop.f32.mrf.mxu0
        %8558 = vdwg.mxu0
        %v8559 = vunpack.c.l.b16 %v4826
        %v8560 = vunpack.c.l.b16 %v4874
        %v8561 = vunpack.c.l.b16 %v4922
        %v8562 = vunpack.c.l.b16 %v4970
        %v8563 = vpack.c.b16 %v8560, %v8559
        %v8564 = vpack.c.b16 %v8562, %v8561
        %v8566 = vsel %vm7948, %v1914, 0
        %v8569 = vsel %vm7948, %v8563, 0
        %v8572 = vsel %vm7948, %v8564, 0
        %8574 = vmatpush.bf16.xpose.msra.mxu0 0
        %8575 = vmatpush.bf16.xpose.msra.mxu0 0
        %8576 = vmatpush.bf16.xpose.msra.mxu0 0
        %8577 = vmatpush.bf16.xpose.msra.mxu0 0
        %8578 = vmatpush.bf16.xpose.msra.mxu0 0
        %8579 = vmatpush.bf16.xpose.msra.mxu0 0
        %8580 = vmatpush.bf16.xpose.msra.mxu0 %v8572
        %8581 = vmatpush.bf16.xpose.msra.mxu0 %v8569
        %8582 = vmatmul.bf16.gmra.mxu0 %v8566
        %v8583 = vpop.f32.mrf.mxu0
        %v8584 = vadd.f32 0.0, %v8583
        %v8585 = vpop.f32.mrf.mxu0
        %8586 = vdwg.mxu0
        %v8587 = vunpack.c.l.b16 %v4829
        %v8588 = vunpack.c.l.b16 %v4877
        %v8589 = vunpack.c.l.b16 %v4925
        %v8590 = vunpack.c.l.b16 %v4973
        %v8591 = vpack.c.b16 %v8588, %v8587
        %v8592 = vpack.c.b16 %v8590, %v8589
        %v8594 = vsel %vm7948, %v1917, 0
        %v8597 = vsel %vm7948, %v8591, 0
        %v8600 = vsel %vm7948, %v8592, 0
        %8602 = vmatpush.bf16.xpose.msra.mxu0 0
        %8603 = vmatpush.bf16.xpose.msra.mxu0 0
        %8604 = vmatpush.bf16.xpose.msra.mxu0 0
        %8605 = vmatpush.bf16.xpose.msra.mxu0 0
        %8606 = vmatpush.bf16.xpose.msra.mxu0 0
        %8607 = vmatpush.bf16.xpose.msra.mxu0 0
        %8608 = vmatpush.bf16.xpose.msra.mxu0 %v8600
        %8609 = vmatpush.bf16.xpose.msra.mxu0 %v8597
        %8610 = vmatmul.bf16.gmra.mxu0 %v8594
        %v8611 = vpop.f32.mrf.mxu0
        %v8612 = vadd.f32 0.0, %v8611
        %v8613 = vpop.f32.mrf.mxu0
        %8614 = vdwg.mxu0
        %v8615 = vunpack.c.l.b16 %v4832
        %v8616 = vunpack.c.l.b16 %v4880
        %v8617 = vunpack.c.l.b16 %v4928
        %v8618 = vunpack.c.l.b16 %v4976
        %v8619 = vpack.c.b16 %v8616, %v8615
        %v8620 = vpack.c.b16 %v8618, %v8617
        %v8622 = vsel %vm7948, %v1920, 0
        %v8625 = vsel %vm7948, %v8619, 0
        %v8628 = vsel %vm7948, %v8620, 0
        %8630 = vmatpush.bf16.xpose.msra.mxu0 0
        %8631 = vmatpush.bf16.xpose.msra.mxu0 0
        %8632 = vmatpush.bf16.xpose.msra.mxu0 0
        %8633 = vmatpush.bf16.xpose.msra.mxu0 0
        %8634 = vmatpush.bf16.xpose.msra.mxu0 0
        %8635 = vmatpush.bf16.xpose.msra.mxu0 0
        %8636 = vmatpush.bf16.xpose.msra.mxu0 %v8628
        %8637 = vmatpush.bf16.xpose.msra.mxu0 %v8625
        %8638 = vmatmul.bf16.gmra.mxu0 %v8622
        %v8639 = vpop.f32.mrf.mxu0
        %v8640 = vadd.f32 0.0, %v8639
        %v8641 = vpop.f32.mrf.mxu0
        %8642 = vdwg.mxu0
        %v8643 = vunpack.c.l.b16 %v4835
        %v8644 = vunpack.c.l.b16 %v4883
        %v8645 = vunpack.c.l.b16 %v4931
        %v8646 = vunpack.c.l.b16 %v4979
        %v8647 = vpack.c.b16 %v8644, %v8643
        %v8648 = vpack.c.b16 %v8646, %v8645
        %v8650 = vsel %vm7948, %v1923, 0
        %v8653 = vsel %vm7948, %v8647, 0
        %v8656 = vsel %vm7948, %v8648, 0
        %8658 = vmatpush.bf16.xpose.msra.mxu0 0
        %8659 = vmatpush.bf16.xpose.msra.mxu0 0
        %8660 = vmatpush.bf16.xpose.msra.mxu0 0
        %8661 = vmatpush.bf16.xpose.msra.mxu0 0
        %8662 = vmatpush.bf16.xpose.msra.mxu0 0
        %8663 = vmatpush.bf16.xpose.msra.mxu0 0
        %8664 = vmatpush.bf16.xpose.msra.mxu0 %v8656
        %8665 = vmatpush.bf16.xpose.msra.mxu0 %v8653
        %8666 = vmatmul.bf16.gmra.mxu0 %v8650
        %v8667 = vpop.f32.mrf.mxu0
        %v8668 = vadd.f32 0.0, %v8667
        %v8669 = vpop.f32.mrf.mxu0
        %8670 = vdwg.mxu0
        %v8671 = vunpack.c.l.b16 %v4838
        %v8672 = vunpack.c.l.b16 %v4886
        %v8673 = vunpack.c.l.b16 %v4934
        %v8674 = vunpack.c.l.b16 %v4982
        %v8675 = vpack.c.b16 %v8672, %v8671
        %v8676 = vpack.c.b16 %v8674, %v8673
        %v8678 = vsel %vm7948, %v1926, 0
        %v8681 = vsel %vm7948, %v8675, 0
        %v8684 = vsel %vm7948, %v8676, 0
        %8686 = vmatpush.bf16.xpose.msra.mxu0 0
        %8687 = vmatpush.bf16.xpose.msra.mxu0 0
        %8688 = vmatpush.bf16.xpose.msra.mxu0 0
        %8689 = vmatpush.bf16.xpose.msra.mxu0 0
        %8690 = vmatpush.bf16.xpose.msra.mxu0 0
        %8691 = vmatpush.bf16.xpose.msra.mxu0 0
        %8692 = vmatpush.bf16.xpose.msra.mxu0 %v8684
        %8693 = vmatpush.bf16.xpose.msra.mxu0 %v8681
        %8694 = vmatmul.bf16.gmra.mxu0 %v8678
        %v8695 = vpop.f32.mrf.mxu0
        %v8696 = vadd.f32 0.0, %v8695
        %v8697 = vpop.f32.mrf.mxu0
        %8698 = vdwg.mxu0
        %v8699 = vunpack.c.l.b16 %v4841
        %v8700 = vunpack.c.l.b16 %v4889
        %v8701 = vunpack.c.l.b16 %v4937
        %v8702 = vunpack.c.l.b16 %v4985
        %v8703 = vpack.c.b16 %v8700, %v8699
        %v8704 = vpack.c.b16 %v8702, %v8701
        %v8706 = vsel %vm7948, %v1929, 0
        %v8709 = vsel %vm7948, %v8703, 0
        %v8712 = vsel %vm7948, %v8704, 0
        %8714 = vmatpush.bf16.xpose.msra.mxu0 0
        %8715 = vmatpush.bf16.xpose.msra.mxu0 0
        %8716 = vmatpush.bf16.xpose.msra.mxu0 0
        %8717 = vmatpush.bf16.xpose.msra.mxu0 0
        %8718 = vmatpush.bf16.xpose.msra.mxu0 0
        %8719 = vmatpush.bf16.xpose.msra.mxu0 0
        %8720 = vmatpush.bf16.xpose.msra.mxu0 %v8712
        %8721 = vmatpush.bf16.xpose.msra.mxu0 %v8709
        %8722 = vmatmul.bf16.gmra.mxu0 %v8706
        %v8723 = vpop.f32.mrf.mxu0
        %v8724 = vadd.f32 0.0, %v8723
        %v8725 = vpop.f32.mrf.mxu0
        %8726 = vdwg.mxu0
        %v8727 = vunpack.c.l.b16 %v4844
        %v8728 = vunpack.c.l.b16 %v4892
        %v8729 = vunpack.c.l.b16 %v4940
        %v8730 = vunpack.c.l.b16 %v4988
        %v8731 = vpack.c.b16 %v8728, %v8727
        %v8732 = vpack.c.b16 %v8730, %v8729
        %v8734 = vsel %vm7948, %v1932, 0
        %v8737 = vsel %vm7948, %v8731, 0
        %v8740 = vsel %vm7948, %v8732, 0
        %8742 = vmatpush.bf16.xpose.msra.mxu0 0
        %8743 = vmatpush.bf16.xpose.msra.mxu0 0
        %8744 = vmatpush.bf16.xpose.msra.mxu0 0
        %8745 = vmatpush.bf16.xpose.msra.mxu0 0
        %8746 = vmatpush.bf16.xpose.msra.mxu0 0
        %8747 = vmatpush.bf16.xpose.msra.mxu0 0
        %8748 = vmatpush.bf16.xpose.msra.mxu0 %v8740
        %8749 = vmatpush.bf16.xpose.msra.mxu0 %v8737
        %8750 = vmatmul.bf16.gmra.mxu0 %v8734
        %v8751 = vpop.f32.mrf.mxu0
        %v8752 = vadd.f32 0.0, %v8751
        %v8753 = vpop.f32.mrf.mxu0
        %8754 = vdwg.mxu0
        %v8755 = vunpack.c.l.b16 %v4847
        %v8756 = vunpack.c.l.b16 %v4895
        %v8757 = vunpack.c.l.b16 %v4943
        %v8758 = vunpack.c.l.b16 %v4991
        %v8759 = vpack.c.b16 %v8756, %v8755
        %v8760 = vpack.c.b16 %v8758, %v8757
        %v8762 = vsel %vm7948, %v1935, 0
        %v8765 = vsel %vm7948, %v8759, 0
        %v8768 = vsel %vm7948, %v8760, 0
        %8770 = vmatpush.bf16.xpose.msra.mxu0 0
        %8771 = vmatpush.bf16.xpose.msra.mxu0 0
        %8772 = vmatpush.bf16.xpose.msra.mxu0 0
        %8773 = vmatpush.bf16.xpose.msra.mxu0 0
        %8774 = vmatpush.bf16.xpose.msra.mxu0 0
        %8775 = vmatpush.bf16.xpose.msra.mxu0 0
        %8776 = vmatpush.bf16.xpose.msra.mxu0 %v8768
        %8777 = vmatpush.bf16.xpose.msra.mxu0 %v8765
        %8778 = vmatmul.bf16.gmra.mxu0 %v8762
        %v8779 = vpop.f32.mrf.mxu0
        %v8780 = vadd.f32 0.0, %v8779
        %v8781 = vpop.f32.mrf.mxu0
        %8782 = vdwg.mxu0
        %v8783 = vunpack.c.l.b16 %v4850
        %v8784 = vunpack.c.l.b16 %v4898
        %v8785 = vunpack.c.l.b16 %v4946
        %v8786 = vunpack.c.l.b16 %v4994
        %v8787 = vpack.c.b16 %v8784, %v8783
        %v8788 = vpack.c.b16 %v8786, %v8785
        %v8790 = vsel %vm7948, %v1938, 0
        %v8793 = vsel %vm7948, %v8787, 0
        %v8796 = vsel %vm7948, %v8788, 0
        %8798 = vmatpush.bf16.xpose.msra.mxu0 0
        %8799 = vmatpush.bf16.xpose.msra.mxu0 0
        %8800 = vmatpush.bf16.xpose.msra.mxu0 0
        %8801 = vmatpush.bf16.xpose.msra.mxu0 0
        %8802 = vmatpush.bf16.xpose.msra.mxu0 0
        %8803 = vmatpush.bf16.xpose.msra.mxu0 0
        %8804 = vmatpush.bf16.xpose.msra.mxu0 %v8796
        %8805 = vmatpush.bf16.xpose.msra.mxu0 %v8793
        %8806 = vmatmul.bf16.gmra.mxu0 %v8790
        %v8807 = vpop.f32.mrf.mxu0
        %v8808 = vadd.f32 0.0, %v8807
        %v8809 = vpop.f32.mrf.mxu0
        %8810 = vdwg.mxu0
        %v8811 = vunpack.c.l.b16 %v4853
        %v8812 = vunpack.c.l.b16 %v4901
        %v8813 = vunpack.c.l.b16 %v4949
        %v8814 = vunpack.c.l.b16 %v4997
        %v8815 = vpack.c.b16 %v8812, %v8811
        %v8816 = vpack.c.b16 %v8814, %v8813
        %v8818 = vsel %vm7948, %v1941, 0
        %v8821 = vsel %vm7948, %v8815, 0
        %v8824 = vsel %vm7948, %v8816, 0
        %8826 = vmatpush.bf16.xpose.msra.mxu0 0
        %8827 = vmatpush.bf16.xpose.msra.mxu0 0
        %8828 = vmatpush.bf16.xpose.msra.mxu0 0
        %8829 = vmatpush.bf16.xpose.msra.mxu0 0
        %8830 = vmatpush.bf16.xpose.msra.mxu0 0
        %8831 = vmatpush.bf16.xpose.msra.mxu0 0
        %8832 = vmatpush.bf16.xpose.msra.mxu0 %v8824
        %8833 = vmatpush.bf16.xpose.msra.mxu0 %v8821
        %8834 = vmatmul.bf16.gmra.mxu0 %v8818
        %v8835 = vpop.f32.mrf.mxu0
        %v8836 = vadd.f32 0.0, %v8835
        %v8837 = vpop.f32.mrf.mxu0
        %8838 = vdwg.mxu0
        %v8839 = vmul.f32 %v7968, 0.35355338
        %v8840 = vmul.f32 %v7996, 0.35355338
        %v8841 = vmul.f32 %v8024, 0.35355338
        %v8842 = vmul.f32 %v8052, 0.35355338
        %v8843 = vmul.f32 %v8080, 0.35355338
        %v8844 = vmul.f32 %v8108, 0.35355338
        %v8845 = vmul.f32 %v8136, 0.35355338
        %v8846 = vmul.f32 %v8164, 0.35355338
        %v8847 = vmul.f32 %v8192, 0.35355338
        %v8848 = vmul.f32 %v8220, 0.35355338
        %v8849 = vmul.f32 %v8248, 0.35355338
        %v8850 = vmul.f32 %v8276, 0.35355338
        %v8851 = vmul.f32 %v8304, 0.35355338
        %v8852 = vmul.f32 %v8332, 0.35355338
        %v8853 = vmul.f32 %v8360, 0.35355338
        %v8854 = vmul.f32 %v8388, 0.35355338
        %v8855 = vmul.f32 %v8416, 0.35355338
        %v8856 = vmul.f32 %v8444, 0.35355338
        %v8857 = vmul.f32 %v8472, 0.35355338
        %v8858 = vmul.f32 %v8500, 0.35355338
        %v8859 = vmul.f32 %v8528, 0.35355338
        %v8860 = vmul.f32 %v8556, 0.35355338
        %v8861 = vmul.f32 %v8584, 0.35355338
        %v8862 = vmul.f32 %v8612, 0.35355338
        %v8863 = vmul.f32 %v8640, 0.35355338
        %v8864 = vmul.f32 %v8668, 0.35355338
        %v8865 = vmul.f32 %v8696, 0.35355338
        %v8866 = vmul.f32 %v8724, 0.35355338
        %v8867 = vmul.f32 %v8752, 0.35355338
        %v8868 = vmul.f32 %v8780, 0.35355338
        %v8869 = vmul.f32 %v8808, 0.35355338
        %v8870 = vmul.f32 %v8836, 0.35355338
        %v8871 = vld [vmem:[%s532] sm:$0xff]
        %v8872 = vld [vmem:[%s532 + $0x8] sm:$0xff]
        %v8873 = vadd.f32 %v8839, %v8871
        %v8874 = vadd.f32 %v8840, %v8871
        %v8875 = vadd.f32 %v8841, %v8871
        %v8876 = vadd.f32 %v8842, %v8871
        %v8877 = vadd.f32 %v8843, %v8871
        %v8878 = vadd.f32 %v8844, %v8871
        %v8879 = vadd.f32 %v8845, %v8871
        %v8880 = vadd.f32 %v8846, %v8871
        %v8881 = vadd.f32 %v8847, %v8871
        %v8882 = vadd.f32 %v8848, %v8871
        %v8883 = vadd.f32 %v8849, %v8871
        %v8884 = vadd.f32 %v8850, %v8871
        %v8885 = vadd.f32 %v8851, %v8871
        %v8886 = vadd.f32 %v8852, %v8871
        %v8887 = vadd.f32 %v8853, %v8871
        %v8888 = vadd.f32 %v8854, %v8871
        %v8889 = vadd.f32 %v8855, %v8872
        %v8890 = vadd.f32 %v8856, %v8872
        %v8891 = vadd.f32 %v8857, %v8872
        %v8892 = vadd.f32 %v8858, %v8872
        %v8893 = vadd.f32 %v8859, %v8872
        %v8894 = vadd.f32 %v8860, %v8872
        %v8895 = vadd.f32 %v8861, %v8872
        %v8896 = vadd.f32 %v8862, %v8872
        %v8897 = vadd.f32 %v8863, %v8872
        %v8898 = vadd.f32 %v8864, %v8872
        %v8899 = vadd.f32 %v8865, %v8872
        %v8900 = vadd.f32 %v8866, %v8872
        %v8901 = vadd.f32 %v8867, %v8872
        %v8902 = vadd.f32 %v8868, %v8872
        %v8903 = vadd.f32 %v8869, %v8872
        %v8904 = vadd.f32 %v8870, %v8872
        %vm8905 = vcmask 261120
        %v8906 = vsel %vm8905, %v8873, -inf
        %8907 = vmax.xlane.f32.xlu0 %v8906
        %v8908 = vpop.xlane.xlu0 %8907
        %v8909 = vsel %vm8905, %v8874, -inf
        %8910 = vmax.xlane.f32.xlu0 %v8909
        %v8911 = vpop.xlane.xlu0 %8910
        %v8912 = vsel %vm8905, %v8875, -inf
        %8913 = vmax.xlane.f32.xlu0 %v8912
        %v8914 = vpop.xlane.xlu0 %8913
        %v8915 = vsel %vm8905, %v8876, -inf
        %8916 = vmax.xlane.f32.xlu0 %v8915
        %v8917 = vpop.xlane.xlu0 %8916
        %v8918 = vsel %vm8905, %v8877, -inf
        %8919 = vmax.xlane.f32.xlu0 %v8918
        %v8920 = vpop.xlane.xlu0 %8919
        %v8921 = vsel %vm8905, %v8878, -inf
        %8922 = vmax.xlane.f32.xlu0 %v8921
        %v8923 = vpop.xlane.xlu0 %8922
        %v8924 = vsel %vm8905, %v8879, -inf
        %8925 = vmax.xlane.f32.xlu0 %v8924
        %v8926 = vpop.xlane.xlu0 %8925
        %v8927 = vsel %vm8905, %v8880, -inf
        %8928 = vmax.xlane.f32.xlu0 %v8927
        %v8929 = vpop.xlane.xlu0 %8928
        %v8930 = vsel %vm8905, %v8881, -inf
        %8931 = vmax.xlane.f32.xlu0 %v8930
        %v8932 = vpop.xlane.xlu0 %8931
        %v8933 = vsel %vm8905, %v8882, -inf
        %8934 = vmax.xlane.f32.xlu0 %v8933
        %v8935 = vpop.xlane.xlu0 %8934
        %v8936 = vsel %vm8905, %v8883, -inf
        %8937 = vmax.xlane.f32.xlu0 %v8936
        %v8938 = vpop.xlane.xlu0 %8937
        %v8939 = vsel %vm8905, %v8884, -inf
        %8940 = vmax.xlane.f32.xlu0 %v8939
        %v8941 = vpop.xlane.xlu0 %8940
        %v8942 = vsel %vm8905, %v8885, -inf
        %8943 = vmax.xlane.f32.xlu0 %v8942
        %v8944 = vpop.xlane.xlu0 %8943
        %v8945 = vsel %vm8905, %v8886, -inf
        %8946 = vmax.xlane.f32.xlu0 %v8945
        %v8947 = vpop.xlane.xlu0 %8946
        %v8948 = vsel %vm8905, %v8887, -inf
        %8949 = vmax.xlane.f32.xlu0 %v8948
        %v8950 = vpop.xlane.xlu0 %8949
        %v8951 = vsel %vm8905, %v8888, -inf
        %8952 = vmax.xlane.f32.xlu0 %v8951
        %v8953 = vpop.xlane.xlu0 %8952
        %v8954 = vsel %vm8905, %v8889, -inf
        %8955 = vmax.xlane.f32.xlu0 %v8954
        %v8956 = vpop.xlane.xlu0 %8955
        %v8957 = vsel %vm8905, %v8890, -inf
        %8958 = vmax.xlane.f32.xlu0 %v8957
        %v8959 = vpop.xlane.xlu0 %8958
        %v8960 = vsel %vm8905, %v8891, -inf
        %8961 = vmax.xlane.f32.xlu0 %v8960
        %v8962 = vpop.xlane.xlu0 %8961
        %v8963 = vsel %vm8905, %v8892, -inf
        %8964 = vmax.xlane.f32.xlu0 %v8963
        %v8965 = vpop.xlane.xlu0 %8964
        %v8966 = vsel %vm8905, %v8893, -inf
        %8967 = vmax.xlane.f32.xlu0 %v8966
        %v8968 = vpop.xlane.xlu0 %8967
        %v8969 = vsel %vm8905, %v8894, -inf
        %8970 = vmax.xlane.f32.xlu0 %v8969
        %v8971 = vpop.xlane.xlu0 %8970
        %v8972 = vsel %vm8905, %v8895, -inf
        %8973 = vmax.xlane.f32.xlu0 %v8972
        %v8974 = vpop.xlane.xlu0 %8973
        %v8975 = vsel %vm8905, %v8896, -inf
        %8976 = vmax.xlane.f32.xlu0 %v8975
        %v8977 = vpop.xlane.xlu0 %8976
        %v8978 = vsel %vm8905, %v8897, -inf
        %8979 = vmax.xlane.f32.xlu0 %v8978
        %v8980 = vpop.xlane.xlu0 %8979
        %v8981 = vsel %vm8905, %v8898, -inf
        %8982 = vmax.xlane.f32.xlu0 %v8981
        %v8983 = vpop.xlane.xlu0 %8982
        %v8984 = vsel %vm8905, %v8899, -inf
        %8985 = vmax.xlane.f32.xlu0 %v8984
        %v8986 = vpop.xlane.xlu0 %8985
        %v8987 = vsel %vm8905, %v8900, -inf
        %8988 = vmax.xlane.f32.xlu0 %v8987
        %v8989 = vpop.xlane.xlu0 %8988
        %v8990 = vsel %vm8905, %v8901, -inf
        %8991 = vmax.xlane.f32.xlu0 %v8990
        %v8992 = vpop.xlane.xlu0 %8991
        %v8993 = vsel %vm8905, %v8902, -inf
        %8994 = vmax.xlane.f32.xlu0 %v8993
        %v8995 = vpop.xlane.xlu0 %8994
        %v8996 = vsel %vm8905, %v8903, -inf
        %8997 = vmax.xlane.f32.xlu0 %v8996
        %v8998 = vpop.xlane.xlu0 %8997
        %v8999 = vsel %vm8905, %v8904, -inf
        %9000 = vmax.xlane.f32.xlu0 %v8999
        %v9001 = vpop.xlane.xlu0 %9000
        %v9002 = vsub.f32 %v8873, %v8908
        %v9003 = vsub.f32 %v8874, %v8911
        %v9004 = vsub.f32 %v8875, %v8914
        %v9005 = vsub.f32 %v8876, %v8917
        %v9006 = vsub.f32 %v8877, %v8920
        %v9007 = vsub.f32 %v8878, %v8923
        %v9008 = vsub.f32 %v8879, %v8926
        %v9009 = vsub.f32 %v8880, %v8929
        %v9010 = vsub.f32 %v8881, %v8932
        %v9011 = vsub.f32 %v8882, %v8935
        %v9012 = vsub.f32 %v8883, %v8938
        %v9013 = vsub.f32 %v8884, %v8941
        %v9014 = vsub.f32 %v8885, %v8944
        %v9015 = vsub.f32 %v8886, %v8947
        %v9016 = vsub.f32 %v8887, %v8950
        %v9017 = vsub.f32 %v8888, %v8953
        %v9018 = vsub.f32 %v8889, %v8956
        %v9019 = vsub.f32 %v8890, %v8959
        %v9020 = vsub.f32 %v8891, %v8962
        %v9021 = vsub.f32 %v8892, %v8965
        %v9022 = vsub.f32 %v8893, %v8968
        %v9023 = vsub.f32 %v8894, %v8971
        %v9024 = vsub.f32 %v8895, %v8974
        %v9025 = vsub.f32 %v8896, %v8977
        %v9026 = vsub.f32 %v8897, %v8980
        %v9027 = vsub.f32 %v8898, %v8983
        %v9028 = vsub.f32 %v8899, %v8986
        %v9029 = vsub.f32 %v8900, %v8989
        %v9030 = vsub.f32 %v8901, %v8992
        %v9031 = vsub.f32 %v8902, %v8995
        %v9032 = vsub.f32 %v8903, %v8998
        %v9033 = vsub.f32 %v8904, %v9001
        %v9034 = vmul.f32 %v9002, 1.442695
        %v9035 = vpow.pop %v9034
        %v9036 = vmul.f32 %v9003, 1.442695
        %v9037 = vpow.pop %v9036
        %v9038 = vmul.f32 %v9004, 1.442695
        %v9039 = vpow.pop %v9038
        %v9040 = vmul.f32 %v9005, 1.442695
        %v9041 = vpow.pop %v9040
        %v9042 = vmul.f32 %v9006, 1.442695
        %v9043 = vpow.pop %v9042
        %v9044 = vmul.f32 %v9007, 1.442695
        %v9045 = vpow.pop %v9044
        %v9046 = vmul.f32 %v9008, 1.442695
        %v9047 = vpow.pop %v9046
        %v9048 = vmul.f32 %v9009, 1.442695
        %v9049 = vpow.pop %v9048
        %v9050 = vmul.f32 %v9010, 1.442695
        %v9051 = vpow.pop %v9050
        %v9052 = vmul.f32 %v9011, 1.442695
        %v9053 = vpow.pop %v9052
        %v9054 = vmul.f32 %v9012, 1.442695
        %v9055 = vpow.pop %v9054
        %v9056 = vmul.f32 %v9013, 1.442695
        %v9057 = vpow.pop %v9056
        %v9058 = vmul.f32 %v9014, 1.442695
        %v9059 = vpow.pop %v9058
        %v9060 = vmul.f32 %v9015, 1.442695
        %v9061 = vpow.pop %v9060
        %v9062 = vmul.f32 %v9016, 1.442695
        %v9063 = vpow.pop %v9062
        %v9064 = vmul.f32 %v9017, 1.442695
        %v9065 = vpow.pop %v9064
        %v9066 = vmul.f32 %v9018, 1.442695
        %v9067 = vpow.pop %v9066
        %v9068 = vmul.f32 %v9019, 1.442695
        %v9069 = vpow.pop %v9068
        %v9070 = vmul.f32 %v9020, 1.442695
        %v9071 = vpow.pop %v9070
        %v9072 = vmul.f32 %v9021, 1.442695
        %v9073 = vpow.pop %v9072
        %v9074 = vmul.f32 %v9022, 1.442695
        %v9075 = vpow.pop %v9074
        %v9076 = vmul.f32 %v9023, 1.442695
        %v9077 = vpow.pop %v9076
        %v9078 = vmul.f32 %v9024, 1.442695
        %v9079 = vpow.pop %v9078
        %v9080 = vmul.f32 %v9025, 1.442695
        %v9081 = vpow.pop %v9080
        %v9082 = vmul.f32 %v9026, 1.442695
        %v9083 = vpow.pop %v9082
        %v9084 = vmul.f32 %v9027, 1.442695
        %v9085 = vpow.pop %v9084
        %v9086 = vmul.f32 %v9028, 1.442695
        %v9087 = vpow.pop %v9086
        %v9088 = vmul.f32 %v9029, 1.442695
        %v9089 = vpow.pop %v9088
        %v9090 = vmul.f32 %v9030, 1.442695
        %v9091 = vpow.pop %v9090
        %v9092 = vmul.f32 %v9031, 1.442695
        %v9093 = vpow.pop %v9092
        %v9094 = vmul.f32 %v9032, 1.442695
        %v9095 = vpow.pop %v9094
        %v9096 = vmul.f32 %v9033, 1.442695
        %v9097 = vpow.pop %v9096
        %v9098 = vsel %vm8905, %v9035, 0.0
        %9099 = vadd.xlane.f32.xlu0 %v9098
        %v9100 = vpop.xlane.xlu0 %9099
        %v9101 = vsel %vm8905, %v9037, 0.0
        %9102 = vadd.xlane.f32.xlu0 %v9101
        %v9103 = vpop.xlane.xlu0 %9102
        %v9104 = vsel %vm8905, %v9039, 0.0
        %9105 = vadd.xlane.f32.xlu0 %v9104
        %v9106 = vpop.xlane.xlu0 %9105
        %v9107 = vsel %vm8905, %v9041, 0.0
        %9108 = vadd.xlane.f32.xlu0 %v9107
        %v9109 = vpop.xlane.xlu0 %9108
        %v9110 = vsel %vm8905, %v9043, 0.0
        %9111 = vadd.xlane.f32.xlu0 %v9110
        %v9112 = vpop.xlane.xlu0 %9111
        %v9113 = vsel %vm8905, %v9045, 0.0
        %9114 = vadd.xlane.f32.xlu0 %v9113
        %v9115 = vpop.xlane.xlu0 %9114
        %v9116 = vsel %vm8905, %v9047, 0.0
        %9117 = vadd.xlane.f32.xlu0 %v9116
        %v9118 = vpop.xlane.xlu0 %9117
        %v9119 = vsel %vm8905, %v9049, 0.0
        %9120 = vadd.xlane.f32.xlu0 %v9119
        %v9121 = vpop.xlane.xlu0 %9120
        %v9122 = vsel %vm8905, %v9051, 0.0
        %9123 = vadd.xlane.f32.xlu0 %v9122
        %v9124 = vpop.xlane.xlu0 %9123
        %v9125 = vsel %vm8905, %v9053, 0.0
        %9126 = vadd.xlane.f32.xlu0 %v9125
        %v9127 = vpop.xlane.xlu0 %9126
        %v9128 = vsel %vm8905, %v9055, 0.0
        %9129 = vadd.xlane.f32.xlu0 %v9128
        %v9130 = vpop.xlane.xlu0 %9129
        %v9131 = vsel %vm8905, %v9057, 0.0
        %9132 = vadd.xlane.f32.xlu0 %v9131
        %v9133 = vpop.xlane.xlu0 %9132
        %v9134 = vsel %vm8905, %v9059, 0.0
        %9135 = vadd.xlane.f32.xlu0 %v9134
        %v9136 = vpop.xlane.xlu0 %9135
        %v9137 = vsel %vm8905, %v9061, 0.0
        %9138 = vadd.xlane.f32.xlu0 %v9137
        %v9139 = vpop.xlane.xlu0 %9138
        %v9140 = vsel %vm8905, %v9063, 0.0
        %9141 = vadd.xlane.f32.xlu0 %v9140
        %v9142 = vpop.xlane.xlu0 %9141
        %v9143 = vsel %vm8905, %v9065, 0.0
        %9144 = vadd.xlane.f32.xlu0 %v9143
        %v9145 = vpop.xlane.xlu0 %9144
        %v9146 = vsel %vm8905, %v9067, 0.0
        %9147 = vadd.xlane.f32.xlu0 %v9146
        %v9148 = vpop.xlane.xlu0 %9147
        %v9149 = vsel %vm8905, %v9069, 0.0
        %9150 = vadd.xlane.f32.xlu0 %v9149
        %v9151 = vpop.xlane.xlu0 %9150
        %v9152 = vsel %vm8905, %v9071, 0.0
        %9153 = vadd.xlane.f32.xlu0 %v9152
        %v9154 = vpop.xlane.xlu0 %9153
        %v9155 = vsel %vm8905, %v9073, 0.0
        %9156 = vadd.xlane.f32.xlu0 %v9155
        %v9157 = vpop.xlane.xlu0 %9156
        %v9158 = vsel %vm8905, %v9075, 0.0
        %9159 = vadd.xlane.f32.xlu0 %v9158
        %v9160 = vpop.xlane.xlu0 %9159
        %v9161 = vsel %vm8905, %v9077, 0.0
        %9162 = vadd.xlane.f32.xlu0 %v9161
        %v9163 = vpop.xlane.xlu0 %9162
        %v9164 = vsel %vm8905, %v9079, 0.0
        %9165 = vadd.xlane.f32.xlu0 %v9164
        %v9166 = vpop.xlane.xlu0 %9165
        %v9167 = vsel %vm8905, %v9081, 0.0
        %9168 = vadd.xlane.f32.xlu0 %v9167
        %v9169 = vpop.xlane.xlu0 %9168
        %v9170 = vsel %vm8905, %v9083, 0.0
        %9171 = vadd.xlane.f32.xlu0 %v9170
        %v9172 = vpop.xlane.xlu0 %9171
        %v9173 = vsel %vm8905, %v9085, 0.0
        %9174 = vadd.xlane.f32.xlu0 %v9173
        %v9175 = vpop.xlane.xlu0 %9174
        %v9176 = vsel %vm8905, %v9087, 0.0
        %9177 = vadd.xlane.f32.xlu0 %v9176
        %v9178 = vpop.xlane.xlu0 %9177
        %v9179 = vsel %vm8905, %v9089, 0.0
        %9180 = vadd.xlane.f32.xlu0 %v9179
        %v9181 = vpop.xlane.xlu0 %9180
        %v9182 = vsel %vm8905, %v9091, 0.0
        %9183 = vadd.xlane.f32.xlu0 %v9182
        %v9184 = vpop.xlane.xlu0 %9183
        %v9185 = vsel %vm8905, %v9093, 0.0
        %9186 = vadd.xlane.f32.xlu0 %v9185
        %v9187 = vpop.xlane.xlu0 %9186
        %v9188 = vsel %vm8905, %v9095, 0.0
        %9189 = vadd.xlane.f32.xlu0 %v9188
        %v9190 = vpop.xlane.xlu0 %9189
        %v9191 = vsel %vm8905, %v9097, 0.0
        %9192 = vadd.xlane.f32.xlu0 %v9191
        %v9193 = vpop.xlane.xlu0 %9192
        %v9194 = vrcp.pop %v9100
        %v9195 = vrcp.pop %v9103
        %v9196 = vrcp.pop %v9106
        %v9197 = vrcp.pop %v9109
        %v9198 = vrcp.pop %v9112
        %v9199 = vrcp.pop %v9115
        %v9200 = vrcp.pop %v9118
        %v9201 = vrcp.pop %v9121
        %v9202 = vrcp.pop %v9124
        %v9203 = vrcp.pop %v9127
        %v9204 = vrcp.pop %v9130
        %v9205 = vrcp.pop %v9133
        %v9206 = vrcp.pop %v9136
        %v9207 = vrcp.pop %v9139
        %v9208 = vrcp.pop %v9142
        %v9209 = vrcp.pop %v9145
        %v9210 = vrcp.pop %v9148
        %v9211 = vrcp.pop %v9151
        %v9212 = vrcp.pop %v9154
        %v9213 = vrcp.pop %v9157
        %v9214 = vrcp.pop %v9160
        %v9215 = vrcp.pop %v9163
        %v9216 = vrcp.pop %v9166
        %v9217 = vrcp.pop %v9169
        %v9218 = vrcp.pop %v9172
        %v9219 = vrcp.pop %v9175
        %v9220 = vrcp.pop %v9178
        %v9221 = vrcp.pop %v9181
        %v9222 = vrcp.pop %v9184
        %v9223 = vrcp.pop %v9187
        %v9224 = vrcp.pop %v9190
        %v9225 = vrcp.pop %v9193
        %v9226 = vmul.f32 %v9035, %v9194
        %v9227 = vmul.f32 %v9037, %v9195
        %v9228 = vmul.f32 %v9039, %v9196
        %v9229 = vmul.f32 %v9041, %v9197
        %v9230 = vmul.f32 %v9043, %v9198
        %v9231 = vmul.f32 %v9045, %v9199
        %v9232 = vmul.f32 %v9047, %v9200
        %v9233 = vmul.f32 %v9049, %v9201
        %v9234 = vmul.f32 %v9051, %v9202
        %v9235 = vmul.f32 %v9053, %v9203
        %v9236 = vmul.f32 %v9055, %v9204
        %v9237 = vmul.f32 %v9057, %v9205
        %v9238 = vmul.f32 %v9059, %v9206
        %v9239 = vmul.f32 %v9061, %v9207
        %v9240 = vmul.f32 %v9063, %v9208
        %v9241 = vmul.f32 %v9065, %v9209
        %v9242 = vmul.f32 %v9067, %v9210
        %v9243 = vmul.f32 %v9069, %v9211
        %v9244 = vmul.f32 %v9071, %v9212
        %v9245 = vmul.f32 %v9073, %v9213
        %v9246 = vmul.f32 %v9075, %v9214
        %v9247 = vmul.f32 %v9077, %v9215
        %v9248 = vmul.f32 %v9079, %v9216
        %v9249 = vmul.f32 %v9081, %v9217
        %v9250 = vmul.f32 %v9083, %v9218
        %v9251 = vmul.f32 %v9085, %v9219
        %v9252 = vmul.f32 %v9087, %v9220
        %v9253 = vmul.f32 %v9089, %v9221
        %v9254 = vmul.f32 %v9091, %v9222
        %v9255 = vmul.f32 %v9093, %v9223
        %v9256 = vmul.f32 %v9095, %v9224
        %v9257 = vmul.f32 %v9097, %v9225
        %v9258 = vpack.c.bf16 %v9226, %v9226
        %v9259 = vpack.c.bf16 %v9227, %v9227
        %v9260 = vpack.c.bf16 %v9228, %v9228
        %v9261 = vpack.c.bf16 %v9229, %v9229
        %v9262 = vpack.c.bf16 %v9230, %v9230
        %v9263 = vpack.c.bf16 %v9231, %v9231
        %v9264 = vpack.c.bf16 %v9232, %v9232
        %v9265 = vpack.c.bf16 %v9233, %v9233
        %v9266 = vpack.c.bf16 %v9234, %v9234
        %v9267 = vpack.c.bf16 %v9235, %v9235
        %v9268 = vpack.c.bf16 %v9236, %v9236
        %v9269 = vpack.c.bf16 %v9237, %v9237
        %v9270 = vpack.c.bf16 %v9238, %v9238
        %v9271 = vpack.c.bf16 %v9239, %v9239
        %v9272 = vpack.c.bf16 %v9240, %v9240
        %v9273 = vpack.c.bf16 %v9241, %v9241
        %v9274 = vpack.c.bf16 %v9242, %v9242
        %v9275 = vpack.c.bf16 %v9243, %v9243
        %v9276 = vpack.c.bf16 %v9244, %v9244
        %v9277 = vpack.c.bf16 %v9245, %v9245
        %v9278 = vpack.c.bf16 %v9246, %v9246
        %v9279 = vpack.c.bf16 %v9247, %v9247
        %v9280 = vpack.c.bf16 %v9248, %v9248
        %v9281 = vpack.c.bf16 %v9249, %v9249
        %v9282 = vpack.c.bf16 %v9250, %v9250
        %v9283 = vpack.c.bf16 %v9251, %v9251
        %v9284 = vpack.c.bf16 %v9252, %v9252
        %v9285 = vpack.c.bf16 %v9253, %v9253
        %v9286 = vpack.c.bf16 %v9254, %v9254
        %v9287 = vpack.c.bf16 %v9255, %v9255
        %v9288 = vpack.c.bf16 %v9256, %v9256
        %v9289 = vpack.c.bf16 %v9257, %v9257
        %v9290 = vunpack.c.l.b16 %v7560
        %v9291 = vunpack.c.l.b16 %v7608
        %v9292 = vunpack.c.l.b16 %v7656
        %v9293 = vunpack.c.l.b16 %v7704
        %v9294 = vpack.c.b16 %v9291, %v9290
        %v9295 = vpack.c.b16 %v9293, %v9292
        %v9299 = vsel %vm8905, %v9258, 0
        %9301 = vmatpush.bf16.msra.mxu0 0
        %9302 = vmatpush.bf16.msra.mxu0 0
        %9303 = vmatpush.bf16.msra.mxu0 0
        %9304 = vmatpush.bf16.msra.mxu0 0
        %9305 = vmatpush.bf16.msra.mxu0 0
        %9306 = vmatpush.bf16.msra.mxu0 0
        %9307 = vmatpush.bf16.msra.mxu0 %v9295
        %9308 = vmatpush.bf16.msra.mxu0 %v9294
        %9309 = vmatmul.bf16.gmra.mxu0 %v9299
        %v9310 = vpop.f32.mrf.mxu0
        %v9311 = vadd.f32 0.0, %v9310
        %v9312 = vpop.f32.mrf.mxu0
        %9313 = vdwg.mxu0
        %v9314 = vunpack.c.l.b16 %v7563
        %v9315 = vunpack.c.l.b16 %v7611
        %v9316 = vunpack.c.l.b16 %v7659
        %v9317 = vunpack.c.l.b16 %v7707
        %v9318 = vpack.c.b16 %v9315, %v9314
        %v9319 = vpack.c.b16 %v9317, %v9316
        %v9323 = vsel %vm8905, %v9259, 0
        %9325 = vmatpush.bf16.msra.mxu0 0
        %9326 = vmatpush.bf16.msra.mxu0 0
        %9327 = vmatpush.bf16.msra.mxu0 0
        %9328 = vmatpush.bf16.msra.mxu0 0
        %9329 = vmatpush.bf16.msra.mxu0 0
        %9330 = vmatpush.bf16.msra.mxu0 0
        %9331 = vmatpush.bf16.msra.mxu0 %v9319
        %9332 = vmatpush.bf16.msra.mxu0 %v9318
        %9333 = vmatmul.bf16.gmra.mxu0 %v9323
        %v9334 = vpop.f32.mrf.mxu0
        %v9335 = vadd.f32 0.0, %v9334
        %v9336 = vpop.f32.mrf.mxu0
        %9337 = vdwg.mxu0
        %v9338 = vunpack.c.l.b16 %v7566
        %v9339 = vunpack.c.l.b16 %v7614
        %v9340 = vunpack.c.l.b16 %v7662
        %v9341 = vunpack.c.l.b16 %v7710
        %v9342 = vpack.c.b16 %v9339, %v9338
        %v9343 = vpack.c.b16 %v9341, %v9340
        %v9347 = vsel %vm8905, %v9260, 0
        %9349 = vmatpush.bf16.msra.mxu0 0
        %9350 = vmatpush.bf16.msra.mxu0 0
        %9351 = vmatpush.bf16.msra.mxu0 0
        %9352 = vmatpush.bf16.msra.mxu0 0
        %9353 = vmatpush.bf16.msra.mxu0 0
        %9354 = vmatpush.bf16.msra.mxu0 0
        %9355 = vmatpush.bf16.msra.mxu0 %v9343
        %9356 = vmatpush.bf16.msra.mxu0 %v9342
        %9357 = vmatmul.bf16.gmra.mxu0 %v9347
        %v9358 = vpop.f32.mrf.mxu0
        %v9359 = vadd.f32 0.0, %v9358
        %v9360 = vpop.f32.mrf.mxu0
        %9361 = vdwg.mxu0
        %v9362 = vunpack.c.l.b16 %v7569
        %v9363 = vunpack.c.l.b16 %v7617
        %v9364 = vunpack.c.l.b16 %v7665
        %v9365 = vunpack.c.l.b16 %v7713
        %v9366 = vpack.c.b16 %v9363, %v9362
        %v9367 = vpack.c.b16 %v9365, %v9364
        %v9371 = vsel %vm8905, %v9261, 0
        %9373 = vmatpush.bf16.msra.mxu0 0
        %9374 = vmatpush.bf16.msra.mxu0 0
        %9375 = vmatpush.bf16.msra.mxu0 0
        %9376 = vmatpush.bf16.msra.mxu0 0
        %9377 = vmatpush.bf16.msra.mxu0 0
        %9378 = vmatpush.bf16.msra.mxu0 0
        %9379 = vmatpush.bf16.msra.mxu0 %v9367
        %9380 = vmatpush.bf16.msra.mxu0 %v9366
        %9381 = vmatmul.bf16.gmra.mxu0 %v9371
        %v9382 = vpop.f32.mrf.mxu0
        %v9383 = vadd.f32 0.0, %v9382
        %v9384 = vpop.f32.mrf.mxu0
        %9385 = vdwg.mxu0
        %v9386 = vunpack.c.l.b16 %v7572
        %v9387 = vunpack.c.l.b16 %v7620
        %v9388 = vunpack.c.l.b16 %v7668
        %v9389 = vunpack.c.l.b16 %v7716
        %v9390 = vpack.c.b16 %v9387, %v9386
        %v9391 = vpack.c.b16 %v9389, %v9388
        %v9395 = vsel %vm8905, %v9262, 0
        %9397 = vmatpush.bf16.msra.mxu0 0
        %9398 = vmatpush.bf16.msra.mxu0 0
        %9399 = vmatpush.bf16.msra.mxu0 0
        %9400 = vmatpush.bf16.msra.mxu0 0
        %9401 = vmatpush.bf16.msra.mxu0 0
        %9402 = vmatpush.bf16.msra.mxu0 0
        %9403 = vmatpush.bf16.msra.mxu0 %v9391
        %9404 = vmatpush.bf16.msra.mxu0 %v9390
        %9405 = vmatmul.bf16.gmra.mxu0 %v9395
        %v9406 = vpop.f32.mrf.mxu0
        %v9407 = vadd.f32 0.0, %v9406
        %v9408 = vpop.f32.mrf.mxu0
        %9409 = vdwg.mxu0
        %v9410 = vunpack.c.l.b16 %v7575
        %v9411 = vunpack.c.l.b16 %v7623
        %v9412 = vunpack.c.l.b16 %v7671
        %v9413 = vunpack.c.l.b16 %v7719
        %v9414 = vpack.c.b16 %v9411, %v9410
        %v9415 = vpack.c.b16 %v9413, %v9412
        %v9419 = vsel %vm8905, %v9263, 0
        %9421 = vmatpush.bf16.msra.mxu0 0
        %9422 = vmatpush.bf16.msra.mxu0 0
        %9423 = vmatpush.bf16.msra.mxu0 0
        %9424 = vmatpush.bf16.msra.mxu0 0
        %9425 = vmatpush.bf16.msra.mxu0 0
        %9426 = vmatpush.bf16.msra.mxu0 0
        %9427 = vmatpush.bf16.msra.mxu0 %v9415
        %9428 = vmatpush.bf16.msra.mxu0 %v9414
        %9429 = vmatmul.bf16.gmra.mxu0 %v9419
        %v9430 = vpop.f32.mrf.mxu0
        %v9431 = vadd.f32 0.0, %v9430
        %v9432 = vpop.f32.mrf.mxu0
        %9433 = vdwg.mxu0
        %v9434 = vunpack.c.l.b16 %v7578
        %v9435 = vunpack.c.l.b16 %v7626
        %v9436 = vunpack.c.l.b16 %v7674
        %v9437 = vunpack.c.l.b16 %v7722
        %v9438 = vpack.c.b16 %v9435, %v9434
        %v9439 = vpack.c.b16 %v9437, %v9436
        %v9443 = vsel %vm8905, %v9264, 0
        %9445 = vmatpush.bf16.msra.mxu0 0
        %9446 = vmatpush.bf16.msra.mxu0 0
        %9447 = vmatpush.bf16.msra.mxu0 0
        %9448 = vmatpush.bf16.msra.mxu0 0
        %9449 = vmatpush.bf16.msra.mxu0 0
        %9450 = vmatpush.bf16.msra.mxu0 0
        %9451 = vmatpush.bf16.msra.mxu0 %v9439
        %9452 = vmatpush.bf16.msra.mxu0 %v9438
        %9453 = vmatmul.bf16.gmra.mxu0 %v9443
        %v9454 = vpop.f32.mrf.mxu0
        %v9455 = vadd.f32 0.0, %v9454
        %v9456 = vpop.f32.mrf.mxu0
        %9457 = vdwg.mxu0
        %v9458 = vunpack.c.l.b16 %v7581
        %v9459 = vunpack.c.l.b16 %v7629
        %v9460 = vunpack.c.l.b16 %v7677
        %v9461 = vunpack.c.l.b16 %v7725
        %v9462 = vpack.c.b16 %v9459, %v9458
        %v9463 = vpack.c.b16 %v9461, %v9460
        %v9467 = vsel %vm8905, %v9265, 0
        %9469 = vmatpush.bf16.msra.mxu0 0
        %9470 = vmatpush.bf16.msra.mxu0 0
        %9471 = vmatpush.bf16.msra.mxu0 0
        %9472 = vmatpush.bf16.msra.mxu0 0
        %9473 = vmatpush.bf16.msra.mxu0 0
        %9474 = vmatpush.bf16.msra.mxu0 0
        %9475 = vmatpush.bf16.msra.mxu0 %v9463
        %9476 = vmatpush.bf16.msra.mxu0 %v9462
        %9477 = vmatmul.bf16.gmra.mxu0 %v9467
        %v9478 = vpop.f32.mrf.mxu0
        %v9479 = vadd.f32 0.0, %v9478
        %v9480 = vpop.f32.mrf.mxu0
        %9481 = vdwg.mxu0
        %v9482 = vunpack.c.l.b16 %v7584
        %v9483 = vunpack.c.l.b16 %v7632
        %v9484 = vunpack.c.l.b16 %v7680
        %v9485 = vunpack.c.l.b16 %v7728
        %v9486 = vpack.c.b16 %v9483, %v9482
        %v9487 = vpack.c.b16 %v9485, %v9484
        %v9491 = vsel %vm8905, %v9266, 0
        %9493 = vmatpush.bf16.msra.mxu0 0
        %9494 = vmatpush.bf16.msra.mxu0 0
        %9495 = vmatpush.bf16.msra.mxu0 0
        %9496 = vmatpush.bf16.msra.mxu0 0
        %9497 = vmatpush.bf16.msra.mxu0 0
        %9498 = vmatpush.bf16.msra.mxu0 0
        %9499 = vmatpush.bf16.msra.mxu0 %v9487
        %9500 = vmatpush.bf16.msra.mxu0 %v9486
        %9501 = vmatmul.bf16.gmra.mxu0 %v9491
        %v9502 = vpop.f32.mrf.mxu0
        %v9503 = vadd.f32 0.0, %v9502
        %v9504 = vpop.f32.mrf.mxu0
        %9505 = vdwg.mxu0
        %v9506 = vunpack.c.l.b16 %v7587
        %v9507 = vunpack.c.l.b16 %v7635
        %v9508 = vunpack.c.l.b16 %v7683
        %v9509 = vunpack.c.l.b16 %v7731
        %v9510 = vpack.c.b16 %v9507, %v9506
        %v9511 = vpack.c.b16 %v9509, %v9508
        %v9515 = vsel %vm8905, %v9267, 0
        %9517 = vmatpush.bf16.msra.mxu0 0
        %9518 = vmatpush.bf16.msra.mxu0 0
        %9519 = vmatpush.bf16.msra.mxu0 0
        %9520 = vmatpush.bf16.msra.mxu0 0
        %9521 = vmatpush.bf16.msra.mxu0 0
        %9522 = vmatpush.bf16.msra.mxu0 0
        %9523 = vmatpush.bf16.msra.mxu0 %v9511
        %9524 = vmatpush.bf16.msra.mxu0 %v9510
        %9525 = vmatmul.bf16.gmra.mxu0 %v9515
        %v9526 = vpop.f32.mrf.mxu0
        %v9527 = vadd.f32 0.0, %v9526
        %v9528 = vpop.f32.mrf.mxu0
        %9529 = vdwg.mxu0
        %v9530 = vunpack.c.l.b16 %v7590
        %v9531 = vunpack.c.l.b16 %v7638
        %v9532 = vunpack.c.l.b16 %v7686
        %v9533 = vunpack.c.l.b16 %v7734
        %v9534 = vpack.c.b16 %v9531, %v9530
        %v9535 = vpack.c.b16 %v9533, %v9532
        %v9539 = vsel %vm8905, %v9268, 0
        %9541 = vmatpush.bf16.msra.mxu0 0
        %9542 = vmatpush.bf16.msra.mxu0 0
        %9543 = vmatpush.bf16.msra.mxu0 0
        %9544 = vmatpush.bf16.msra.mxu0 0
        %9545 = vmatpush.bf16.msra.mxu0 0
        %9546 = vmatpush.bf16.msra.mxu0 0
        %9547 = vmatpush.bf16.msra.mxu0 %v9535
        %9548 = vmatpush.bf16.msra.mxu0 %v9534
        %9549 = vmatmul.bf16.gmra.mxu0 %v9539
        %v9550 = vpop.f32.mrf.mxu0
        %v9551 = vadd.f32 0.0, %v9550
        %v9552 = vpop.f32.mrf.mxu0
        %9553 = vdwg.mxu0
        %v9554 = vunpack.c.l.b16 %v7593
        %v9555 = vunpack.c.l.b16 %v7641
        %v9556 = vunpack.c.l.b16 %v7689
        %v9557 = vunpack.c.l.b16 %v7737
        %v9558 = vpack.c.b16 %v9555, %v9554
        %v9559 = vpack.c.b16 %v9557, %v9556
        %v9563 = vsel %vm8905, %v9269, 0
        %9565 = vmatpush.bf16.msra.mxu0 0
        %9566 = vmatpush.bf16.msra.mxu0 0
        %9567 = vmatpush.bf16.msra.mxu0 0
        %9568 = vmatpush.bf16.msra.mxu0 0
        %9569 = vmatpush.bf16.msra.mxu0 0
        %9570 = vmatpush.bf16.msra.mxu0 0
        %9571 = vmatpush.bf16.msra.mxu0 %v9559
        %9572 = vmatpush.bf16.msra.mxu0 %v9558
        %9573 = vmatmul.bf16.gmra.mxu0 %v9563
        %v9574 = vpop.f32.mrf.mxu0
        %v9575 = vadd.f32 0.0, %v9574
        %v9576 = vpop.f32.mrf.mxu0
        %9577 = vdwg.mxu0
        %v9578 = vunpack.c.l.b16 %v7596
        %v9579 = vunpack.c.l.b16 %v7644
        %v9580 = vunpack.c.l.b16 %v7692
        %v9581 = vunpack.c.l.b16 %v7740
        %v9582 = vpack.c.b16 %v9579, %v9578
        %v9583 = vpack.c.b16 %v9581, %v9580
        %v9587 = vsel %vm8905, %v9270, 0
        %9589 = vmatpush.bf16.msra.mxu0 0
        %9590 = vmatpush.bf16.msra.mxu0 0
        %9591 = vmatpush.bf16.msra.mxu0 0
        %9592 = vmatpush.bf16.msra.mxu0 0
        %9593 = vmatpush.bf16.msra.mxu0 0
        %9594 = vmatpush.bf16.msra.mxu0 0
        %9595 = vmatpush.bf16.msra.mxu0 %v9583
        %9596 = vmatpush.bf16.msra.mxu0 %v9582
        %9597 = vmatmul.bf16.gmra.mxu0 %v9587
        %v9598 = vpop.f32.mrf.mxu0
        %v9599 = vadd.f32 0.0, %v9598
        %v9600 = vpop.f32.mrf.mxu0
        %9601 = vdwg.mxu0
        %v9602 = vunpack.c.l.b16 %v7599
        %v9603 = vunpack.c.l.b16 %v7647
        %v9604 = vunpack.c.l.b16 %v7695
        %v9605 = vunpack.c.l.b16 %v7743
        %v9606 = vpack.c.b16 %v9603, %v9602
        %v9607 = vpack.c.b16 %v9605, %v9604
        %v9611 = vsel %vm8905, %v9271, 0
        %9613 = vmatpush.bf16.msra.mxu0 0
        %9614 = vmatpush.bf16.msra.mxu0 0
        %9615 = vmatpush.bf16.msra.mxu0 0
        %9616 = vmatpush.bf16.msra.mxu0 0
        %9617 = vmatpush.bf16.msra.mxu0 0
        %9618 = vmatpush.bf16.msra.mxu0 0
        %9619 = vmatpush.bf16.msra.mxu0 %v9607
        %9620 = vmatpush.bf16.msra.mxu0 %v9606
        %9621 = vmatmul.bf16.gmra.mxu0 %v9611
        %v9622 = vpop.f32.mrf.mxu0
        %v9623 = vadd.f32 0.0, %v9622
        %v9624 = vpop.f32.mrf.mxu0
        %9625 = vdwg.mxu0
        %v9626 = vunpack.c.l.b16 %v7602
        %v9627 = vunpack.c.l.b16 %v7650
        %v9628 = vunpack.c.l.b16 %v7698
        %v9629 = vunpack.c.l.b16 %v7746
        %v9630 = vpack.c.b16 %v9627, %v9626
        %v9631 = vpack.c.b16 %v9629, %v9628
        %v9635 = vsel %vm8905, %v9272, 0
        %9637 = vmatpush.bf16.msra.mxu0 0
        %9638 = vmatpush.bf16.msra.mxu0 0
        %9639 = vmatpush.bf16.msra.mxu0 0
        %9640 = vmatpush.bf16.msra.mxu0 0
        %9641 = vmatpush.bf16.msra.mxu0 0
        %9642 = vmatpush.bf16.msra.mxu0 0
        %9643 = vmatpush.bf16.msra.mxu0 %v9631
        %9644 = vmatpush.bf16.msra.mxu0 %v9630
        %9645 = vmatmul.bf16.gmra.mxu0 %v9635
        %v9646 = vpop.f32.mrf.mxu0
        %v9647 = vadd.f32 0.0, %v9646
        %v9648 = vpop.f32.mrf.mxu0
        %9649 = vdwg.mxu0
        %v9650 = vunpack.c.l.b16 %v7605
        %v9651 = vunpack.c.l.b16 %v7653
        %v9652 = vunpack.c.l.b16 %v7701
        %v9653 = vunpack.c.l.b16 %v7749
        %v9654 = vpack.c.b16 %v9651, %v9650
        %v9655 = vpack.c.b16 %v9653, %v9652
        %v9659 = vsel %vm8905, %v9273, 0
        %9661 = vmatpush.bf16.msra.mxu0 0
        %9662 = vmatpush.bf16.msra.mxu0 0
        %9663 = vmatpush.bf16.msra.mxu0 0
        %9664 = vmatpush.bf16.msra.mxu0 0
        %9665 = vmatpush.bf16.msra.mxu0 0
        %9666 = vmatpush.bf16.msra.mxu0 0
        %9667 = vmatpush.bf16.msra.mxu0 %v9655
        %9668 = vmatpush.bf16.msra.mxu0 %v9654
        %9669 = vmatmul.bf16.gmra.mxu0 %v9659
        %v9670 = vpop.f32.mrf.mxu0
        %v9671 = vadd.f32 0.0, %v9670
        %v9672 = vpop.f32.mrf.mxu0
        %9673 = vdwg.mxu0
        %v9674 = vunpack.c.l.b16 %v7752
        %v9675 = vunpack.c.l.b16 %v7800
        %v9676 = vunpack.c.l.b16 %v7848
        %v9677 = vunpack.c.l.b16 %v7896
        %v9678 = vpack.c.b16 %v9675, %v9674
        %v9679 = vpack.c.b16 %v9677, %v9676
        %v9683 = vsel %vm8905, %v9274, 0
        %9685 = vmatpush.bf16.msra.mxu0 0
        %9686 = vmatpush.bf16.msra.mxu0 0
        %9687 = vmatpush.bf16.msra.mxu0 0
        %9688 = vmatpush.bf16.msra.mxu0 0
        %9689 = vmatpush.bf16.msra.mxu0 0
        %9690 = vmatpush.bf16.msra.mxu0 0
        %9691 = vmatpush.bf16.msra.mxu0 %v9679
        %9692 = vmatpush.bf16.msra.mxu0 %v9678
        %9693 = vmatmul.bf16.gmra.mxu0 %v9683
        %v9694 = vpop.f32.mrf.mxu0
        %v9695 = vadd.f32 0.0, %v9694
        %v9696 = vpop.f32.mrf.mxu0
        %9697 = vdwg.mxu0
        %v9698 = vunpack.c.l.b16 %v7755
        %v9699 = vunpack.c.l.b16 %v7803
        %v9700 = vunpack.c.l.b16 %v7851
        %v9701 = vunpack.c.l.b16 %v7899
        %v9702 = vpack.c.b16 %v9699, %v9698
        %v9703 = vpack.c.b16 %v9701, %v9700
        %v9707 = vsel %vm8905, %v9275, 0
        %9709 = vmatpush.bf16.msra.mxu0 0
        %9710 = vmatpush.bf16.msra.mxu0 0
        %9711 = vmatpush.bf16.msra.mxu0 0
        %9712 = vmatpush.bf16.msra.mxu0 0
        %9713 = vmatpush.bf16.msra.mxu0 0
        %9714 = vmatpush.bf16.msra.mxu0 0
        %9715 = vmatpush.bf16.msra.mxu0 %v9703
        %9716 = vmatpush.bf16.msra.mxu0 %v9702
        %9717 = vmatmul.bf16.gmra.mxu0 %v9707
        %v9718 = vpop.f32.mrf.mxu0
        %v9719 = vadd.f32 0.0, %v9718
        %v9720 = vpop.f32.mrf.mxu0
        %9721 = vdwg.mxu0
        %v9722 = vunpack.c.l.b16 %v7758
        %v9723 = vunpack.c.l.b16 %v7806
        %v9724 = vunpack.c.l.b16 %v7854
        %v9725 = vunpack.c.l.b16 %v7902
        %v9726 = vpack.c.b16 %v9723, %v9722
        %v9727 = vpack.c.b16 %v9725, %v9724
        %v9731 = vsel %vm8905, %v9276, 0
        %9733 = vmatpush.bf16.msra.mxu0 0
        %9734 = vmatpush.bf16.msra.mxu0 0
        %9735 = vmatpush.bf16.msra.mxu0 0
        %9736 = vmatpush.bf16.msra.mxu0 0
        %9737 = vmatpush.bf16.msra.mxu0 0
        %9738 = vmatpush.bf16.msra.mxu0 0
        %9739 = vmatpush.bf16.msra.mxu0 %v9727
        %9740 = vmatpush.bf16.msra.mxu0 %v9726
        %9741 = vmatmul.bf16.gmra.mxu0 %v9731
        %v9742 = vpop.f32.mrf.mxu0
        %v9743 = vadd.f32 0.0, %v9742
        %v9744 = vpop.f32.mrf.mxu0
        %9745 = vdwg.mxu0
        %v9746 = vunpack.c.l.b16 %v7761
        %v9747 = vunpack.c.l.b16 %v7809
        %v9748 = vunpack.c.l.b16 %v7857
        %v9749 = vunpack.c.l.b16 %v7905
        %v9750 = vpack.c.b16 %v9747, %v9746
        %v9751 = vpack.c.b16 %v9749, %v9748
        %v9755 = vsel %vm8905, %v9277, 0
        %9757 = vmatpush.bf16.msra.mxu0 0
        %9758 = vmatpush.bf16.msra.mxu0 0
        %9759 = vmatpush.bf16.msra.mxu0 0
        %9760 = vmatpush.bf16.msra.mxu0 0
        %9761 = vmatpush.bf16.msra.mxu0 0
        %9762 = vmatpush.bf16.msra.mxu0 0
        %9763 = vmatpush.bf16.msra.mxu0 %v9751
        %9764 = vmatpush.bf16.msra.mxu0 %v9750
        %9765 = vmatmul.bf16.gmra.mxu0 %v9755
        %v9766 = vpop.f32.mrf.mxu0
        %v9767 = vadd.f32 0.0, %v9766
        %v9768 = vpop.f32.mrf.mxu0
        %9769 = vdwg.mxu0
        %v9770 = vunpack.c.l.b16 %v7764
        %v9771 = vunpack.c.l.b16 %v7812
        %v9772 = vunpack.c.l.b16 %v7860
        %v9773 = vunpack.c.l.b16 %v7908
        %v9774 = vpack.c.b16 %v9771, %v9770
        %v9775 = vpack.c.b16 %v9773, %v9772
        %v9779 = vsel %vm8905, %v9278, 0
        %9781 = vmatpush.bf16.msra.mxu0 0
        %9782 = vmatpush.bf16.msra.mxu0 0
        %9783 = vmatpush.bf16.msra.mxu0 0
        %9784 = vmatpush.bf16.msra.mxu0 0
        %9785 = vmatpush.bf16.msra.mxu0 0
        %9786 = vmatpush.bf16.msra.mxu0 0
        %9787 = vmatpush.bf16.msra.mxu0 %v9775
        %9788 = vmatpush.bf16.msra.mxu0 %v9774
        %9789 = vmatmul.bf16.gmra.mxu0 %v9779
        %v9790 = vpop.f32.mrf.mxu0
        %v9791 = vadd.f32 0.0, %v9790
        %v9792 = vpop.f32.mrf.mxu0
        %9793 = vdwg.mxu0
        %v9794 = vunpack.c.l.b16 %v7767
        %v9795 = vunpack.c.l.b16 %v7815
        %v9796 = vunpack.c.l.b16 %v7863
        %v9797 = vunpack.c.l.b16 %v7911
        %v9798 = vpack.c.b16 %v9795, %v9794
        %v9799 = vpack.c.b16 %v9797, %v9796
        %v9803 = vsel %vm8905, %v9279, 0
        %9805 = vmatpush.bf16.msra.mxu0 0
        %9806 = vmatpush.bf16.msra.mxu0 0
        %9807 = vmatpush.bf16.msra.mxu0 0
        %9808 = vmatpush.bf16.msra.mxu0 0
        %9809 = vmatpush.bf16.msra.mxu0 0
        %9810 = vmatpush.bf16.msra.mxu0 0
        %9811 = vmatpush.bf16.msra.mxu0 %v9799
        %9812 = vmatpush.bf16.msra.mxu0 %v9798
        %9813 = vmatmul.bf16.gmra.mxu0 %v9803
        %v9814 = vpop.f32.mrf.mxu0
        %v9815 = vadd.f32 0.0, %v9814
        %v9816 = vpop.f32.mrf.mxu0
        %9817 = vdwg.mxu0
        %v9818 = vunpack.c.l.b16 %v7770
        %v9819 = vunpack.c.l.b16 %v7818
        %v9820 = vunpack.c.l.b16 %v7866
        %v9821 = vunpack.c.l.b16 %v7914
        %v9822 = vpack.c.b16 %v9819, %v9818
        %v9823 = vpack.c.b16 %v9821, %v9820
        %v9827 = vsel %vm8905, %v9280, 0
        %9829 = vmatpush.bf16.msra.mxu0 0
        %9830 = vmatpush.bf16.msra.mxu0 0
        %9831 = vmatpush.bf16.msra.mxu0 0
        %9832 = vmatpush.bf16.msra.mxu0 0
        %9833 = vmatpush.bf16.msra.mxu0 0
        %9834 = vmatpush.bf16.msra.mxu0 0
        %9835 = vmatpush.bf16.msra.mxu0 %v9823
        %9836 = vmatpush.bf16.msra.mxu0 %v9822
        %9837 = vmatmul.bf16.gmra.mxu0 %v9827
        %v9838 = vpop.f32.mrf.mxu0
        %v9839 = vadd.f32 0.0, %v9838
        %v9840 = vpop.f32.mrf.mxu0
        %9841 = vdwg.mxu0
        %v9842 = vunpack.c.l.b16 %v7773
        %v9843 = vunpack.c.l.b16 %v7821
        %v9844 = vunpack.c.l.b16 %v7869
        %v9845 = vunpack.c.l.b16 %v7917
        %v9846 = vpack.c.b16 %v9843, %v9842
        %v9847 = vpack.c.b16 %v9845, %v9844
        %v9851 = vsel %vm8905, %v9281, 0
        %9853 = vmatpush.bf16.msra.mxu0 0
        %9854 = vmatpush.bf16.msra.mxu0 0
        %9855 = vmatpush.bf16.msra.mxu0 0
        %9856 = vmatpush.bf16.msra.mxu0 0
        %9857 = vmatpush.bf16.msra.mxu0 0
        %9858 = vmatpush.bf16.msra.mxu0 0
        %9859 = vmatpush.bf16.msra.mxu0 %v9847
        %9860 = vmatpush.bf16.msra.mxu0 %v9846
        %9861 = vmatmul.bf16.gmra.mxu0 %v9851
        %v9862 = vpop.f32.mrf.mxu0
        %v9863 = vadd.f32 0.0, %v9862
        %v9864 = vpop.f32.mrf.mxu0
        %9865 = vdwg.mxu0
        %v9866 = vunpack.c.l.b16 %v7776
        %v9867 = vunpack.c.l.b16 %v7824
        %v9868 = vunpack.c.l.b16 %v7872
        %v9869 = vunpack.c.l.b16 %v7920
        %v9870 = vpack.c.b16 %v9867, %v9866
        %v9871 = vpack.c.b16 %v9869, %v9868
        %v9875 = vsel %vm8905, %v9282, 0
        %9877 = vmatpush.bf16.msra.mxu0 0
        %9878 = vmatpush.bf16.msra.mxu0 0
        %9879 = vmatpush.bf16.msra.mxu0 0
        %9880 = vmatpush.bf16.msra.mxu0 0
        %9881 = vmatpush.bf16.msra.mxu0 0
        %9882 = vmatpush.bf16.msra.mxu0 0
        %9883 = vmatpush.bf16.msra.mxu0 %v9871
        %9884 = vmatpush.bf16.msra.mxu0 %v9870
        %9885 = vmatmul.bf16.gmra.mxu0 %v9875
        %v9886 = vpop.f32.mrf.mxu0
        %v9887 = vadd.f32 0.0, %v9886
        %v9888 = vpop.f32.mrf.mxu0
        %9889 = vdwg.mxu0
        %v9890 = vunpack.c.l.b16 %v7779
        %v9891 = vunpack.c.l.b16 %v7827
        %v9892 = vunpack.c.l.b16 %v7875
        %v9893 = vunpack.c.l.b16 %v7923
        %v9894 = vpack.c.b16 %v9891, %v9890
        %v9895 = vpack.c.b16 %v9893, %v9892
        %v9899 = vsel %vm8905, %v9283, 0
        %9901 = vmatpush.bf16.msra.mxu0 0
        %9902 = vmatpush.bf16.msra.mxu0 0
        %9903 = vmatpush.bf16.msra.mxu0 0
        %9904 = vmatpush.bf16.msra.mxu0 0
        %9905 = vmatpush.bf16.msra.mxu0 0
        %9906 = vmatpush.bf16.msra.mxu0 0
        %9907 = vmatpush.bf16.msra.mxu0 %v9895
        %9908 = vmatpush.bf16.msra.mxu0 %v9894
        %9909 = vmatmul.bf16.gmra.mxu0 %v9899
        %v9910 = vpop.f32.mrf.mxu0
        %v9911 = vadd.f32 0.0, %v9910
        %v9912 = vpop.f32.mrf.mxu0
        %9913 = vdwg.mxu0
        %v9914 = vunpack.c.l.b16 %v7782
        %v9915 = vunpack.c.l.b16 %v7830
        %v9916 = vunpack.c.l.b16 %v7878
        %v9917 = vunpack.c.l.b16 %v7926
        %v9918 = vpack.c.b16 %v9915, %v9914
        %v9919 = vpack.c.b16 %v9917, %v9916
        %v9923 = vsel %vm8905, %v9284, 0
        %9925 = vmatpush.bf16.msra.mxu0 0
        %9926 = vmatpush.bf16.msra.mxu0 0
        %9927 = vmatpush.bf16.msra.mxu0 0
        %9928 = vmatpush.bf16.msra.mxu0 0
        %9929 = vmatpush.bf16.msra.mxu0 0
        %9930 = vmatpush.bf16.msra.mxu0 0
        %9931 = vmatpush.bf16.msra.mxu0 %v9919
        %9932 = vmatpush.bf16.msra.mxu0 %v9918
        %9933 = vmatmul.bf16.gmra.mxu0 %v9923
        %v9934 = vpop.f32.mrf.mxu0
        %v9935 = vadd.f32 0.0, %v9934
        %v9936 = vpop.f32.mrf.mxu0
        %9937 = vdwg.mxu0
        %v9938 = vunpack.c.l.b16 %v7785
        %v9939 = vunpack.c.l.b16 %v7833
        %v9940 = vunpack.c.l.b16 %v7881
        %v9941 = vunpack.c.l.b16 %v7929
        %v9942 = vpack.c.b16 %v9939, %v9938
        %v9943 = vpack.c.b16 %v9941, %v9940
        %v9947 = vsel %vm8905, %v9285, 0
        %9949 = vmatpush.bf16.msra.mxu0 0
        %9950 = vmatpush.bf16.msra.mxu0 0
        %9951 = vmatpush.bf16.msra.mxu0 0
        %9952 = vmatpush.bf16.msra.mxu0 0
        %9953 = vmatpush.bf16.msra.mxu0 0
        %9954 = vmatpush.bf16.msra.mxu0 0
        %9955 = vmatpush.bf16.msra.mxu0 %v9943
        %9956 = vmatpush.bf16.msra.mxu0 %v9942
        %9957 = vmatmul.bf16.gmra.mxu0 %v9947
        %v9958 = vpop.f32.mrf.mxu0
        %v9959 = vadd.f32 0.0, %v9958
        %v9960 = vpop.f32.mrf.mxu0
        %9961 = vdwg.mxu0
        %v9962 = vunpack.c.l.b16 %v7788
        %v9963 = vunpack.c.l.b16 %v7836
        %v9964 = vunpack.c.l.b16 %v7884
        %v9965 = vunpack.c.l.b16 %v7932
        %v9966 = vpack.c.b16 %v9963, %v9962
        %v9967 = vpack.c.b16 %v9965, %v9964
        %v9971 = vsel %vm8905, %v9286, 0
        %9973 = vmatpush.bf16.msra.mxu0 0
        %9974 = vmatpush.bf16.msra.mxu0 0
        %9975 = vmatpush.bf16.msra.mxu0 0
        %9976 = vmatpush.bf16.msra.mxu0 0
        %9977 = vmatpush.bf16.msra.mxu0 0
        %9978 = vmatpush.bf16.msra.mxu0 0
        %9979 = vmatpush.bf16.msra.mxu0 %v9967
        %9980 = vmatpush.bf16.msra.mxu0 %v9966
        %9981 = vmatmul.bf16.gmra.mxu0 %v9971
        %v9982 = vpop.f32.mrf.mxu0
        %v9983 = vadd.f32 0.0, %v9982
        %v9984 = vpop.f32.mrf.mxu0
        %9985 = vdwg.mxu0
        %v9986 = vunpack.c.l.b16 %v7791
        %v9987 = vunpack.c.l.b16 %v7839
        %v9988 = vunpack.c.l.b16 %v7887
        %v9989 = vunpack.c.l.b16 %v7935
        %v9990 = vpack.c.b16 %v9987, %v9986
        %v9991 = vpack.c.b16 %v9989, %v9988
        %v9995 = vsel %vm8905, %v9287, 0
        %9997 = vmatpush.bf16.msra.mxu0 0
        %9998 = vmatpush.bf16.msra.mxu0 0
        %9999 = vmatpush.bf16.msra.mxu0 0
        %10000 = vmatpush.bf16.msra.mxu0 0
        %10001 = vmatpush.bf16.msra.mxu0 0
        %10002 = vmatpush.bf16.msra.mxu0 0
        %10003 = vmatpush.bf16.msra.mxu0 %v9991
        %10004 = vmatpush.bf16.msra.mxu0 %v9990
        %10005 = vmatmul.bf16.gmra.mxu0 %v9995
        %v10006 = vpop.f32.mrf.mxu0
        %v10007 = vadd.f32 0.0, %v10006
        %v10008 = vpop.f32.mrf.mxu0
        %10009 = vdwg.mxu0
        %v10010 = vunpack.c.l.b16 %v7794
        %v10011 = vunpack.c.l.b16 %v7842
        %v10012 = vunpack.c.l.b16 %v7890
        %v10013 = vunpack.c.l.b16 %v7938
        %v10014 = vpack.c.b16 %v10011, %v10010
        %v10015 = vpack.c.b16 %v10013, %v10012
        %v10019 = vsel %vm8905, %v9288, 0
        %10021 = vmatpush.bf16.msra.mxu0 0
        %10022 = vmatpush.bf16.msra.mxu0 0
        %10023 = vmatpush.bf16.msra.mxu0 0
        %10024 = vmatpush.bf16.msra.mxu0 0
        %10025 = vmatpush.bf16.msra.mxu0 0
        %10026 = vmatpush.bf16.msra.mxu0 0
        %10027 = vmatpush.bf16.msra.mxu0 %v10015
        %10028 = vmatpush.bf16.msra.mxu0 %v10014
        %10029 = vmatmul.bf16.gmra.mxu0 %v10019
        %v10030 = vpop.f32.mrf.mxu0
        %v10031 = vadd.f32 0.0, %v10030
        %v10032 = vpop.f32.mrf.mxu0
        %10033 = vdwg.mxu0
        %v10034 = vunpack.c.l.b16 %v7797
        %v10035 = vunpack.c.l.b16 %v7845
        %v10036 = vunpack.c.l.b16 %v7893
        %v10037 = vunpack.c.l.b16 %v7941
        %v10038 = vpack.c.b16 %v10035, %v10034
        %v10039 = vpack.c.b16 %v10037, %v10036
        %v10043 = vsel %vm8905, %v9289, 0
        %10045 = vmatpush.bf16.msra.mxu0 0
        %10046 = vmatpush.bf16.msra.mxu0 0
        %10047 = vmatpush.bf16.msra.mxu0 0
        %10048 = vmatpush.bf16.msra.mxu0 0
        %10049 = vmatpush.bf16.msra.mxu0 0
        %10050 = vmatpush.bf16.msra.mxu0 0
        %10051 = vmatpush.bf16.msra.mxu0 %v10039
        %10052 = vmatpush.bf16.msra.mxu0 %v10038
        %10053 = vmatmul.bf16.gmra.mxu0 %v10043
        %v10054 = vpop.f32.mrf.mxu0
        %v10055 = vadd.f32 0.0, %v10054
        %v10056 = vpop.f32.mrf.mxu0
        %10057 = vdwg.mxu0
        %v10058 = vrot.slane %v9359, 4
        %vm10059 = vcmask 1047556
        %v10060 = vsel %vm10059, %v10058, %v9311
        %v10061 = vrot.slane %v9311, 4
        %v10062 = vsel %vm10059, %v9359, %v10061
        %v10064 = vunpack.c.l.s4 1983009808
        %v10065 = vunpack.c.0.s8 %v10064
        %v10066 = vperm.slane %v10060, %v10065
        %v10068 = vunpack.c.l.s4 1983009808
        %v10069 = vunpack.c.0.s8 %v10068
        %v10070 = vperm.slane %v10062, %v10069
        %v10071 = vrot.slane %v9383, 4
        %v10072 = vsel %vm10059, %v10071, %v9335
        %v10073 = vrot.slane %v9335, 4
        %v10074 = vsel %vm10059, %v9383, %v10073
        %v10076 = vunpack.c.l.s4 1983009808
        %v10077 = vunpack.c.0.s8 %v10076
        %v10078 = vperm.slane %v10072, %v10077
        %v10080 = vunpack.c.l.s4 1983009808
        %v10081 = vunpack.c.0.s8 %v10080
        %v10082 = vperm.slane %v10074, %v10081
        %v10083 = vrot.slane %v9455, 4
        %v10084 = vsel %vm10059, %v10083, %v9407
        %v10085 = vrot.slane %v9407, 4
        %v10086 = vsel %vm10059, %v9455, %v10085
        %v10088 = vunpack.c.l.s4 1983009808
        %v10089 = vunpack.c.0.s8 %v10088
        %v10090 = vperm.slane %v10084, %v10089
        %v10092 = vunpack.c.l.s4 1983009808
        %v10093 = vunpack.c.0.s8 %v10092
        %v10094 = vperm.slane %v10086, %v10093
        %v10095 = vrot.slane %v9479, 4
        %v10096 = vsel %vm10059, %v10095, %v9431
        %v10097 = vrot.slane %v9431, 4
        %v10098 = vsel %vm10059, %v9479, %v10097
        %v10100 = vunpack.c.l.s4 1983009808
        %v10101 = vunpack.c.0.s8 %v10100
        %v10102 = vperm.slane %v10096, %v10101
        %v10104 = vunpack.c.l.s4 1983009808
        %v10105 = vunpack.c.0.s8 %v10104
        %v10106 = vperm.slane %v10098, %v10105
        %v10107 = vrot.slane %v10078, 4
        %v10108 = vsel %vm10059, %v10107, %v10066
        %v10109 = vrot.slane %v10066, 4
        %v10110 = vsel %vm10059, %v10078, %v10109
        %v10112 = vunpack.c.l.s4 1934713408
        %v10113 = vunpack.c.0.s8 %v10112
        %v10114 = vperm.slane %v10108, %v10113
        %v10116 = vunpack.c.l.s4 1934713408
        %v10117 = vunpack.c.0.s8 %v10116
        %v10118 = vperm.slane %v10110, %v10117
        %v10119 = vrot.slane %v10082, 4
        %v10120 = vsel %vm10059, %v10119, %v10070
        %v10121 = vrot.slane %v10070, 4
        %v10122 = vsel %vm10059, %v10082, %v10121
        %v10124 = vunpack.c.l.s4 1934713408
        %v10125 = vunpack.c.0.s8 %v10124
        %v10126 = vperm.slane %v10120, %v10125
        %v10128 = vunpack.c.l.s4 1934713408
        %v10129 = vunpack.c.0.s8 %v10128
        %v10130 = vperm.slane %v10122, %v10129
        %v10131 = vrot.slane %v10102, 4
        %v10132 = vsel %vm10059, %v10131, %v10090
        %v10133 = vrot.slane %v10090, 4
        %v10134 = vsel %vm10059, %v10102, %v10133
        %v10136 = vunpack.c.l.s4 1934713408
        %v10137 = vunpack.c.0.s8 %v10136
        %v10138 = vperm.slane %v10132, %v10137
        %v10140 = vunpack.c.l.s4 1934713408
        %v10141 = vunpack.c.0.s8 %v10140
        %v10142 = vperm.slane %v10134, %v10141
        %v10143 = vrot.slane %v10106, 4
        %v10144 = vsel %vm10059, %v10143, %v10094
        %v10145 = vrot.slane %v10094, 4
        %v10146 = vsel %vm10059, %v10106, %v10145
        %v10148 = vunpack.c.l.s4 1934713408
        %v10149 = vunpack.c.0.s8 %v10148
        %v10150 = vperm.slane %v10144, %v10149
        %v10152 = vunpack.c.l.s4 1934713408
        %v10153 = vunpack.c.0.s8 %v10152
        %v10154 = vperm.slane %v10146, %v10153
        %v10155 = vrot.slane %v10138, 4
        %v10156 = vsel %vm10059, %v10155, %v10114
        %v10157 = vrot.slane %v10114, 4
        %v10158 = vsel %vm10059, %v10138, %v10157
        %v10159 = vrot.slane %v10142, 4
        %v10160 = vsel %vm10059, %v10159, %v10118
        %v10161 = vrot.slane %v10118, 4
        %v10162 = vsel %vm10059, %v10142, %v10161
        %v10163 = vrot.slane %v10150, 4
        %v10164 = vsel %vm10059, %v10163, %v10126
        %v10165 = vrot.slane %v10126, 4
        %v10166 = vsel %vm10059, %v10150, %v10165
        %v10167 = vrot.slane %v10154, 4
        %v10168 = vsel %vm10059, %v10167, %v10130
        %v10169 = vrot.slane %v10130, 4
        %v10170 = vsel %vm10059, %v10154, %v10169
        %v10171 = vrot.slane %v9551, 4
        %v10172 = vsel %vm10059, %v10171, %v9503
        %v10173 = vrot.slane %v9503, 4
        %v10174 = vsel %vm10059, %v9551, %v10173
        %v10176 = vunpack.c.l.s4 1983009808
        %v10177 = vunpack.c.0.s8 %v10176
        %v10178 = vperm.slane %v10172, %v10177
        %v10180 = vunpack.c.l.s4 1983009808
        %v10181 = vunpack.c.0.s8 %v10180
        %v10182 = vperm.slane %v10174, %v10181
        %v10183 = vrot.slane %v9575, 4
        %v10184 = vsel %vm10059, %v10183, %v9527
        %v10185 = vrot.slane %v9527, 4
        %v10186 = vsel %vm10059, %v9575, %v10185
        %v10188 = vunpack.c.l.s4 1983009808
        %v10189 = vunpack.c.0.s8 %v10188
        %v10190 = vperm.slane %v10184, %v10189
        %v10192 = vunpack.c.l.s4 1983009808
        %v10193 = vunpack.c.0.s8 %v10192
        %v10194 = vperm.slane %v10186, %v10193
        %v10195 = vrot.slane %v9647, 4
        %v10196 = vsel %vm10059, %v10195, %v9599
        %v10197 = vrot.slane %v9599, 4
        %v10198 = vsel %vm10059, %v9647, %v10197
        %v10200 = vunpack.c.l.s4 1983009808
        %v10201 = vunpack.c.0.s8 %v10200
        %v10202 = vperm.slane %v10196, %v10201
        %v10204 = vunpack.c.l.s4 1983009808
        %v10205 = vunpack.c.0.s8 %v10204
        %v10206 = vperm.slane %v10198, %v10205
        %v10207 = vrot.slane %v9671, 4
        %v10208 = vsel %vm10059, %v10207, %v9623
        %v10209 = vrot.slane %v9623, 4
        %v10210 = vsel %vm10059, %v9671, %v10209
        %v10212 = vunpack.c.l.s4 1983009808
        %v10213 = vunpack.c.0.s8 %v10212
        %v10214 = vperm.slane %v10208, %v10213
        %v10216 = vunpack.c.l.s4 1983009808
        %v10217 = vunpack.c.0.s8 %v10216
        %v10218 = vperm.slane %v10210, %v10217
        %v10219 = vrot.slane %v10190, 4
        %v10220 = vsel %vm10059, %v10219, %v10178
        %v10221 = vrot.slane %v10178, 4
        %v10222 = vsel %vm10059, %v10190, %v10221
        %v10224 = vunpack.c.l.s4 1934713408
        %v10225 = vunpack.c.0.s8 %v10224
        %v10226 = vperm.slane %v10220, %v10225
        %v10228 = vunpack.c.l.s4 1934713408
        %v10229 = vunpack.c.0.s8 %v10228
        %v10230 = vperm.slane %v10222, %v10229
        %v10231 = vrot.slane %v10194, 4
        %v10232 = vsel %vm10059, %v10231, %v10182
        %v10233 = vrot.slane %v10182, 4
        %v10234 = vsel %vm10059, %v10194, %v10233
        %v10236 = vunpack.c.l.s4 1934713408
        %v10237 = vunpack.c.0.s8 %v10236
        %v10238 = vperm.slane %v10232, %v10237
        %v10240 = vunpack.c.l.s4 1934713408
        %v10241 = vunpack.c.0.s8 %v10240
        %v10242 = vperm.slane %v10234, %v10241
        %v10243 = vrot.slane %v10214, 4
        %v10244 = vsel %vm10059, %v10243, %v10202
        %v10245 = vrot.slane %v10202, 4
        %v10246 = vsel %vm10059, %v10214, %v10245
        %v10248 = vunpack.c.l.s4 1934713408
        %v10249 = vunpack.c.0.s8 %v10248
        %v10250 = vperm.slane %v10244, %v10249
        %v10252 = vunpack.c.l.s4 1934713408
        %v10253 = vunpack.c.0.s8 %v10252
        %v10254 = vperm.slane %v10246, %v10253
        %v10255 = vrot.slane %v10218, 4
        %v10256 = vsel %vm10059, %v10255, %v10206
        %v10257 = vrot.slane %v10206, 4
        %v10258 = vsel %vm10059, %v10218, %v10257
        %v10260 = vunpack.c.l.s4 1934713408
        %v10261 = vunpack.c.0.s8 %v10260
        %v10262 = vperm.slane %v10256, %v10261
        %v10264 = vunpack.c.l.s4 1934713408
        %v10265 = vunpack.c.0.s8 %v10264
        %v10266 = vperm.slane %v10258, %v10265
        %v10267 = vrot.slane %v10250, 4
        %v10268 = vsel %vm10059, %v10267, %v10226
        %v10269 = vrot.slane %v10226, 4
        %v10270 = vsel %vm10059, %v10250, %v10269
        %v10271 = vrot.slane %v10254, 4
        %v10272 = vsel %vm10059, %v10271, %v10230
        %v10273 = vrot.slane %v10230, 4
        %v10274 = vsel %vm10059, %v10254, %v10273
        %v10275 = vrot.slane %v10262, 4
        %v10276 = vsel %vm10059, %v10275, %v10238
        %v10277 = vrot.slane %v10238, 4
        %v10278 = vsel %vm10059, %v10262, %v10277
        %v10279 = vrot.slane %v10266, 4
        %v10280 = vsel %vm10059, %v10279, %v10242
        %v10281 = vrot.slane %v10242, 4
        %v10282 = vsel %vm10059, %v10266, %v10281
        %v10283 = vrot.slane %v9743, 4
        %v10284 = vsel %vm10059, %v10283, %v9695
        %v10285 = vrot.slane %v9695, 4
        %v10286 = vsel %vm10059, %v9743, %v10285
        %v10288 = vunpack.c.l.s4 1983009808
        %v10289 = vunpack.c.0.s8 %v10288
        %v10290 = vperm.slane %v10284, %v10289
        %v10292 = vunpack.c.l.s4 1983009808
        %v10293 = vunpack.c.0.s8 %v10292
        %v10294 = vperm.slane %v10286, %v10293
        %v10295 = vrot.slane %v9767, 4
        %v10296 = vsel %vm10059, %v10295, %v9719
        %v10297 = vrot.slane %v9719, 4
        %v10298 = vsel %vm10059, %v9767, %v10297
        %v10300 = vunpack.c.l.s4 1983009808
        %v10301 = vunpack.c.0.s8 %v10300
        %v10302 = vperm.slane %v10296, %v10301
        %v10304 = vunpack.c.l.s4 1983009808
        %v10305 = vunpack.c.0.s8 %v10304
        %v10306 = vperm.slane %v10298, %v10305
        %v10307 = vrot.slane %v9839, 4
        %v10308 = vsel %vm10059, %v10307, %v9791
        %v10309 = vrot.slane %v9791, 4
        %v10310 = vsel %vm10059, %v9839, %v10309
        %v10312 = vunpack.c.l.s4 1983009808
        %v10313 = vunpack.c.0.s8 %v10312
        %v10314 = vperm.slane %v10308, %v10313
        %v10316 = vunpack.c.l.s4 1983009808
        %v10317 = vunpack.c.0.s8 %v10316
        %v10318 = vperm.slane %v10310, %v10317
        %v10319 = vrot.slane %v9863, 4
        %v10320 = vsel %vm10059, %v10319, %v9815
        %v10321 = vrot.slane %v9815, 4
        %v10322 = vsel %vm10059, %v9863, %v10321
        %v10324 = vunpack.c.l.s4 1983009808
        %v10325 = vunpack.c.0.s8 %v10324
        %v10326 = vperm.slane %v10320, %v10325
        %v10328 = vunpack.c.l.s4 1983009808
        %v10329 = vunpack.c.0.s8 %v10328
        %v10330 = vperm.slane %v10322, %v10329
        %v10331 = vrot.slane %v10302, 4
        %v10332 = vsel %vm10059, %v10331, %v10290
        %v10333 = vrot.slane %v10290, 4
        %v10334 = vsel %vm10059, %v10302, %v10333
        %v10336 = vunpack.c.l.s4 1934713408
        %v10337 = vunpack.c.0.s8 %v10336
        %v10338 = vperm.slane %v10332, %v10337
        %v10340 = vunpack.c.l.s4 1934713408
        %v10341 = vunpack.c.0.s8 %v10340
        %v10342 = vperm.slane %v10334, %v10341
        %v10343 = vrot.slane %v10306, 4
        %v10344 = vsel %vm10059, %v10343, %v10294
        %v10345 = vrot.slane %v10294, 4
        %v10346 = vsel %vm10059, %v10306, %v10345
        %v10348 = vunpack.c.l.s4 1934713408
        %v10349 = vunpack.c.0.s8 %v10348
        %v10350 = vperm.slane %v10344, %v10349
        %v10352 = vunpack.c.l.s4 1934713408
        %v10353 = vunpack.c.0.s8 %v10352
        %v10354 = vperm.slane %v10346, %v10353
        %v10355 = vrot.slane %v10326, 4
        %v10356 = vsel %vm10059, %v10355, %v10314
        %v10357 = vrot.slane %v10314, 4
        %v10358 = vsel %vm10059, %v10326, %v10357
        %v10360 = vunpack.c.l.s4 1934713408
        %v10361 = vunpack.c.0.s8 %v10360
        %v10362 = vperm.slane %v10356, %v10361
        %v10364 = vunpack.c.l.s4 1934713408
        %v10365 = vunpack.c.0.s8 %v10364
        %v10366 = vperm.slane %v10358, %v10365
        %v10367 = vrot.slane %v10330, 4
        %v10368 = vsel %vm10059, %v10367, %v10318
        %v10369 = vrot.slane %v10318, 4
        %v10370 = vsel %vm10059, %v10330, %v10369
        %v10372 = vunpack.c.l.s4 1934713408
        %v10373 = vunpack.c.0.s8 %v10372
        %v10374 = vperm.slane %v10368, %v10373
        %v10376 = vunpack.c.l.s4 1934713408
        %v10377 = vunpack.c.0.s8 %v10376
        %v10378 = vperm.slane %v10370, %v10377
        %v10379 = vrot.slane %v10362, 4
        %v10380 = vsel %vm10059, %v10379, %v10338
        %v10381 = vrot.slane %v10338, 4
        %v10382 = vsel %vm10059, %v10362, %v10381
        %v10383 = vrot.slane %v10366, 4
        %v10384 = vsel %vm10059, %v10383, %v10342
        %v10385 = vrot.slane %v10342, 4
        %v10386 = vsel %vm10059, %v10366, %v10385
        %v10387 = vrot.slane %v10374, 4
        %v10388 = vsel %vm10059, %v10387, %v10350
        %v10389 = vrot.slane %v10350, 4
        %v10390 = vsel %vm10059, %v10374, %v10389
        %v10391 = vrot.slane %v10378, 4
        %v10392 = vsel %vm10059, %v10391, %v10354
        %v10393 = vrot.slane %v10354, 4
        %v10394 = vsel %vm10059, %v10378, %v10393
        %v10395 = vrot.slane %v9935, 4
        %v10396 = vsel %vm10059, %v10395, %v9887
        %v10397 = vrot.slane %v9887, 4
        %v10398 = vsel %vm10059, %v9935, %v10397
        %v10400 = vunpack.c.l.s4 1983009808
        %v10401 = vunpack.c.0.s8 %v10400
        %v10402 = vperm.slane %v10396, %v10401
        %v10404 = vunpack.c.l.s4 1983009808
        %v10405 = vunpack.c.0.s8 %v10404
        %v10406 = vperm.slane %v10398, %v10405
        %v10407 = vrot.slane %v9959, 4
        %v10408 = vsel %vm10059, %v10407, %v9911
        %v10409 = vrot.slane %v9911, 4
        %v10410 = vsel %vm10059, %v9959, %v10409
        %v10412 = vunpack.c.l.s4 1983009808
        %v10413 = vunpack.c.0.s8 %v10412
        %v10414 = vperm.slane %v10408, %v10413
        %v10416 = vunpack.c.l.s4 1983009808
        %v10417 = vunpack.c.0.s8 %v10416
        %v10418 = vperm.slane %v10410, %v10417
        %v10419 = vrot.slane %v10031, 4
        %v10420 = vsel %vm10059, %v10419, %v9983
        %v10421 = vrot.slane %v9983, 4
        %v10422 = vsel %vm10059, %v10031, %v10421
        %v10424 = vunpack.c.l.s4 1983009808
        %v10425 = vunpack.c.0.s8 %v10424
        %v10426 = vperm.slane %v10420, %v10425
        %v10428 = vunpack.c.l.s4 1983009808
        %v10429 = vunpack.c.0.s8 %v10428
        %v10430 = vperm.slane %v10422, %v10429
        %v10431 = vrot.slane %v10055, 4
        %v10432 = vsel %vm10059, %v10431, %v10007
        %v10433 = vrot.slane %v10007, 4
        %v10434 = vsel %vm10059, %v10055, %v10433
        %v10436 = vunpack.c.l.s4 1983009808
        %v10437 = vunpack.c.0.s8 %v10436
        %v10438 = vperm.slane %v10432, %v10437
        %v10440 = vunpack.c.l.s4 1983009808
        %v10441 = vunpack.c.0.s8 %v10440
        %v10442 = vperm.slane %v10434, %v10441
        %v10443 = vrot.slane %v10414, 4
        %v10444 = vsel %vm10059, %v10443, %v10402
        %v10445 = vrot.slane %v10402, 4
        %v10446 = vsel %vm10059, %v10414, %v10445
        %v10448 = vunpack.c.l.s4 1934713408
        %v10449 = vunpack.c.0.s8 %v10448
        %v10450 = vperm.slane %v10444, %v10449
        %v10452 = vunpack.c.l.s4 1934713408
        %v10453 = vunpack.c.0.s8 %v10452
        %v10454 = vperm.slane %v10446, %v10453
        %v10455 = vrot.slane %v10418, 4
        %v10456 = vsel %vm10059, %v10455, %v10406
        %v10457 = vrot.slane %v10406, 4
        %v10458 = vsel %vm10059, %v10418, %v10457
        %v10460 = vunpack.c.l.s4 1934713408
        %v10461 = vunpack.c.0.s8 %v10460
        %v10462 = vperm.slane %v10456, %v10461
        %v10464 = vunpack.c.l.s4 1934713408
        %v10465 = vunpack.c.0.s8 %v10464
        %v10466 = vperm.slane %v10458, %v10465
        %v10467 = vrot.slane %v10438, 4
        %v10468 = vsel %vm10059, %v10467, %v10426
        %v10469 = vrot.slane %v10426, 4
        %v10470 = vsel %vm10059, %v10438, %v10469
        %v10472 = vunpack.c.l.s4 1934713408
        %v10473 = vunpack.c.0.s8 %v10472
        %v10474 = vperm.slane %v10468, %v10473
        %v10476 = vunpack.c.l.s4 1934713408
        %v10477 = vunpack.c.0.s8 %v10476
        %v10478 = vperm.slane %v10470, %v10477
        %v10479 = vrot.slane %v10442, 4
        %v10480 = vsel %vm10059, %v10479, %v10430
        %v10481 = vrot.slane %v10430, 4
        %v10482 = vsel %vm10059, %v10442, %v10481
        %v10484 = vunpack.c.l.s4 1934713408
        %v10485 = vunpack.c.0.s8 %v10484
        %v10486 = vperm.slane %v10480, %v10485
        %v10488 = vunpack.c.l.s4 1934713408
        %v10489 = vunpack.c.0.s8 %v10488
        %v10490 = vperm.slane %v10482, %v10489
        %v10491 = vrot.slane %v10474, 4
        %v10492 = vsel %vm10059, %v10491, %v10450
        %v10493 = vrot.slane %v10450, 4
        %v10494 = vsel %vm10059, %v10474, %v10493
        %v10495 = vrot.slane %v10478, 4
        %v10496 = vsel %vm10059, %v10495, %v10454
        %v10497 = vrot.slane %v10454, 4
        %v10498 = vsel %vm10059, %v10478, %v10497
        %v10499 = vrot.slane %v10486, 4
        %v10500 = vsel %vm10059, %v10499, %v10462
        %v10501 = vrot.slane %v10462, 4
        %v10502 = vsel %vm10059, %v10486, %v10501
        %v10503 = vrot.slane %v10490, 4
        %v10504 = vsel %vm10059, %v10503, %v10466
        %v10505 = vrot.slane %v10466, 4
        %v10506 = vsel %vm10059, %v10490, %v10505
        %v10507 = vrot.slane %v10160, 4
        %v10508 = vsel %vm10059, %v10507, %v10156
        %v10509 = vrot.slane %v10156, 4
        %v10510 = vsel %vm10059, %v10160, %v10509
        %v10512 = vunpack.c.l.s4 1983009808
        %v10513 = vunpack.c.0.s8 %v10512
        %v10514 = vperm.slane %v10508, %v10513
        %v10516 = vunpack.c.l.s4 1983009808
        %v10517 = vunpack.c.0.s8 %v10516
        %v10518 = vperm.slane %v10510, %v10517
        %v10519 = vrot.slane %v10162, 4
        %v10520 = vsel %vm10059, %v10519, %v10158
        %v10521 = vrot.slane %v10158, 4
        %v10522 = vsel %vm10059, %v10162, %v10521
        %v10524 = vunpack.c.l.s4 1983009808
        %v10525 = vunpack.c.0.s8 %v10524
        %v10526 = vperm.slane %v10520, %v10525
        %v10528 = vunpack.c.l.s4 1983009808
        %v10529 = vunpack.c.0.s8 %v10528
        %v10530 = vperm.slane %v10522, %v10529
        %v10531 = vrot.slane %v10168, 4
        %v10532 = vsel %vm10059, %v10531, %v10164
        %v10533 = vrot.slane %v10164, 4
        %v10534 = vsel %vm10059, %v10168, %v10533
        %v10536 = vunpack.c.l.s4 1983009808
        %v10537 = vunpack.c.0.s8 %v10536
        %v10538 = vperm.slane %v10532, %v10537
        %v10540 = vunpack.c.l.s4 1983009808
        %v10541 = vunpack.c.0.s8 %v10540
        %v10542 = vperm.slane %v10534, %v10541
        %v10543 = vrot.slane %v10170, 4
        %v10544 = vsel %vm10059, %v10543, %v10166
        %v10545 = vrot.slane %v10166, 4
        %v10546 = vsel %vm10059, %v10170, %v10545
        %v10548 = vunpack.c.l.s4 1983009808
        %v10549 = vunpack.c.0.s8 %v10548
        %v10550 = vperm.slane %v10544, %v10549
        %v10552 = vunpack.c.l.s4 1983009808
        %v10553 = vunpack.c.0.s8 %v10552
        %v10554 = vperm.slane %v10546, %v10553
        %v10555 = vrot.slane %v10526, 4
        %v10556 = vsel %vm10059, %v10555, %v10514
        %v10557 = vrot.slane %v10514, 4
        %v10558 = vsel %vm10059, %v10526, %v10557
        %v10560 = vunpack.c.l.s4 1934713408
        %v10561 = vunpack.c.0.s8 %v10560
        %v10562 = vperm.slane %v10556, %v10561
        %v10564 = vunpack.c.l.s4 1934713408
        %v10565 = vunpack.c.0.s8 %v10564
        %v10566 = vperm.slane %v10558, %v10565
        %v10567 = vrot.slane %v10530, 4
        %v10568 = vsel %vm10059, %v10567, %v10518
        %v10569 = vrot.slane %v10518, 4
        %v10570 = vsel %vm10059, %v10530, %v10569
        %v10572 = vunpack.c.l.s4 1934713408
        %v10573 = vunpack.c.0.s8 %v10572
        %v10574 = vperm.slane %v10568, %v10573
        %v10576 = vunpack.c.l.s4 1934713408
        %v10577 = vunpack.c.0.s8 %v10576
        %v10578 = vperm.slane %v10570, %v10577
        %v10579 = vrot.slane %v10550, 4
        %v10580 = vsel %vm10059, %v10579, %v10538
        %v10581 = vrot.slane %v10538, 4
        %v10582 = vsel %vm10059, %v10550, %v10581
        %v10584 = vunpack.c.l.s4 1934713408
        %v10585 = vunpack.c.0.s8 %v10584
        %v10586 = vperm.slane %v10580, %v10585
        %v10588 = vunpack.c.l.s4 1934713408
        %v10589 = vunpack.c.0.s8 %v10588
        %v10590 = vperm.slane %v10582, %v10589
        %v10591 = vrot.slane %v10554, 4
        %v10592 = vsel %vm10059, %v10591, %v10542
        %v10593 = vrot.slane %v10542, 4
        %v10594 = vsel %vm10059, %v10554, %v10593
        %v10596 = vunpack.c.l.s4 1934713408
        %v10597 = vunpack.c.0.s8 %v10596
        %v10598 = vperm.slane %v10592, %v10597
        %v10600 = vunpack.c.l.s4 1934713408
        %v10601 = vunpack.c.0.s8 %v10600
        %v10602 = vperm.slane %v10594, %v10601
        %v10603 = vrot.slane %v10586, 4
        %v10604 = vsel %vm10059, %v10603, %v10562
        %v10605 = vrot.slane %v10562, 4
        %v10606 = vsel %vm10059, %v10586, %v10605
        %v10607 = vrot.slane %v10590, 4
        %v10608 = vsel %vm10059, %v10607, %v10566
        %v10609 = vrot.slane %v10566, 4
        %v10610 = vsel %vm10059, %v10590, %v10609
        %v10611 = vrot.slane %v10598, 4
        %v10612 = vsel %vm10059, %v10611, %v10574
        %v10613 = vrot.slane %v10574, 4
        %v10614 = vsel %vm10059, %v10598, %v10613
        %v10615 = vrot.slane %v10602, 4
        %v10616 = vsel %vm10059, %v10615, %v10578
        %v10617 = vrot.slane %v10578, 4
        %v10618 = vsel %vm10059, %v10602, %v10617
        %v10619 = vrot.slane %v10384, 4
        %v10620 = vsel %vm10059, %v10619, %v10380
        %v10621 = vrot.slane %v10380, 4
        %v10622 = vsel %vm10059, %v10384, %v10621
        %v10624 = vunpack.c.l.s4 1983009808
        %v10625 = vunpack.c.0.s8 %v10624
        %v10626 = vperm.slane %v10620, %v10625
        %v10628 = vunpack.c.l.s4 1983009808
        %v10629 = vunpack.c.0.s8 %v10628
        %v10630 = vperm.slane %v10622, %v10629
        %v10631 = vrot.slane %v10386, 4
        %v10632 = vsel %vm10059, %v10631, %v10382
        %v10633 = vrot.slane %v10382, 4
        %v10634 = vsel %vm10059, %v10386, %v10633
        %v10636 = vunpack.c.l.s4 1983009808
        %v10637 = vunpack.c.0.s8 %v10636
        %v10638 = vperm.slane %v10632, %v10637
        %v10640 = vunpack.c.l.s4 1983009808
        %v10641 = vunpack.c.0.s8 %v10640
        %v10642 = vperm.slane %v10634, %v10641
        %v10643 = vrot.slane %v10392, 4
        %v10644 = vsel %vm10059, %v10643, %v10388
        %v10645 = vrot.slane %v10388, 4
        %v10646 = vsel %vm10059, %v10392, %v10645
        %v10648 = vunpack.c.l.s4 1983009808
        %v10649 = vunpack.c.0.s8 %v10648
        %v10650 = vperm.slane %v10644, %v10649
        %v10652 = vunpack.c.l.s4 1983009808
        %v10653 = vunpack.c.0.s8 %v10652
        %v10654 = vperm.slane %v10646, %v10653
        %v10655 = vrot.slane %v10394, 4
        %v10656 = vsel %vm10059, %v10655, %v10390
        %v10657 = vrot.slane %v10390, 4
        %v10658 = vsel %vm10059, %v10394, %v10657
        %v10660 = vunpack.c.l.s4 1983009808
        %v10661 = vunpack.c.0.s8 %v10660
        %v10662 = vperm.slane %v10656, %v10661
        %v10664 = vunpack.c.l.s4 1983009808
        %v10665 = vunpack.c.0.s8 %v10664
        %v10666 = vperm.slane %v10658, %v10665
        %v10667 = vrot.slane %v10638, 4
        %v10668 = vsel %vm10059, %v10667, %v10626
        %v10669 = vrot.slane %v10626, 4
        %v10670 = vsel %vm10059, %v10638, %v10669
        %v10672 = vunpack.c.l.s4 1934713408
        %v10673 = vunpack.c.0.s8 %v10672
        %v10674 = vperm.slane %v10668, %v10673
        %v10676 = vunpack.c.l.s4 1934713408
        %v10677 = vunpack.c.0.s8 %v10676
        %v10678 = vperm.slane %v10670, %v10677
        %v10679 = vrot.slane %v10642, 4
        %v10680 = vsel %vm10059, %v10679, %v10630
        %v10681 = vrot.slane %v10630, 4
        %v10682 = vsel %vm10059, %v10642, %v10681
        %v10684 = vunpack.c.l.s4 1934713408
        %v10685 = vunpack.c.0.s8 %v10684
        %v10686 = vperm.slane %v10680, %v10685
        %v10688 = vunpack.c.l.s4 1934713408
        %v10689 = vunpack.c.0.s8 %v10688
        %v10690 = vperm.slane %v10682, %v10689
        %v10691 = vrot.slane %v10662, 4
        %v10692 = vsel %vm10059, %v10691, %v10650
        %v10693 = vrot.slane %v10650, 4
        %v10694 = vsel %vm10059, %v10662, %v10693
        %v10696 = vunpack.c.l.s4 1934713408
        %v10697 = vunpack.c.0.s8 %v10696
        %v10698 = vperm.slane %v10692, %v10697
        %v10700 = vunpack.c.l.s4 1934713408
        %v10701 = vunpack.c.0.s8 %v10700
        %v10702 = vperm.slane %v10694, %v10701
        %v10703 = vrot.slane %v10666, 4
        %v10704 = vsel %vm10059, %v10703, %v10654
        %v10705 = vrot.slane %v10654, 4
        %v10706 = vsel %vm10059, %v10666, %v10705
        %v10708 = vunpack.c.l.s4 1934713408
        %v10709 = vunpack.c.0.s8 %v10708
        %v10710 = vperm.slane %v10704, %v10709
        %v10712 = vunpack.c.l.s4 1934713408
        %v10713 = vunpack.c.0.s8 %v10712
        %v10714 = vperm.slane %v10706, %v10713
        %v10715 = vrot.slane %v10698, 4
        %v10716 = vsel %vm10059, %v10715, %v10674
        %v10717 = vrot.slane %v10674, 4
        %v10718 = vsel %vm10059, %v10698, %v10717
        %v10719 = vrot.slane %v10702, 4
        %v10720 = vsel %vm10059, %v10719, %v10678
        %v10721 = vrot.slane %v10678, 4
        %v10722 = vsel %vm10059, %v10702, %v10721
        %v10723 = vrot.slane %v10710, 4
        %v10724 = vsel %vm10059, %v10723, %v10686
        %v10725 = vrot.slane %v10686, 4
        %v10726 = vsel %vm10059, %v10710, %v10725
        %v10727 = vrot.slane %v10714, 4
        %v10728 = vsel %vm10059, %v10727, %v10690
        %v10729 = vrot.slane %v10690, 4
        %v10730 = vsel %vm10059, %v10714, %v10729
        %v10731 = vrot.slane %v10272, 4
        %v10732 = vsel %vm10059, %v10731, %v10268
        %v10733 = vrot.slane %v10268, 4
        %v10734 = vsel %vm10059, %v10272, %v10733
        %v10736 = vunpack.c.l.s4 1983009808
        %v10737 = vunpack.c.0.s8 %v10736
        %v10738 = vperm.slane %v10732, %v10737
        %v10740 = vunpack.c.l.s4 1983009808
        %v10741 = vunpack.c.0.s8 %v10740
        %v10742 = vperm.slane %v10734, %v10741
        %v10743 = vrot.slane %v10274, 4
        %v10744 = vsel %vm10059, %v10743, %v10270
        %v10745 = vrot.slane %v10270, 4
        %v10746 = vsel %vm10059, %v10274, %v10745
        %v10748 = vunpack.c.l.s4 1983009808
        %v10749 = vunpack.c.0.s8 %v10748
        %v10750 = vperm.slane %v10744, %v10749
        %v10752 = vunpack.c.l.s4 1983009808
        %v10753 = vunpack.c.0.s8 %v10752
        %v10754 = vperm.slane %v10746, %v10753
        %v10755 = vrot.slane %v10280, 4
        %v10756 = vsel %vm10059, %v10755, %v10276
        %v10757 = vrot.slane %v10276, 4
        %v10758 = vsel %vm10059, %v10280, %v10757
        %v10760 = vunpack.c.l.s4 1983009808
        %v10761 = vunpack.c.0.s8 %v10760
        %v10762 = vperm.slane %v10756, %v10761
        %v10764 = vunpack.c.l.s4 1983009808
        %v10765 = vunpack.c.0.s8 %v10764
        %v10766 = vperm.slane %v10758, %v10765
        %v10767 = vrot.slane %v10282, 4
        %v10768 = vsel %vm10059, %v10767, %v10278
        %v10769 = vrot.slane %v10278, 4
        %v10770 = vsel %vm10059, %v10282, %v10769
        %v10772 = vunpack.c.l.s4 1983009808
        %v10773 = vunpack.c.0.s8 %v10772
        %v10774 = vperm.slane %v10768, %v10773
        %v10776 = vunpack.c.l.s4 1983009808
        %v10777 = vunpack.c.0.s8 %v10776
        %v10778 = vperm.slane %v10770, %v10777
        %v10779 = vrot.slane %v10750, 4
        %v10780 = vsel %vm10059, %v10779, %v10738
        %v10781 = vrot.slane %v10738, 4
        %v10782 = vsel %vm10059, %v10750, %v10781
        %v10784 = vunpack.c.l.s4 1934713408
        %v10785 = vunpack.c.0.s8 %v10784
        %v10786 = vperm.slane %v10780, %v10785
        %v10788 = vunpack.c.l.s4 1934713408
        %v10789 = vunpack.c.0.s8 %v10788
        %v10790 = vperm.slane %v10782, %v10789
        %v10791 = vrot.slane %v10754, 4
        %v10792 = vsel %vm10059, %v10791, %v10742
        %v10793 = vrot.slane %v10742, 4
        %v10794 = vsel %vm10059, %v10754, %v10793
        %v10796 = vunpack.c.l.s4 1934713408
        %v10797 = vunpack.c.0.s8 %v10796
        %v10798 = vperm.slane %v10792, %v10797
        %v10800 = vunpack.c.l.s4 1934713408
        %v10801 = vunpack.c.0.s8 %v10800
        %v10802 = vperm.slane %v10794, %v10801
        %v10803 = vrot.slane %v10774, 4
        %v10804 = vsel %vm10059, %v10803, %v10762
        %v10805 = vrot.slane %v10762, 4
        %v10806 = vsel %vm10059, %v10774, %v10805
        %v10808 = vunpack.c.l.s4 1934713408
        %v10809 = vunpack.c.0.s8 %v10808
        %v10810 = vperm.slane %v10804, %v10809
        %v10812 = vunpack.c.l.s4 1934713408
        %v10813 = vunpack.c.0.s8 %v10812
        %v10814 = vperm.slane %v10806, %v10813
        %v10815 = vrot.slane %v10778, 4
        %v10816 = vsel %vm10059, %v10815, %v10766
        %v10817 = vrot.slane %v10766, 4
        %v10818 = vsel %vm10059, %v10778, %v10817
        %v10820 = vunpack.c.l.s4 1934713408
        %v10821 = vunpack.c.0.s8 %v10820
        %v10822 = vperm.slane %v10816, %v10821
        %v10824 = vunpack.c.l.s4 1934713408
        %v10825 = vunpack.c.0.s8 %v10824
        %v10826 = vperm.slane %v10818, %v10825
        %v10827 = vrot.slane %v10810, 4
        %v10828 = vsel %vm10059, %v10827, %v10786
        %v10829 = vrot.slane %v10786, 4
        %v10830 = vsel %vm10059, %v10810, %v10829
        %v10831 = vrot.slane %v10814, 4
        %v10832 = vsel %vm10059, %v10831, %v10790
        %v10833 = vrot.slane %v10790, 4
        %v10834 = vsel %vm10059, %v10814, %v10833
        %v10835 = vrot.slane %v10822, 4
        %v10836 = vsel %vm10059, %v10835, %v10798
        %v10837 = vrot.slane %v10798, 4
        %v10838 = vsel %vm10059, %v10822, %v10837
        %v10839 = vrot.slane %v10826, 4
        %v10840 = vsel %vm10059, %v10839, %v10802
        %v10841 = vrot.slane %v10802, 4
        %v10842 = vsel %vm10059, %v10826, %v10841
        %v10843 = vrot.slane %v10496, 4
        %v10844 = vsel %vm10059, %v10843, %v10492
        %v10845 = vrot.slane %v10492, 4
        %v10846 = vsel %vm10059, %v10496, %v10845
        %v10848 = vunpack.c.l.s4 1983009808
        %v10849 = vunpack.c.0.s8 %v10848
        %v10850 = vperm.slane %v10844, %v10849
        %v10852 = vunpack.c.l.s4 1983009808
        %v10853 = vunpack.c.0.s8 %v10852
        %v10854 = vperm.slane %v10846, %v10853
        %v10855 = vrot.slane %v10498, 4
        %v10856 = vsel %vm10059, %v10855, %v10494
        %v10857 = vrot.slane %v10494, 4
        %v10858 = vsel %vm10059, %v10498, %v10857
        %v10860 = vunpack.c.l.s4 1983009808
        %v10861 = vunpack.c.0.s8 %v10860
        %v10862 = vperm.slane %v10856, %v10861
        %v10864 = vunpack.c.l.s4 1983009808
        %v10865 = vunpack.c.0.s8 %v10864
        %v10866 = vperm.slane %v10858, %v10865
        %v10867 = vrot.slane %v10504, 4
        %v10868 = vsel %vm10059, %v10867, %v10500
        %v10869 = vrot.slane %v10500, 4
        %v10870 = vsel %vm10059, %v10504, %v10869
        %v10872 = vunpack.c.l.s4 1983009808
        %v10873 = vunpack.c.0.s8 %v10872
        %v10874 = vperm.slane %v10868, %v10873
        %v10876 = vunpack.c.l.s4 1983009808
        %v10877 = vunpack.c.0.s8 %v10876
        %v10878 = vperm.slane %v10870, %v10877
        %v10879 = vrot.slane %v10506, 4
        %v10880 = vsel %vm10059, %v10879, %v10502
        %v10881 = vrot.slane %v10502, 4
        %v10882 = vsel %vm10059, %v10506, %v10881
        %v10884 = vunpack.c.l.s4 1983009808
        %v10885 = vunpack.c.0.s8 %v10884
        %v10886 = vperm.slane %v10880, %v10885
        %v10888 = vunpack.c.l.s4 1983009808
        %v10889 = vunpack.c.0.s8 %v10888
        %v10890 = vperm.slane %v10882, %v10889
        %v10891 = vrot.slane %v10862, 4
        %v10892 = vsel %vm10059, %v10891, %v10850
        %v10893 = vrot.slane %v10850, 4
        %v10894 = vsel %vm10059, %v10862, %v10893
        %v10896 = vunpack.c.l.s4 1934713408
        %v10897 = vunpack.c.0.s8 %v10896
        %v10898 = vperm.slane %v10892, %v10897
        %v10900 = vunpack.c.l.s4 1934713408
        %v10901 = vunpack.c.0.s8 %v10900
        %v10902 = vperm.slane %v10894, %v10901
        %v10903 = vrot.slane %v10866, 4
        %v10904 = vsel %vm10059, %v10903, %v10854
        %v10905 = vrot.slane %v10854, 4
        %v10906 = vsel %vm10059, %v10866, %v10905
        %v10908 = vunpack.c.l.s4 1934713408
        %v10909 = vunpack.c.0.s8 %v10908
        %v10910 = vperm.slane %v10904, %v10909
        %v10912 = vunpack.c.l.s4 1934713408
        %v10913 = vunpack.c.0.s8 %v10912
        %v10914 = vperm.slane %v10906, %v10913
        %v10915 = vrot.slane %v10886, 4
        %v10916 = vsel %vm10059, %v10915, %v10874
        %v10917 = vrot.slane %v10874, 4
        %v10918 = vsel %vm10059, %v10886, %v10917
        %v10920 = vunpack.c.l.s4 1934713408
        %v10921 = vunpack.c.0.s8 %v10920
        %v10922 = vperm.slane %v10916, %v10921
        %v10924 = vunpack.c.l.s4 1934713408
        %v10925 = vunpack.c.0.s8 %v10924
        %v10926 = vperm.slane %v10918, %v10925
        %v10927 = vrot.slane %v10890, 4
        %v10928 = vsel %vm10059, %v10927, %v10878
        %v10929 = vrot.slane %v10878, 4
        %v10930 = vsel %vm10059, %v10890, %v10929
        %v10932 = vunpack.c.l.s4 1934713408
        %v10933 = vunpack.c.0.s8 %v10932
        %v10934 = vperm.slane %v10928, %v10933
        %v10936 = vunpack.c.l.s4 1934713408
        %v10937 = vunpack.c.0.s8 %v10936
        %v10938 = vperm.slane %v10930, %v10937
        %v10939 = vrot.slane %v10922, 4
        %v10940 = vsel %vm10059, %v10939, %v10898
        %v10941 = vrot.slane %v10898, 4
        %v10942 = vsel %vm10059, %v10922, %v10941
        %v10943 = vrot.slane %v10926, 4
        %v10944 = vsel %vm10059, %v10943, %v10902
        %v10945 = vrot.slane %v10902, 4
        %v10946 = vsel %vm10059, %v10926, %v10945
        %v10947 = vrot.slane %v10934, 4
        %v10948 = vsel %vm10059, %v10947, %v10910
        %v10949 = vrot.slane %v10910, 4
        %v10950 = vsel %vm10059, %v10934, %v10949
        %v10951 = vrot.slane %v10938, 4
        %v10952 = vsel %vm10059, %v10951, %v10914
        %v10953 = vrot.slane %v10914, 4
        %v10954 = vsel %vm10059, %v10938, %v10953
        %10957 = vrot.lane.b32.xlu0 %v10606, 8
        %v10958 = vpop.permute.xlu0 %10957
        %10959 = vrot.lane.b32.xlu0 %v10718, 8
        %v10960 = vpop.permute.xlu0 %10959
        %10965 = vrot.lane.b32.xlu0 %v10608, 16
        %v10966 = vpop.permute.xlu0 %10965
        %10967 = vrot.lane.b32.xlu0 %v10720, 16
        %v10968 = vpop.permute.xlu0 %10967
        %10973 = vrot.lane.b32.xlu0 %v10610, 24
        %v10974 = vpop.permute.xlu0 %10973
        %10975 = vrot.lane.b32.xlu0 %v10722, 24
        %v10976 = vpop.permute.xlu0 %10975
        %10981 = vrot.lane.b32.xlu0 %v10612, 32
        %v10982 = vpop.permute.xlu0 %10981
        %10983 = vrot.lane.b32.xlu0 %v10724, 32
        %v10984 = vpop.permute.xlu0 %10983
        %10989 = vrot.lane.b32.xlu0 %v10614, 40
        %v10990 = vpop.permute.xlu0 %10989
        %10991 = vrot.lane.b32.xlu0 %v10726, 40
        %v10992 = vpop.permute.xlu0 %10991
        %10997 = vrot.lane.b32.xlu0 %v10616, 48
        %v10998 = vpop.permute.xlu0 %10997
        %10999 = vrot.lane.b32.xlu0 %v10728, 48
        %v11000 = vpop.permute.xlu0 %10999
        %11005 = vrot.lane.b32.xlu0 %v10618, 56
        %v11006 = vpop.permute.xlu0 %11005
        %11007 = vrot.lane.b32.xlu0 %v10730, 56
        %v11008 = vpop.permute.xlu0 %11007
        %11013 = vrot.lane.b32.xlu0 %v10828, 64
        %v11014 = vpop.permute.xlu0 %11013
        %11015 = vrot.lane.b32.xlu0 %v10940, 64
        %v11016 = vpop.permute.xlu0 %11015
        %11021 = vrot.lane.b32.xlu0 %v10830, 72
        %v11022 = vpop.permute.xlu0 %11021
        %11023 = vrot.lane.b32.xlu0 %v10942, 72
        %v11024 = vpop.permute.xlu0 %11023
        %11029 = vrot.lane.b32.xlu0 %v10832, 80
        %v11030 = vpop.permute.xlu0 %11029
        %11031 = vrot.lane.b32.xlu0 %v10944, 80
        %v11032 = vpop.permute.xlu0 %11031
        %11037 = vrot.lane.b32.xlu0 %v10834, 88
        %v11038 = vpop.permute.xlu0 %11037
        %11039 = vrot.lane.b32.xlu0 %v10946, 88
        %v11040 = vpop.permute.xlu0 %11039
        %11045 = vrot.lane.b32.xlu0 %v10836, 96
        %v11046 = vpop.permute.xlu0 %11045
        %11047 = vrot.lane.b32.xlu0 %v10948, 96
        %v11048 = vpop.permute.xlu0 %11047
        %11053 = vrot.lane.b32.xlu0 %v10838, 104
        %v11054 = vpop.permute.xlu0 %11053
        %11055 = vrot.lane.b32.xlu0 %v10950, 104
        %v11056 = vpop.permute.xlu0 %11055
        %11061 = vrot.lane.b32.xlu0 %v10840, 112
        %v11062 = vpop.permute.xlu0 %11061
        %11063 = vrot.lane.b32.xlu0 %v10952, 112
        %v11064 = vpop.permute.xlu0 %11063
        %11069 = vrot.lane.b32.xlu0 %v10842, 120
        %v11070 = vpop.permute.xlu0 %11069
        %11071 = vrot.lane.b32.xlu0 %v10954, 120
        %v11072 = vpop.permute.xlu0 %11071
        %v11075 = vsel %vm7948, %v10604, %v10958
        %v11076 = vsel %vm7948, %v10716, %v10960
        %vm11077 = vcmask 130048
        %v11078 = vsel %vm11077, %v11075, %v10966
        %v11079 = vsel %vm11077, %v11076, %v10968
        %vm11080 = vcmask 195584
        %v11081 = vsel %vm11080, %v11078, %v10974
        %v11082 = vsel %vm11080, %v11079, %v10976
        %v11083 = vsel %vm8905, %v11081, %v10982
        %v11084 = vsel %vm8905, %v11082, %v10984
        %vm11085 = vcmask 326656
        %v11086 = vsel %vm11085, %v11083, %v10990
        %v11087 = vsel %vm11085, %v11084, %v10992
        %vm11088 = vcmask 392192
        %v11089 = vsel %vm11088, %v11086, %v10998
        %v11090 = vsel %vm11088, %v11087, %v11000
        %vm11091 = vcmask 457728
        %v11092 = vsel %vm11091, %v11089, %v11006
        %v11093 = vsel %vm11091, %v11090, %v11008
        %v11094 = vsel %vm620, %v11092, %v11014
        %v11095 = vsel %vm620, %v11093, %v11016
        %vm11096 = vcmask 588800
        %v11097 = vsel %vm11096, %v11094, %v11022
        %v11098 = vsel %vm11096, %v11095, %v11024
        %vm11099 = vcmask 654336
        %v11100 = vsel %vm11099, %v11097, %v11030
        %v11101 = vsel %vm11099, %v11098, %v11032
        %vm11102 = vcmask 719872
        %v11103 = vsel %vm11102, %v11100, %v11038
        %v11104 = vsel %vm11102, %v11101, %v11040
        %vm11105 = vcmask 785408
        %v11106 = vsel %vm11105, %v11103, %v11046
        %v11107 = vsel %vm11105, %v11104, %v11048
        %vm11108 = vcmask 850944
        %v11109 = vsel %vm11108, %v11106, %v11054
        %v11110 = vsel %vm11108, %v11107, %v11056
        %vm11111 = vcmask 916480
        %v11112 = vsel %vm11111, %v11109, %v11062
        %v11113 = vsel %vm11111, %v11110, %v11064
        %vm11114 = vcmask 982016
        %v11115 = vsel %vm11114, %v11112, %v11070
        %v11116 = vsel %vm11114, %v11113, %v11072
        %v11117 = vpack.c.bf16 %v11116, %v11115
        %v11118 = vld [vmem:[#allocation17] sm:$0xf]
        %v11119 = vld [vmem:[#allocation17 + $0x4] sm:$0xf]
        %v11120 = vld [vmem:[#allocation17 + $0x8] sm:$0xf]
        %v11121 = vld [vmem:[#allocation17 + $0xc] sm:$0xf]
        %v11122 = vld [vmem:[#allocation17 + $0x10] sm:$0xf]
        %v11123 = vld [vmem:[#allocation17 + $0x14] sm:$0xf]
        %v11124 = vld [vmem:[#allocation17 + $0x18] sm:$0xf]
        %v11125 = vld [vmem:[#allocation17 + $0x1c] sm:$0xf]
        %v11126 = vld [vmem:[#allocation17 + $0x20] sm:$0xf]
        %v11127 = vld [vmem:[#allocation17 + $0x24] sm:$0xf]
        %v11128 = vld [vmem:[#allocation17 + $0x28] sm:$0xf]
        %v11129 = vld [vmem:[#allocation17 + $0x2c] sm:$0xf]
        %v11130 = vld [vmem:[#allocation17 + $0x30] sm:$0xf]
        %v11131 = vld [vmem:[#allocation17 + $0x34] sm:$0xf]
        %v11132 = vld [vmem:[#allocation17 + $0x38] sm:$0xf]
        %v11133 = vld [vmem:[#allocation17 + $0x3c] sm:$0xf]
        %v11150 = vunpack.c.l.b16 %v11118
        %v11151 = vunpack.c.l.b16 %v11119
        %v11152 = vunpack.c.l.b16 %v11120
        %v11153 = vunpack.c.l.b16 %v11121
        %v11154 = vunpack.c.l.b16 %v11122
        %v11155 = vunpack.c.l.b16 %v11123
        %v11156 = vunpack.c.l.b16 %v11124
        %v11157 = vunpack.c.l.b16 %v11125
        %v11158 = vunpack.c.l.b16 %v11126
        %v11159 = vunpack.c.l.b16 %v11127
        %v11160 = vunpack.c.l.b16 %v11128
        %v11161 = vunpack.c.l.b16 %v11129
        %v11162 = vunpack.c.l.b16 %v11130
        %v11163 = vunpack.c.l.b16 %v11131
        %v11164 = vunpack.c.l.b16 %v11132
        %v11165 = vunpack.c.l.b16 %v11133
        %v11166 = vpack.c.b16 %v11151, %v11150
        %v11167 = vpack.c.b16 %v11153, %v11152
        %v11168 = vpack.c.b16 %v11155, %v11154
        %v11169 = vpack.c.b16 %v11157, %v11156
        %v11170 = vpack.c.b16 %v11159, %v11158
        %v11171 = vpack.c.b16 %v11161, %v11160
        %v11172 = vpack.c.b16 %v11163, %v11162
        %v11173 = vpack.c.b16 %v11165, %v11164
        %11182 = vmatpush.bf16.msra.mxu0 %v11173
        %11183 = vmatpush.bf16.msra.mxu0 %v11172
        %11184 = vmatpush.bf16.msra.mxu0 %v11171
        %11185 = vmatpush.bf16.msra.mxu0 %v11170
        %11186 = vmatpush.bf16.msra.mxu0 %v11169
        %11187 = vmatpush.bf16.msra.mxu0 %v11168
        %11188 = vmatpush.bf16.msra.mxu0 %v11167
        %11189 = vmatpush.bf16.msra.mxu0 %v11166
        %11190 = vmatmul.bf16.gmra.mxu0 %v11117
        %v11191 = vpop.f32.mrf.mxu0
        %v11192 = vadd.f32 0.0, %v11191
        %v11193 = vpop.f32.mrf.mxu0
        %v11194 = vadd.f32 0.0, %v11193
        %11195 = vdwg.mxu0
        %11196 = vst [vmem:[%s611] sm:$0xff] %v11192
        %11197 = vst [vmem:[%s611 + $0x8] sm:$0xff] %v11194
        %s11198 = sand.u32 %s295, 1
        %s11199 = scalar_lea.sflag [#allocation5], %s11198
        %s11200 = sand.u32 %s295, 1
        %s11201 = smul.addr %s11200, 16
        %s11202 = scalar_lea.vmem [#allocation18], %s11201
        // Predicated region
        $region101: #{tpu_custom_call.1} parent=63 // pred_check
          %p11203 = pneg %p305
        $region102: #{tpu_custom_call.1} parent=63 // pred_check_branch
          %11205 = sbr.rel (%p11203) target = $region104
        $region103: #{tpu_custom_call.1} parent=63 // pred_region
          %s11206 = smul.u32 2, %s36
          %11208 = vsyncadd %s11199, 0
          %s11209 = smul.addr %s11206, 8
          %s11210 = scalar_lea.hbm %s11, %s11209
          %s11211 = sshll.u32 %s11202, 4
          %s11212 = int_to_ptr.vmem [resolvable:$true] %s11211
          %s11213 = sshll.u32 %s11210, 4
          %s11214 = int_to_ptr.hbm [resolvable:$true] %s11213
          %11219 = dma.vmem_to_hbm [thread:$0]  %s11212, 256, %s11214, %s11199, 128, 128, 8
        $region104: #{tpu_custom_call.1} parent=63 // pred_fallthru
          _
      $region64: #{tpu_custom_call.1} parent=5 // pred_fallthru
        _
      %p11220 = scmp.le.s32.totalorder 2, %s31
      // Predicated region
      $region105: #{tpu_custom_call.1} parent=5 // pred_check
        %p11221 = pneg %p11220
      $region106: #{tpu_custom_call.1} parent=5 // pred_check_branch
        %11223 = sbr.rel (%p11221) target = $region108
      $region107: #{tpu_custom_call.1} parent=5 // pred_region
        %s11224 = ssub.s32 %s31, 2
        // Predicated region
        $region109: #{tpu_custom_call.1} parent=107 // pred_check
          %p11225 = pneg %p311
        $region110: #{tpu_custom_call.1} parent=107 // pred_check_branch
          %11227 = sbr.rel (%p11225) target = $region112
        $region111: #{tpu_custom_call.1} parent=107 // pred_region
          %s11228 = sand.u32 %s296, 1
          %s11229 = scalar_lea.sflag [#allocation5], %s11228
          %s11230 = sand.u32 %s296, 1
          %s11231 = smul.addr %s11230, 16
          %s11232 = scalar_lea.vmem [#allocation18], %s11231
          %11234 = dma.done %s11229, 256
        $region112: #{tpu_custom_call.1} parent=107 // pred_fallthru
          _
      $region108: #{tpu_custom_call.1} parent=5 // pred_fallthru
        _
    $region6: #{tpu_custom_call.1} parent=1 // loop_footer
      %s35 = sadd.s32 1, %s31
    $region7: #{tpu_custom_call.1} parent=1 // loop_footer_branch
      %30 = sbr.rel target = $region3
    $region8: #{tpu_custom_call.1} parent=1 // loop_exit
      _
    %11235 = vsyncpa [#allocation4], 1
    %s11236 = scalar_lea.sflag [#allocation4], 1
    %11237 = vsyncpa %s11236, 1
    %11238 = vsyncpa [#allocation7], 1
    %s11239 = scalar_lea.sflag [#allocation7], 1
    %11240 = vsyncpa %s11239, 1
    %11241 = vsyncpa [#allocation10], 1
    %s11242 = scalar_lea.sflag [#allocation10], 1
    %11243 = vsyncpa %s11242, 1
    %11244 = vsyncpa [#allocation13], 1
    %11245 = vsyncpa [#allocation16], 1
    %11246 = vsyncpa [#allocation5], 1
    %s11247 = scalar_lea.sflag [#allocation5], 1
    %11248 = vsyncpa %s11247, 1

</llo_original>
